<compile_context>
chip_gen: v5e
topology: v5e:2x2
jax: 0.10.0
libtpu: 0.0.40
codegen_flags: <defaults>
</compile_context>

<pallas_src>
import functools

import jax
import jax.numpy as jnp
import numpy as np
from jax import lax
from jax.experimental import pallas as pl
from jax.experimental.pallas import tpu as pltpu

# Full-precision f32 matmuls everywhere (kernel MXU dots and the pure-JAX
# reference) so the numeric self-check tolerance is meaningful.
jax.config.update("jax_default_matmul_precision", "highest")

# Plain Python floats (NOT jnp scalars) -> jaxpr literals, not captured consts.
NEG_BIG = -1e16
LEAKY_SLOPE = 0.2


def _leaky(x):
    """LeakyReLU(0.2)."""
    return jnp.where(x >= 0.0, x, LEAKY_SLOPE * x)


def _masked_softmax_attn(h, graph):
    """GraphAttentionLayer attention: softmax(masked_fill((h@h^T)*graph == 0, -1e16))."""
    s = lax.dot_general(h, h, (((1,), (1,)), ((), ())),
                        preferred_element_type=jnp.float32)          # (N, N)
    sg = s * graph
    logits = jnp.where(sg == 0.0, NEG_BIG, sg)
    m = jnp.max(logits, axis=-1, keepdims=True)
    e = jnp.exp(logits - m)
    denom = jnp.sum(e, axis=-1, keepdims=True)
    # Reciprocal on the EUP slot instead of a VALU divide.
    return e * pl.reciprocal(denom, approx=True)


def _gat_block(x, contract_dim, graph, w_ref, b_ref, wo_ref, bo_ref, heads):
    """One GAT module: heads -> (virtual) concat -> LeakyReLU -> out_att -> LeakyReLU.

    x is (N, C) with contract_dim=1, or (C, N) with contract_dim=0 (the
    transposed case folds Generator's permute(0,2,1) into the first matmul).
    w_ref:  (heads, C, hidden)   stacked head weights (no bias in W)
    b_ref:  (heads, 1, hidden)   per-head output biases
    wo_ref: (heads, hidden, out) out_att weight split per head slice
    bo_ref: (1, out)             out_att bias
    Returns (N, out).
    """
    # act(concat_h(o_h + b_h)) @ Wo == sum_h act(o_h + b_h) @ Wo[h*hidden:...],
    # so the concatenated hidden never needs to materialize.
    h2 = None
    for hd in range(heads):                                   # static unroll
        h_h = lax.dot_general(x, w_ref[hd],
                              (((contract_dim,), (0,)), ((), ())),
                              preferred_element_type=jnp.float32)  # (N, hidden)
        attn = _masked_softmax_attn(h_h, graph)
        o_h = jnp.dot(attn, h_h, preferred_element_type=jnp.float32) + b_ref[hd]
        part = jnp.dot(_leaky(o_h), wo_ref[hd],
                       preferred_element_type=jnp.float32)         # (N, out)
        h2 = part if h2 is None else h2 + part
    # out_att GraphAttentionLayer on the (virtually) concatenated hidden.
    attn2 = _masked_softmax_attn(h2, graph)
    out = jnp.dot(attn2, h2, preferred_element_type=jnp.float32) + bo_ref[...]
    return _leaky(out)


def _generator_kernel(x_ref, adj_ref, gw1_ref, gw2_ref,
                      g1w_ref, g1b_ref, g1wo_ref, g1bo_ref,
                      g2w_ref, g2b_ref, g2wo_ref, g2bo_ref,
                      ow_ref, ob_ref, out_ref, *, heads):
    """Entire Generator forward for one batch element (all tiles in VMEM)."""
    f32 = jnp.float32
    adj = adj_ref[...]                                    # (N, N) dense adjacency
    xg = x_ref[0]                                         # (T, N) = in_shots[b]

    # ---- GCN (num_hidden_layers=0):  (relu((x @ W1) @ A) @ W2) @ A ----
    h = jnp.dot(xg, gw1_ref[...], preferred_element_type=f32)
    h = jnp.dot(h, adj, preferred_element_type=f32)
    h = jnp.maximum(h, 0.0)
    # TODO(synk): F.dropout(p=0.1) in GCN omitted (inference semantics).
    h = jnp.dot(h, gw2_ref[...], preferred_element_type=f32)
    g = jnp.dot(h, adj, preferred_element_type=f32)       # (T, N)

    # Generator's permute(0, 2, 1): GAT-1 consumes g^T (N, T); the transpose is
    # folded into the first GAT matmul by contracting over dim 0.
    o1 = _gat_block(g, 0, adj, g1w_ref, g1b_ref, g1wo_ref, g1bo_ref, heads)  # (N, N)
    o2 = _gat_block(o1, 1, adj, g2w_ref, g2b_ref, g2wo_ref, g2bo_ref, heads) # (N, N)

    # outLayer (Linear(16, 3)) fused with the trailing permute(0, 2, 1):
    #   y[c, n] = sum_k o2[n, k] * Wl[c, k] + bl[c]
    y = lax.dot_general(ow_ref[...], o2, (((1,), (1,)), ((), ())),
                        preferred_element_type=f32) + ob_ref[...]
    out_ref[0] = y                                        # (3, N)


def generator_forward(in_shots, adj, params, *, heads=3, hidden=64):
    """Fused Generator forward. in_shots: (B, T, N) f32, adj: (N, N) dense f32."""
    B, T, Nn = in_shots.shape
    out_dim = params["out_w"].shape[0]
    g1, g2 = params["gat1"], params["gat2"]

    def full(arr):  # whole-array block, same for every grid step
        shape = arr.shape
        return pl.BlockSpec(shape, lambda b, n=len(shape): (0,) * n)

    kernel = functools.partial(_generator_kernel, heads=heads)
    return pl.pallas_call(
        kernel,
        out_shape=jax.ShapeDtypeStruct((B, out_dim, Nn), jnp.float32),
        grid=(B,),
        in_specs=[
            pl.BlockSpec((1, T, Nn), lambda b: (b, 0, 0)),   # in_shots[b]
            full(adj),                                       # adj (dense)
            full(params["gcn_w1"]), full(params["gcn_w2"]),  # GCN W1, W2  [in, out]
            full(g1["w"]), full(g1["b"]),                    # GAT1 head W / b
            full(g1["wo"]), full(g1["bo"]),                  # GAT1 out_att W / b
            full(g2["w"]), full(g2["b"]),                    # GAT2 head W / b
            full(g2["wo"]), full(g2["bo"]),                  # GAT2 out_att W / b
            full(params["out_w"]), full(params["out_b"]),    # outLayer W [out,in] / b
        ],
        out_specs=pl.BlockSpec((1, out_dim, Nn), lambda b: (b, 0, 0)),
        compiler_params=pltpu.CompilerParams(
            dimension_semantics=("parallel",)),              # B steps -> both v7x TCs
    )(in_shots, adj,
      params["gcn_w1"], params["gcn_w2"],
      g1["w"], g1["b"], g1["wo"], g1["bo"],
      g2["w"], g2["b"], g2["wo"], g2["bo"],
      params["out_w"], params["out_b"])


def init_generator_params(key, node_num, window, hidden, heads, out_dim):
    """Deterministic init. Gaussian weights (std 0.5/sqrt(fan_in)) and small
    biases keep attention logits O(1) so the numeric self-check is meaningful;
    only the init scale differs from nn.init.normal_ — forward math unchanged."""
    ks = jax.random.split(key, 12)

    def w(k, shape, fan_in):
        return (0.5 / float(np.sqrt(fan_in))) * jax.random.normal(
            k, shape, dtype=jnp.float32)

    def b(k, shape):
        return 0.1 * jax.random.normal(k, shape, dtype=jnp.float32)

    return {
        "gcn_w1": w(ks[0], (node_num, node_num), node_num),
        "gcn_w2": w(ks[1], (node_num, node_num), node_num),
        "gat1": {
            "w": w(ks[2], (heads, window, hidden), window),
            "b": b(ks[3], (heads, 1, hidden)),
            "wo": w(ks[4], (heads, hidden, node_num), heads * hidden),
            "bo": b(ks[5], (1, node_num)),
        },
        "gat2": {
            "w": w(ks[6], (heads, node_num, hidden), node_num),
            "b": b(ks[7], (heads, 1, hidden)),
            "wo": w(ks[8], (heads, hidden, node_num), heads * hidden),
            "bo": b(ks[9], (1, node_num)),
        },
        "out_w": w(ks[10], (out_dim, node_num), node_num),   # PyTorch [out, in]
        "out_b": b(ks[11], (out_dim, 1)),
    }


# ------------------- pure-JAX reference (correctness check) -------------------
def _ref_gat(x, graph, p, heads, hidden):
    outs = []
    for hd in range(heads):
        hh = x @ p["w"][hd]                                   # (B, N, hidden)
        s = jnp.einsum("bnd,bmd->bnm", hh, hh)
        sg = s * graph[None]
        a = jax.nn.softmax(jnp.where(sg == 0.0, NEG_BIG, sg), axis=-1)
        outs.append(jnp.einsum("bnm,bmd->bnd", a, hh) + p["b"][hd])
    cat = _leaky(jnp.concatenate(outs, axis=-1))              # (B, N, heads*hidden)
    wo_cat = jnp.concatenate([p["wo"][hd] for hd in range(heads)], axis=0)
    h2 = cat @ wo_cat                                         # (B, N, out)
    s = jnp.einsum("bnd,bmd->bnm", h2, h2)
    sg = s * graph[None]
    a = jax.nn.softmax(jnp.where(sg == 0.0, NEG_BIG, sg), axis=-1)
    return _leaky(jnp.einsum("bnm,bmd->bnd", a, h2) + p["bo"])


def _ref_generator(in_shots, adj, params, *, heads, hidden):
    B, T, Nn = in_shots.shape
    x = in_shots.reshape(B * T, Nn)
    h = jnp.maximum((x @ params["gcn_w1"]) @ adj, 0.0)
    g = (h @ params["gcn_w2"]) @ adj
    gat_in = jnp.transpose(g.reshape(B, T, Nn), (0, 2, 1))    # (B, N, T)
    o1 = _ref_gat(gat_in, adj, params["gat1"], heads, hidden)
    o2 = _ref_gat(o1, adj, params["gat2"], heads, hidden)
    y = jnp.einsum("bnk,ck->bcn", o2, params["out_w"])
    return y + params["out_b"][None, :, :]


if __name__ == "__main__":
    # Shapes implied by the module: nn.Linear(16, 3) forces node_num = 16; the
    # window (= in_features = GAT-1 feature size) is chosen small.
    B, T, NODE = 2, 8, 16
    HEADS, HIDDEN, OUT = 3, 64, 3

    key = jax.random.PRNGKey(0)
    kx, kg, kp = jax.random.split(key, 3)

    in_shots = jax.random.normal(kx, (B, T, NODE), dtype=jnp.float32)
    # Dense 0/1 adjacency with self-loops (stands in for adj.to_dense()).
    adj = (jax.random.uniform(kg, (NODE, NODE)) > 0.5).astype(jnp.float32)
    adj = jnp.maximum(adj, jnp.eye(NODE, dtype=jnp.float32))

    params = init_generator_params(kp, NODE, T, HIDDEN, HEADS, OUT)

    out = jax.block_until_ready(
        generator_forward(in_shots, adj, params, heads=HEADS, hidden=HIDDEN))
    ref = jax.block_until_ready(
        _ref_generator(in_shots, adj, params, heads=HEADS, hidden=HIDDEN))

    # Tolerance leaves headroom for the approximate-reciprocal softmax.
    np.testing.assert_allclose(np.asarray(out), np.asarray(ref),
                               rtol=2e-2, atol=5e-3)
    assert out.shape == (B, OUT, NODE) and out.dtype == jnp.float32
    print("KERNEL_OK")
</pallas_src>

<mosaic_0001>
module attributes {stable_mosaic.version = 11 : i64} {
  func.func @_generator_kernel(%arg0: i32, %arg1: memref<1x8x16xf32, #tpu.memory_space<vmem>>, %arg2: memref<16x16xf32, #tpu.memory_space<vmem>>, %arg3: memref<16x16xf32, #tpu.memory_space<vmem>>, %arg4: memref<16x16xf32, #tpu.memory_space<vmem>>, %arg5: memref<3x8x64xf32, #tpu.memory_space<vmem>>, %arg6: memref<3x1x64xf32, #tpu.memory_space<vmem>>, %arg7: memref<3x64x16xf32, #tpu.memory_space<vmem>>, %arg8: memref<1x16xf32, #tpu.memory_space<vmem>>, %arg9: memref<3x16x64xf32, #tpu.memory_space<vmem>>, %arg10: memref<3x1x64xf32, #tpu.memory_space<vmem>>, %arg11: memref<3x64x16xf32, #tpu.memory_space<vmem>>, %arg12: memref<1x16xf32, #tpu.memory_space<vmem>>, %arg13: memref<3x16xf32, #tpu.memory_space<vmem>>, %arg14: memref<3x1xf32, #tpu.memory_space<vmem>>, %arg15: memref<1x3x16xf32, #tpu.memory_space<vmem>>) attributes {dimension_semantics = [#tpu.dimension_semantics<parallel>], iteration_bounds = array<i64: 2>, scalar_prefetch = 0 : i64, scratch_operands = 0 : i64, tpu.core_type = #tpu.core_type<tc>, window_params = [{transform_indices = @transform_0, window_bounds = array<i64: 1, 8, 16>}, {pipeline_mode = #tpu.pipeline_mode<synchronous>, transform_indices = @transform_1, window_bounds = array<i64: 16, 16>}, {pipeline_mode = #tpu.pipeline_mode<synchronous>, transform_indices = @transform_2, window_bounds = array<i64: 16, 16>}, {pipeline_mode = #tpu.pipeline_mode<synchronous>, transform_indices = @transform_3, window_bounds = array<i64: 16, 16>}, {pipeline_mode = #tpu.pipeline_mode<synchronous>, transform_indices = @transform_4, window_bounds = array<i64: 3, 8, 64>}, {pipeline_mode = #tpu.pipeline_mode<synchronous>, transform_indices = @transform_5, window_bounds = array<i64: 3, 1, 64>}, {pipeline_mode = #tpu.pipeline_mode<synchronous>, transform_indices = @transform_6, window_bounds = array<i64: 3, 64, 16>}, {pipeline_mode = #tpu.pipeline_mode<synchronous>, transform_indices = @transform_7, window_bounds = array<i64: 1, 16>}, {pipeline_mode = #tpu.pipeline_mode<synchronous>, transform_indices = @transform_8, window_bounds = array<i64: 3, 16, 64>}, {pipeline_mode = #tpu.pipeline_mode<synchronous>, transform_indices = @transform_9, window_bounds = array<i64: 3, 1, 64>}, {pipeline_mode = #tpu.pipeline_mode<synchronous>, transform_indices = @transform_10, window_bounds = array<i64: 3, 64, 16>}, {pipeline_mode = #tpu.pipeline_mode<synchronous>, transform_indices = @transform_11, window_bounds = array<i64: 1, 16>}, {pipeline_mode = #tpu.pipeline_mode<synchronous>, transform_indices = @transform_12, window_bounds = array<i64: 3, 16>}, {pipeline_mode = #tpu.pipeline_mode<synchronous>, transform_indices = @transform_13, window_bounds = array<i64: 3, 1>}, {transform_indices = @transform_14, window_bounds = array<i64: 1, 3, 16>}]} {
    %c0 = arith.constant 0 : index
    %c0_0 = arith.constant 0 : index
    %0 = vector.load %arg2[%c0, %c0_0] : memref<16x16xf32, #tpu.memory_space<vmem>>, vector<16x16xf32>
    %c0_1 = arith.constant 0 : index
    %c0_2 = arith.constant 0 : index
    %c0_3 = arith.constant 0 : index
    %1 = vector.load %arg1[%c0_1, %c0_2, %c0_3] : memref<1x8x16xf32, #tpu.memory_space<vmem>>, vector<1x8x16xf32>
    %2 = vector.shape_cast %1 : vector<1x8x16xf32> to vector<8x16xf32>
    %c0_4 = arith.constant 0 : index
    %c0_5 = arith.constant 0 : index
    %3 = vector.load %arg3[%c0_4, %c0_5] : memref<16x16xf32, #tpu.memory_space<vmem>>, vector<16x16xf32>
    %cst = arith.constant dense<0.000000e+00> : vector<8x16xf32>
    %4 = tpu.matmul %2, %3, %cst {dimension_numbers = #tpu.dot_dimension_numbers<[1], [0], [0], [1], [0, 0, 1, 1], [], []>, precision = #tpu.contract_precision<fp32>} : vector<8x16xf32>, vector<16x16xf32>, vector<8x16xf32> -> vector<8x16xf32>
    %cst_6 = arith.constant dense<0.000000e+00> : vector<8x16xf32>
    %5 = tpu.matmul %4, %0, %cst_6 {dimension_numbers = #tpu.dot_dimension_numbers<[1], [0], [0], [1], [0, 0, 1, 1], [], []>, precision = #tpu.contract_precision<fp32>} : vector<8x16xf32>, vector<16x16xf32>, vector<8x16xf32> -> vector<8x16xf32>
    %cst_7 = arith.constant 0.000000e+00 : f32
    %6 = vector.broadcast %cst_7 : f32 to vector<8x16xf32>
    %7 = arith.maximumf %5, %6 : vector<8x16xf32>
    %c0_8 = arith.constant 0 : index
    %c0_9 = arith.constant 0 : index
    %8 = vector.load %arg4[%c0_8, %c0_9] : memref<16x16xf32, #tpu.memory_space<vmem>>, vector<16x16xf32>
    %cst_10 = arith.constant dense<0.000000e+00> : vector<8x16xf32>
    %9 = tpu.matmul %7, %8, %cst_10 {dimension_numbers = #tpu.dot_dimension_numbers<[1], [0], [0], [1], [0, 0, 1, 1], [], []>, precision = #tpu.contract_precision<fp32>} : vector<8x16xf32>, vector<16x16xf32>, vector<8x16xf32> -> vector<8x16xf32>
    %cst_11 = arith.constant dense<0.000000e+00> : vector<8x16xf32>
    %10 = tpu.matmul %9, %0, %cst_11 {dimension_numbers = #tpu.dot_dimension_numbers<[1], [0], [0], [1], [0, 0, 1, 1], [], []>, precision = #tpu.contract_precision<fp32>} : vector<8x16xf32>, vector<16x16xf32>, vector<8x16xf32> -> vector<8x16xf32>
    %c0_12 = arith.constant 0 : index
    %c0_13 = arith.constant 0 : index
    %c0_14 = arith.constant 0 : index
    %11 = vector.load %arg5[%c0_12, %c0_13, %c0_14] : memref<3x8x64xf32, #tpu.memory_space<vmem>>, vector<1x8x64xf32>
    %12 = vector.shape_cast %11 : vector<1x8x64xf32> to vector<8x64xf32>
    %cst_15 = arith.constant dense<0.000000e+00> : vector<16x64xf32>
    %13 = tpu.matmul %10, %12, %cst_15 {dimension_numbers = #tpu.dot_dimension_numbers<[0], [0], [1], [1], [0, 1, 1, 1], [], []>, precision = #tpu.contract_precision<fp32>} : vector<8x16xf32>, vector<8x64xf32>, vector<16x64xf32> -> vector<16x64xf32>
    %cst_16 = arith.constant dense<0.000000e+00> : vector<16x16xf32>
    %14 = tpu.matmul %13, %13, %cst_16 {dimension_numbers = #tpu.dot_dimension_numbers<[1], [1], [0], [0], [0, 0, 1, 0], [], []>, precision = #tpu.contract_precision<fp32>} : vector<16x64xf32>, vector<16x64xf32>, vector<16x16xf32> -> vector<16x16xf32>
    %15 = arith.mulf %14, %0 : vector<16x16xf32>
    %cst_17 = arith.constant 0.000000e+00 : f32
    %16 = vector.broadcast %cst_17 : f32 to vector<16x16xf32>
    %17 = arith.cmpf oeq, %15, %16 : vector<16x16xf32>
    %cst_18 = arith.constant -1.000000e+16 : f32
    %18 = vector.broadcast %cst_18 : f32 to vector<16x16xf32>
    %19 = arith.select %17, %18, %15 : vector<16x16xi1>, vector<16x16xf32>
    %cst_19 = arith.constant dense<0xFF800000> : vector<16xf32>
    %20 = vector.multi_reduction <maximumf>, %19, %cst_19 [1] : vector<16x16xf32> to vector<16xf32>
    %21 = vector.shape_cast %20 : vector<16xf32> to vector<16x1xf32>
    %22 = vector.broadcast %21 : vector<16x1xf32> to vector<16x16xf32>
    %23 = arith.subf %19, %22 : vector<16x16xf32>
    %24 = math.exp %23 : vector<16x16xf32>
    %cst_20 = arith.constant dense<0.000000e+00> : vector<16xf32>
    %25 = vector.multi_reduction <add>, %24, %cst_20 [1] : vector<16x16xf32> to vector<16xf32>
    %26 = vector.shape_cast %25 : vector<16xf32> to vector<16x1xf32>
    %27 = tpu.reciprocal %26 {approx = true} : vector<16x1xf32> -> vector<16x1xf32>
    %28 = vector.broadcast %27 : vector<16x1xf32> to vector<16x16xf32>
    %29 = arith.mulf %24, %28 : vector<16x16xf32>
    %cst_21 = arith.constant dense<0.000000e+00> : vector<16x64xf32>
    %30 = tpu.matmul %29, %13, %cst_21 {dimension_numbers = #tpu.dot_dimension_numbers<[1], [0], [0], [1], [0, 0, 1, 1], [], []>, precision = #tpu.contract_precision<fp32>} : vector<16x16xf32>, vector<16x64xf32>, vector<16x64xf32> -> vector<16x64xf32>
    %c0_22 = arith.constant 0 : index
    %c0_23 = arith.constant 0 : index
    %c0_24 = arith.constant 0 : index
    %31 = vector.load %arg6[%c0_22, %c0_23, %c0_24] : memref<3x1x64xf32, #tpu.memory_space<vmem>>, vector<1x1x64xf32>
    %32 = vector.shape_cast %31 : vector<1x1x64xf32> to vector<1x64xf32>
    %33 = vector.broadcast %32 : vector<1x64xf32> to vector<16x64xf32>
    %34 = arith.addf %30, %33 : vector<16x64xf32>
    %cst_25 = arith.constant 0.000000e+00 : f32
    %35 = vector.broadcast %cst_25 : f32 to vector<16x64xf32>
    %36 = arith.cmpf oge, %34, %35 : vector<16x64xf32>
    %cst_26 = arith.constant 2.000000e-01 : f32
    %37 = vector.broadcast %cst_26 : f32 to vector<16x64xf32>
    %38 = arith.mulf %37, %34 : vector<16x64xf32>
    %39 = arith.select %36, %34, %38 : vector<16x64xi1>, vector<16x64xf32>
    %c0_27 = arith.constant 0 : index
    %c0_28 = arith.constant 0 : index
    %c0_29 = arith.constant 0 : index
    %40 = vector.load %arg7[%c0_27, %c0_28, %c0_29] : memref<3x64x16xf32, #tpu.memory_space<vmem>>, vector<1x64x16xf32>
    %41 = vector.shape_cast %40 : vector<1x64x16xf32> to vector<64x16xf32>
    %cst_30 = arith.constant dense<0.000000e+00> : vector<16x16xf32>
    %42 = tpu.matmul %39, %41, %cst_30 {dimension_numbers = #tpu.dot_dimension_numbers<[1], [0], [0], [1], [0, 0, 1, 1], [], []>, precision = #tpu.contract_precision<fp32>} : vector<16x64xf32>, vector<64x16xf32>, vector<16x16xf32> -> vector<16x16xf32>
    %c1 = arith.constant 1 : index
    %c0_31 = arith.constant 0 : index
    %c0_32 = arith.constant 0 : index
    %43 = vector.load %arg5[%c1, %c0_31, %c0_32] : memref<3x8x64xf32, #tpu.memory_space<vmem>>, vector<1x8x64xf32>
    %44 = vector.shape_cast %43 : vector<1x8x64xf32> to vector<8x64xf32>
    %cst_33 = arith.constant dense<0.000000e+00> : vector<16x64xf32>
    %45 = tpu.matmul %10, %44, %cst_33 {dimension_numbers = #tpu.dot_dimension_numbers<[0], [0], [1], [1], [0, 1, 1, 1], [], []>, precision = #tpu.contract_precision<fp32>} : vector<8x16xf32>, vector<8x64xf32>, vector<16x64xf32> -> vector<16x64xf32>
    %cst_34 = arith.constant dense<0.000000e+00> : vector<16x16xf32>
    %46 = tpu.matmul %45, %45, %cst_34 {dimension_numbers = #tpu.dot_dimension_numbers<[1], [1], [0], [0], [0, 0, 1, 0], [], []>, precision = #tpu.contract_precision<fp32>} : vector<16x64xf32>, vector<16x64xf32>, vector<16x16xf32> -> vector<16x16xf32>
    %47 = arith.mulf %46, %0 : vector<16x16xf32>
    %cst_35 = arith.constant 0.000000e+00 : f32
    %48 = vector.broadcast %cst_35 : f32 to vector<16x16xf32>
    %49 = arith.cmpf oeq, %47, %48 : vector<16x16xf32>
    %cst_36 = arith.constant -1.000000e+16 : f32
    %50 = vector.broadcast %cst_36 : f32 to vector<16x16xf32>
    %51 = arith.select %49, %50, %47 : vector<16x16xi1>, vector<16x16xf32>
    %cst_37 = arith.constant dense<0xFF800000> : vector<16xf32>
    %52 = vector.multi_reduction <maximumf>, %51, %cst_37 [1] : vector<16x16xf32> to vector<16xf32>
    %53 = vector.shape_cast %52 : vector<16xf32> to vector<16x1xf32>
    %54 = vector.broadcast %53 : vector<16x1xf32> to vector<16x16xf32>
    %55 = arith.subf %51, %54 : vector<16x16xf32>
    %56 = math.exp %55 : vector<16x16xf32>
    %cst_38 = arith.constant dense<0.000000e+00> : vector<16xf32>
    %57 = vector.multi_reduction <add>, %56, %cst_38 [1] : vector<16x16xf32> to vector<16xf32>
    %58 = vector.shape_cast %57 : vector<16xf32> to vector<16x1xf32>
    %59 = tpu.reciprocal %58 {approx = true} : vector<16x1xf32> -> vector<16x1xf32>
    %60 = vector.broadcast %59 : vector<16x1xf32> to vector<16x16xf32>
    %61 = arith.mulf %56, %60 : vector<16x16xf32>
    %cst_39 = arith.constant dense<0.000000e+00> : vector<16x64xf32>
    %62 = tpu.matmul %61, %45, %cst_39 {dimension_numbers = #tpu.dot_dimension_numbers<[1], [0], [0], [1], [0, 0, 1, 1], [], []>, precision = #tpu.contract_precision<fp32>} : vector<16x16xf32>, vector<16x64xf32>, vector<16x64xf32> -> vector<16x64xf32>
    %c1_40 = arith.constant 1 : index
    %c0_41 = arith.constant 0 : index
    %c0_42 = arith.constant 0 : index
    %63 = vector.load %arg6[%c1_40, %c0_41, %c0_42] : memref<3x1x64xf32, #tpu.memory_space<vmem>>, vector<1x1x64xf32>
    %64 = vector.shape_cast %63 : vector<1x1x64xf32> to vector<1x64xf32>
    %65 = vector.broadcast %64 : vector<1x64xf32> to vector<16x64xf32>
    %66 = arith.addf %62, %65 : vector<16x64xf32>
    %cst_43 = arith.constant 0.000000e+00 : f32
    %67 = vector.broadcast %cst_43 : f32 to vector<16x64xf32>
    %68 = arith.cmpf oge, %66, %67 : vector<16x64xf32>
    %cst_44 = arith.constant 2.000000e-01 : f32
    %69 = vector.broadcast %cst_44 : f32 to vector<16x64xf32>
    %70 = arith.mulf %69, %66 : vector<16x64xf32>
    %71 = arith.select %68, %66, %70 : vector<16x64xi1>, vector<16x64xf32>
    %c1_45 = arith.constant 1 : index
    %c0_46 = arith.constant 0 : index
    %c0_47 = arith.constant 0 : index
    %72 = vector.load %arg7[%c1_45, %c0_46, %c0_47] : memref<3x64x16xf32, #tpu.memory_space<vmem>>, vector<1x64x16xf32>
    %73 = vector.shape_cast %72 : vector<1x64x16xf32> to vector<64x16xf32>
    %cst_48 = arith.constant dense<0.000000e+00> : vector<16x16xf32>
    %74 = tpu.matmul %71, %73, %cst_48 {dimension_numbers = #tpu.dot_dimension_numbers<[1], [0], [0], [1], [0, 0, 1, 1], [], []>, precision = #tpu.contract_precision<fp32>} : vector<16x64xf32>, vector<64x16xf32>, vector<16x16xf32> -> vector<16x16xf32>
    %75 = arith.addf %42, %74 : vector<16x16xf32>
    %c2 = arith.constant 2 : index
    %c0_49 = arith.constant 0 : index
    %c0_50 = arith.constant 0 : index
    %76 = vector.load %arg5[%c2, %c0_49, %c0_50] : memref<3x8x64xf32, #tpu.memory_space<vmem>>, vector<1x8x64xf32>
    %77 = vector.shape_cast %76 : vector<1x8x64xf32> to vector<8x64xf32>
    %cst_51 = arith.constant dense<0.000000e+00> : vector<16x64xf32>
    %78 = tpu.matmul %10, %77, %cst_51 {dimension_numbers = #tpu.dot_dimension_numbers<[0], [0], [1], [1], [0, 1, 1, 1], [], []>, precision = #tpu.contract_precision<fp32>} : vector<8x16xf32>, vector<8x64xf32>, vector<16x64xf32> -> vector<16x64xf32>
    %cst_52 = arith.constant dense<0.000000e+00> : vector<16x16xf32>
    %79 = tpu.matmul %78, %78, %cst_52 {dimension_numbers = #tpu.dot_dimension_numbers<[1], [1], [0], [0], [0, 0, 1, 0], [], []>, precision = #tpu.contract_precision<fp32>} : vector<16x64xf32>, vector<16x64xf32>, vector<16x16xf32> -> vector<16x16xf32>
    %80 = arith.mulf %79, %0 : vector<16x16xf32>
    %cst_53 = arith.constant 0.000000e+00 : f32
    %81 = vector.broadcast %cst_53 : f32 to vector<16x16xf32>
    %82 = arith.cmpf oeq, %80, %81 : vector<16x16xf32>
    %cst_54 = arith.constant -1.000000e+16 : f32
    %83 = vector.broadcast %cst_54 : f32 to vector<16x16xf32>
    %84 = arith.select %82, %83, %80 : vector<16x16xi1>, vector<16x16xf32>
    %cst_55 = arith.constant dense<0xFF800000> : vector<16xf32>
    %85 = vector.multi_reduction <maximumf>, %84, %cst_55 [1] : vector<16x16xf32> to vector<16xf32>
    %86 = vector.shape_cast %85 : vector<16xf32> to vector<16x1xf32>
    %87 = vector.broadcast %86 : vector<16x1xf32> to vector<16x16xf32>
    %88 = arith.subf %84, %87 : vector<16x16xf32>
    %89 = math.exp %88 : vector<16x16xf32>
    %cst_56 = arith.constant dense<0.000000e+00> : vector<16xf32>
    %90 = vector.multi_reduction <add>, %89, %cst_56 [1] : vector<16x16xf32> to vector<16xf32>
    %91 = vector.shape_cast %90 : vector<16xf32> to vector<16x1xf32>
    %92 = tpu.reciprocal %91 {approx = true} : vector<16x1xf32> -> vector<16x1xf32>
    %93 = vector.broadcast %92 : vector<16x1xf32> to vector<16x16xf32>
    %94 = arith.mulf %89, %93 : vector<16x16xf32>
    %cst_57 = arith.constant dense<0.000000e+00> : vector<16x64xf32>
    %95 = tpu.matmul %94, %78, %cst_57 {dimension_numbers = #tpu.dot_dimension_numbers<[1], [0], [0], [1], [0, 0, 1, 1], [], []>, precision = #tpu.contract_precision<fp32>} : vector<16x16xf32>, vector<16x64xf32>, vector<16x64xf32> -> vector<16x64xf32>
    %c2_58 = arith.constant 2 : index
    %c0_59 = arith.constant 0 : index
    %c0_60 = arith.constant 0 : index
    %96 = vector.load %arg6[%c2_58, %c0_59, %c0_60] : memref<3x1x64xf32, #tpu.memory_space<vmem>>, vector<1x1x64xf32>
    %97 = vector.shape_cast %96 : vector<1x1x64xf32> to vector<1x64xf32>
    %98 = vector.broadcast %97 : vector<1x64xf32> to vector<16x64xf32>
    %99 = arith.addf %95, %98 : vector<16x64xf32>
    %cst_61 = arith.constant 0.000000e+00 : f32
    %100 = vector.broadcast %cst_61 : f32 to vector<16x64xf32>
    %101 = arith.cmpf oge, %99, %100 : vector<16x64xf32>
    %cst_62 = arith.constant 2.000000e-01 : f32
    %102 = vector.broadcast %cst_62 : f32 to vector<16x64xf32>
    %103 = arith.mulf %102, %99 : vector<16x64xf32>
    %104 = arith.select %101, %99, %103 : vector<16x64xi1>, vector<16x64xf32>
    %c2_63 = arith.constant 2 : index
    %c0_64 = arith.constant 0 : index
    %c0_65 = arith.constant 0 : index
    %105 = vector.load %arg7[%c2_63, %c0_64, %c0_65] : memref<3x64x16xf32, #tpu.memory_space<vmem>>, vector<1x64x16xf32>
    %106 = vector.shape_cast %105 : vector<1x64x16xf32> to vector<64x16xf32>
    %cst_66 = arith.constant dense<0.000000e+00> : vector<16x16xf32>
    %107 = tpu.matmul %104, %106, %cst_66 {dimension_numbers = #tpu.dot_dimension_numbers<[1], [0], [0], [1], [0, 0, 1, 1], [], []>, precision = #tpu.contract_precision<fp32>} : vector<16x64xf32>, vector<64x16xf32>, vector<16x16xf32> -> vector<16x16xf32>
    %108 = arith.addf %75, %107 : vector<16x16xf32>
    %cst_67 = arith.constant dense<0.000000e+00> : vector<16x16xf32>
    %109 = tpu.matmul %108, %108, %cst_67 {dimension_numbers = #tpu.dot_dimension_numbers<[1], [1], [0], [0], [0, 0, 1, 0], [], []>, precision = #tpu.contract_precision<fp32>} : vector<16x16xf32>, vector<16x16xf32>, vector<16x16xf32> -> vector<16x16xf32>
    %110 = arith.mulf %109, %0 : vector<16x16xf32>
    %cst_68 = arith.constant 0.000000e+00 : f32
    %111 = vector.broadcast %cst_68 : f32 to vector<16x16xf32>
    %112 = arith.cmpf oeq, %110, %111 : vector<16x16xf32>
    %cst_69 = arith.constant -1.000000e+16 : f32
    %113 = vector.broadcast %cst_69 : f32 to vector<16x16xf32>
    %114 = arith.select %112, %113, %110 : vector<16x16xi1>, vector<16x16xf32>
    %cst_70 = arith.constant dense<0xFF800000> : vector<16xf32>
    %115 = vector.multi_reduction <maximumf>, %114, %cst_70 [1] : vector<16x16xf32> to vector<16xf32>
    %116 = vector.shape_cast %115 : vector<16xf32> to vector<16x1xf32>
    %117 = vector.broadcast %116 : vector<16x1xf32> to vector<16x16xf32>
    %118 = arith.subf %114, %117 : vector<16x16xf32>
    %119 = math.exp %118 : vector<16x16xf32>
    %cst_71 = arith.constant dense<0.000000e+00> : vector<16xf32>
    %120 = vector.multi_reduction <add>, %119, %cst_71 [1] : vector<16x16xf32> to vector<16xf32>
    %121 = vector.shape_cast %120 : vector<16xf32> to vector<16x1xf32>
    %122 = tpu.reciprocal %121 {approx = true} : vector<16x1xf32> -> vector<16x1xf32>
    %123 = vector.broadcast %122 : vector<16x1xf32> to vector<16x16xf32>
    %124 = arith.mulf %119, %123 : vector<16x16xf32>
    %cst_72 = arith.constant dense<0.000000e+00> : vector<16x16xf32>
    %125 = tpu.matmul %124, %108, %cst_72 {dimension_numbers = #tpu.dot_dimension_numbers<[1], [0], [0], [1], [0, 0, 1, 1], [], []>, precision = #tpu.contract_precision<fp32>} : vector<16x16xf32>, vector<16x16xf32>, vector<16x16xf32> -> vector<16x16xf32>
    %c0_73 = arith.constant 0 : index
    %c0_74 = arith.constant 0 : index
    %126 = vector.load %arg8[%c0_73, %c0_74] : memref<1x16xf32, #tpu.memory_space<vmem>>, vector<1x16xf32>
    %127 = vector.broadcast %126 : vector<1x16xf32> to vector<16x16xf32>
    %128 = arith.addf %125, %127 : vector<16x16xf32>
    %cst_75 = arith.constant 0.000000e+00 : f32
    %129 = vector.broadcast %cst_75 : f32 to vector<16x16xf32>
    %130 = arith.cmpf oge, %128, %129 : vector<16x16xf32>
    %cst_76 = arith.constant 2.000000e-01 : f32
    %131 = vector.broadcast %cst_76 : f32 to vector<16x16xf32>
    %132 = arith.mulf %131, %128 : vector<16x16xf32>
    %133 = arith.select %130, %128, %132 : vector<16x16xi1>, vector<16x16xf32>
    %c0_77 = arith.constant 0 : index
    %c0_78 = arith.constant 0 : index
    %c0_79 = arith.constant 0 : index
    %134 = vector.load %arg9[%c0_77, %c0_78, %c0_79] : memref<3x16x64xf32, #tpu.memory_space<vmem>>, vector<1x16x64xf32>
    %135 = vector.shape_cast %134 : vector<1x16x64xf32> to vector<16x64xf32>
    %cst_80 = arith.constant dense<0.000000e+00> : vector<16x64xf32>
    %136 = tpu.matmul %133, %135, %cst_80 {dimension_numbers = #tpu.dot_dimension_numbers<[1], [0], [0], [1], [0, 0, 1, 1], [], []>, precision = #tpu.contract_precision<fp32>} : vector<16x16xf32>, vector<16x64xf32>, vector<16x64xf32> -> vector<16x64xf32>
    %cst_81 = arith.constant dense<0.000000e+00> : vector<16x16xf32>
    %137 = tpu.matmul %136, %136, %cst_81 {dimension_numbers = #tpu.dot_dimension_numbers<[1], [1], [0], [0], [0, 0, 1, 0], [], []>, precision = #tpu.contract_precision<fp32>} : vector<16x64xf32>, vector<16x64xf32>, vector<16x16xf32> -> vector<16x16xf32>
    %138 = arith.mulf %137, %0 : vector<16x16xf32>
    %cst_82 = arith.constant 0.000000e+00 : f32
    %139 = vector.broadcast %cst_82 : f32 to vector<16x16xf32>
    %140 = arith.cmpf oeq, %138, %139 : vector<16x16xf32>
    %cst_83 = arith.constant -1.000000e+16 : f32
    %141 = vector.broadcast %cst_83 : f32 to vector<16x16xf32>
    %142 = arith.select %140, %141, %138 : vector<16x16xi1>, vector<16x16xf32>
    %cst_84 = arith.constant dense<0xFF800000> : vector<16xf32>
    %143 = vector.multi_reduction <maximumf>, %142, %cst_84 [1] : vector<16x16xf32> to vector<16xf32>
    %144 = vector.shape_cast %143 : vector<16xf32> to vector<16x1xf32>
    %145 = vector.broadcast %144 : vector<16x1xf32> to vector<16x16xf32>
    %146 = arith.subf %142, %145 : vector<16x16xf32>
    %147 = math.exp %146 : vector<16x16xf32>
    %cst_85 = arith.constant dense<0.000000e+00> : vector<16xf32>
    %148 = vector.multi_reduction <add>, %147, %cst_85 [1] : vector<16x16xf32> to vector<16xf32>
    %149 = vector.shape_cast %148 : vector<16xf32> to vector<16x1xf32>
    %150 = tpu.reciprocal %149 {approx = true} : vector<16x1xf32> -> vector<16x1xf32>
    %151 = vector.broadcast %150 : vector<16x1xf32> to vector<16x16xf32>
    %152 = arith.mulf %147, %151 : vector<16x16xf32>
    %cst_86 = arith.constant dense<0.000000e+00> : vector<16x64xf32>
    %153 = tpu.matmul %152, %136, %cst_86 {dimension_numbers = #tpu.dot_dimension_numbers<[1], [0], [0], [1], [0, 0, 1, 1], [], []>, precision = #tpu.contract_precision<fp32>} : vector<16x16xf32>, vector<16x64xf32>, vector<16x64xf32> -> vector<16x64xf32>
    %c0_87 = arith.constant 0 : index
    %c0_88 = arith.constant 0 : index
    %c0_89 = arith.constant 0 : index
    %154 = vector.load %arg10[%c0_87, %c0_88, %c0_89] : memref<3x1x64xf32, #tpu.memory_space<vmem>>, vector<1x1x64xf32>
    %155 = vector.shape_cast %154 : vector<1x1x64xf32> to vector<1x64xf32>
    %156 = vector.broadcast %155 : vector<1x64xf32> to vector<16x64xf32>
    %157 = arith.addf %153, %156 : vector<16x64xf32>
    %cst_90 = arith.constant 0.000000e+00 : f32
    %158 = vector.broadcast %cst_90 : f32 to vector<16x64xf32>
    %159 = arith.cmpf oge, %157, %158 : vector<16x64xf32>
    %cst_91 = arith.constant 2.000000e-01 : f32
    %160 = vector.broadcast %cst_91 : f32 to vector<16x64xf32>
    %161 = arith.mulf %160, %157 : vector<16x64xf32>
    %162 = arith.select %159, %157, %161 : vector<16x64xi1>, vector<16x64xf32>
    %c0_92 = arith.constant 0 : index
    %c0_93 = arith.constant 0 : index
    %c0_94 = arith.constant 0 : index
    %163 = vector.load %arg11[%c0_92, %c0_93, %c0_94] : memref<3x64x16xf32, #tpu.memory_space<vmem>>, vector<1x64x16xf32>
    %164 = vector.shape_cast %163 : vector<1x64x16xf32> to vector<64x16xf32>
    %cst_95 = arith.constant dense<0.000000e+00> : vector<16x16xf32>
    %165 = tpu.matmul %162, %164, %cst_95 {dimension_numbers = #tpu.dot_dimension_numbers<[1], [0], [0], [1], [0, 0, 1, 1], [], []>, precision = #tpu.contract_precision<fp32>} : vector<16x64xf32>, vector<64x16xf32>, vector<16x16xf32> -> vector<16x16xf32>
    %c1_96 = arith.constant 1 : index
    %c0_97 = arith.constant 0 : index
    %c0_98 = arith.constant 0 : index
    %166 = vector.load %arg9[%c1_96, %c0_97, %c0_98] : memref<3x16x64xf32, #tpu.memory_space<vmem>>, vector<1x16x64xf32>
    %167 = vector.shape_cast %166 : vector<1x16x64xf32> to vector<16x64xf32>
    %cst_99 = arith.constant dense<0.000000e+00> : vector<16x64xf32>
    %168 = tpu.matmul %133, %167, %cst_99 {dimension_numbers = #tpu.dot_dimension_numbers<[1], [0], [0], [1], [0, 0, 1, 1], [], []>, precision = #tpu.contract_precision<fp32>} : vector<16x16xf32>, vector<16x64xf32>, vector<16x64xf32> -> vector<16x64xf32>
    %cst_100 = arith.constant dense<0.000000e+00> : vector<16x16xf32>
    %169 = tpu.matmul %168, %168, %cst_100 {dimension_numbers = #tpu.dot_dimension_numbers<[1], [1], [0], [0], [0, 0, 1, 0], [], []>, precision = #tpu.contract_precision<fp32>} : vector<16x64xf32>, vector<16x64xf32>, vector<16x16xf32> -> vector<16x16xf32>
    %170 = arith.mulf %169, %0 : vector<16x16xf32>
    %cst_101 = arith.constant 0.000000e+00 : f32
    %171 = vector.broadcast %cst_101 : f32 to vector<16x16xf32>
    %172 = arith.cmpf oeq, %170, %171 : vector<16x16xf32>
    %cst_102 = arith.constant -1.000000e+16 : f32
    %173 = vector.broadcast %cst_102 : f32 to vector<16x16xf32>
    %174 = arith.select %172, %173, %170 : vector<16x16xi1>, vector<16x16xf32>
    %cst_103 = arith.constant dense<0xFF800000> : vector<16xf32>
    %175 = vector.multi_reduction <maximumf>, %174, %cst_103 [1] : vector<16x16xf32> to vector<16xf32>
    %176 = vector.shape_cast %175 : vector<16xf32> to vector<16x1xf32>
    %177 = vector.broadcast %176 : vector<16x1xf32> to vector<16x16xf32>
    %178 = arith.subf %174, %177 : vector<16x16xf32>
    %179 = math.exp %178 : vector<16x16xf32>
    %cst_104 = arith.constant dense<0.000000e+00> : vector<16xf32>
    %180 = vector.multi_reduction <add>, %179, %cst_104 [1] : vector<16x16xf32> to vector<16xf32>
    %181 = vector.shape_cast %180 : vector<16xf32> to vector<16x1xf32>
    %182 = tpu.reciprocal %181 {approx = true} : vector<16x1xf32> -> vector<16x1xf32>
    %183 = vector.broadcast %182 : vector<16x1xf32> to vector<16x16xf32>
    %184 = arith.mulf %179, %183 : vector<16x16xf32>
    %cst_105 = arith.constant dense<0.000000e+00> : vector<16x64xf32>
    %185 = tpu.matmul %184, %168, %cst_105 {dimension_numbers = #tpu.dot_dimension_numbers<[1], [0], [0], [1], [0, 0, 1, 1], [], []>, precision = #tpu.contract_precision<fp32>} : vector<16x16xf32>, vector<16x64xf32>, vector<16x64xf32> -> vector<16x64xf32>
    %c1_106 = arith.constant 1 : index
    %c0_107 = arith.constant 0 : index
    %c0_108 = arith.constant 0 : index
    %186 = vector.load %arg10[%c1_106, %c0_107, %c0_108] : memref<3x1x64xf32, #tpu.memory_space<vmem>>, vector<1x1x64xf32>
    %187 = vector.shape_cast %186 : vector<1x1x64xf32> to vector<1x64xf32>
    %188 = vector.broadcast %187 : vector<1x64xf32> to vector<16x64xf32>
    %189 = arith.addf %185, %188 : vector<16x64xf32>
    %cst_109 = arith.constant 0.000000e+00 : f32
    %190 = vector.broadcast %cst_109 : f32 to vector<16x64xf32>
    %191 = arith.cmpf oge, %189, %190 : vector<16x64xf32>
    %cst_110 = arith.constant 2.000000e-01 : f32
    %192 = vector.broadcast %cst_110 : f32 to vector<16x64xf32>
    %193 = arith.mulf %192, %189 : vector<16x64xf32>
    %194 = arith.select %191, %189, %193 : vector<16x64xi1>, vector<16x64xf32>
    %c1_111 = arith.constant 1 : index
    %c0_112 = arith.constant 0 : index
    %c0_113 = arith.constant 0 : index
    %195 = vector.load %arg11[%c1_111, %c0_112, %c0_113] : memref<3x64x16xf32, #tpu.memory_space<vmem>>, vector<1x64x16xf32>
    %196 = vector.shape_cast %195 : vector<1x64x16xf32> to vector<64x16xf32>
    %cst_114 = arith.constant dense<0.000000e+00> : vector<16x16xf32>
    %197 = tpu.matmul %194, %196, %cst_114 {dimension_numbers = #tpu.dot_dimension_numbers<[1], [0], [0], [1], [0, 0, 1, 1], [], []>, precision = #tpu.contract_precision<fp32>} : vector<16x64xf32>, vector<64x16xf32>, vector<16x16xf32> -> vector<16x16xf32>
    %198 = arith.addf %165, %197 : vector<16x16xf32>
    %c2_115 = arith.constant 2 : index
    %c0_116 = arith.constant 0 : index
    %c0_117 = arith.constant 0 : index
    %199 = vector.load %arg9[%c2_115, %c0_116, %c0_117] : memref<3x16x64xf32, #tpu.memory_space<vmem>>, vector<1x16x64xf32>
    %200 = vector.shape_cast %199 : vector<1x16x64xf32> to vector<16x64xf32>
    %cst_118 = arith.constant dense<0.000000e+00> : vector<16x64xf32>
    %201 = tpu.matmul %133, %200, %cst_118 {dimension_numbers = #tpu.dot_dimension_numbers<[1], [0], [0], [1], [0, 0, 1, 1], [], []>, precision = #tpu.contract_precision<fp32>} : vector<16x16xf32>, vector<16x64xf32>, vector<16x64xf32> -> vector<16x64xf32>
    %cst_119 = arith.constant dense<0.000000e+00> : vector<16x16xf32>
    %202 = tpu.matmul %201, %201, %cst_119 {dimension_numbers = #tpu.dot_dimension_numbers<[1], [1], [0], [0], [0, 0, 1, 0], [], []>, precision = #tpu.contract_precision<fp32>} : vector<16x64xf32>, vector<16x64xf32>, vector<16x16xf32> -> vector<16x16xf32>
    %203 = arith.mulf %202, %0 : vector<16x16xf32>
    %cst_120 = arith.constant 0.000000e+00 : f32
    %204 = vector.broadcast %cst_120 : f32 to vector<16x16xf32>
    %205 = arith.cmpf oeq, %203, %204 : vector<16x16xf32>
    %cst_121 = arith.constant -1.000000e+16 : f32
    %206 = vector.broadcast %cst_121 : f32 to vector<16x16xf32>
    %207 = arith.select %205, %206, %203 : vector<16x16xi1>, vector<16x16xf32>
    %cst_122 = arith.constant dense<0xFF800000> : vector<16xf32>
    %208 = vector.multi_reduction <maximumf>, %207, %cst_122 [1] : vector<16x16xf32> to vector<16xf32>
    %209 = vector.shape_cast %208 : vector<16xf32> to vector<16x1xf32>
    %210 = vector.broadcast %209 : vector<16x1xf32> to vector<16x16xf32>
    %211 = arith.subf %207, %210 : vector<16x16xf32>
    %212 = math.exp %211 : vector<16x16xf32>
    %cst_123 = arith.constant dense<0.000000e+00> : vector<16xf32>
    %213 = vector.multi_reduction <add>, %212, %cst_123 [1] : vector<16x16xf32> to vector<16xf32>
    %214 = vector.shape_cast %213 : vector<16xf32> to vector<16x1xf32>
    %215 = tpu.reciprocal %214 {approx = true} : vector<16x1xf32> -> vector<16x1xf32>
    %216 = vector.broadcast %215 : vector<16x1xf32> to vector<16x16xf32>
    %217 = arith.mulf %212, %216 : vector<16x16xf32>
    %cst_124 = arith.constant dense<0.000000e+00> : vector<16x64xf32>
    %218 = tpu.matmul %217, %201, %cst_124 {dimension_numbers = #tpu.dot_dimension_numbers<[1], [0], [0], [1], [0, 0, 1, 1], [], []>, precision = #tpu.contract_precision<fp32>} : vector<16x16xf32>, vector<16x64xf32>, vector<16x64xf32> -> vector<16x64xf32>
    %c2_125 = arith.constant 2 : index
    %c0_126 = arith.constant 0 : index
    %c0_127 = arith.constant 0 : index
    %219 = vector.load %arg10[%c2_125, %c0_126, %c0_127] : memref<3x1x64xf32, #tpu.memory_space<vmem>>, vector<1x1x64xf32>
    %220 = vector.shape_cast %219 : vector<1x1x64xf32> to vector<1x64xf32>
    %221 = vector.broadcast %220 : vector<1x64xf32> to vector<16x64xf32>
    %222 = arith.addf %218, %221 : vector<16x64xf32>
    %cst_128 = arith.constant 0.000000e+00 : f32
    %223 = vector.broadcast %cst_128 : f32 to vector<16x64xf32>
    %224 = arith.cmpf oge, %222, %223 : vector<16x64xf32>
    %cst_129 = arith.constant 2.000000e-01 : f32
    %225 = vector.broadcast %cst_129 : f32 to vector<16x64xf32>
    %226 = arith.mulf %225, %222 : vector<16x64xf32>
    %227 = arith.select %224, %222, %226 : vector<16x64xi1>, vector<16x64xf32>
    %c2_130 = arith.constant 2 : index
    %c0_131 = arith.constant 0 : index
    %c0_132 = arith.constant 0 : index
    %228 = vector.load %arg11[%c2_130, %c0_131, %c0_132] : memref<3x64x16xf32, #tpu.memory_space<vmem>>, vector<1x64x16xf32>
    %229 = vector.shape_cast %228 : vector<1x64x16xf32> to vector<64x16xf32>
    %cst_133 = arith.constant dense<0.000000e+00> : vector<16x16xf32>
    %230 = tpu.matmul %227, %229, %cst_133 {dimension_numbers = #tpu.dot_dimension_numbers<[1], [0], [0], [1], [0, 0, 1, 1], [], []>, precision = #tpu.contract_precision<fp32>} : vector<16x64xf32>, vector<64x16xf32>, vector<16x16xf32> -> vector<16x16xf32>
    %231 = arith.addf %198, %230 : vector<16x16xf32>
    %cst_134 = arith.constant dense<0.000000e+00> : vector<16x16xf32>
    %232 = tpu.matmul %231, %231, %cst_134 {dimension_numbers = #tpu.dot_dimension_numbers<[1], [1], [0], [0], [0, 0, 1, 0], [], []>, precision = #tpu.contract_precision<fp32>} : vector<16x16xf32>, vector<16x16xf32>, vector<16x16xf32> -> vector<16x16xf32>
    %233 = arith.mulf %232, %0 : vector<16x16xf32>
    %cst_135 = arith.constant 0.000000e+00 : f32
    %234 = vector.broadcast %cst_135 : f32 to vector<16x16xf32>
    %235 = arith.cmpf oeq, %233, %234 : vector<16x16xf32>
    %cst_136 = arith.constant -1.000000e+16 : f32
    %236 = vector.broadcast %cst_136 : f32 to vector<16x16xf32>
    %237 = arith.select %235, %236, %233 : vector<16x16xi1>, vector<16x16xf32>
    %cst_137 = arith.constant dense<0xFF800000> : vector<16xf32>
    %238 = vector.multi_reduction <maximumf>, %237, %cst_137 [1] : vector<16x16xf32> to vector<16xf32>
    %239 = vector.shape_cast %238 : vector<16xf32> to vector<16x1xf32>
    %240 = vector.broadcast %239 : vector<16x1xf32> to vector<16x16xf32>
    %241 = arith.subf %237, %240 : vector<16x16xf32>
    %242 = math.exp %241 : vector<16x16xf32>
    %cst_138 = arith.constant dense<0.000000e+00> : vector<16xf32>
    %243 = vector.multi_reduction <add>, %242, %cst_138 [1] : vector<16x16xf32> to vector<16xf32>
    %244 = vector.shape_cast %243 : vector<16xf32> to vector<16x1xf32>
    %245 = tpu.reciprocal %244 {approx = true} : vector<16x1xf32> -> vector<16x1xf32>
    %246 = vector.broadcast %245 : vector<16x1xf32> to vector<16x16xf32>
    %247 = arith.mulf %242, %246 : vector<16x16xf32>
    %cst_139 = arith.constant dense<0.000000e+00> : vector<16x16xf32>
    %248 = tpu.matmul %247, %231, %cst_139 {dimension_numbers = #tpu.dot_dimension_numbers<[1], [0], [0], [1], [0, 0, 1, 1], [], []>, precision = #tpu.contract_precision<fp32>} : vector<16x16xf32>, vector<16x16xf32>, vector<16x16xf32> -> vector<16x16xf32>
    %c0_140 = arith.constant 0 : index
    %c0_141 = arith.constant 0 : index
    %249 = vector.load %arg12[%c0_140, %c0_141] : memref<1x16xf32, #tpu.memory_space<vmem>>, vector<1x16xf32>
    %250 = vector.broadcast %249 : vector<1x16xf32> to vector<16x16xf32>
    %251 = arith.addf %248, %250 : vector<16x16xf32>
    %cst_142 = arith.constant 0.000000e+00 : f32
    %252 = vector.broadcast %cst_142 : f32 to vector<16x16xf32>
    %253 = arith.cmpf oge, %251, %252 : vector<16x16xf32>
    %cst_143 = arith.constant 2.000000e-01 : f32
    %254 = vector.broadcast %cst_143 : f32 to vector<16x16xf32>
    %255 = arith.mulf %254, %251 : vector<16x16xf32>
    %256 = arith.select %253, %251, %255 : vector<16x16xi1>, vector<16x16xf32>
    %c0_144 = arith.constant 0 : index
    %c0_145 = arith.constant 0 : index
    %257 = vector.load %arg13[%c0_144, %c0_145] : memref<3x16xf32, #tpu.memory_space<vmem>>, vector<3x16xf32>
    %cst_146 = arith.constant dense<0.000000e+00> : vector<3x16xf32>
    %258 = tpu.matmul %257, %256, %cst_146 {dimension_numbers = #tpu.dot_dimension_numbers<[1], [1], [0], [0], [0, 0, 1, 0], [], []>, precision = #tpu.contract_precision<fp32>} : vector<3x16xf32>, vector<16x16xf32>, vector<3x16xf32> -> vector<3x16xf32>
    %c0_147 = arith.constant 0 : index
    %c0_148 = arith.constant 0 : index
    %259 = vector.load %arg14[%c0_147, %c0_148] : memref<3x1xf32, #tpu.memory_space<vmem>>, vector<3x1xf32>
    %260 = vector.broadcast %259 : vector<3x1xf32> to vector<3x16xf32>
    %261 = arith.addf %258, %260 : vector<3x16xf32>
    %c0_149 = arith.constant 0 : index
    %c0_150 = arith.constant 0 : index
    %c0_151 = arith.constant 0 : index
    %262 = vector.load %arg15[%c0_149, %c0_150, %c0_151] : memref<1x3x16xf32, #tpu.memory_space<vmem>>, vector<1x3x16xf32>
    %263 = vector.shape_cast %262 : vector<1x3x16xf32> to vector<3x16xf32>
    %264 = vector.shape_cast %261 : vector<3x16xf32> to vector<1x3x16xf32>
    tpu.vector_store %arg15[%c0_149, %c0_150, %c0_151], %264 {strides = array<i32>} : memref<1x3x16xf32, #tpu.memory_space<vmem>>, vector<1x3x16xf32>,
    return
  }
  func.func @transform_0(%arg0: i32) -> (i32, i32, i32) {
    %c0_i32 = arith.constant 0 : i32
    %c0_i32_0 = arith.constant 0 : i32
    %c0_i32_1 = arith.constant 0 : i32
    return %arg0, %c0_i32, %c0_i32_0 : i32, i32, i32
  }
  func.func @transform_1(%arg0: i32) -> (i32, i32) {
    %c0_i32 = arith.constant 0 : i32
    %c0_i32_0 = arith.constant 0 : i32
    %c0_i32_1 = arith.constant 0 : i32
    return %c0_i32, %c0_i32_0 : i32, i32
  }
  func.func @transform_2(%arg0: i32) -> (i32, i32) {
    %c0_i32 = arith.constant 0 : i32
    %c0_i32_0 = arith.constant 0 : i32
    %c0_i32_1 = arith.constant 0 : i32
    return %c0_i32, %c0_i32_0 : i32, i32
  }
  func.func @transform_3(%arg0: i32) -> (i32, i32) {
    %c0_i32 = arith.constant 0 : i32
    %c0_i32_0 = arith.constant 0 : i32
    %c0_i32_1 = arith.constant 0 : i32
    return %c0_i32, %c0_i32_0 : i32, i32
  }
  func.func @transform_4(%arg0: i32) -> (i32, i32, i32) {
    %c0_i32 = arith.constant 0 : i32
    %c0_i32_0 = arith.constant 0 : i32
    %c0_i32_1 = arith.constant 0 : i32
    %c0_i32_2 = arith.constant 0 : i32
    return %c0_i32, %c0_i32_0, %c0_i32_1 : i32, i32, i32
  }
  func.func @transform_5(%arg0: i32) -> (i32, i32, i32) {
    %c0_i32 = arith.constant 0 : i32
    %c0_i32_0 = arith.constant 0 : i32
    %c0_i32_1 = arith.constant 0 : i32
    %c0_i32_2 = arith.constant 0 : i32
    return %c0_i32, %c0_i32_0, %c0_i32_1 : i32, i32, i32
  }
  func.func @transform_6(%arg0: i32) -> (i32, i32, i32) {
    %c0_i32 = arith.constant 0 : i32
    %c0_i32_0 = arith.constant 0 : i32
    %c0_i32_1 = arith.constant 0 : i32
    %c0_i32_2 = arith.constant 0 : i32
    return %c0_i32, %c0_i32_0, %c0_i32_1 : i32, i32, i32
  }
  func.func @transform_7(%arg0: i32) -> (i32, i32) {
    %c0_i32 = arith.constant 0 : i32
    %c0_i32_0 = arith.constant 0 : i32
    %c0_i32_1 = arith.constant 0 : i32
    return %c0_i32, %c0_i32_0 : i32, i32
  }
  func.func @transform_8(%arg0: i32) -> (i32, i32, i32) {
    %c0_i32 = arith.constant 0 : i32
    %c0_i32_0 = arith.constant 0 : i32
    %c0_i32_1 = arith.constant 0 : i32
    %c0_i32_2 = arith.constant 0 : i32
    return %c0_i32, %c0_i32_0, %c0_i32_1 : i32, i32, i32
  }
  func.func @transform_9(%arg0: i32) -> (i32, i32, i32) {
    %c0_i32 = arith.constant 0 : i32
    %c0_i32_0 = arith.constant 0 : i32
    %c0_i32_1 = arith.constant 0 : i32
    %c0_i32_2 = arith.constant 0 : i32
    return %c0_i32, %c0_i32_0, %c0_i32_1 : i32, i32, i32
  }
  func.func @transform_10(%arg0: i32) -> (i32, i32, i32) {
    %c0_i32 = arith.constant 0 : i32
    %c0_i32_0 = arith.constant 0 : i32
    %c0_i32_1 = arith.constant 0 : i32
    %c0_i32_2 = arith.constant 0 : i32
    return %c0_i32, %c0_i32_0, %c0_i32_1 : i32, i32, i32
  }
  func.func @transform_11(%arg0: i32) -> (i32, i32) {
    %c0_i32 = arith.constant 0 : i32
    %c0_i32_0 = arith.constant 0 : i32
    %c0_i32_1 = arith.constant 0 : i32
    return %c0_i32, %c0_i32_0 : i32, i32
  }
  func.func @transform_12(%arg0: i32) -> (i32, i32) {
    %c0_i32 = arith.constant 0 : i32
    %c0_i32_0 = arith.constant 0 : i32
    %c0_i32_1 = arith.constant 0 : i32
    return %c0_i32, %c0_i32_0 : i32, i32
  }
  func.func @transform_13(%arg0: i32) -> (i32, i32) {
    %c0_i32 = arith.constant 0 : i32
    %c0_i32_0 = arith.constant 0 : i32
    %c0_i32_1 = arith.constant 0 : i32
    return %c0_i32, %c0_i32_0 : i32, i32
  }
  func.func @transform_14(%arg0: i32) -> (i32, i32, i32) {
    %c0_i32 = arith.constant 0 : i32
    %c0_i32_0 = arith.constant 0 : i32
    %c0_i32_1 = arith.constant 0 : i32
    return %arg0, %c0_i32, %c0_i32_0 : i32, i32, i32
  }
}

</mosaic_0001>

<llo_original>
// kernel: tpu_custom_call.1
$region0: #{tpu_custom_call.1}
  #allocation0 [shape = 'u32[]', space=smem, size = 0x4, offset = 0x4, fixed_abs, tag = 'smem constant byte address 0x4 - core index']
  #allocation1 [shape = 'u32[72,128]{1,0:T(1,128)}', space=vmem, size = 0x9000, scoped, tag = 'internal scratch']
  %s0 = inlined_call_operand.vmem [shape: f32[2,8,16], index: 0, kind: input, shape index: {}]
  %s1 = inlined_call_operand.vmem [shape: f32[16,16], index: 1, kind: input, shape index: {}]
  %s2 = inlined_call_operand.vmem [shape: f32[16,16], index: 2, kind: input, shape index: {}]
  %s3 = inlined_call_operand.vmem [shape: f32[16,16], index: 3, kind: input, shape index: {}]
  %s4 = inlined_call_operand.vmem [shape: f32[3,8,64], index: 4, kind: input, shape index: {}]
  %s5 = inlined_call_operand.vmem [shape: f32[3,1,64], index: 5, kind: input, shape index: {}]
  %s6 = inlined_call_operand.vmem [shape: f32[3,64,16], index: 6, kind: input, shape index: {}]
  %s7 = inlined_call_operand.vmem [shape: f32[1,16], index: 7, kind: input, shape index: {}]
  %s8 = inlined_call_operand.vmem [shape: f32[3,16,64], index: 8, kind: input, shape index: {}]
  %s9 = inlined_call_operand.vmem [shape: f32[3,1,64], index: 9, kind: input, shape index: {}]
  %s10 = inlined_call_operand.vmem [shape: f32[3,64,16], index: 10, kind: input, shape index: {}]
  %s11 = inlined_call_operand.vmem [shape: f32[1,16], index: 11, kind: input, shape index: {}]
  %s12 = inlined_call_operand.vmem [shape: f32[3,16], index: 12, kind: input, shape index: {}]
  %s13 = inlined_call_operand.vmem [shape: f32[3,1], index: 13, kind: input, shape index: {}]
  %s14 = inlined_call_operand.vmem [shape: f32[2,3,16], index: 14, kind: output, shape index: {}]
  %s15 = sld [smem:[#allocation0]]
  $region89: #{tpu_custom_call.1} parent=0
    _
  %s17 = ssub.s32 1, %s15
  %s18 = scalar_select 0, %s17, %s15
  loop: start=0, step=1, limit=4
  $region2: #{tpu_custom_call.1} parent=0 // loop_pre_header
    _
  $region3: #{tpu_custom_call.1} parent=0 // loop_header
    %s20 = sphi 0, %s24
    %p21 = scmp.ge.s32.totalorder %s20, 4
    %s30 = sphi 0, %s32
    %s33 = sphi 0, %s30
    %s34 = sphi 0, %s33
    %s50 = sphi 0, %s34
    %s54 = sphi 0, %s54
    %s56 = sphi 0, %s54
    %s57 = sphi 0, %s56
    %s71 = sphi 0, %s57
    %s75 = sphi 0, %s75
    %s77 = sphi 0, %s75
    %s78 = sphi 0, %s77
    %s92 = sphi 0, %s78
    %s96 = sphi 0, %s96
    %s98 = sphi 0, %s96
    %s99 = sphi 0, %s98
    %s113 = sphi 0, %s99
    %s117 = sphi 0, %s117
    %s119 = sphi 0, %s117
    %s120 = sphi 0, %s119
    %s134 = sphi 0, %s120
    %s138 = sphi 0, %s138
    %s140 = sphi 0, %s138
    %s141 = sphi 0, %s140
    %s155 = sphi 0, %s141
    %s159 = sphi 0, %s159
    %s161 = sphi 0, %s159
    %s162 = sphi 0, %s161
    %s176 = sphi 0, %s162
    %s180 = sphi 0, %s180
    %s182 = sphi 0, %s180
    %s183 = sphi 0, %s182
    %s197 = sphi 0, %s183
    %s201 = sphi 0, %s201
    %s203 = sphi 0, %s201
    %s204 = sphi 0, %s203
    %s218 = sphi 0, %s204
    %s222 = sphi 0, %s222
    %s224 = sphi 0, %s222
    %s225 = sphi 0, %s224
    %s239 = sphi 0, %s225
    %s243 = sphi 0, %s243
    %s245 = sphi 0, %s243
    %s246 = sphi 0, %s245
    %s260 = sphi 0, %s246
    %s264 = sphi 0, %s264
    %s266 = sphi 0, %s264
    %s267 = sphi 0, %s266
    %s281 = sphi 0, %s267
    %s285 = sphi 0, %s285
    %s287 = sphi 0, %s285
    %s288 = sphi 0, %s287
    %s302 = sphi 0, %s288
    %s306 = sphi 0, %s306
    %s308 = sphi 0, %s306
    %s309 = sphi 0, %s308
    %s323 = sphi 0, %s309
    %s329 = sphi 0, %s331
    %s332 = sphi 0, %s329
    %s333 = sphi 0, %s332
    %s349 = sphi 0, %s333
  $region4: #{tpu_custom_call.1} parent=0 // loop_header_branch
    %23 = sbr.rel (%p21) target = $region8
  $region5: #{tpu_custom_call.1} parent=0 // loop_body
    %s25 = ssub.s32 %s20, 1
    %s26 = ssub.s32 %s20, 2
    %s27 = sadd.s32 %s20, 1
    %s28 = ssub.s32 %s20, %s27
    %p29 = scmp.eq.s32.totalorder %s28, 0
    %s31 = sadd.s32 %s30, 1
    %s32 = scalar_select %p29, %s30, %s31
    %p35 = pneg %p29
    %p36 = scmp.eq.s32.totalorder %s20, 1
    %p37 = por %p35, %p36
    %p38 = scmp.ne.s32.totalorder %s30, %s33
    %p39 = scmp.eq.s32.totalorder %s20, 0
    %p40 = por %p38, %p39
    %p41 = scmp.ne.s32.totalorder %s30, %s33
    %p42 = scmp.eq.s32.totalorder %s25, 1
    %p43 = por %p41, %p42
    %p44 = scmp.ne.s32.totalorder %s33, %s34
    %p45 = scmp.eq.s32.totalorder %s25, 0
    %p46 = por %p44, %p45
    %p47 = scmp.ne.s32.totalorder %s33, %s34
    %p48 = scmp.eq.s32.totalorder %s26, 1
    %p49 = por %p47, %p48
    %p51 = scmp.ne.s32.totalorder %s34, %s50
    %p52 = scmp.eq.s32.totalorder %s26, 0
    %p53 = por %p51, %p52
    %s55 = sadd.s32 %s54, 1
    %p58 = scmp.eq.s32.totalorder %s20, 1
    %p59 = scmp.ne.s32.totalorder %s54, %s56
    %p60 = scmp.eq.s32.totalorder %s20, 0
    %p61 = por %p59, %p60
    %p62 = scmp.ne.s32.totalorder %s54, %s56
    %p63 = scmp.eq.s32.totalorder %s25, 1
    %p64 = por %p62, %p63
    %p65 = scmp.ne.s32.totalorder %s56, %s57
    %p66 = scmp.eq.s32.totalorder %s25, 0
    %p67 = por %p65, %p66
    %p68 = scmp.ne.s32.totalorder %s56, %s57
    %p69 = scmp.eq.s32.totalorder %s26, 1
    %p70 = por %p68, %p69
    %p72 = scmp.ne.s32.totalorder %s57, %s71
    %p73 = scmp.eq.s32.totalorder %s26, 0
    %p74 = por %p72, %p73
    %s76 = sadd.s32 %s75, 1
    %p79 = scmp.eq.s32.totalorder %s20, 1
    %p80 = scmp.ne.s32.totalorder %s75, %s77
    %p81 = scmp.eq.s32.totalorder %s20, 0
    %p82 = por %p80, %p81
    %p83 = scmp.ne.s32.totalorder %s75, %s77
    %p84 = scmp.eq.s32.totalorder %s25, 1
    %p85 = por %p83, %p84
    %p86 = scmp.ne.s32.totalorder %s77, %s78
    %p87 = scmp.eq.s32.totalorder %s25, 0
    %p88 = por %p86, %p87
    %p89 = scmp.ne.s32.totalorder %s77, %s78
    %p90 = scmp.eq.s32.totalorder %s26, 1
    %p91 = por %p89, %p90
    %p93 = scmp.ne.s32.totalorder %s78, %s92
    %p94 = scmp.eq.s32.totalorder %s26, 0
    %p95 = por %p93, %p94
    %s97 = sadd.s32 %s96, 1
    %p100 = scmp.eq.s32.totalorder %s20, 1
    %p101 = scmp.ne.s32.totalorder %s96, %s98
    %p102 = scmp.eq.s32.totalorder %s20, 0
    %p103 = por %p101, %p102
    %p104 = scmp.ne.s32.totalorder %s96, %s98
    %p105 = scmp.eq.s32.totalorder %s25, 1
    %p106 = por %p104, %p105
    %p107 = scmp.ne.s32.totalorder %s98, %s99
    %p108 = scmp.eq.s32.totalorder %s25, 0
    %p109 = por %p107, %p108
    %p110 = scmp.ne.s32.totalorder %s98, %s99
    %p111 = scmp.eq.s32.totalorder %s26, 1
    %p112 = por %p110, %p111
    %p114 = scmp.ne.s32.totalorder %s99, %s113
    %p115 = scmp.eq.s32.totalorder %s26, 0
    %p116 = por %p114, %p115
    %s118 = sadd.s32 %s117, 1
    %p121 = scmp.eq.s32.totalorder %s20, 1
    %p122 = scmp.ne.s32.totalorder %s117, %s119
    %p123 = scmp.eq.s32.totalorder %s20, 0
    %p124 = por %p122, %p123
    %p125 = scmp.ne.s32.totalorder %s117, %s119
    %p126 = scmp.eq.s32.totalorder %s25, 1
    %p127 = por %p125, %p126
    %p128 = scmp.ne.s32.totalorder %s119, %s120
    %p129 = scmp.eq.s32.totalorder %s25, 0
    %p130 = por %p128, %p129
    %p131 = scmp.ne.s32.totalorder %s119, %s120
    %p132 = scmp.eq.s32.totalorder %s26, 1
    %p133 = por %p131, %p132
    %p135 = scmp.ne.s32.totalorder %s120, %s134
    %p136 = scmp.eq.s32.totalorder %s26, 0
    %p137 = por %p135, %p136
    %s139 = sadd.s32 %s138, 1
    %p142 = scmp.eq.s32.totalorder %s20, 1
    %p143 = scmp.ne.s32.totalorder %s138, %s140
    %p144 = scmp.eq.s32.totalorder %s20, 0
    %p145 = por %p143, %p144
    %p146 = scmp.ne.s32.totalorder %s138, %s140
    %p147 = scmp.eq.s32.totalorder %s25, 1
    %p148 = por %p146, %p147
    %p149 = scmp.ne.s32.totalorder %s140, %s141
    %p150 = scmp.eq.s32.totalorder %s25, 0
    %p151 = por %p149, %p150
    %p152 = scmp.ne.s32.totalorder %s140, %s141
    %p153 = scmp.eq.s32.totalorder %s26, 1
    %p154 = por %p152, %p153
    %p156 = scmp.ne.s32.totalorder %s141, %s155
    %p157 = scmp.eq.s32.totalorder %s26, 0
    %p158 = por %p156, %p157
    %s160 = sadd.s32 %s159, 1
    %p163 = scmp.eq.s32.totalorder %s20, 1
    %p164 = scmp.ne.s32.totalorder %s159, %s161
    %p165 = scmp.eq.s32.totalorder %s20, 0
    %p166 = por %p164, %p165
    %p167 = scmp.ne.s32.totalorder %s159, %s161
    %p168 = scmp.eq.s32.totalorder %s25, 1
    %p169 = por %p167, %p168
    %p170 = scmp.ne.s32.totalorder %s161, %s162
    %p171 = scmp.eq.s32.totalorder %s25, 0
    %p172 = por %p170, %p171
    %p173 = scmp.ne.s32.totalorder %s161, %s162
    %p174 = scmp.eq.s32.totalorder %s26, 1
    %p175 = por %p173, %p174
    %p177 = scmp.ne.s32.totalorder %s162, %s176
    %p178 = scmp.eq.s32.totalorder %s26, 0
    %p179 = por %p177, %p178
    %s181 = sadd.s32 %s180, 1
    %p184 = scmp.eq.s32.totalorder %s20, 1
    %p185 = scmp.ne.s32.totalorder %s180, %s182
    %p186 = scmp.eq.s32.totalorder %s20, 0
    %p187 = por %p185, %p186
    %p188 = scmp.ne.s32.totalorder %s180, %s182
    %p189 = scmp.eq.s32.totalorder %s25, 1
    %p190 = por %p188, %p189
    %p191 = scmp.ne.s32.totalorder %s182, %s183
    %p192 = scmp.eq.s32.totalorder %s25, 0
    %p193 = por %p191, %p192
    %p194 = scmp.ne.s32.totalorder %s182, %s183
    %p195 = scmp.eq.s32.totalorder %s26, 1
    %p196 = por %p194, %p195
    %p198 = scmp.ne.s32.totalorder %s183, %s197
    %p199 = scmp.eq.s32.totalorder %s26, 0
    %p200 = por %p198, %p199
    %s202 = sadd.s32 %s201, 1
    %p205 = scmp.eq.s32.totalorder %s20, 1
    %p206 = scmp.ne.s32.totalorder %s201, %s203
    %p207 = scmp.eq.s32.totalorder %s20, 0
    %p208 = por %p206, %p207
    %p209 = scmp.ne.s32.totalorder %s201, %s203
    %p210 = scmp.eq.s32.totalorder %s25, 1
    %p211 = por %p209, %p210
    %p212 = scmp.ne.s32.totalorder %s203, %s204
    %p213 = scmp.eq.s32.totalorder %s25, 0
    %p214 = por %p212, %p213
    %p215 = scmp.ne.s32.totalorder %s203, %s204
    %p216 = scmp.eq.s32.totalorder %s26, 1
    %p217 = por %p215, %p216
    %p219 = scmp.ne.s32.totalorder %s204, %s218
    %p220 = scmp.eq.s32.totalorder %s26, 0
    %p221 = por %p219, %p220
    %s223 = sadd.s32 %s222, 1
    %p226 = scmp.eq.s32.totalorder %s20, 1
    %p227 = scmp.ne.s32.totalorder %s222, %s224
    %p228 = scmp.eq.s32.totalorder %s20, 0
    %p229 = por %p227, %p228
    %p230 = scmp.ne.s32.totalorder %s222, %s224
    %p231 = scmp.eq.s32.totalorder %s25, 1
    %p232 = por %p230, %p231
    %p233 = scmp.ne.s32.totalorder %s224, %s225
    %p234 = scmp.eq.s32.totalorder %s25, 0
    %p235 = por %p233, %p234
    %p236 = scmp.ne.s32.totalorder %s224, %s225
    %p237 = scmp.eq.s32.totalorder %s26, 1
    %p238 = por %p236, %p237
    %p240 = scmp.ne.s32.totalorder %s225, %s239
    %p241 = scmp.eq.s32.totalorder %s26, 0
    %p242 = por %p240, %p241
    %s244 = sadd.s32 %s243, 1
    %p247 = scmp.eq.s32.totalorder %s20, 1
    %p248 = scmp.ne.s32.totalorder %s243, %s245
    %p249 = scmp.eq.s32.totalorder %s20, 0
    %p250 = por %p248, %p249
    %p251 = scmp.ne.s32.totalorder %s243, %s245
    %p252 = scmp.eq.s32.totalorder %s25, 1
    %p253 = por %p251, %p252
    %p254 = scmp.ne.s32.totalorder %s245, %s246
    %p255 = scmp.eq.s32.totalorder %s25, 0
    %p256 = por %p254, %p255
    %p257 = scmp.ne.s32.totalorder %s245, %s246
    %p258 = scmp.eq.s32.totalorder %s26, 1
    %p259 = por %p257, %p258
    %p261 = scmp.ne.s32.totalorder %s246, %s260
    %p262 = scmp.eq.s32.totalorder %s26, 0
    %p263 = por %p261, %p262
    %s265 = sadd.s32 %s264, 1
    %p268 = scmp.eq.s32.totalorder %s20, 1
    %p269 = scmp.ne.s32.totalorder %s264, %s266
    %p270 = scmp.eq.s32.totalorder %s20, 0
    %p271 = por %p269, %p270
    %p272 = scmp.ne.s32.totalorder %s264, %s266
    %p273 = scmp.eq.s32.totalorder %s25, 1
    %p274 = por %p272, %p273
    %p275 = scmp.ne.s32.totalorder %s266, %s267
    %p276 = scmp.eq.s32.totalorder %s25, 0
    %p277 = por %p275, %p276
    %p278 = scmp.ne.s32.totalorder %s266, %s267
    %p279 = scmp.eq.s32.totalorder %s26, 1
    %p280 = por %p278, %p279
    %p282 = scmp.ne.s32.totalorder %s267, %s281
    %p283 = scmp.eq.s32.totalorder %s26, 0
    %p284 = por %p282, %p283
    %s286 = sadd.s32 %s285, 1
    %p289 = scmp.eq.s32.totalorder %s20, 1
    %p290 = scmp.ne.s32.totalorder %s285, %s287
    %p291 = scmp.eq.s32.totalorder %s20, 0
    %p292 = por %p290, %p291
    %p293 = scmp.ne.s32.totalorder %s285, %s287
    %p294 = scmp.eq.s32.totalorder %s25, 1
    %p295 = por %p293, %p294
    %p296 = scmp.ne.s32.totalorder %s287, %s288
    %p297 = scmp.eq.s32.totalorder %s25, 0
    %p298 = por %p296, %p297
    %p299 = scmp.ne.s32.totalorder %s287, %s288
    %p300 = scmp.eq.s32.totalorder %s26, 1
    %p301 = por %p299, %p300
    %p303 = scmp.ne.s32.totalorder %s288, %s302
    %p304 = scmp.eq.s32.totalorder %s26, 0
    %p305 = por %p303, %p304
    %s307 = sadd.s32 %s306, 1
    %p310 = scmp.eq.s32.totalorder %s20, 1
    %p311 = scmp.ne.s32.totalorder %s306, %s308
    %p312 = scmp.eq.s32.totalorder %s20, 0
    %p313 = por %p311, %p312
    %p314 = scmp.ne.s32.totalorder %s306, %s308
    %p315 = scmp.eq.s32.totalorder %s25, 1
    %p316 = por %p314, %p315
    %p317 = scmp.ne.s32.totalorder %s308, %s309
    %p318 = scmp.eq.s32.totalorder %s25, 0
    %p319 = por %p317, %p318
    %p320 = scmp.ne.s32.totalorder %s308, %s309
    %p321 = scmp.eq.s32.totalorder %s26, 1
    %p322 = por %p320, %p321
    %p324 = scmp.ne.s32.totalorder %s309, %s323
    %p325 = scmp.eq.s32.totalorder %s26, 0
    %p326 = por %p324, %p325
    %s327 = ssub.s32 %s20, %s27
    %p328 = scmp.eq.s32.totalorder %s327, 0
    %s330 = sadd.s32 %s329, 1
    %s331 = scalar_select %p328, %s329, %s330
    %p334 = pneg %p328
    %p335 = scmp.eq.s32.totalorder %s20, 1
    %p336 = por %p334, %p335
    %p337 = scmp.ne.s32.totalorder %s329, %s332
    %p338 = scmp.eq.s32.totalorder %s20, 0
    %p339 = por %p337, %p338
    %p340 = scmp.ne.s32.totalorder %s329, %s332
    %p341 = scmp.eq.s32.totalorder %s25, 1
    %p342 = por %p340, %p341
    %p343 = scmp.ne.s32.totalorder %s332, %s333
    %p344 = scmp.eq.s32.totalorder %s25, 0
    %p345 = por %p343, %p344
    %p346 = scmp.ne.s32.totalorder %s332, %s333
    %p347 = scmp.eq.s32.totalorder %s26, 1
    %p348 = por %p346, %p347
    %p350 = scmp.ne.s32.totalorder %s333, %s349
    %p351 = scmp.eq.s32.totalorder %s26, 0
    %p352 = por %p350, %p351
    %p353 = scmp.le.s32.totalorder 1, %s20
    %p354 = scmp.lt.s32.totalorder %s20, 3
    %p355 = pnand %p353, %p354
    %p356 = pneg %p355
    // Predicated region
    $region9: #{tpu_custom_call.1} parent=5 // pred_check
      _
    $region10: #{tpu_custom_call.1} parent=5 // pred_check_branch
      %358 = sbr.rel (%p355) target = $region12
    $region11: #{tpu_custom_call.1} parent=5 // pred_region
      %s359 = ssub.s32 %s20, 1
      // Predicated region
      $region13: #{tpu_custom_call.1} parent=11 // pred_check
        %p360 = pneg %p67
      $region14: #{tpu_custom_call.1} parent=11 // pred_check_branch
        %362 = sbr.rel (%p360) target = $region16
      $region15: #{tpu_custom_call.1} parent=11 // pred_region
        _
      $region16: #{tpu_custom_call.1} parent=11 // pred_fallthru
        _
      // Predicated region
      $region17: #{tpu_custom_call.1} parent=11 // pred_check
        %p363 = pneg %p88
      $region18: #{tpu_custom_call.1} parent=11 // pred_check_branch
        %365 = sbr.rel (%p363) target = $region20
      $region19: #{tpu_custom_call.1} parent=11 // pred_region
        _
      $region20: #{tpu_custom_call.1} parent=11 // pred_fallthru
        _
      // Predicated region
      $region21: #{tpu_custom_call.1} parent=11 // pred_check
        %p366 = pneg %p109
      $region22: #{tpu_custom_call.1} parent=11 // pred_check_branch
        %368 = sbr.rel (%p366) target = $region24
      $region23: #{tpu_custom_call.1} parent=11 // pred_region
        _
      $region24: #{tpu_custom_call.1} parent=11 // pred_fallthru
        _
      // Predicated region
      $region25: #{tpu_custom_call.1} parent=11 // pred_check
        %p369 = pneg %p130
      $region26: #{tpu_custom_call.1} parent=11 // pred_check_branch
        %371 = sbr.rel (%p369) target = $region28
      $region27: #{tpu_custom_call.1} parent=11 // pred_region
        _
      $region28: #{tpu_custom_call.1} parent=11 // pred_fallthru
        _
      // Predicated region
      $region29: #{tpu_custom_call.1} parent=11 // pred_check
        %p372 = pneg %p151
      $region30: #{tpu_custom_call.1} parent=11 // pred_check_branch
        %374 = sbr.rel (%p372) target = $region32
      $region31: #{tpu_custom_call.1} parent=11 // pred_region
        _
      $region32: #{tpu_custom_call.1} parent=11 // pred_fallthru
        _
      // Predicated region
      $region33: #{tpu_custom_call.1} parent=11 // pred_check
        %p375 = pneg %p172
      $region34: #{tpu_custom_call.1} parent=11 // pred_check_branch
        %377 = sbr.rel (%p375) target = $region36
      $region35: #{tpu_custom_call.1} parent=11 // pred_region
        _
      $region36: #{tpu_custom_call.1} parent=11 // pred_fallthru
        _
      // Predicated region
      $region37: #{tpu_custom_call.1} parent=11 // pred_check
        %p378 = pneg %p193
      $region38: #{tpu_custom_call.1} parent=11 // pred_check_branch
        %380 = sbr.rel (%p378) target = $region40
      $region39: #{tpu_custom_call.1} parent=11 // pred_region
        _
      $region40: #{tpu_custom_call.1} parent=11 // pred_fallthru
        _
      // Predicated region
      $region41: #{tpu_custom_call.1} parent=11 // pred_check
        %p381 = pneg %p214
      $region42: #{tpu_custom_call.1} parent=11 // pred_check_branch
        %383 = sbr.rel (%p381) target = $region44
      $region43: #{tpu_custom_call.1} parent=11 // pred_region
        _
      $region44: #{tpu_custom_call.1} parent=11 // pred_fallthru
        _
      // Predicated region
      $region45: #{tpu_custom_call.1} parent=11 // pred_check
        %p384 = pneg %p235
      $region46: #{tpu_custom_call.1} parent=11 // pred_check_branch
        %386 = sbr.rel (%p384) target = $region48
      $region47: #{tpu_custom_call.1} parent=11 // pred_region
        _
      $region48: #{tpu_custom_call.1} parent=11 // pred_fallthru
        _
      // Predicated region
      $region49: #{tpu_custom_call.1} parent=11 // pred_check
        %p387 = pneg %p256
      $region50: #{tpu_custom_call.1} parent=11 // pred_check_branch
        %389 = sbr.rel (%p387) target = $region52
      $region51: #{tpu_custom_call.1} parent=11 // pred_region
        _
      $region52: #{tpu_custom_call.1} parent=11 // pred_fallthru
        _
      // Predicated region
      $region53: #{tpu_custom_call.1} parent=11 // pred_check
        %p390 = pneg %p277
      $region54: #{tpu_custom_call.1} parent=11 // pred_check_branch
        %392 = sbr.rel (%p390) target = $region56
      $region55: #{tpu_custom_call.1} parent=11 // pred_region
        _
      $region56: #{tpu_custom_call.1} parent=11 // pred_fallthru
        _
      // Predicated region
      $region57: #{tpu_custom_call.1} parent=11 // pred_check
        %p393 = pneg %p298
      $region58: #{tpu_custom_call.1} parent=11 // pred_check_branch
        %395 = sbr.rel (%p393) target = $region60
      $region59: #{tpu_custom_call.1} parent=11 // pred_region
        _
      $region60: #{tpu_custom_call.1} parent=11 // pred_fallthru
        _
      // Predicated region
      $region61: #{tpu_custom_call.1} parent=11 // pred_check
        %p396 = pneg %p319
      $region62: #{tpu_custom_call.1} parent=11 // pred_check_branch
        %398 = sbr.rel (%p396) target = $region64
      $region63: #{tpu_custom_call.1} parent=11 // pred_region
        _
      $region64: #{tpu_custom_call.1} parent=11 // pred_fallthru
        _
    $region12: #{tpu_custom_call.1} parent=5 // pred_fallthru
      _
    %p399 = scmp.lt.s32.totalorder %s20, 2
    // Predicated region
    $region65: #{tpu_custom_call.1} parent=5 // pred_check
      %p400 = pneg %p399
    $region66: #{tpu_custom_call.1} parent=5 // pred_check_branch
      %402 = sbr.rel (%p400) target = $region68
    $region67: #{tpu_custom_call.1} parent=5 // pred_region
      // Predicated region
      $region69: #{tpu_custom_call.1} parent=67 // pred_check
        %p403 = pneg %p40
      $region70: #{tpu_custom_call.1} parent=67 // pred_check_branch
        %405 = sbr.rel (%p403) target = $region72
      $region71: #{tpu_custom_call.1} parent=67 // pred_region
        %p406 = scmp.lt.s32.totalorder %s20, 1
        %s407 = scalar_select %p406, %s20, 1
        %s408 = smul.addr %s407, 8
        %s409 = scalar_lea.vmem %s0, %s408
      $region72: #{tpu_custom_call.1} parent=67 // pred_fallthru
        _
    $region68: #{tpu_custom_call.1} parent=5 // pred_fallthru
      _
    %p410 = scmp.le.s32.totalorder 1, %s20
    %p411 = scmp.lt.s32.totalorder %s20, 3
    %p412 = pnand %p410, %p411
    %p413 = pneg %p412
    // Predicated region
    $region73: #{tpu_custom_call.1} parent=5 // pred_check
      _
    $region74: #{tpu_custom_call.1} parent=5 // pred_check_branch
      %415 = sbr.rel (%p412) target = $region76
    $region75: #{tpu_custom_call.1} parent=5 // pred_region
      %s416 = ssub.s32 %s20, 1
      %p417 = scmp.lt.s32.totalorder %s25, 1
      %s418 = scalar_select %p417, %s25, 1
      %s419 = smul.addr %s418, 8
      %s420 = scalar_lea.vmem %s0, %s419
      %p421 = pneg %p46
      %p422 = pneg %p43
      %p423 = pneg %p67
      %p424 = pneg %p64
      %p425 = pneg %p88
      %p426 = pneg %p85
      %p427 = pneg %p109
      %p428 = pneg %p106
      %p429 = pneg %p130
      %p430 = pneg %p127
      %p431 = pneg %p151
      %p432 = pneg %p148
      %p433 = pneg %p172
      %p434 = pneg %p169
      %p435 = pneg %p193
      %p436 = pneg %p190
      %p437 = pneg %p214
      %p438 = pneg %p211
      %p439 = pneg %p235
      %p440 = pneg %p232
      %p441 = pneg %p256
      %p442 = pneg %p253
      %p443 = pneg %p277
      %p444 = pneg %p274
      %p445 = pneg %p298
      %p446 = pneg %p295
      %p447 = pneg %p319
      %p448 = pneg %p316
      %p449 = pneg %p345
      %p450 = pneg %p342
      %p451 = scmp.lt.s32.totalorder %s25, 1
      %s452 = scalar_select %p451, %s25, 1
      %s453 = smul.addr %s452, 4
      %s454 = scalar_lea.vmem %s14, %s453
      %p455 = scmp.lt.s32.totalorder %s25, 1
      %s456 = scalar_select %p455, %s25, 1
      %s457 = smul.addr %s456, 8
      %s458 = scalar_lea.vmem %s0, %s457
      %p459 = scmp.lt.s32.totalorder %s25, 1
      %s460 = scalar_select %p459, %s25, 1
      %s461 = smul.addr %s460, 4
      %s462 = scalar_lea.vmem %s14, %s461
      %v463 = vld [vmem:[%s1] sm:$0xff]
      %v464 = vld [vmem:[%s1 + $0x8] sm:$0xff]
      %v465 = vld [vmem:[%s458] sm:$0xff]
      %v466 = vld [vmem:[%s2] sm:$0xff]
      %v467 = vld [vmem:[%s2 + $0x8] sm:$0xff]
      %vm468 = vcmask 130048
      %v470 = vsel %vm468, %v465, 0
      %472 = vmatpush.msra.mxu0 0.0
      %473 = vmatpush.msra.mxu0 0.0
      %474 = vmatpush.msra.mxu0 0.0
      %475 = vmatpush.msra.mxu0 0.0
      %476 = vmatpush.msra.mxu0 0.0
      %477 = vmatpush.msra.mxu0 0.0
      %478 = vmatpush.msra.mxu0 0.0
      %479 = vmatpush.msra.mxu0 0.0
      %480 = vmatpush.msra.mxu0 0.0
      %481 = vmatpush.msra.mxu0 0.0
      %482 = vmatpush.msra.mxu0 0.0
      %483 = vmatpush.msra.mxu0 0.0
      %484 = vmatpush.msra.mxu0 0.0
      %485 = vmatpush.msra.mxu0 0.0
      %v486 = vand.u32 %v467, 4294901760
      %487 = vmatpush.msra.mxu0 %v486
      %v488 = vand.u32 %v466, 4294901760
      %489 = vmatpush.msra.mxu0 %v488
      %v490 = vand.u32 %v470, 4294901760
      %v491 = vsub.f32 %v470, %v490
      %v492 = vand.u32 %v491, 4294901760
      %v493 = vsub.f32 %v491, %v492
      %v494 = vand.u32 %v493, 4294901760
      %495 = vmatmul.f32.gmra.mxu0 %v494
      %v496 = vpop.f32.mrf.mxu0
      %v497 = vadd.f32 0.0, %v496
      %498 = vdwg.mxu0
      %499 = vmatpush.msra.mxu0 0.0
      %500 = vmatpush.msra.mxu0 0.0
      %501 = vmatpush.msra.mxu0 0.0
      %502 = vmatpush.msra.mxu0 0.0
      %503 = vmatpush.msra.mxu0 0.0
      %504 = vmatpush.msra.mxu0 0.0
      %505 = vmatpush.msra.mxu0 0.0
      %506 = vmatpush.msra.mxu0 0.0
      %507 = vmatpush.msra.mxu0 0.0
      %508 = vmatpush.msra.mxu0 0.0
      %509 = vmatpush.msra.mxu0 0.0
      %510 = vmatpush.msra.mxu0 0.0
      %511 = vmatpush.msra.mxu0 0.0
      %512 = vmatpush.msra.mxu0 0.0
      %v513 = vand.u32 %v467, 4294901760
      %v514 = vsub.f32 %v467, %v513
      %v515 = vand.u32 %v514, 4294901760
      %v516 = vsub.f32 %v514, %v515
      %v517 = vand.u32 %v516, 4294901760
      %518 = vmatpush.msra.mxu0 %v517
      %v519 = vand.u32 %v466, 4294901760
      %v520 = vsub.f32 %v466, %v519
      %v521 = vand.u32 %v520, 4294901760
      %v522 = vsub.f32 %v520, %v521
      %v523 = vand.u32 %v522, 4294901760
      %524 = vmatpush.msra.mxu0 %v523
      %v525 = vand.u32 %v470, 4294901760
      %526 = vmatmul.f32.gmra.mxu0 %v525
      %v527 = vpop.f32.mrf.mxu0
      %v528 = vadd.f32 %v497, %v527
      %529 = vdwg.mxu0
      %530 = vmatpush.msra.mxu0 0.0
      %531 = vmatpush.msra.mxu0 0.0
      %532 = vmatpush.msra.mxu0 0.0
      %533 = vmatpush.msra.mxu0 0.0
      %534 = vmatpush.msra.mxu0 0.0
      %535 = vmatpush.msra.mxu0 0.0
      %536 = vmatpush.msra.mxu0 0.0
      %537 = vmatpush.msra.mxu0 0.0
      %538 = vmatpush.msra.mxu0 0.0
      %539 = vmatpush.msra.mxu0 0.0
      %540 = vmatpush.msra.mxu0 0.0
      %541 = vmatpush.msra.mxu0 0.0
      %542 = vmatpush.msra.mxu0 0.0
      %543 = vmatpush.msra.mxu0 0.0
      %v544 = vand.u32 %v467, 4294901760
      %v545 = vsub.f32 %v467, %v544
      %546 = vmatpush.msra.mxu0 %v545
      %v547 = vand.u32 %v466, 4294901760
      %v548 = vsub.f32 %v466, %v547
      %549 = vmatpush.msra.mxu0 %v548
      %v550 = vand.u32 %v470, 4294901760
      %v551 = vsub.f32 %v470, %v550
      %552 = vmatmul.f32.gmra.mxu0 %v551
      %v553 = vpop.f32.mrf.mxu0
      %v554 = vadd.f32 %v528, %v553
      %555 = vdwg.mxu0
      %556 = vmatpush.msra.mxu0 0.0
      %557 = vmatpush.msra.mxu0 0.0
      %558 = vmatpush.msra.mxu0 0.0
      %559 = vmatpush.msra.mxu0 0.0
      %560 = vmatpush.msra.mxu0 0.0
      %561 = vmatpush.msra.mxu0 0.0
      %562 = vmatpush.msra.mxu0 0.0
      %563 = vmatpush.msra.mxu0 0.0
      %564 = vmatpush.msra.mxu0 0.0
      %565 = vmatpush.msra.mxu0 0.0
      %566 = vmatpush.msra.mxu0 0.0
      %567 = vmatpush.msra.mxu0 0.0
      %568 = vmatpush.msra.mxu0 0.0
      %569 = vmatpush.msra.mxu0 0.0
      %v570 = vand.u32 %v467, 4294901760
      %571 = vmatpush.msra.mxu0 %v570
      %v572 = vand.u32 %v466, 4294901760
      %573 = vmatpush.msra.mxu0 %v572
      %v574 = vand.u32 %v470, 4294901760
      %v575 = vsub.f32 %v470, %v574
      %v576 = vand.u32 %v575, 4294901760
      %577 = vmatmul.f32.gmra.mxu0 %v576
      %v578 = vpop.f32.mrf.mxu0
      %v579 = vadd.f32 %v554, %v578
      %580 = vdwg.mxu0
      %581 = vmatpush.msra.mxu0 0.0
      %582 = vmatpush.msra.mxu0 0.0
      %583 = vmatpush.msra.mxu0 0.0
      %584 = vmatpush.msra.mxu0 0.0
      %585 = vmatpush.msra.mxu0 0.0
      %586 = vmatpush.msra.mxu0 0.0
      %587 = vmatpush.msra.mxu0 0.0
      %588 = vmatpush.msra.mxu0 0.0
      %589 = vmatpush.msra.mxu0 0.0
      %590 = vmatpush.msra.mxu0 0.0
      %591 = vmatpush.msra.mxu0 0.0
      %592 = vmatpush.msra.mxu0 0.0
      %593 = vmatpush.msra.mxu0 0.0
      %594 = vmatpush.msra.mxu0 0.0
      %v595 = vand.u32 %v467, 4294901760
      %v596 = vsub.f32 %v467, %v595
      %v597 = vand.u32 %v596, 4294901760
      %598 = vmatpush.msra.mxu0 %v597
      %v599 = vand.u32 %v466, 4294901760
      %v600 = vsub.f32 %v466, %v599
      %v601 = vand.u32 %v600, 4294901760
      %602 = vmatpush.msra.mxu0 %v601
      %v603 = vand.u32 %v470, 4294901760
      %604 = vmatmul.f32.gmra.mxu0 %v603
      %v605 = vpop.f32.mrf.mxu0
      %v606 = vadd.f32 %v579, %v605
      %607 = vdwg.mxu0
      %608 = vmatpush.msra.mxu0 0.0
      %609 = vmatpush.msra.mxu0 0.0
      %610 = vmatpush.msra.mxu0 0.0
      %611 = vmatpush.msra.mxu0 0.0
      %612 = vmatpush.msra.mxu0 0.0
      %613 = vmatpush.msra.mxu0 0.0
      %614 = vmatpush.msra.mxu0 0.0
      %615 = vmatpush.msra.mxu0 0.0
      %616 = vmatpush.msra.mxu0 0.0
      %617 = vmatpush.msra.mxu0 0.0
      %618 = vmatpush.msra.mxu0 0.0
      %619 = vmatpush.msra.mxu0 0.0
      %620 = vmatpush.msra.mxu0 0.0
      %621 = vmatpush.msra.mxu0 0.0
      %v622 = vand.u32 %v467, 4294901760
      %623 = vmatpush.msra.mxu0 %v622
      %v624 = vand.u32 %v466, 4294901760
      %625 = vmatpush.msra.mxu0 %v624
      %v626 = vand.u32 %v470, 4294901760
      %627 = vmatmul.f32.gmra.mxu0 %v626
      %v628 = vpop.f32.mrf.mxu0
      %v629 = vadd.f32 %v606, %v628
      %630 = vdwg.mxu0
      %v632 = vsel %vm468, %v629, 0
      %634 = vmatpush.msra.mxu0 0.0
      %635 = vmatpush.msra.mxu0 0.0
      %636 = vmatpush.msra.mxu0 0.0
      %637 = vmatpush.msra.mxu0 0.0
      %638 = vmatpush.msra.mxu0 0.0
      %639 = vmatpush.msra.mxu0 0.0
      %640 = vmatpush.msra.mxu0 0.0
      %641 = vmatpush.msra.mxu0 0.0
      %642 = vmatpush.msra.mxu0 0.0
      %643 = vmatpush.msra.mxu0 0.0
      %644 = vmatpush.msra.mxu0 0.0
      %645 = vmatpush.msra.mxu0 0.0
      %646 = vmatpush.msra.mxu0 0.0
      %647 = vmatpush.msra.mxu0 0.0
      %v648 = vand.u32 %v464, 4294901760
      %649 = vmatpush.msra.mxu0 %v648
      %v650 = vand.u32 %v463, 4294901760
      %651 = vmatpush.msra.mxu0 %v650
      %v652 = vand.u32 %v632, 4294901760
      %v653 = vsub.f32 %v632, %v652
      %v654 = vand.u32 %v653, 4294901760
      %v655 = vsub.f32 %v653, %v654
      %v656 = vand.u32 %v655, 4294901760
      %657 = vmatmul.f32.gmra.mxu0 %v656
      %v658 = vpop.f32.mrf.mxu0
      %v659 = vadd.f32 0.0, %v658
      %660 = vdwg.mxu0
      %661 = vmatpush.msra.mxu0 0.0
      %662 = vmatpush.msra.mxu0 0.0
      %663 = vmatpush.msra.mxu0 0.0
      %664 = vmatpush.msra.mxu0 0.0
      %665 = vmatpush.msra.mxu0 0.0
      %666 = vmatpush.msra.mxu0 0.0
      %667 = vmatpush.msra.mxu0 0.0
      %668 = vmatpush.msra.mxu0 0.0
      %669 = vmatpush.msra.mxu0 0.0
      %670 = vmatpush.msra.mxu0 0.0
      %671 = vmatpush.msra.mxu0 0.0
      %672 = vmatpush.msra.mxu0 0.0
      %673 = vmatpush.msra.mxu0 0.0
      %674 = vmatpush.msra.mxu0 0.0
      %v675 = vand.u32 %v464, 4294901760
      %v676 = vsub.f32 %v464, %v675
      %v677 = vand.u32 %v676, 4294901760
      %v678 = vsub.f32 %v676, %v677
      %v679 = vand.u32 %v678, 4294901760
      %680 = vmatpush.msra.mxu0 %v679
      %v681 = vand.u32 %v463, 4294901760
      %v682 = vsub.f32 %v463, %v681
      %v683 = vand.u32 %v682, 4294901760
      %v684 = vsub.f32 %v682, %v683
      %v685 = vand.u32 %v684, 4294901760
      %686 = vmatpush.msra.mxu0 %v685
      %v687 = vand.u32 %v632, 4294901760
      %688 = vmatmul.f32.gmra.mxu0 %v687
      %v689 = vpop.f32.mrf.mxu0
      %v690 = vadd.f32 %v659, %v689
      %691 = vdwg.mxu0
      %692 = vmatpush.msra.mxu0 0.0
      %693 = vmatpush.msra.mxu0 0.0
      %694 = vmatpush.msra.mxu0 0.0
      %695 = vmatpush.msra.mxu0 0.0
      %696 = vmatpush.msra.mxu0 0.0
      %697 = vmatpush.msra.mxu0 0.0
      %698 = vmatpush.msra.mxu0 0.0
      %699 = vmatpush.msra.mxu0 0.0
      %700 = vmatpush.msra.mxu0 0.0
      %701 = vmatpush.msra.mxu0 0.0
      %702 = vmatpush.msra.mxu0 0.0
      %703 = vmatpush.msra.mxu0 0.0
      %704 = vmatpush.msra.mxu0 0.0
      %705 = vmatpush.msra.mxu0 0.0
      %v706 = vand.u32 %v464, 4294901760
      %v707 = vsub.f32 %v464, %v706
      %708 = vmatpush.msra.mxu0 %v707
      %v709 = vand.u32 %v463, 4294901760
      %v710 = vsub.f32 %v463, %v709
      %711 = vmatpush.msra.mxu0 %v710
      %v712 = vand.u32 %v632, 4294901760
      %v713 = vsub.f32 %v632, %v712
      %714 = vmatmul.f32.gmra.mxu0 %v713
      %v715 = vpop.f32.mrf.mxu0
      %v716 = vadd.f32 %v690, %v715
      %717 = vdwg.mxu0
      %718 = vmatpush.msra.mxu0 0.0
      %719 = vmatpush.msra.mxu0 0.0
      %720 = vmatpush.msra.mxu0 0.0
      %721 = vmatpush.msra.mxu0 0.0
      %722 = vmatpush.msra.mxu0 0.0
      %723 = vmatpush.msra.mxu0 0.0
      %724 = vmatpush.msra.mxu0 0.0
      %725 = vmatpush.msra.mxu0 0.0
      %726 = vmatpush.msra.mxu0 0.0
      %727 = vmatpush.msra.mxu0 0.0
      %728 = vmatpush.msra.mxu0 0.0
      %729 = vmatpush.msra.mxu0 0.0
      %730 = vmatpush.msra.mxu0 0.0
      %731 = vmatpush.msra.mxu0 0.0
      %v732 = vand.u32 %v464, 4294901760
      %733 = vmatpush.msra.mxu0 %v732
      %v734 = vand.u32 %v463, 4294901760
      %735 = vmatpush.msra.mxu0 %v734
      %v736 = vand.u32 %v632, 4294901760
      %v737 = vsub.f32 %v632, %v736
      %v738 = vand.u32 %v737, 4294901760
      %739 = vmatmul.f32.gmra.mxu0 %v738
      %v740 = vpop.f32.mrf.mxu0
      %v741 = vadd.f32 %v716, %v740
      %742 = vdwg.mxu0
      %743 = vmatpush.msra.mxu0 0.0
      %744 = vmatpush.msra.mxu0 0.0
      %745 = vmatpush.msra.mxu0 0.0
      %746 = vmatpush.msra.mxu0 0.0
      %747 = vmatpush.msra.mxu0 0.0
      %748 = vmatpush.msra.mxu0 0.0
      %749 = vmatpush.msra.mxu0 0.0
      %750 = vmatpush.msra.mxu0 0.0
      %751 = vmatpush.msra.mxu0 0.0
      %752 = vmatpush.msra.mxu0 0.0
      %753 = vmatpush.msra.mxu0 0.0
      %754 = vmatpush.msra.mxu0 0.0
      %755 = vmatpush.msra.mxu0 0.0
      %756 = vmatpush.msra.mxu0 0.0
      %v757 = vand.u32 %v464, 4294901760
      %v758 = vsub.f32 %v464, %v757
      %v759 = vand.u32 %v758, 4294901760
      %760 = vmatpush.msra.mxu0 %v759
      %v761 = vand.u32 %v463, 4294901760
      %v762 = vsub.f32 %v463, %v761
      %v763 = vand.u32 %v762, 4294901760
      %764 = vmatpush.msra.mxu0 %v763
      %v765 = vand.u32 %v632, 4294901760
      %766 = vmatmul.f32.gmra.mxu0 %v765
      %v767 = vpop.f32.mrf.mxu0
      %v768 = vadd.f32 %v741, %v767
      %769 = vdwg.mxu0
      %770 = vmatpush.msra.mxu0 0.0
      %771 = vmatpush.msra.mxu0 0.0
      %772 = vmatpush.msra.mxu0 0.0
      %773 = vmatpush.msra.mxu0 0.0
      %774 = vmatpush.msra.mxu0 0.0
      %775 = vmatpush.msra.mxu0 0.0
      %776 = vmatpush.msra.mxu0 0.0
      %777 = vmatpush.msra.mxu0 0.0
      %778 = vmatpush.msra.mxu0 0.0
      %779 = vmatpush.msra.mxu0 0.0
      %780 = vmatpush.msra.mxu0 0.0
      %781 = vmatpush.msra.mxu0 0.0
      %782 = vmatpush.msra.mxu0 0.0
      %783 = vmatpush.msra.mxu0 0.0
      %v784 = vand.u32 %v464, 4294901760
      %785 = vmatpush.msra.mxu0 %v784
      %v786 = vand.u32 %v463, 4294901760
      %787 = vmatpush.msra.mxu0 %v786
      %v788 = vand.u32 %v632, 4294901760
      %789 = vmatmul.f32.gmra.mxu0 %v788
      %v790 = vpop.f32.mrf.mxu0
      %v791 = vadd.f32 %v768, %v790
      %792 = vdwg.mxu0
      %v793 = vmax.f32 %v791, 0.0
      %v794 = vld [vmem:[%s3] sm:$0xff]
      %v795 = vld [vmem:[%s3 + $0x8] sm:$0xff]
      %v797 = vsel %vm468, %v793, 0
      %799 = vmatpush.msra.mxu0 0.0
      %800 = vmatpush.msra.mxu0 0.0
      %801 = vmatpush.msra.mxu0 0.0
      %802 = vmatpush.msra.mxu0 0.0
      %803 = vmatpush.msra.mxu0 0.0
      %804 = vmatpush.msra.mxu0 0.0
      %805 = vmatpush.msra.mxu0 0.0
      %806 = vmatpush.msra.mxu0 0.0
      %807 = vmatpush.msra.mxu0 0.0
      %808 = vmatpush.msra.mxu0 0.0
      %809 = vmatpush.msra.mxu0 0.0
      %810 = vmatpush.msra.mxu0 0.0
      %811 = vmatpush.msra.mxu0 0.0
      %812 = vmatpush.msra.mxu0 0.0
      %v813 = vand.u32 %v795, 4294901760
      %814 = vmatpush.msra.mxu0 %v813
      %v815 = vand.u32 %v794, 4294901760
      %816 = vmatpush.msra.mxu0 %v815
      %v817 = vand.u32 %v797, 4294901760
      %v818 = vsub.f32 %v797, %v817
      %v819 = vand.u32 %v818, 4294901760
      %v820 = vsub.f32 %v818, %v819
      %v821 = vand.u32 %v820, 4294901760
      %822 = vmatmul.f32.gmra.mxu0 %v821
      %v823 = vpop.f32.mrf.mxu0
      %v824 = vadd.f32 0.0, %v823
      %825 = vdwg.mxu0
      %826 = vmatpush.msra.mxu0 0.0
      %827 = vmatpush.msra.mxu0 0.0
      %828 = vmatpush.msra.mxu0 0.0
      %829 = vmatpush.msra.mxu0 0.0
      %830 = vmatpush.msra.mxu0 0.0
      %831 = vmatpush.msra.mxu0 0.0
      %832 = vmatpush.msra.mxu0 0.0
      %833 = vmatpush.msra.mxu0 0.0
      %834 = vmatpush.msra.mxu0 0.0
      %835 = vmatpush.msra.mxu0 0.0
      %836 = vmatpush.msra.mxu0 0.0
      %837 = vmatpush.msra.mxu0 0.0
      %838 = vmatpush.msra.mxu0 0.0
      %839 = vmatpush.msra.mxu0 0.0
      %v840 = vand.u32 %v795, 4294901760
      %v841 = vsub.f32 %v795, %v840
      %v842 = vand.u32 %v841, 4294901760
      %v843 = vsub.f32 %v841, %v842
      %v844 = vand.u32 %v843, 4294901760
      %845 = vmatpush.msra.mxu0 %v844
      %v846 = vand.u32 %v794, 4294901760
      %v847 = vsub.f32 %v794, %v846
      %v848 = vand.u32 %v847, 4294901760
      %v849 = vsub.f32 %v847, %v848
      %v850 = vand.u32 %v849, 4294901760
      %851 = vmatpush.msra.mxu0 %v850
      %v852 = vand.u32 %v797, 4294901760
      %853 = vmatmul.f32.gmra.mxu0 %v852
      %v854 = vpop.f32.mrf.mxu0
      %v855 = vadd.f32 %v824, %v854
      %856 = vdwg.mxu0
      %857 = vmatpush.msra.mxu0 0.0
      %858 = vmatpush.msra.mxu0 0.0
      %859 = vmatpush.msra.mxu0 0.0
      %860 = vmatpush.msra.mxu0 0.0
      %861 = vmatpush.msra.mxu0 0.0
      %862 = vmatpush.msra.mxu0 0.0
      %863 = vmatpush.msra.mxu0 0.0
      %864 = vmatpush.msra.mxu0 0.0
      %865 = vmatpush.msra.mxu0 0.0
      %866 = vmatpush.msra.mxu0 0.0
      %867 = vmatpush.msra.mxu0 0.0
      %868 = vmatpush.msra.mxu0 0.0
      %869 = vmatpush.msra.mxu0 0.0
      %870 = vmatpush.msra.mxu0 0.0
      %v871 = vand.u32 %v795, 4294901760
      %v872 = vsub.f32 %v795, %v871
      %873 = vmatpush.msra.mxu0 %v872
      %v874 = vand.u32 %v794, 4294901760
      %v875 = vsub.f32 %v794, %v874
      %876 = vmatpush.msra.mxu0 %v875
      %v877 = vand.u32 %v797, 4294901760
      %v878 = vsub.f32 %v797, %v877
      %879 = vmatmul.f32.gmra.mxu0 %v878
      %v880 = vpop.f32.mrf.mxu0
      %v881 = vadd.f32 %v855, %v880
      %882 = vdwg.mxu0
      %883 = vmatpush.msra.mxu0 0.0
      %884 = vmatpush.msra.mxu0 0.0
      %885 = vmatpush.msra.mxu0 0.0
      %886 = vmatpush.msra.mxu0 0.0
      %887 = vmatpush.msra.mxu0 0.0
      %888 = vmatpush.msra.mxu0 0.0
      %889 = vmatpush.msra.mxu0 0.0
      %890 = vmatpush.msra.mxu0 0.0
      %891 = vmatpush.msra.mxu0 0.0
      %892 = vmatpush.msra.mxu0 0.0
      %893 = vmatpush.msra.mxu0 0.0
      %894 = vmatpush.msra.mxu0 0.0
      %895 = vmatpush.msra.mxu0 0.0
      %896 = vmatpush.msra.mxu0 0.0
      %v897 = vand.u32 %v795, 4294901760
      %898 = vmatpush.msra.mxu0 %v897
      %v899 = vand.u32 %v794, 4294901760
      %900 = vmatpush.msra.mxu0 %v899
      %v901 = vand.u32 %v797, 4294901760
      %v902 = vsub.f32 %v797, %v901
      %v903 = vand.u32 %v902, 4294901760
      %904 = vmatmul.f32.gmra.mxu0 %v903
      %v905 = vpop.f32.mrf.mxu0
      %v906 = vadd.f32 %v881, %v905
      %907 = vdwg.mxu0
      %908 = vmatpush.msra.mxu0 0.0
      %909 = vmatpush.msra.mxu0 0.0
      %910 = vmatpush.msra.mxu0 0.0
      %911 = vmatpush.msra.mxu0 0.0
      %912 = vmatpush.msra.mxu0 0.0
      %913 = vmatpush.msra.mxu0 0.0
      %914 = vmatpush.msra.mxu0 0.0
      %915 = vmatpush.msra.mxu0 0.0
      %916 = vmatpush.msra.mxu0 0.0
      %917 = vmatpush.msra.mxu0 0.0
      %918 = vmatpush.msra.mxu0 0.0
      %919 = vmatpush.msra.mxu0 0.0
      %920 = vmatpush.msra.mxu0 0.0
      %921 = vmatpush.msra.mxu0 0.0
      %v922 = vand.u32 %v795, 4294901760
      %v923 = vsub.f32 %v795, %v922
      %v924 = vand.u32 %v923, 4294901760
      %925 = vmatpush.msra.mxu0 %v924
      %v926 = vand.u32 %v794, 4294901760
      %v927 = vsub.f32 %v794, %v926
      %v928 = vand.u32 %v927, 4294901760
      %929 = vmatpush.msra.mxu0 %v928
      %v930 = vand.u32 %v797, 4294901760
      %931 = vmatmul.f32.gmra.mxu0 %v930
      %v932 = vpop.f32.mrf.mxu0
      %v933 = vadd.f32 %v906, %v932
      %934 = vdwg.mxu0
      %935 = vmatpush.msra.mxu0 0.0
      %936 = vmatpush.msra.mxu0 0.0
      %937 = vmatpush.msra.mxu0 0.0
      %938 = vmatpush.msra.mxu0 0.0
      %939 = vmatpush.msra.mxu0 0.0
      %940 = vmatpush.msra.mxu0 0.0
      %941 = vmatpush.msra.mxu0 0.0
      %942 = vmatpush.msra.mxu0 0.0
      %943 = vmatpush.msra.mxu0 0.0
      %944 = vmatpush.msra.mxu0 0.0
      %945 = vmatpush.msra.mxu0 0.0
      %946 = vmatpush.msra.mxu0 0.0
      %947 = vmatpush.msra.mxu0 0.0
      %948 = vmatpush.msra.mxu0 0.0
      %v949 = vand.u32 %v795, 4294901760
      %950 = vmatpush.msra.mxu0 %v949
      %v951 = vand.u32 %v794, 4294901760
      %952 = vmatpush.msra.mxu0 %v951
      %v953 = vand.u32 %v797, 4294901760
      %954 = vmatmul.f32.gmra.mxu0 %v953
      %v955 = vpop.f32.mrf.mxu0
      %v956 = vadd.f32 %v933, %v955
      %957 = vdwg.mxu0
      %v959 = vsel %vm468, %v956, 0
      %961 = vmatpush.msra.mxu0 0.0
      %962 = vmatpush.msra.mxu0 0.0
      %963 = vmatpush.msra.mxu0 0.0
      %964 = vmatpush.msra.mxu0 0.0
      %965 = vmatpush.msra.mxu0 0.0
      %966 = vmatpush.msra.mxu0 0.0
      %967 = vmatpush.msra.mxu0 0.0
      %968 = vmatpush.msra.mxu0 0.0
      %969 = vmatpush.msra.mxu0 0.0
      %970 = vmatpush.msra.mxu0 0.0
      %971 = vmatpush.msra.mxu0 0.0
      %972 = vmatpush.msra.mxu0 0.0
      %973 = vmatpush.msra.mxu0 0.0
      %974 = vmatpush.msra.mxu0 0.0
      %v975 = vand.u32 %v464, 4294901760
      %976 = vmatpush.msra.mxu0 %v975
      %v977 = vand.u32 %v463, 4294901760
      %978 = vmatpush.msra.mxu0 %v977
      %v979 = vand.u32 %v959, 4294901760
      %v980 = vsub.f32 %v959, %v979
      %v981 = vand.u32 %v980, 4294901760
      %v982 = vsub.f32 %v980, %v981
      %v983 = vand.u32 %v982, 4294901760
      %984 = vmatmul.f32.gmra.mxu0 %v983
      %v985 = vpop.f32.mrf.mxu0
      %v986 = vadd.f32 0.0, %v985
      %987 = vdwg.mxu0
      %988 = vmatpush.msra.mxu0 0.0
      %989 = vmatpush.msra.mxu0 0.0
      %990 = vmatpush.msra.mxu0 0.0
      %991 = vmatpush.msra.mxu0 0.0
      %992 = vmatpush.msra.mxu0 0.0
      %993 = vmatpush.msra.mxu0 0.0
      %994 = vmatpush.msra.mxu0 0.0
      %995 = vmatpush.msra.mxu0 0.0
      %996 = vmatpush.msra.mxu0 0.0
      %997 = vmatpush.msra.mxu0 0.0
      %998 = vmatpush.msra.mxu0 0.0
      %999 = vmatpush.msra.mxu0 0.0
      %1000 = vmatpush.msra.mxu0 0.0
      %1001 = vmatpush.msra.mxu0 0.0
      %v1002 = vand.u32 %v464, 4294901760
      %v1003 = vsub.f32 %v464, %v1002
      %v1004 = vand.u32 %v1003, 4294901760
      %v1005 = vsub.f32 %v1003, %v1004
      %v1006 = vand.u32 %v1005, 4294901760
      %1007 = vmatpush.msra.mxu0 %v1006
      %v1008 = vand.u32 %v463, 4294901760
      %v1009 = vsub.f32 %v463, %v1008
      %v1010 = vand.u32 %v1009, 4294901760
      %v1011 = vsub.f32 %v1009, %v1010
      %v1012 = vand.u32 %v1011, 4294901760
      %1013 = vmatpush.msra.mxu0 %v1012
      %v1014 = vand.u32 %v959, 4294901760
      %1015 = vmatmul.f32.gmra.mxu0 %v1014
      %v1016 = vpop.f32.mrf.mxu0
      %v1017 = vadd.f32 %v986, %v1016
      %1018 = vdwg.mxu0
      %1019 = vmatpush.msra.mxu0 0.0
      %1020 = vmatpush.msra.mxu0 0.0
      %1021 = vmatpush.msra.mxu0 0.0
      %1022 = vmatpush.msra.mxu0 0.0
      %1023 = vmatpush.msra.mxu0 0.0
      %1024 = vmatpush.msra.mxu0 0.0
      %1025 = vmatpush.msra.mxu0 0.0
      %1026 = vmatpush.msra.mxu0 0.0
      %1027 = vmatpush.msra.mxu0 0.0
      %1028 = vmatpush.msra.mxu0 0.0
      %1029 = vmatpush.msra.mxu0 0.0
      %1030 = vmatpush.msra.mxu0 0.0
      %1031 = vmatpush.msra.mxu0 0.0
      %1032 = vmatpush.msra.mxu0 0.0
      %v1033 = vand.u32 %v464, 4294901760
      %v1034 = vsub.f32 %v464, %v1033
      %1035 = vmatpush.msra.mxu0 %v1034
      %v1036 = vand.u32 %v463, 4294901760
      %v1037 = vsub.f32 %v463, %v1036
      %1038 = vmatpush.msra.mxu0 %v1037
      %v1039 = vand.u32 %v959, 4294901760
      %v1040 = vsub.f32 %v959, %v1039
      %1041 = vmatmul.f32.gmra.mxu0 %v1040
      %v1042 = vpop.f32.mrf.mxu0
      %v1043 = vadd.f32 %v1017, %v1042
      %1044 = vdwg.mxu0
      %1045 = vmatpush.msra.mxu0 0.0
      %1046 = vmatpush.msra.mxu0 0.0
      %1047 = vmatpush.msra.mxu0 0.0
      %1048 = vmatpush.msra.mxu0 0.0
      %1049 = vmatpush.msra.mxu0 0.0
      %1050 = vmatpush.msra.mxu0 0.0
      %1051 = vmatpush.msra.mxu0 0.0
      %1052 = vmatpush.msra.mxu0 0.0
      %1053 = vmatpush.msra.mxu0 0.0
      %1054 = vmatpush.msra.mxu0 0.0
      %1055 = vmatpush.msra.mxu0 0.0
      %1056 = vmatpush.msra.mxu0 0.0
      %1057 = vmatpush.msra.mxu0 0.0
      %1058 = vmatpush.msra.mxu0 0.0
      %v1059 = vand.u32 %v464, 4294901760
      %1060 = vmatpush.msra.mxu0 %v1059
      %v1061 = vand.u32 %v463, 4294901760
      %1062 = vmatpush.msra.mxu0 %v1061
      %v1063 = vand.u32 %v959, 4294901760
      %v1064 = vsub.f32 %v959, %v1063
      %v1065 = vand.u32 %v1064, 4294901760
      %1066 = vmatmul.f32.gmra.mxu0 %v1065
      %v1067 = vpop.f32.mrf.mxu0
      %v1068 = vadd.f32 %v1043, %v1067
      %1069 = vdwg.mxu0
      %1070 = vmatpush.msra.mxu0 0.0
      %1071 = vmatpush.msra.mxu0 0.0
      %1072 = vmatpush.msra.mxu0 0.0
      %1073 = vmatpush.msra.mxu0 0.0
      %1074 = vmatpush.msra.mxu0 0.0
      %1075 = vmatpush.msra.mxu0 0.0
      %1076 = vmatpush.msra.mxu0 0.0
      %1077 = vmatpush.msra.mxu0 0.0
      %1078 = vmatpush.msra.mxu0 0.0
      %1079 = vmatpush.msra.mxu0 0.0
      %1080 = vmatpush.msra.mxu0 0.0
      %1081 = vmatpush.msra.mxu0 0.0
      %1082 = vmatpush.msra.mxu0 0.0
      %1083 = vmatpush.msra.mxu0 0.0
      %v1084 = vand.u32 %v464, 4294901760
      %v1085 = vsub.f32 %v464, %v1084
      %v1086 = vand.u32 %v1085, 4294901760
      %1087 = vmatpush.msra.mxu0 %v1086
      %v1088 = vand.u32 %v463, 4294901760
      %v1089 = vsub.f32 %v463, %v1088
      %v1090 = vand.u32 %v1089, 4294901760
      %1091 = vmatpush.msra.mxu0 %v1090
      %v1092 = vand.u32 %v959, 4294901760
      %1093 = vmatmul.f32.gmra.mxu0 %v1092
      %v1094 = vpop.f32.mrf.mxu0
      %v1095 = vadd.f32 %v1068, %v1094
      %1096 = vdwg.mxu0
      %1097 = vmatpush.msra.mxu0 0.0
      %1098 = vmatpush.msra.mxu0 0.0
      %1099 = vmatpush.msra.mxu0 0.0
      %1100 = vmatpush.msra.mxu0 0.0
      %1101 = vmatpush.msra.mxu0 0.0
      %1102 = vmatpush.msra.mxu0 0.0
      %1103 = vmatpush.msra.mxu0 0.0
      %1104 = vmatpush.msra.mxu0 0.0
      %1105 = vmatpush.msra.mxu0 0.0
      %1106 = vmatpush.msra.mxu0 0.0
      %1107 = vmatpush.msra.mxu0 0.0
      %1108 = vmatpush.msra.mxu0 0.0
      %1109 = vmatpush.msra.mxu0 0.0
      %1110 = vmatpush.msra.mxu0 0.0
      %v1111 = vand.u32 %v464, 4294901760
      %1112 = vmatpush.msra.mxu0 %v1111
      %v1113 = vand.u32 %v463, 4294901760
      %1114 = vmatpush.msra.mxu0 %v1113
      %v1115 = vand.u32 %v959, 4294901760
      %1116 = vmatmul.f32.gmra.mxu0 %v1115
      %v1117 = vpop.f32.mrf.mxu0
      %v1118 = vadd.f32 %v1095, %v1117
      %1119 = vdwg.mxu0
      %v1120 = vld [vmem:[%s4] sm:$0xff]
      %1121 = vxpose.xlu0.b32.start [1/16] %v1118, 128
      %1122 = vxpose.xlu0.b32.cont [2/16] 0.0, 128
      %1123 = vxpose.xlu0.b32.cont [3/16] 0.0, 128
      %1124 = vxpose.xlu0.b32.cont [4/16] 0.0, 128
      %1125 = vxpose.xlu0.b32.cont [5/16] 0.0, 128
      %1126 = vxpose.xlu0.b32.cont [6/16] 0.0, 128
      %1127 = vxpose.xlu0.b32.cont [7/16] 0.0, 128
      %1128 = vxpose.xlu0.b32.cont [8/16] 0.0, 128
      %1129 = vxpose.xlu0.b32.cont [9/16] 0.0, 128
      %1130 = vxpose.xlu0.b32.cont [10/16] 0.0, 128
      %1131 = vxpose.xlu0.b32.cont [11/16] 0.0, 128
      %1132 = vxpose.xlu0.b32.cont [12/16] 0.0, 128
      %1133 = vxpose.xlu0.b32.cont [13/16] 0.0, 128
      %1134 = vxpose.xlu0.b32.cont [14/16] 0.0, 128
      %1135 = vxpose.xlu0.b32.cont [15/16] 0.0, 128
      %1136 = vxpose.xlu0.b32.end [16/16] 0.0, 128
      %v1137 = vpop.trf.xlu0
      %v1138 = vpop.trf.xlu0
      %v1139 = vpop.trf.xlu0
      %v1140 = vpop.trf.xlu0
      %v1141 = vpop.trf.xlu0
      %v1142 = vpop.trf.xlu0
      %v1143 = vpop.trf.xlu0
      %v1144 = vpop.trf.xlu0
      %v1145 = vpop.trf.xlu0
      %v1146 = vpop.trf.xlu0
      %v1147 = vpop.trf.xlu0
      %v1148 = vpop.trf.xlu0
      %v1149 = vpop.trf.xlu0
      %v1150 = vpop.trf.xlu0
      %v1151 = vpop.trf.xlu0
      %v1152 = vpop.trf.xlu0
      %vm1153 = vcmask 64512
      %v1155 = vsel %vm1153, %v1137, 0
      %v1158 = vsel %vm1153, %v1138, 0
      %1160 = vmatpush.msra.mxu0 0.0
      %1161 = vmatpush.msra.mxu0 0.0
      %1162 = vmatpush.msra.mxu0 0.0
      %1163 = vmatpush.msra.mxu0 0.0
      %1164 = vmatpush.msra.mxu0 0.0
      %1165 = vmatpush.msra.mxu0 0.0
      %1166 = vmatpush.msra.mxu0 0.0
      %1167 = vmatpush.msra.mxu0 0.0
      %1168 = vmatpush.msra.mxu0 0.0
      %1169 = vmatpush.msra.mxu0 0.0
      %1170 = vmatpush.msra.mxu0 0.0
      %1171 = vmatpush.msra.mxu0 0.0
      %1172 = vmatpush.msra.mxu0 0.0
      %1173 = vmatpush.msra.mxu0 0.0
      %1174 = vmatpush.msra.mxu0 0.0
      %v1175 = vand.u32 %v1120, 4294901760
      %1176 = vmatpush.msra.mxu0 %v1175
      %v1177 = vand.u32 %v1155, 4294901760
      %v1178 = vsub.f32 %v1155, %v1177
      %v1179 = vand.u32 %v1178, 4294901760
      %v1180 = vsub.f32 %v1178, %v1179
      %v1181 = vand.u32 %v1180, 4294901760
      %1182 = vmatmul.f32.gmra.mxu0 %v1181
      %v1183 = vpop.f32.mrf.mxu0
      %v1184 = vadd.f32 0.0, %v1183
      %v1185 = vand.u32 %v1158, 4294901760
      %v1186 = vsub.f32 %v1158, %v1185
      %v1187 = vand.u32 %v1186, 4294901760
      %v1188 = vsub.f32 %v1186, %v1187
      %v1189 = vand.u32 %v1188, 4294901760
      %1190 = vmatmul.f32.gmra.mxu0 %v1189
      %v1191 = vpop.f32.mrf.mxu0
      %v1192 = vadd.f32 0.0, %v1191
      %1193 = vdwg.mxu0
      %1194 = vmatpush.msra.mxu0 0.0
      %1195 = vmatpush.msra.mxu0 0.0
      %1196 = vmatpush.msra.mxu0 0.0
      %1197 = vmatpush.msra.mxu0 0.0
      %1198 = vmatpush.msra.mxu0 0.0
      %1199 = vmatpush.msra.mxu0 0.0
      %1200 = vmatpush.msra.mxu0 0.0
      %1201 = vmatpush.msra.mxu0 0.0
      %1202 = vmatpush.msra.mxu0 0.0
      %1203 = vmatpush.msra.mxu0 0.0
      %1204 = vmatpush.msra.mxu0 0.0
      %1205 = vmatpush.msra.mxu0 0.0
      %1206 = vmatpush.msra.mxu0 0.0
      %1207 = vmatpush.msra.mxu0 0.0
      %1208 = vmatpush.msra.mxu0 0.0
      %v1209 = vand.u32 %v1120, 4294901760
      %v1210 = vsub.f32 %v1120, %v1209
      %v1211 = vand.u32 %v1210, 4294901760
      %v1212 = vsub.f32 %v1210, %v1211
      %v1213 = vand.u32 %v1212, 4294901760
      %1214 = vmatpush.msra.mxu0 %v1213
      %v1215 = vand.u32 %v1155, 4294901760
      %1216 = vmatmul.f32.gmra.mxu0 %v1215
      %v1217 = vpop.f32.mrf.mxu0
      %v1218 = vadd.f32 %v1184, %v1217
      %v1219 = vand.u32 %v1158, 4294901760
      %1220 = vmatmul.f32.gmra.mxu0 %v1219
      %v1221 = vpop.f32.mrf.mxu0
      %v1222 = vadd.f32 %v1192, %v1221
      %1223 = vdwg.mxu0
      %1224 = vmatpush.msra.mxu0 0.0
      %1225 = vmatpush.msra.mxu0 0.0
      %1226 = vmatpush.msra.mxu0 0.0
      %1227 = vmatpush.msra.mxu0 0.0
      %1228 = vmatpush.msra.mxu0 0.0
      %1229 = vmatpush.msra.mxu0 0.0
      %1230 = vmatpush.msra.mxu0 0.0
      %1231 = vmatpush.msra.mxu0 0.0
      %1232 = vmatpush.msra.mxu0 0.0
      %1233 = vmatpush.msra.mxu0 0.0
      %1234 = vmatpush.msra.mxu0 0.0
      %1235 = vmatpush.msra.mxu0 0.0
      %1236 = vmatpush.msra.mxu0 0.0
      %1237 = vmatpush.msra.mxu0 0.0
      %1238 = vmatpush.msra.mxu0 0.0
      %v1239 = vand.u32 %v1120, 4294901760
      %v1240 = vsub.f32 %v1120, %v1239
      %1241 = vmatpush.msra.mxu0 %v1240
      %v1242 = vand.u32 %v1155, 4294901760
      %v1243 = vsub.f32 %v1155, %v1242
      %1244 = vmatmul.f32.gmra.mxu0 %v1243
      %v1245 = vpop.f32.mrf.mxu0
      %v1246 = vadd.f32 %v1218, %v1245
      %v1247 = vand.u32 %v1158, 4294901760
      %v1248 = vsub.f32 %v1158, %v1247
      %1249 = vmatmul.f32.gmra.mxu0 %v1248
      %v1250 = vpop.f32.mrf.mxu0
      %v1251 = vadd.f32 %v1222, %v1250
      %1252 = vdwg.mxu0
      %1253 = vmatpush.msra.mxu0 0.0
      %1254 = vmatpush.msra.mxu0 0.0
      %1255 = vmatpush.msra.mxu0 0.0
      %1256 = vmatpush.msra.mxu0 0.0
      %1257 = vmatpush.msra.mxu0 0.0
      %1258 = vmatpush.msra.mxu0 0.0
      %1259 = vmatpush.msra.mxu0 0.0
      %1260 = vmatpush.msra.mxu0 0.0
      %1261 = vmatpush.msra.mxu0 0.0
      %1262 = vmatpush.msra.mxu0 0.0
      %1263 = vmatpush.msra.mxu0 0.0
      %1264 = vmatpush.msra.mxu0 0.0
      %1265 = vmatpush.msra.mxu0 0.0
      %1266 = vmatpush.msra.mxu0 0.0
      %1267 = vmatpush.msra.mxu0 0.0
      %v1268 = vand.u32 %v1120, 4294901760
      %1269 = vmatpush.msra.mxu0 %v1268
      %v1270 = vand.u32 %v1155, 4294901760
      %v1271 = vsub.f32 %v1155, %v1270
      %v1272 = vand.u32 %v1271, 4294901760
      %1273 = vmatmul.f32.gmra.mxu0 %v1272
      %v1274 = vpop.f32.mrf.mxu0
      %v1275 = vadd.f32 %v1246, %v1274
      %v1276 = vand.u32 %v1158, 4294901760
      %v1277 = vsub.f32 %v1158, %v1276
      %v1278 = vand.u32 %v1277, 4294901760
      %1279 = vmatmul.f32.gmra.mxu0 %v1278
      %v1280 = vpop.f32.mrf.mxu0
      %v1281 = vadd.f32 %v1251, %v1280
      %1282 = vdwg.mxu0
      %1283 = vmatpush.msra.mxu0 0.0
      %1284 = vmatpush.msra.mxu0 0.0
      %1285 = vmatpush.msra.mxu0 0.0
      %1286 = vmatpush.msra.mxu0 0.0
      %1287 = vmatpush.msra.mxu0 0.0
      %1288 = vmatpush.msra.mxu0 0.0
      %1289 = vmatpush.msra.mxu0 0.0
      %1290 = vmatpush.msra.mxu0 0.0
      %1291 = vmatpush.msra.mxu0 0.0
      %1292 = vmatpush.msra.mxu0 0.0
      %1293 = vmatpush.msra.mxu0 0.0
      %1294 = vmatpush.msra.mxu0 0.0
      %1295 = vmatpush.msra.mxu0 0.0
      %1296 = vmatpush.msra.mxu0 0.0
      %1297 = vmatpush.msra.mxu0 0.0
      %v1298 = vand.u32 %v1120, 4294901760
      %v1299 = vsub.f32 %v1120, %v1298
      %v1300 = vand.u32 %v1299, 4294901760
      %1301 = vmatpush.msra.mxu0 %v1300
      %v1302 = vand.u32 %v1155, 4294901760
      %1303 = vmatmul.f32.gmra.mxu0 %v1302
      %v1304 = vpop.f32.mrf.mxu0
      %v1305 = vadd.f32 %v1275, %v1304
      %v1306 = vand.u32 %v1158, 4294901760
      %1307 = vmatmul.f32.gmra.mxu0 %v1306
      %v1308 = vpop.f32.mrf.mxu0
      %v1309 = vadd.f32 %v1281, %v1308
      %1310 = vdwg.mxu0
      %1311 = vmatpush.msra.mxu0 0.0
      %1312 = vmatpush.msra.mxu0 0.0
      %1313 = vmatpush.msra.mxu0 0.0
      %1314 = vmatpush.msra.mxu0 0.0
      %1315 = vmatpush.msra.mxu0 0.0
      %1316 = vmatpush.msra.mxu0 0.0
      %1317 = vmatpush.msra.mxu0 0.0
      %1318 = vmatpush.msra.mxu0 0.0
      %1319 = vmatpush.msra.mxu0 0.0
      %1320 = vmatpush.msra.mxu0 0.0
      %1321 = vmatpush.msra.mxu0 0.0
      %1322 = vmatpush.msra.mxu0 0.0
      %1323 = vmatpush.msra.mxu0 0.0
      %1324 = vmatpush.msra.mxu0 0.0
      %1325 = vmatpush.msra.mxu0 0.0
      %v1326 = vand.u32 %v1120, 4294901760
      %1327 = vmatpush.msra.mxu0 %v1326
      %v1328 = vand.u32 %v1155, 4294901760
      %1329 = vmatmul.f32.gmra.mxu0 %v1328
      %v1330 = vpop.f32.mrf.mxu0
      %v1331 = vadd.f32 %v1305, %v1330
      %v1332 = vand.u32 %v1158, 4294901760
      %1333 = vmatmul.f32.gmra.mxu0 %v1332
      %v1334 = vpop.f32.mrf.mxu0
      %v1335 = vadd.f32 %v1309, %v1334
      %1336 = vdwg.mxu0
      %vm1337 = vcmask 523264
      %v1339 = vsel %vm1337, %v1331, 0
      %v1342 = vsel %vm1337, %v1335, 0
      %1344 = vmatpush.xpose.msra.mxu0 0.0
      %1345 = vmatpush.xpose.msra.mxu0 0.0
      %1346 = vmatpush.xpose.msra.mxu0 0.0
      %1347 = vmatpush.xpose.msra.mxu0 0.0
      %1348 = vmatpush.xpose.msra.mxu0 0.0
      %1349 = vmatpush.xpose.msra.mxu0 0.0
      %1350 = vmatpush.xpose.msra.mxu0 0.0
      %1351 = vmatpush.xpose.msra.mxu0 0.0
      %1352 = vmatpush.xpose.msra.mxu0 0.0
      %1353 = vmatpush.xpose.msra.mxu0 0.0
      %1354 = vmatpush.xpose.msra.mxu0 0.0
      %1355 = vmatpush.xpose.msra.mxu0 0.0
      %1356 = vmatpush.xpose.msra.mxu0 0.0
      %1357 = vmatpush.xpose.msra.mxu0 0.0
      %v1358 = vand.u32 %v1342, 4294901760
      %1359 = vmatpush.xpose.msra.mxu0 %v1358
      %v1360 = vand.u32 %v1339, 4294901760
      %1361 = vmatpush.xpose.msra.mxu0 %v1360
      %v1362 = vand.u32 %v1339, 4294901760
      %v1363 = vsub.f32 %v1339, %v1362
      %v1364 = vand.u32 %v1363, 4294901760
      %v1365 = vsub.f32 %v1363, %v1364
      %v1366 = vand.u32 %v1365, 4294901760
      %1367 = vmatmul.f32.gmra.mxu0 %v1366
      %v1368 = vpop.f32.mrf.mxu0
      %v1369 = vadd.f32 0.0, %v1368
      %v1370 = vand.u32 %v1342, 4294901760
      %v1371 = vsub.f32 %v1342, %v1370
      %v1372 = vand.u32 %v1371, 4294901760
      %v1373 = vsub.f32 %v1371, %v1372
      %v1374 = vand.u32 %v1373, 4294901760
      %1375 = vmatmul.f32.gmra.mxu0 %v1374
      %v1376 = vpop.f32.mrf.mxu0
      %v1377 = vadd.f32 0.0, %v1376
      %1378 = vdwg.mxu0
      %1379 = vmatpush.xpose.msra.mxu0 0.0
      %1380 = vmatpush.xpose.msra.mxu0 0.0
      %1381 = vmatpush.xpose.msra.mxu0 0.0
      %1382 = vmatpush.xpose.msra.mxu0 0.0
      %1383 = vmatpush.xpose.msra.mxu0 0.0
      %1384 = vmatpush.xpose.msra.mxu0 0.0
      %1385 = vmatpush.xpose.msra.mxu0 0.0
      %1386 = vmatpush.xpose.msra.mxu0 0.0
      %1387 = vmatpush.xpose.msra.mxu0 0.0
      %1388 = vmatpush.xpose.msra.mxu0 0.0
      %1389 = vmatpush.xpose.msra.mxu0 0.0
      %1390 = vmatpush.xpose.msra.mxu0 0.0
      %1391 = vmatpush.xpose.msra.mxu0 0.0
      %1392 = vmatpush.xpose.msra.mxu0 0.0
      %v1393 = vand.u32 %v1342, 4294901760
      %v1394 = vsub.f32 %v1342, %v1393
      %v1395 = vand.u32 %v1394, 4294901760
      %v1396 = vsub.f32 %v1394, %v1395
      %v1397 = vand.u32 %v1396, 4294901760
      %1398 = vmatpush.xpose.msra.mxu0 %v1397
      %v1399 = vand.u32 %v1339, 4294901760
      %v1400 = vsub.f32 %v1339, %v1399
      %v1401 = vand.u32 %v1400, 4294901760
      %v1402 = vsub.f32 %v1400, %v1401
      %v1403 = vand.u32 %v1402, 4294901760
      %1404 = vmatpush.xpose.msra.mxu0 %v1403
      %v1405 = vand.u32 %v1339, 4294901760
      %1406 = vmatmul.f32.gmra.mxu0 %v1405
      %v1407 = vpop.f32.mrf.mxu0
      %v1408 = vadd.f32 %v1369, %v1407
      %v1409 = vand.u32 %v1342, 4294901760
      %1410 = vmatmul.f32.gmra.mxu0 %v1409
      %v1411 = vpop.f32.mrf.mxu0
      %v1412 = vadd.f32 %v1377, %v1411
      %1413 = vdwg.mxu0
      %1414 = vmatpush.xpose.msra.mxu0 0.0
      %1415 = vmatpush.xpose.msra.mxu0 0.0
      %1416 = vmatpush.xpose.msra.mxu0 0.0
      %1417 = vmatpush.xpose.msra.mxu0 0.0
      %1418 = vmatpush.xpose.msra.mxu0 0.0
      %1419 = vmatpush.xpose.msra.mxu0 0.0
      %1420 = vmatpush.xpose.msra.mxu0 0.0
      %1421 = vmatpush.xpose.msra.mxu0 0.0
      %1422 = vmatpush.xpose.msra.mxu0 0.0
      %1423 = vmatpush.xpose.msra.mxu0 0.0
      %1424 = vmatpush.xpose.msra.mxu0 0.0
      %1425 = vmatpush.xpose.msra.mxu0 0.0
      %1426 = vmatpush.xpose.msra.mxu0 0.0
      %1427 = vmatpush.xpose.msra.mxu0 0.0
      %v1428 = vand.u32 %v1342, 4294901760
      %v1429 = vsub.f32 %v1342, %v1428
      %1430 = vmatpush.xpose.msra.mxu0 %v1429
      %v1431 = vand.u32 %v1339, 4294901760
      %v1432 = vsub.f32 %v1339, %v1431
      %1433 = vmatpush.xpose.msra.mxu0 %v1432
      %v1434 = vand.u32 %v1339, 4294901760
      %v1435 = vsub.f32 %v1339, %v1434
      %1436 = vmatmul.f32.gmra.mxu0 %v1435
      %v1437 = vpop.f32.mrf.mxu0
      %v1438 = vadd.f32 %v1408, %v1437
      %v1439 = vand.u32 %v1342, 4294901760
      %v1440 = vsub.f32 %v1342, %v1439
      %1441 = vmatmul.f32.gmra.mxu0 %v1440
      %v1442 = vpop.f32.mrf.mxu0
      %v1443 = vadd.f32 %v1412, %v1442
      %1444 = vdwg.mxu0
      %1445 = vmatpush.xpose.msra.mxu0 0.0
      %1446 = vmatpush.xpose.msra.mxu0 0.0
      %1447 = vmatpush.xpose.msra.mxu0 0.0
      %1448 = vmatpush.xpose.msra.mxu0 0.0
      %1449 = vmatpush.xpose.msra.mxu0 0.0
      %1450 = vmatpush.xpose.msra.mxu0 0.0
      %1451 = vmatpush.xpose.msra.mxu0 0.0
      %1452 = vmatpush.xpose.msra.mxu0 0.0
      %1453 = vmatpush.xpose.msra.mxu0 0.0
      %1454 = vmatpush.xpose.msra.mxu0 0.0
      %1455 = vmatpush.xpose.msra.mxu0 0.0
      %1456 = vmatpush.xpose.msra.mxu0 0.0
      %1457 = vmatpush.xpose.msra.mxu0 0.0
      %1458 = vmatpush.xpose.msra.mxu0 0.0
      %v1459 = vand.u32 %v1342, 4294901760
      %1460 = vmatpush.xpose.msra.mxu0 %v1459
      %v1461 = vand.u32 %v1339, 4294901760
      %1462 = vmatpush.xpose.msra.mxu0 %v1461
      %v1463 = vand.u32 %v1339, 4294901760
      %v1464 = vsub.f32 %v1339, %v1463
      %v1465 = vand.u32 %v1464, 4294901760
      %1466 = vmatmul.f32.gmra.mxu0 %v1465
      %v1467 = vpop.f32.mrf.mxu0
      %v1468 = vadd.f32 %v1438, %v1467
      %v1469 = vand.u32 %v1342, 4294901760
      %v1470 = vsub.f32 %v1342, %v1469
      %v1471 = vand.u32 %v1470, 4294901760
      %1472 = vmatmul.f32.gmra.mxu0 %v1471
      %v1473 = vpop.f32.mrf.mxu0
      %v1474 = vadd.f32 %v1443, %v1473
      %1475 = vdwg.mxu0
      %1476 = vmatpush.xpose.msra.mxu0 0.0
      %1477 = vmatpush.xpose.msra.mxu0 0.0
      %1478 = vmatpush.xpose.msra.mxu0 0.0
      %1479 = vmatpush.xpose.msra.mxu0 0.0
      %1480 = vmatpush.xpose.msra.mxu0 0.0
      %1481 = vmatpush.xpose.msra.mxu0 0.0
      %1482 = vmatpush.xpose.msra.mxu0 0.0
      %1483 = vmatpush.xpose.msra.mxu0 0.0
      %1484 = vmatpush.xpose.msra.mxu0 0.0
      %1485 = vmatpush.xpose.msra.mxu0 0.0
      %1486 = vmatpush.xpose.msra.mxu0 0.0
      %1487 = vmatpush.xpose.msra.mxu0 0.0
      %1488 = vmatpush.xpose.msra.mxu0 0.0
      %1489 = vmatpush.xpose.msra.mxu0 0.0
      %v1490 = vand.u32 %v1342, 4294901760
      %v1491 = vsub.f32 %v1342, %v1490
      %v1492 = vand.u32 %v1491, 4294901760
      %1493 = vmatpush.xpose.msra.mxu0 %v1492
      %v1494 = vand.u32 %v1339, 4294901760
      %v1495 = vsub.f32 %v1339, %v1494
      %v1496 = vand.u32 %v1495, 4294901760
      %1497 = vmatpush.xpose.msra.mxu0 %v1496
      %v1498 = vand.u32 %v1339, 4294901760
      %1499 = vmatmul.f32.gmra.mxu0 %v1498
      %v1500 = vpop.f32.mrf.mxu0
      %v1501 = vadd.f32 %v1468, %v1500
      %v1502 = vand.u32 %v1342, 4294901760
      %1503 = vmatmul.f32.gmra.mxu0 %v1502
      %v1504 = vpop.f32.mrf.mxu0
      %v1505 = vadd.f32 %v1474, %v1504
      %1506 = vdwg.mxu0
      %1507 = vmatpush.xpose.msra.mxu0 0.0
      %1508 = vmatpush.xpose.msra.mxu0 0.0
      %1509 = vmatpush.xpose.msra.mxu0 0.0
      %1510 = vmatpush.xpose.msra.mxu0 0.0
      %1511 = vmatpush.xpose.msra.mxu0 0.0
      %1512 = vmatpush.xpose.msra.mxu0 0.0
      %1513 = vmatpush.xpose.msra.mxu0 0.0
      %1514 = vmatpush.xpose.msra.mxu0 0.0
      %1515 = vmatpush.xpose.msra.mxu0 0.0
      %1516 = vmatpush.xpose.msra.mxu0 0.0
      %1517 = vmatpush.xpose.msra.mxu0 0.0
      %1518 = vmatpush.xpose.msra.mxu0 0.0
      %1519 = vmatpush.xpose.msra.mxu0 0.0
      %1520 = vmatpush.xpose.msra.mxu0 0.0
      %v1521 = vand.u32 %v1342, 4294901760
      %1522 = vmatpush.xpose.msra.mxu0 %v1521
      %v1523 = vand.u32 %v1339, 4294901760
      %1524 = vmatpush.xpose.msra.mxu0 %v1523
      %v1525 = vand.u32 %v1339, 4294901760
      %1526 = vmatmul.f32.gmra.mxu0 %v1525
      %v1527 = vpop.f32.mrf.mxu0
      %v1528 = vadd.f32 %v1501, %v1527
      %v1529 = vand.u32 %v1342, 4294901760
      %1530 = vmatmul.f32.gmra.mxu0 %v1529
      %v1531 = vpop.f32.mrf.mxu0
      %v1532 = vadd.f32 %v1505, %v1531
      %1533 = vdwg.mxu0
      %v1534 = vmul.f32 %v1528, %v463
      %v1535 = vmul.f32 %v1532, %v464
      %vm1536 = vcmp.eq.f32.partialorder %v1534, 0.0
      %vm1537 = vcmp.eq.f32.partialorder %v1535, 0.0
      %v1538 = vsel %vm1536, -1e+16, %v1534
      %v1539 = vsel %vm1537, -1e+16, %v1535
      %v1540 = vsel %vm468, %v1538, -inf
      %1541 = vmax.xlane.f32.xlu0 %v1540
      %v1542 = vpop.xlane.xlu0 %1541
      %v1543 = vsel %vm468, %v1539, -inf
      %1544 = vmax.xlane.f32.xlu0 %v1543
      %v1545 = vpop.xlane.xlu0 %1544
      %v1546 = vsub.f32 %v1538, %v1542
      %v1547 = vsub.f32 %v1539, %v1545
      %v1548 = vmul.f32 %v1546, 1.442695
      %v1549 = vpow.pop %v1548
      %v1550 = vmul.f32 %v1547, 1.442695
      %v1551 = vpow.pop %v1550
      %v1552 = vsel %vm468, %v1549, 0.0
      %1553 = vadd.xlane.f32.xlu0 %v1552
      %v1554 = vpop.xlane.xlu0 %1553
      %v1555 = vsel %vm468, %v1551, 0.0
      %1556 = vadd.xlane.f32.xlu0 %v1555
      %v1557 = vpop.xlane.xlu0 %1556
      %v1558 = vrcp.pop %v1554
      %v1559 = vrcp.pop %v1557
      %v1560 = vmul.f32 %v1549, %v1558
      %v1561 = vmul.f32 %v1551, %v1559
      %v1562 = vld [vmem:[%s5] sm:$0x1]
      %v1564 = vperm.slane %v1562, 0
      %v1567 = vsel %vm468, %v1560, 0
      %v1570 = vsel %vm468, %v1561, 0
      %1572 = vmatpush.msra.mxu0 0.0
      %1573 = vmatpush.msra.mxu0 0.0
      %1574 = vmatpush.msra.mxu0 0.0
      %1575 = vmatpush.msra.mxu0 0.0
      %1576 = vmatpush.msra.mxu0 0.0
      %1577 = vmatpush.msra.mxu0 0.0
      %1578 = vmatpush.msra.mxu0 0.0
      %1579 = vmatpush.msra.mxu0 0.0
      %1580 = vmatpush.msra.mxu0 0.0
      %1581 = vmatpush.msra.mxu0 0.0
      %1582 = vmatpush.msra.mxu0 0.0
      %1583 = vmatpush.msra.mxu0 0.0
      %1584 = vmatpush.msra.mxu0 0.0
      %1585 = vmatpush.msra.mxu0 0.0
      %v1586 = vand.u32 %v1335, 4294901760
      %1587 = vmatpush.msra.mxu0 %v1586
      %v1588 = vand.u32 %v1331, 4294901760
      %1589 = vmatpush.msra.mxu0 %v1588
      %v1590 = vand.u32 %v1567, 4294901760
      %v1591 = vsub.f32 %v1567, %v1590
      %v1592 = vand.u32 %v1591, 4294901760
      %v1593 = vsub.f32 %v1591, %v1592
      %v1594 = vand.u32 %v1593, 4294901760
      %1595 = vmatmul.f32.gmra.mxu0 %v1594
      %v1596 = vpop.f32.mrf.mxu0
      %v1597 = vadd.f32 %v1564, %v1596
      %v1598 = vand.u32 %v1570, 4294901760
      %v1599 = vsub.f32 %v1570, %v1598
      %v1600 = vand.u32 %v1599, 4294901760
      %v1601 = vsub.f32 %v1599, %v1600
      %v1602 = vand.u32 %v1601, 4294901760
      %1603 = vmatmul.f32.gmra.mxu0 %v1602
      %v1604 = vpop.f32.mrf.mxu0
      %v1605 = vadd.f32 %v1564, %v1604
      %1606 = vdwg.mxu0
      %1607 = vmatpush.msra.mxu0 0.0
      %1608 = vmatpush.msra.mxu0 0.0
      %1609 = vmatpush.msra.mxu0 0.0
      %1610 = vmatpush.msra.mxu0 0.0
      %1611 = vmatpush.msra.mxu0 0.0
      %1612 = vmatpush.msra.mxu0 0.0
      %1613 = vmatpush.msra.mxu0 0.0
      %1614 = vmatpush.msra.mxu0 0.0
      %1615 = vmatpush.msra.mxu0 0.0
      %1616 = vmatpush.msra.mxu0 0.0
      %1617 = vmatpush.msra.mxu0 0.0
      %1618 = vmatpush.msra.mxu0 0.0
      %1619 = vmatpush.msra.mxu0 0.0
      %1620 = vmatpush.msra.mxu0 0.0
      %v1621 = vand.u32 %v1335, 4294901760
      %v1622 = vsub.f32 %v1335, %v1621
      %v1623 = vand.u32 %v1622, 4294901760
      %v1624 = vsub.f32 %v1622, %v1623
      %v1625 = vand.u32 %v1624, 4294901760
      %1626 = vmatpush.msra.mxu0 %v1625
      %v1627 = vand.u32 %v1331, 4294901760
      %v1628 = vsub.f32 %v1331, %v1627
      %v1629 = vand.u32 %v1628, 4294901760
      %v1630 = vsub.f32 %v1628, %v1629
      %v1631 = vand.u32 %v1630, 4294901760
      %1632 = vmatpush.msra.mxu0 %v1631
      %v1633 = vand.u32 %v1567, 4294901760
      %1634 = vmatmul.f32.gmra.mxu0 %v1633
      %v1635 = vpop.f32.mrf.mxu0
      %v1636 = vadd.f32 %v1597, %v1635
      %v1637 = vand.u32 %v1570, 4294901760
      %1638 = vmatmul.f32.gmra.mxu0 %v1637
      %v1639 = vpop.f32.mrf.mxu0
      %v1640 = vadd.f32 %v1605, %v1639
      %1641 = vdwg.mxu0
      %1642 = vmatpush.msra.mxu0 0.0
      %1643 = vmatpush.msra.mxu0 0.0
      %1644 = vmatpush.msra.mxu0 0.0
      %1645 = vmatpush.msra.mxu0 0.0
      %1646 = vmatpush.msra.mxu0 0.0
      %1647 = vmatpush.msra.mxu0 0.0
      %1648 = vmatpush.msra.mxu0 0.0
      %1649 = vmatpush.msra.mxu0 0.0
      %1650 = vmatpush.msra.mxu0 0.0
      %1651 = vmatpush.msra.mxu0 0.0
      %1652 = vmatpush.msra.mxu0 0.0
      %1653 = vmatpush.msra.mxu0 0.0
      %1654 = vmatpush.msra.mxu0 0.0
      %1655 = vmatpush.msra.mxu0 0.0
      %v1656 = vand.u32 %v1335, 4294901760
      %v1657 = vsub.f32 %v1335, %v1656
      %1658 = vmatpush.msra.mxu0 %v1657
      %v1659 = vand.u32 %v1331, 4294901760
      %v1660 = vsub.f32 %v1331, %v1659
      %1661 = vmatpush.msra.mxu0 %v1660
      %v1662 = vand.u32 %v1567, 4294901760
      %v1663 = vsub.f32 %v1567, %v1662
      %1664 = vmatmul.f32.gmra.mxu0 %v1663
      %v1665 = vpop.f32.mrf.mxu0
      %v1666 = vadd.f32 %v1636, %v1665
      %v1667 = vand.u32 %v1570, 4294901760
      %v1668 = vsub.f32 %v1570, %v1667
      %1669 = vmatmul.f32.gmra.mxu0 %v1668
      %v1670 = vpop.f32.mrf.mxu0
      %v1671 = vadd.f32 %v1640, %v1670
      %1672 = vdwg.mxu0
      %1673 = vmatpush.msra.mxu0 0.0
      %1674 = vmatpush.msra.mxu0 0.0
      %1675 = vmatpush.msra.mxu0 0.0
      %1676 = vmatpush.msra.mxu0 0.0
      %1677 = vmatpush.msra.mxu0 0.0
      %1678 = vmatpush.msra.mxu0 0.0
      %1679 = vmatpush.msra.mxu0 0.0
      %1680 = vmatpush.msra.mxu0 0.0
      %1681 = vmatpush.msra.mxu0 0.0
      %1682 = vmatpush.msra.mxu0 0.0
      %1683 = vmatpush.msra.mxu0 0.0
      %1684 = vmatpush.msra.mxu0 0.0
      %1685 = vmatpush.msra.mxu0 0.0
      %1686 = vmatpush.msra.mxu0 0.0
      %v1687 = vand.u32 %v1335, 4294901760
      %1688 = vmatpush.msra.mxu0 %v1687
      %v1689 = vand.u32 %v1331, 4294901760
      %1690 = vmatpush.msra.mxu0 %v1689
      %v1691 = vand.u32 %v1567, 4294901760
      %v1692 = vsub.f32 %v1567, %v1691
      %v1693 = vand.u32 %v1692, 4294901760
      %1694 = vmatmul.f32.gmra.mxu0 %v1693
      %v1695 = vpop.f32.mrf.mxu0
      %v1696 = vadd.f32 %v1666, %v1695
      %v1697 = vand.u32 %v1570, 4294901760
      %v1698 = vsub.f32 %v1570, %v1697
      %v1699 = vand.u32 %v1698, 4294901760
      %1700 = vmatmul.f32.gmra.mxu0 %v1699
      %v1701 = vpop.f32.mrf.mxu0
      %v1702 = vadd.f32 %v1671, %v1701
      %1703 = vdwg.mxu0
      %1704 = vmatpush.msra.mxu0 0.0
      %1705 = vmatpush.msra.mxu0 0.0
      %1706 = vmatpush.msra.mxu0 0.0
      %1707 = vmatpush.msra.mxu0 0.0
      %1708 = vmatpush.msra.mxu0 0.0
      %1709 = vmatpush.msra.mxu0 0.0
      %1710 = vmatpush.msra.mxu0 0.0
      %1711 = vmatpush.msra.mxu0 0.0
      %1712 = vmatpush.msra.mxu0 0.0
      %1713 = vmatpush.msra.mxu0 0.0
      %1714 = vmatpush.msra.mxu0 0.0
      %1715 = vmatpush.msra.mxu0 0.0
      %1716 = vmatpush.msra.mxu0 0.0
      %1717 = vmatpush.msra.mxu0 0.0
      %v1718 = vand.u32 %v1335, 4294901760
      %v1719 = vsub.f32 %v1335, %v1718
      %v1720 = vand.u32 %v1719, 4294901760
      %1721 = vmatpush.msra.mxu0 %v1720
      %v1722 = vand.u32 %v1331, 4294901760
      %v1723 = vsub.f32 %v1331, %v1722
      %v1724 = vand.u32 %v1723, 4294901760
      %1725 = vmatpush.msra.mxu0 %v1724
      %v1726 = vand.u32 %v1567, 4294901760
      %1727 = vmatmul.f32.gmra.mxu0 %v1726
      %v1728 = vpop.f32.mrf.mxu0
      %v1729 = vadd.f32 %v1696, %v1728
      %v1730 = vand.u32 %v1570, 4294901760
      %1731 = vmatmul.f32.gmra.mxu0 %v1730
      %v1732 = vpop.f32.mrf.mxu0
      %v1733 = vadd.f32 %v1702, %v1732
      %1734 = vdwg.mxu0
      %1735 = vmatpush.msra.mxu0 0.0
      %1736 = vmatpush.msra.mxu0 0.0
      %1737 = vmatpush.msra.mxu0 0.0
      %1738 = vmatpush.msra.mxu0 0.0
      %1739 = vmatpush.msra.mxu0 0.0
      %1740 = vmatpush.msra.mxu0 0.0
      %1741 = vmatpush.msra.mxu0 0.0
      %1742 = vmatpush.msra.mxu0 0.0
      %1743 = vmatpush.msra.mxu0 0.0
      %1744 = vmatpush.msra.mxu0 0.0
      %1745 = vmatpush.msra.mxu0 0.0
      %1746 = vmatpush.msra.mxu0 0.0
      %1747 = vmatpush.msra.mxu0 0.0
      %1748 = vmatpush.msra.mxu0 0.0
      %v1749 = vand.u32 %v1335, 4294901760
      %1750 = vmatpush.msra.mxu0 %v1749
      %v1751 = vand.u32 %v1331, 4294901760
      %1752 = vmatpush.msra.mxu0 %v1751
      %v1753 = vand.u32 %v1567, 4294901760
      %1754 = vmatmul.f32.gmra.mxu0 %v1753
      %v1755 = vpop.f32.mrf.mxu0
      %v1756 = vadd.f32 %v1729, %v1755
      %v1757 = vand.u32 %v1570, 4294901760
      %1758 = vmatmul.f32.gmra.mxu0 %v1757
      %v1759 = vpop.f32.mrf.mxu0
      %v1760 = vadd.f32 %v1733, %v1759
      %1761 = vdwg.mxu0
      %vm1762 = vcmp.ge.f32.partialorder %v1756, 0.0
      %vm1763 = vcmp.ge.f32.partialorder %v1760, 0.0
      %v1764 = vmul.f32 %v1756, 0.2
      %v1765 = vmul.f32 %v1760, 0.2
      %v1766 = vsel %vm1762, %v1756, %v1764
      %v1767 = vsel %vm1763, %v1760, %v1765
      %v1768 = vld [vmem:[%s6] sm:$0xff]
      %v1769 = vld [vmem:[%s6 + $0x8] sm:$0xff]
      %v1770 = vld [vmem:[%s6 + $0x10] sm:$0xff]
      %v1771 = vld [vmem:[%s6 + $0x18] sm:$0xff]
      %v1772 = vld [vmem:[%s6 + $0x20] sm:$0xff]
      %v1773 = vld [vmem:[%s6 + $0x28] sm:$0xff]
      %v1774 = vld [vmem:[%s6 + $0x30] sm:$0xff]
      %v1775 = vld [vmem:[%s6 + $0x38] sm:$0xff]
      %s1776 = scalar_lea.vmem %s4, 8
      %v1777 = vld [vmem:[%s1776] sm:$0xff]
      %1778 = vmatpush.msra.mxu0 0.0
      %1779 = vmatpush.msra.mxu0 0.0
      %1780 = vmatpush.msra.mxu0 0.0
      %1781 = vmatpush.msra.mxu0 0.0
      %1782 = vmatpush.msra.mxu0 0.0
      %1783 = vmatpush.msra.mxu0 0.0
      %1784 = vmatpush.msra.mxu0 0.0
      %1785 = vmatpush.msra.mxu0 0.0
      %1786 = vmatpush.msra.mxu0 0.0
      %1787 = vmatpush.msra.mxu0 0.0
      %1788 = vmatpush.msra.mxu0 0.0
      %1789 = vmatpush.msra.mxu0 0.0
      %1790 = vmatpush.msra.mxu0 0.0
      %1791 = vmatpush.msra.mxu0 0.0
      %1792 = vmatpush.msra.mxu0 0.0
      %v1793 = vand.u32 %v1777, 4294901760
      %1794 = vmatpush.msra.mxu0 %v1793
      %v1795 = vand.u32 %v1155, 4294901760
      %v1796 = vsub.f32 %v1155, %v1795
      %v1797 = vand.u32 %v1796, 4294901760
      %v1798 = vsub.f32 %v1796, %v1797
      %v1799 = vand.u32 %v1798, 4294901760
      %1800 = vmatmul.f32.gmra.mxu0 %v1799
      %v1801 = vpop.f32.mrf.mxu0
      %v1802 = vadd.f32 0.0, %v1801
      %v1803 = vand.u32 %v1158, 4294901760
      %v1804 = vsub.f32 %v1158, %v1803
      %v1805 = vand.u32 %v1804, 4294901760
      %v1806 = vsub.f32 %v1804, %v1805
      %v1807 = vand.u32 %v1806, 4294901760
      %1808 = vmatmul.f32.gmra.mxu0 %v1807
      %v1809 = vpop.f32.mrf.mxu0
      %v1810 = vadd.f32 0.0, %v1809
      %1811 = vdwg.mxu0
      %1812 = vmatpush.msra.mxu0 0.0
      %1813 = vmatpush.msra.mxu0 0.0
      %1814 = vmatpush.msra.mxu0 0.0
      %1815 = vmatpush.msra.mxu0 0.0
      %1816 = vmatpush.msra.mxu0 0.0
      %1817 = vmatpush.msra.mxu0 0.0
      %1818 = vmatpush.msra.mxu0 0.0
      %1819 = vmatpush.msra.mxu0 0.0
      %1820 = vmatpush.msra.mxu0 0.0
      %1821 = vmatpush.msra.mxu0 0.0
      %1822 = vmatpush.msra.mxu0 0.0
      %1823 = vmatpush.msra.mxu0 0.0
      %1824 = vmatpush.msra.mxu0 0.0
      %1825 = vmatpush.msra.mxu0 0.0
      %1826 = vmatpush.msra.mxu0 0.0
      %v1827 = vand.u32 %v1777, 4294901760
      %v1828 = vsub.f32 %v1777, %v1827
      %v1829 = vand.u32 %v1828, 4294901760
      %v1830 = vsub.f32 %v1828, %v1829
      %v1831 = vand.u32 %v1830, 4294901760
      %1832 = vmatpush.msra.mxu0 %v1831
      %v1833 = vand.u32 %v1155, 4294901760
      %1834 = vmatmul.f32.gmra.mxu0 %v1833
      %v1835 = vpop.f32.mrf.mxu0
      %v1836 = vadd.f32 %v1802, %v1835
      %v1837 = vand.u32 %v1158, 4294901760
      %1838 = vmatmul.f32.gmra.mxu0 %v1837
      %v1839 = vpop.f32.mrf.mxu0
      %v1840 = vadd.f32 %v1810, %v1839
      %1841 = vdwg.mxu0
      %1842 = vmatpush.msra.mxu0 0.0
      %1843 = vmatpush.msra.mxu0 0.0
      %1844 = vmatpush.msra.mxu0 0.0
      %1845 = vmatpush.msra.mxu0 0.0
      %1846 = vmatpush.msra.mxu0 0.0
      %1847 = vmatpush.msra.mxu0 0.0
      %1848 = vmatpush.msra.mxu0 0.0
      %1849 = vmatpush.msra.mxu0 0.0
      %1850 = vmatpush.msra.mxu0 0.0
      %1851 = vmatpush.msra.mxu0 0.0
      %1852 = vmatpush.msra.mxu0 0.0
      %1853 = vmatpush.msra.mxu0 0.0
      %1854 = vmatpush.msra.mxu0 0.0
      %1855 = vmatpush.msra.mxu0 0.0
      %1856 = vmatpush.msra.mxu0 0.0
      %v1857 = vand.u32 %v1777, 4294901760
      %v1858 = vsub.f32 %v1777, %v1857
      %1859 = vmatpush.msra.mxu0 %v1858
      %v1860 = vand.u32 %v1155, 4294901760
      %v1861 = vsub.f32 %v1155, %v1860
      %1862 = vmatmul.f32.gmra.mxu0 %v1861
      %v1863 = vpop.f32.mrf.mxu0
      %v1864 = vadd.f32 %v1836, %v1863
      %v1865 = vand.u32 %v1158, 4294901760
      %v1866 = vsub.f32 %v1158, %v1865
      %1867 = vmatmul.f32.gmra.mxu0 %v1866
      %v1868 = vpop.f32.mrf.mxu0
      %v1869 = vadd.f32 %v1840, %v1868
      %1870 = vdwg.mxu0
      %1871 = vmatpush.msra.mxu0 0.0
      %1872 = vmatpush.msra.mxu0 0.0
      %1873 = vmatpush.msra.mxu0 0.0
      %1874 = vmatpush.msra.mxu0 0.0
      %1875 = vmatpush.msra.mxu0 0.0
      %1876 = vmatpush.msra.mxu0 0.0
      %1877 = vmatpush.msra.mxu0 0.0
      %1878 = vmatpush.msra.mxu0 0.0
      %1879 = vmatpush.msra.mxu0 0.0
      %1880 = vmatpush.msra.mxu0 0.0
      %1881 = vmatpush.msra.mxu0 0.0
      %1882 = vmatpush.msra.mxu0 0.0
      %1883 = vmatpush.msra.mxu0 0.0
      %1884 = vmatpush.msra.mxu0 0.0
      %1885 = vmatpush.msra.mxu0 0.0
      %v1886 = vand.u32 %v1777, 4294901760
      %1887 = vmatpush.msra.mxu0 %v1886
      %v1888 = vand.u32 %v1155, 4294901760
      %v1889 = vsub.f32 %v1155, %v1888
      %v1890 = vand.u32 %v1889, 4294901760
      %1891 = vmatmul.f32.gmra.mxu0 %v1890
      %v1892 = vpop.f32.mrf.mxu0
      %v1893 = vadd.f32 %v1864, %v1892
      %v1894 = vand.u32 %v1158, 4294901760
      %v1895 = vsub.f32 %v1158, %v1894
      %v1896 = vand.u32 %v1895, 4294901760
      %1897 = vmatmul.f32.gmra.mxu0 %v1896
      %v1898 = vpop.f32.mrf.mxu0
      %v1899 = vadd.f32 %v1869, %v1898
      %1900 = vdwg.mxu0
      %1901 = vmatpush.msra.mxu0 0.0
      %1902 = vmatpush.msra.mxu0 0.0
      %1903 = vmatpush.msra.mxu0 0.0
      %1904 = vmatpush.msra.mxu0 0.0
      %1905 = vmatpush.msra.mxu0 0.0
      %1906 = vmatpush.msra.mxu0 0.0
      %1907 = vmatpush.msra.mxu0 0.0
      %1908 = vmatpush.msra.mxu0 0.0
      %1909 = vmatpush.msra.mxu0 0.0
      %1910 = vmatpush.msra.mxu0 0.0
      %1911 = vmatpush.msra.mxu0 0.0
      %1912 = vmatpush.msra.mxu0 0.0
      %1913 = vmatpush.msra.mxu0 0.0
      %1914 = vmatpush.msra.mxu0 0.0
      %1915 = vmatpush.msra.mxu0 0.0
      %v1916 = vand.u32 %v1777, 4294901760
      %v1917 = vsub.f32 %v1777, %v1916
      %v1918 = vand.u32 %v1917, 4294901760
      %1919 = vmatpush.msra.mxu0 %v1918
      %v1920 = vand.u32 %v1155, 4294901760
      %1921 = vmatmul.f32.gmra.mxu0 %v1920
      %v1922 = vpop.f32.mrf.mxu0
      %v1923 = vadd.f32 %v1893, %v1922
      %v1924 = vand.u32 %v1158, 4294901760
      %1925 = vmatmul.f32.gmra.mxu0 %v1924
      %v1926 = vpop.f32.mrf.mxu0
      %v1927 = vadd.f32 %v1899, %v1926
      %1928 = vdwg.mxu0
      %1929 = vmatpush.msra.mxu0 0.0
      %1930 = vmatpush.msra.mxu0 0.0
      %1931 = vmatpush.msra.mxu0 0.0
      %1932 = vmatpush.msra.mxu0 0.0
      %1933 = vmatpush.msra.mxu0 0.0
      %1934 = vmatpush.msra.mxu0 0.0
      %1935 = vmatpush.msra.mxu0 0.0
      %1936 = vmatpush.msra.mxu0 0.0
      %1937 = vmatpush.msra.mxu0 0.0
      %1938 = vmatpush.msra.mxu0 0.0
      %1939 = vmatpush.msra.mxu0 0.0
      %1940 = vmatpush.msra.mxu0 0.0
      %1941 = vmatpush.msra.mxu0 0.0
      %1942 = vmatpush.msra.mxu0 0.0
      %1943 = vmatpush.msra.mxu0 0.0
      %v1944 = vand.u32 %v1777, 4294901760
      %1945 = vmatpush.msra.mxu0 %v1944
      %v1946 = vand.u32 %v1155, 4294901760
      %1947 = vmatmul.f32.gmra.mxu0 %v1946
      %v1948 = vpop.f32.mrf.mxu0
      %v1949 = vadd.f32 %v1923, %v1948
      %v1950 = vand.u32 %v1158, 4294901760
      %1951 = vmatmul.f32.gmra.mxu0 %v1950
      %v1952 = vpop.f32.mrf.mxu0
      %v1953 = vadd.f32 %v1927, %v1952
      %1954 = vdwg.mxu0
      %v1956 = vsel %vm1337, %v1949, 0
      %v1959 = vsel %vm1337, %v1953, 0
      %1961 = vmatpush.xpose.msra.mxu0 0.0
      %1962 = vmatpush.xpose.msra.mxu0 0.0
      %1963 = vmatpush.xpose.msra.mxu0 0.0
      %1964 = vmatpush.xpose.msra.mxu0 0.0
      %1965 = vmatpush.xpose.msra.mxu0 0.0
      %1966 = vmatpush.xpose.msra.mxu0 0.0
      %1967 = vmatpush.xpose.msra.mxu0 0.0
      %1968 = vmatpush.xpose.msra.mxu0 0.0
      %1969 = vmatpush.xpose.msra.mxu0 0.0
      %1970 = vmatpush.xpose.msra.mxu0 0.0
      %1971 = vmatpush.xpose.msra.mxu0 0.0
      %1972 = vmatpush.xpose.msra.mxu0 0.0
      %1973 = vmatpush.xpose.msra.mxu0 0.0
      %1974 = vmatpush.xpose.msra.mxu0 0.0
      %v1975 = vand.u32 %v1959, 4294901760
      %1976 = vmatpush.xpose.msra.mxu0 %v1975
      %v1977 = vand.u32 %v1956, 4294901760
      %1978 = vmatpush.xpose.msra.mxu0 %v1977
      %v1979 = vand.u32 %v1956, 4294901760
      %v1980 = vsub.f32 %v1956, %v1979
      %v1981 = vand.u32 %v1980, 4294901760
      %v1982 = vsub.f32 %v1980, %v1981
      %v1983 = vand.u32 %v1982, 4294901760
      %1984 = vmatmul.f32.gmra.mxu0 %v1983
      %v1985 = vpop.f32.mrf.mxu0
      %v1986 = vadd.f32 0.0, %v1985
      %v1987 = vand.u32 %v1959, 4294901760
      %v1988 = vsub.f32 %v1959, %v1987
      %v1989 = vand.u32 %v1988, 4294901760
      %v1990 = vsub.f32 %v1988, %v1989
      %v1991 = vand.u32 %v1990, 4294901760
      %1992 = vmatmul.f32.gmra.mxu0 %v1991
      %v1993 = vpop.f32.mrf.mxu0
      %v1994 = vadd.f32 0.0, %v1993
      %1995 = vdwg.mxu0
      %1996 = vmatpush.xpose.msra.mxu0 0.0
      %1997 = vmatpush.xpose.msra.mxu0 0.0
      %1998 = vmatpush.xpose.msra.mxu0 0.0
      %1999 = vmatpush.xpose.msra.mxu0 0.0
      %2000 = vmatpush.xpose.msra.mxu0 0.0
      %2001 = vmatpush.xpose.msra.mxu0 0.0
      %2002 = vmatpush.xpose.msra.mxu0 0.0
      %2003 = vmatpush.xpose.msra.mxu0 0.0
      %2004 = vmatpush.xpose.msra.mxu0 0.0
      %2005 = vmatpush.xpose.msra.mxu0 0.0
      %2006 = vmatpush.xpose.msra.mxu0 0.0
      %2007 = vmatpush.xpose.msra.mxu0 0.0
      %2008 = vmatpush.xpose.msra.mxu0 0.0
      %2009 = vmatpush.xpose.msra.mxu0 0.0
      %v2010 = vand.u32 %v1959, 4294901760
      %v2011 = vsub.f32 %v1959, %v2010
      %v2012 = vand.u32 %v2011, 4294901760
      %v2013 = vsub.f32 %v2011, %v2012
      %v2014 = vand.u32 %v2013, 4294901760
      %2015 = vmatpush.xpose.msra.mxu0 %v2014
      %v2016 = vand.u32 %v1956, 4294901760
      %v2017 = vsub.f32 %v1956, %v2016
      %v2018 = vand.u32 %v2017, 4294901760
      %v2019 = vsub.f32 %v2017, %v2018
      %v2020 = vand.u32 %v2019, 4294901760
      %2021 = vmatpush.xpose.msra.mxu0 %v2020
      %v2022 = vand.u32 %v1956, 4294901760
      %2023 = vmatmul.f32.gmra.mxu0 %v2022
      %v2024 = vpop.f32.mrf.mxu0
      %v2025 = vadd.f32 %v1986, %v2024
      %v2026 = vand.u32 %v1959, 4294901760
      %2027 = vmatmul.f32.gmra.mxu0 %v2026
      %v2028 = vpop.f32.mrf.mxu0
      %v2029 = vadd.f32 %v1994, %v2028
      %2030 = vdwg.mxu0
      %2031 = vmatpush.xpose.msra.mxu0 0.0
      %2032 = vmatpush.xpose.msra.mxu0 0.0
      %2033 = vmatpush.xpose.msra.mxu0 0.0
      %2034 = vmatpush.xpose.msra.mxu0 0.0
      %2035 = vmatpush.xpose.msra.mxu0 0.0
      %2036 = vmatpush.xpose.msra.mxu0 0.0
      %2037 = vmatpush.xpose.msra.mxu0 0.0
      %2038 = vmatpush.xpose.msra.mxu0 0.0
      %2039 = vmatpush.xpose.msra.mxu0 0.0
      %2040 = vmatpush.xpose.msra.mxu0 0.0
      %2041 = vmatpush.xpose.msra.mxu0 0.0
      %2042 = vmatpush.xpose.msra.mxu0 0.0
      %2043 = vmatpush.xpose.msra.mxu0 0.0
      %2044 = vmatpush.xpose.msra.mxu0 0.0
      %v2045 = vand.u32 %v1959, 4294901760
      %v2046 = vsub.f32 %v1959, %v2045
      %2047 = vmatpush.xpose.msra.mxu0 %v2046
      %v2048 = vand.u32 %v1956, 4294901760
      %v2049 = vsub.f32 %v1956, %v2048
      %2050 = vmatpush.xpose.msra.mxu0 %v2049
      %v2051 = vand.u32 %v1956, 4294901760
      %v2052 = vsub.f32 %v1956, %v2051
      %2053 = vmatmul.f32.gmra.mxu0 %v2052
      %v2054 = vpop.f32.mrf.mxu0
      %v2055 = vadd.f32 %v2025, %v2054
      %v2056 = vand.u32 %v1959, 4294901760
      %v2057 = vsub.f32 %v1959, %v2056
      %2058 = vmatmul.f32.gmra.mxu0 %v2057
      %v2059 = vpop.f32.mrf.mxu0
      %v2060 = vadd.f32 %v2029, %v2059
      %2061 = vdwg.mxu0
      %2062 = vmatpush.xpose.msra.mxu0 0.0
      %2063 = vmatpush.xpose.msra.mxu0 0.0
      %2064 = vmatpush.xpose.msra.mxu0 0.0
      %2065 = vmatpush.xpose.msra.mxu0 0.0
      %2066 = vmatpush.xpose.msra.mxu0 0.0
      %2067 = vmatpush.xpose.msra.mxu0 0.0
      %2068 = vmatpush.xpose.msra.mxu0 0.0
      %2069 = vmatpush.xpose.msra.mxu0 0.0
      %2070 = vmatpush.xpose.msra.mxu0 0.0
      %2071 = vmatpush.xpose.msra.mxu0 0.0
      %2072 = vmatpush.xpose.msra.mxu0 0.0
      %2073 = vmatpush.xpose.msra.mxu0 0.0
      %2074 = vmatpush.xpose.msra.mxu0 0.0
      %2075 = vmatpush.xpose.msra.mxu0 0.0
      %v2076 = vand.u32 %v1959, 4294901760
      %2077 = vmatpush.xpose.msra.mxu0 %v2076
      %v2078 = vand.u32 %v1956, 4294901760
      %2079 = vmatpush.xpose.msra.mxu0 %v2078
      %v2080 = vand.u32 %v1956, 4294901760
      %v2081 = vsub.f32 %v1956, %v2080
      %v2082 = vand.u32 %v2081, 4294901760
      %2083 = vmatmul.f32.gmra.mxu0 %v2082
      %v2084 = vpop.f32.mrf.mxu0
      %v2085 = vadd.f32 %v2055, %v2084
      %v2086 = vand.u32 %v1959, 4294901760
      %v2087 = vsub.f32 %v1959, %v2086
      %v2088 = vand.u32 %v2087, 4294901760
      %2089 = vmatmul.f32.gmra.mxu0 %v2088
      %v2090 = vpop.f32.mrf.mxu0
      %v2091 = vadd.f32 %v2060, %v2090
      %2092 = vdwg.mxu0
      %2093 = vmatpush.xpose.msra.mxu0 0.0
      %2094 = vmatpush.xpose.msra.mxu0 0.0
      %2095 = vmatpush.xpose.msra.mxu0 0.0
      %2096 = vmatpush.xpose.msra.mxu0 0.0
      %2097 = vmatpush.xpose.msra.mxu0 0.0
      %2098 = vmatpush.xpose.msra.mxu0 0.0
      %2099 = vmatpush.xpose.msra.mxu0 0.0
      %2100 = vmatpush.xpose.msra.mxu0 0.0
      %2101 = vmatpush.xpose.msra.mxu0 0.0
      %2102 = vmatpush.xpose.msra.mxu0 0.0
      %2103 = vmatpush.xpose.msra.mxu0 0.0
      %2104 = vmatpush.xpose.msra.mxu0 0.0
      %2105 = vmatpush.xpose.msra.mxu0 0.0
      %2106 = vmatpush.xpose.msra.mxu0 0.0
      %v2107 = vand.u32 %v1959, 4294901760
      %v2108 = vsub.f32 %v1959, %v2107
      %v2109 = vand.u32 %v2108, 4294901760
      %2110 = vmatpush.xpose.msra.mxu0 %v2109
      %v2111 = vand.u32 %v1956, 4294901760
      %v2112 = vsub.f32 %v1956, %v2111
      %v2113 = vand.u32 %v2112, 4294901760
      %2114 = vmatpush.xpose.msra.mxu0 %v2113
      %v2115 = vand.u32 %v1956, 4294901760
      %2116 = vmatmul.f32.gmra.mxu0 %v2115
      %v2117 = vpop.f32.mrf.mxu0
      %v2118 = vadd.f32 %v2085, %v2117
      %v2119 = vand.u32 %v1959, 4294901760
      %2120 = vmatmul.f32.gmra.mxu0 %v2119
      %v2121 = vpop.f32.mrf.mxu0
      %v2122 = vadd.f32 %v2091, %v2121
      %2123 = vdwg.mxu0
      %2124 = vmatpush.xpose.msra.mxu0 0.0
      %2125 = vmatpush.xpose.msra.mxu0 0.0
      %2126 = vmatpush.xpose.msra.mxu0 0.0
      %2127 = vmatpush.xpose.msra.mxu0 0.0
      %2128 = vmatpush.xpose.msra.mxu0 0.0
      %2129 = vmatpush.xpose.msra.mxu0 0.0
      %2130 = vmatpush.xpose.msra.mxu0 0.0
      %2131 = vmatpush.xpose.msra.mxu0 0.0
      %2132 = vmatpush.xpose.msra.mxu0 0.0
      %2133 = vmatpush.xpose.msra.mxu0 0.0
      %2134 = vmatpush.xpose.msra.mxu0 0.0
      %2135 = vmatpush.xpose.msra.mxu0 0.0
      %2136 = vmatpush.xpose.msra.mxu0 0.0
      %2137 = vmatpush.xpose.msra.mxu0 0.0
      %v2138 = vand.u32 %v1959, 4294901760
      %2139 = vmatpush.xpose.msra.mxu0 %v2138
      %v2140 = vand.u32 %v1956, 4294901760
      %2141 = vmatpush.xpose.msra.mxu0 %v2140
      %v2142 = vand.u32 %v1956, 4294901760
      %2143 = vmatmul.f32.gmra.mxu0 %v2142
      %v2144 = vpop.f32.mrf.mxu0
      %v2145 = vadd.f32 %v2118, %v2144
      %v2146 = vand.u32 %v1959, 4294901760
      %2147 = vmatmul.f32.gmra.mxu0 %v2146
      %v2148 = vpop.f32.mrf.mxu0
      %v2149 = vadd.f32 %v2122, %v2148
      %2150 = vdwg.mxu0
      %v2151 = vmul.f32 %v2145, %v463
      %v2152 = vmul.f32 %v2149, %v464
      %vm2153 = vcmp.eq.f32.partialorder %v2151, 0.0
      %vm2154 = vcmp.eq.f32.partialorder %v2152, 0.0
      %v2155 = vsel %vm2153, -1e+16, %v2151
      %v2156 = vsel %vm2154, -1e+16, %v2152
      %v2157 = vsel %vm468, %v2155, -inf
      %2158 = vmax.xlane.f32.xlu0 %v2157
      %v2159 = vpop.xlane.xlu0 %2158
      %v2160 = vsel %vm468, %v2156, -inf
      %2161 = vmax.xlane.f32.xlu0 %v2160
      %v2162 = vpop.xlane.xlu0 %2161
      %v2163 = vsub.f32 %v2155, %v2159
      %v2164 = vsub.f32 %v2156, %v2162
      %v2165 = vmul.f32 %v2163, 1.442695
      %v2166 = vpow.pop %v2165
      %v2167 = vmul.f32 %v2164, 1.442695
      %v2168 = vpow.pop %v2167
      %v2169 = vsel %vm468, %v2166, 0.0
      %2170 = vadd.xlane.f32.xlu0 %v2169
      %v2171 = vpop.xlane.xlu0 %2170
      %v2172 = vsel %vm468, %v2168, 0.0
      %2173 = vadd.xlane.f32.xlu0 %v2172
      %v2174 = vpop.xlane.xlu0 %2173
      %v2175 = vrcp.pop %v2171
      %v2176 = vrcp.pop %v2174
      %v2177 = vmul.f32 %v2166, %v2175
      %v2178 = vmul.f32 %v2168, %v2176
      %s2179 = scalar_lea.vmem %s5, 1
      %v2180 = vld [vmem:[%s2179] sm:$0x1]
      %v2182 = vperm.slane %v2180, 0
      %v2185 = vsel %vm468, %v2177, 0
      %v2188 = vsel %vm468, %v2178, 0
      %2190 = vmatpush.msra.mxu0 0.0
      %2191 = vmatpush.msra.mxu0 0.0
      %2192 = vmatpush.msra.mxu0 0.0
      %2193 = vmatpush.msra.mxu0 0.0
      %2194 = vmatpush.msra.mxu0 0.0
      %2195 = vmatpush.msra.mxu0 0.0
      %2196 = vmatpush.msra.mxu0 0.0
      %2197 = vmatpush.msra.mxu0 0.0
      %2198 = vmatpush.msra.mxu0 0.0
      %2199 = vmatpush.msra.mxu0 0.0
      %2200 = vmatpush.msra.mxu0 0.0
      %2201 = vmatpush.msra.mxu0 0.0
      %2202 = vmatpush.msra.mxu0 0.0
      %2203 = vmatpush.msra.mxu0 0.0
      %v2204 = vand.u32 %v1953, 4294901760
      %2205 = vmatpush.msra.mxu0 %v2204
      %v2206 = vand.u32 %v1949, 4294901760
      %2207 = vmatpush.msra.mxu0 %v2206
      %v2208 = vand.u32 %v2185, 4294901760
      %v2209 = vsub.f32 %v2185, %v2208
      %v2210 = vand.u32 %v2209, 4294901760
      %v2211 = vsub.f32 %v2209, %v2210
      %v2212 = vand.u32 %v2211, 4294901760
      %2213 = vmatmul.f32.gmra.mxu0 %v2212
      %v2214 = vpop.f32.mrf.mxu0
      %v2215 = vadd.f32 %v2182, %v2214
      %v2216 = vand.u32 %v2188, 4294901760
      %v2217 = vsub.f32 %v2188, %v2216
      %v2218 = vand.u32 %v2217, 4294901760
      %v2219 = vsub.f32 %v2217, %v2218
      %v2220 = vand.u32 %v2219, 4294901760
      %2221 = vmatmul.f32.gmra.mxu0 %v2220
      %v2222 = vpop.f32.mrf.mxu0
      %v2223 = vadd.f32 %v2182, %v2222
      %2224 = vdwg.mxu0
      %2225 = vmatpush.msra.mxu0 0.0
      %2226 = vmatpush.msra.mxu0 0.0
      %2227 = vmatpush.msra.mxu0 0.0
      %2228 = vmatpush.msra.mxu0 0.0
      %2229 = vmatpush.msra.mxu0 0.0
      %2230 = vmatpush.msra.mxu0 0.0
      %2231 = vmatpush.msra.mxu0 0.0
      %2232 = vmatpush.msra.mxu0 0.0
      %2233 = vmatpush.msra.mxu0 0.0
      %2234 = vmatpush.msra.mxu0 0.0
      %2235 = vmatpush.msra.mxu0 0.0
      %2236 = vmatpush.msra.mxu0 0.0
      %2237 = vmatpush.msra.mxu0 0.0
      %2238 = vmatpush.msra.mxu0 0.0
      %v2239 = vand.u32 %v1953, 4294901760
      %v2240 = vsub.f32 %v1953, %v2239
      %v2241 = vand.u32 %v2240, 4294901760
      %v2242 = vsub.f32 %v2240, %v2241
      %v2243 = vand.u32 %v2242, 4294901760
      %2244 = vmatpush.msra.mxu0 %v2243
      %v2245 = vand.u32 %v1949, 4294901760
      %v2246 = vsub.f32 %v1949, %v2245
      %v2247 = vand.u32 %v2246, 4294901760
      %v2248 = vsub.f32 %v2246, %v2247
      %v2249 = vand.u32 %v2248, 4294901760
      %2250 = vmatpush.msra.mxu0 %v2249
      %v2251 = vand.u32 %v2185, 4294901760
      %2252 = vmatmul.f32.gmra.mxu0 %v2251
      %v2253 = vpop.f32.mrf.mxu0
      %v2254 = vadd.f32 %v2215, %v2253
      %v2255 = vand.u32 %v2188, 4294901760
      %2256 = vmatmul.f32.gmra.mxu0 %v2255
      %v2257 = vpop.f32.mrf.mxu0
      %v2258 = vadd.f32 %v2223, %v2257
      %2259 = vdwg.mxu0
      %2260 = vmatpush.msra.mxu0 0.0
      %2261 = vmatpush.msra.mxu0 0.0
      %2262 = vmatpush.msra.mxu0 0.0
      %2263 = vmatpush.msra.mxu0 0.0
      %2264 = vmatpush.msra.mxu0 0.0
      %2265 = vmatpush.msra.mxu0 0.0
      %2266 = vmatpush.msra.mxu0 0.0
      %2267 = vmatpush.msra.mxu0 0.0
      %2268 = vmatpush.msra.mxu0 0.0
      %2269 = vmatpush.msra.mxu0 0.0
      %2270 = vmatpush.msra.mxu0 0.0
      %2271 = vmatpush.msra.mxu0 0.0
      %2272 = vmatpush.msra.mxu0 0.0
      %2273 = vmatpush.msra.mxu0 0.0
      %v2274 = vand.u32 %v1953, 4294901760
      %v2275 = vsub.f32 %v1953, %v2274
      %2276 = vmatpush.msra.mxu0 %v2275
      %v2277 = vand.u32 %v1949, 4294901760
      %v2278 = vsub.f32 %v1949, %v2277
      %2279 = vmatpush.msra.mxu0 %v2278
      %v2280 = vand.u32 %v2185, 4294901760
      %v2281 = vsub.f32 %v2185, %v2280
      %2282 = vmatmul.f32.gmra.mxu0 %v2281
      %v2283 = vpop.f32.mrf.mxu0
      %v2284 = vadd.f32 %v2254, %v2283
      %v2285 = vand.u32 %v2188, 4294901760
      %v2286 = vsub.f32 %v2188, %v2285
      %2287 = vmatmul.f32.gmra.mxu0 %v2286
      %v2288 = vpop.f32.mrf.mxu0
      %v2289 = vadd.f32 %v2258, %v2288
      %2290 = vdwg.mxu0
      %2291 = vmatpush.msra.mxu0 0.0
      %2292 = vmatpush.msra.mxu0 0.0
      %2293 = vmatpush.msra.mxu0 0.0
      %2294 = vmatpush.msra.mxu0 0.0
      %2295 = vmatpush.msra.mxu0 0.0
      %2296 = vmatpush.msra.mxu0 0.0
      %2297 = vmatpush.msra.mxu0 0.0
      %2298 = vmatpush.msra.mxu0 0.0
      %2299 = vmatpush.msra.mxu0 0.0
      %2300 = vmatpush.msra.mxu0 0.0
      %2301 = vmatpush.msra.mxu0 0.0
      %2302 = vmatpush.msra.mxu0 0.0
      %2303 = vmatpush.msra.mxu0 0.0
      %2304 = vmatpush.msra.mxu0 0.0
      %v2305 = vand.u32 %v1953, 4294901760
      %2306 = vmatpush.msra.mxu0 %v2305
      %v2307 = vand.u32 %v1949, 4294901760
      %2308 = vmatpush.msra.mxu0 %v2307
      %v2309 = vand.u32 %v2185, 4294901760
      %v2310 = vsub.f32 %v2185, %v2309
      %v2311 = vand.u32 %v2310, 4294901760
      %2312 = vmatmul.f32.gmra.mxu0 %v2311
      %v2313 = vpop.f32.mrf.mxu0
      %v2314 = vadd.f32 %v2284, %v2313
      %v2315 = vand.u32 %v2188, 4294901760
      %v2316 = vsub.f32 %v2188, %v2315
      %v2317 = vand.u32 %v2316, 4294901760
      %2318 = vmatmul.f32.gmra.mxu0 %v2317
      %v2319 = vpop.f32.mrf.mxu0
      %v2320 = vadd.f32 %v2289, %v2319
      %2321 = vdwg.mxu0
      %2322 = vmatpush.msra.mxu0 0.0
      %2323 = vmatpush.msra.mxu0 0.0
      %2324 = vmatpush.msra.mxu0 0.0
      %2325 = vmatpush.msra.mxu0 0.0
      %2326 = vmatpush.msra.mxu0 0.0
      %2327 = vmatpush.msra.mxu0 0.0
      %2328 = vmatpush.msra.mxu0 0.0
      %2329 = vmatpush.msra.mxu0 0.0
      %2330 = vmatpush.msra.mxu0 0.0
      %2331 = vmatpush.msra.mxu0 0.0
      %2332 = vmatpush.msra.mxu0 0.0
      %2333 = vmatpush.msra.mxu0 0.0
      %2334 = vmatpush.msra.mxu0 0.0
      %2335 = vmatpush.msra.mxu0 0.0
      %v2336 = vand.u32 %v1953, 4294901760
      %v2337 = vsub.f32 %v1953, %v2336
      %v2338 = vand.u32 %v2337, 4294901760
      %2339 = vmatpush.msra.mxu0 %v2338
      %v2340 = vand.u32 %v1949, 4294901760
      %v2341 = vsub.f32 %v1949, %v2340
      %v2342 = vand.u32 %v2341, 4294901760
      %2343 = vmatpush.msra.mxu0 %v2342
      %v2344 = vand.u32 %v2185, 4294901760
      %2345 = vmatmul.f32.gmra.mxu0 %v2344
      %v2346 = vpop.f32.mrf.mxu0
      %v2347 = vadd.f32 %v2314, %v2346
      %v2348 = vand.u32 %v2188, 4294901760
      %2349 = vmatmul.f32.gmra.mxu0 %v2348
      %v2350 = vpop.f32.mrf.mxu0
      %v2351 = vadd.f32 %v2320, %v2350
      %2352 = vdwg.mxu0
      %2353 = vmatpush.msra.mxu0 0.0
      %2354 = vmatpush.msra.mxu0 0.0
      %2355 = vmatpush.msra.mxu0 0.0
      %2356 = vmatpush.msra.mxu0 0.0
      %2357 = vmatpush.msra.mxu0 0.0
      %2358 = vmatpush.msra.mxu0 0.0
      %2359 = vmatpush.msra.mxu0 0.0
      %2360 = vmatpush.msra.mxu0 0.0
      %2361 = vmatpush.msra.mxu0 0.0
      %2362 = vmatpush.msra.mxu0 0.0
      %2363 = vmatpush.msra.mxu0 0.0
      %2364 = vmatpush.msra.mxu0 0.0
      %2365 = vmatpush.msra.mxu0 0.0
      %2366 = vmatpush.msra.mxu0 0.0
      %v2367 = vand.u32 %v1953, 4294901760
      %2368 = vmatpush.msra.mxu0 %v2367
      %v2369 = vand.u32 %v1949, 4294901760
      %2370 = vmatpush.msra.mxu0 %v2369
      %v2371 = vand.u32 %v2185, 4294901760
      %2372 = vmatmul.f32.gmra.mxu0 %v2371
      %v2373 = vpop.f32.mrf.mxu0
      %v2374 = vadd.f32 %v2347, %v2373
      %v2375 = vand.u32 %v2188, 4294901760
      %2376 = vmatmul.f32.gmra.mxu0 %v2375
      %v2377 = vpop.f32.mrf.mxu0
      %v2378 = vadd.f32 %v2351, %v2377
      %2379 = vdwg.mxu0
      %vm2380 = vcmp.ge.f32.partialorder %v2374, 0.0
      %vm2381 = vcmp.ge.f32.partialorder %v2378, 0.0
      %v2382 = vmul.f32 %v2374, 0.2
      %v2383 = vmul.f32 %v2378, 0.2
      %v2384 = vsel %vm2380, %v2374, %v2382
      %v2385 = vsel %vm2381, %v2378, %v2383
      %s2386 = scalar_lea.vmem %s6, 64
      %v2387 = vld [vmem:[%s2386] sm:$0xff]
      %v2388 = vld [vmem:[%s2386 + $0x8] sm:$0xff]
      %v2389 = vld [vmem:[%s2386 + $0x10] sm:$0xff]
      %v2390 = vld [vmem:[%s2386 + $0x18] sm:$0xff]
      %v2391 = vld [vmem:[%s2386 + $0x20] sm:$0xff]
      %v2392 = vld [vmem:[%s2386 + $0x28] sm:$0xff]
      %v2393 = vld [vmem:[%s2386 + $0x30] sm:$0xff]
      %v2394 = vld [vmem:[%s2386 + $0x38] sm:$0xff]
      %v2396 = vsel %vm1337, %v2384, 0
      %v2399 = vsel %vm1337, %v2385, 0
      %2401 = vmatpush.msra.mxu0 0.0
      %2402 = vmatpush.msra.mxu0 0.0
      %2403 = vmatpush.msra.mxu0 0.0
      %2404 = vmatpush.msra.mxu0 0.0
      %2405 = vmatpush.msra.mxu0 0.0
      %2406 = vmatpush.msra.mxu0 0.0
      %2407 = vmatpush.msra.mxu0 0.0
      %2408 = vmatpush.msra.mxu0 0.0
      %v2409 = vand.u32 %v2394, 4294901760
      %2410 = vmatpush.msra.mxu0 %v2409
      %v2411 = vand.u32 %v2393, 4294901760
      %2412 = vmatpush.msra.mxu0 %v2411
      %v2413 = vand.u32 %v2392, 4294901760
      %2414 = vmatpush.msra.mxu0 %v2413
      %v2415 = vand.u32 %v2391, 4294901760
      %2416 = vmatpush.msra.mxu0 %v2415
      %v2417 = vand.u32 %v2390, 4294901760
      %2418 = vmatpush.msra.mxu0 %v2417
      %v2419 = vand.u32 %v2389, 4294901760
      %2420 = vmatpush.msra.mxu0 %v2419
      %v2421 = vand.u32 %v2388, 4294901760
      %2422 = vmatpush.msra.mxu0 %v2421
      %v2423 = vand.u32 %v2387, 4294901760
      %2424 = vmatpush.msra.mxu0 %v2423
      %v2425 = vand.u32 %v2396, 4294901760
      %v2426 = vsub.f32 %v2396, %v2425
      %v2427 = vand.u32 %v2426, 4294901760
      %v2428 = vsub.f32 %v2426, %v2427
      %v2429 = vand.u32 %v2428, 4294901760
      %2430 = vmatmul.f32.gmra.mxu0 %v2429
      %v2431 = vpop.f32.mrf.mxu0
      %v2432 = vadd.f32 0.0, %v2431
      %v2433 = vand.u32 %v2399, 4294901760
      %v2434 = vsub.f32 %v2399, %v2433
      %v2435 = vand.u32 %v2434, 4294901760
      %v2436 = vsub.f32 %v2434, %v2435
      %v2437 = vand.u32 %v2436, 4294901760
      %2438 = vmatmul.f32.gmra.mxu0 %v2437
      %v2439 = vpop.f32.mrf.mxu0
      %v2440 = vadd.f32 0.0, %v2439
      %2441 = vdwg.mxu0
      %2442 = vmatpush.msra.mxu0 0.0
      %2443 = vmatpush.msra.mxu0 0.0
      %2444 = vmatpush.msra.mxu0 0.0
      %2445 = vmatpush.msra.mxu0 0.0
      %2446 = vmatpush.msra.mxu0 0.0
      %2447 = vmatpush.msra.mxu0 0.0
      %2448 = vmatpush.msra.mxu0 0.0
      %2449 = vmatpush.msra.mxu0 0.0
      %v2450 = vand.u32 %v2394, 4294901760
      %v2451 = vsub.f32 %v2394, %v2450
      %v2452 = vand.u32 %v2451, 4294901760
      %v2453 = vsub.f32 %v2451, %v2452
      %v2454 = vand.u32 %v2453, 4294901760
      %2455 = vmatpush.msra.mxu0 %v2454
      %v2456 = vand.u32 %v2393, 4294901760
      %v2457 = vsub.f32 %v2393, %v2456
      %v2458 = vand.u32 %v2457, 4294901760
      %v2459 = vsub.f32 %v2457, %v2458
      %v2460 = vand.u32 %v2459, 4294901760
      %2461 = vmatpush.msra.mxu0 %v2460
      %v2462 = vand.u32 %v2392, 4294901760
      %v2463 = vsub.f32 %v2392, %v2462
      %v2464 = vand.u32 %v2463, 4294901760
      %v2465 = vsub.f32 %v2463, %v2464
      %v2466 = vand.u32 %v2465, 4294901760
      %2467 = vmatpush.msra.mxu0 %v2466
      %v2468 = vand.u32 %v2391, 4294901760
      %v2469 = vsub.f32 %v2391, %v2468
      %v2470 = vand.u32 %v2469, 4294901760
      %v2471 = vsub.f32 %v2469, %v2470
      %v2472 = vand.u32 %v2471, 4294901760
      %2473 = vmatpush.msra.mxu0 %v2472
      %v2474 = vand.u32 %v2390, 4294901760
      %v2475 = vsub.f32 %v2390, %v2474
      %v2476 = vand.u32 %v2475, 4294901760
      %v2477 = vsub.f32 %v2475, %v2476
      %v2478 = vand.u32 %v2477, 4294901760
      %2479 = vmatpush.msra.mxu0 %v2478
      %v2480 = vand.u32 %v2389, 4294901760
      %v2481 = vsub.f32 %v2389, %v2480
      %v2482 = vand.u32 %v2481, 4294901760
      %v2483 = vsub.f32 %v2481, %v2482
      %v2484 = vand.u32 %v2483, 4294901760
      %2485 = vmatpush.msra.mxu0 %v2484
      %v2486 = vand.u32 %v2388, 4294901760
      %v2487 = vsub.f32 %v2388, %v2486
      %v2488 = vand.u32 %v2487, 4294901760
      %v2489 = vsub.f32 %v2487, %v2488
      %v2490 = vand.u32 %v2489, 4294901760
      %2491 = vmatpush.msra.mxu0 %v2490
      %v2492 = vand.u32 %v2387, 4294901760
      %v2493 = vsub.f32 %v2387, %v2492
      %v2494 = vand.u32 %v2493, 4294901760
      %v2495 = vsub.f32 %v2493, %v2494
      %v2496 = vand.u32 %v2495, 4294901760
      %2497 = vmatpush.msra.mxu0 %v2496
      %v2498 = vand.u32 %v2396, 4294901760
      %2499 = vmatmul.f32.gmra.mxu0 %v2498
      %v2500 = vpop.f32.mrf.mxu0
      %v2501 = vadd.f32 %v2432, %v2500
      %v2502 = vand.u32 %v2399, 4294901760
      %2503 = vmatmul.f32.gmra.mxu0 %v2502
      %v2504 = vpop.f32.mrf.mxu0
      %v2505 = vadd.f32 %v2440, %v2504
      %2506 = vdwg.mxu0
      %2507 = vmatpush.msra.mxu0 0.0
      %2508 = vmatpush.msra.mxu0 0.0
      %2509 = vmatpush.msra.mxu0 0.0
      %2510 = vmatpush.msra.mxu0 0.0
      %2511 = vmatpush.msra.mxu0 0.0
      %2512 = vmatpush.msra.mxu0 0.0
      %2513 = vmatpush.msra.mxu0 0.0
      %2514 = vmatpush.msra.mxu0 0.0
      %v2515 = vand.u32 %v2394, 4294901760
      %v2516 = vsub.f32 %v2394, %v2515
      %2517 = vmatpush.msra.mxu0 %v2516
      %v2518 = vand.u32 %v2393, 4294901760
      %v2519 = vsub.f32 %v2393, %v2518
      %2520 = vmatpush.msra.mxu0 %v2519
      %v2521 = vand.u32 %v2392, 4294901760
      %v2522 = vsub.f32 %v2392, %v2521
      %2523 = vmatpush.msra.mxu0 %v2522
      %v2524 = vand.u32 %v2391, 4294901760
      %v2525 = vsub.f32 %v2391, %v2524
      %2526 = vmatpush.msra.mxu0 %v2525
      %v2527 = vand.u32 %v2390, 4294901760
      %v2528 = vsub.f32 %v2390, %v2527
      %2529 = vmatpush.msra.mxu0 %v2528
      %v2530 = vand.u32 %v2389, 4294901760
      %v2531 = vsub.f32 %v2389, %v2530
      %2532 = vmatpush.msra.mxu0 %v2531
      %v2533 = vand.u32 %v2388, 4294901760
      %v2534 = vsub.f32 %v2388, %v2533
      %2535 = vmatpush.msra.mxu0 %v2534
      %v2536 = vand.u32 %v2387, 4294901760
      %v2537 = vsub.f32 %v2387, %v2536
      %2538 = vmatpush.msra.mxu0 %v2537
      %v2539 = vand.u32 %v2396, 4294901760
      %v2540 = vsub.f32 %v2396, %v2539
      %2541 = vmatmul.f32.gmra.mxu0 %v2540
      %v2542 = vpop.f32.mrf.mxu0
      %v2543 = vadd.f32 %v2501, %v2542
      %v2544 = vand.u32 %v2399, 4294901760
      %v2545 = vsub.f32 %v2399, %v2544
      %2546 = vmatmul.f32.gmra.mxu0 %v2545
      %v2547 = vpop.f32.mrf.mxu0
      %v2548 = vadd.f32 %v2505, %v2547
      %2549 = vdwg.mxu0
      %2550 = vmatpush.msra.mxu0 0.0
      %2551 = vmatpush.msra.mxu0 0.0
      %2552 = vmatpush.msra.mxu0 0.0
      %2553 = vmatpush.msra.mxu0 0.0
      %2554 = vmatpush.msra.mxu0 0.0
      %2555 = vmatpush.msra.mxu0 0.0
      %2556 = vmatpush.msra.mxu0 0.0
      %2557 = vmatpush.msra.mxu0 0.0
      %v2558 = vand.u32 %v2394, 4294901760
      %2559 = vmatpush.msra.mxu0 %v2558
      %v2560 = vand.u32 %v2393, 4294901760
      %2561 = vmatpush.msra.mxu0 %v2560
      %v2562 = vand.u32 %v2392, 4294901760
      %2563 = vmatpush.msra.mxu0 %v2562
      %v2564 = vand.u32 %v2391, 4294901760
      %2565 = vmatpush.msra.mxu0 %v2564
      %v2566 = vand.u32 %v2390, 4294901760
      %2567 = vmatpush.msra.mxu0 %v2566
      %v2568 = vand.u32 %v2389, 4294901760
      %2569 = vmatpush.msra.mxu0 %v2568
      %v2570 = vand.u32 %v2388, 4294901760
      %2571 = vmatpush.msra.mxu0 %v2570
      %v2572 = vand.u32 %v2387, 4294901760
      %2573 = vmatpush.msra.mxu0 %v2572
      %v2574 = vand.u32 %v2396, 4294901760
      %v2575 = vsub.f32 %v2396, %v2574
      %v2576 = vand.u32 %v2575, 4294901760
      %2577 = vmatmul.f32.gmra.mxu0 %v2576
      %v2578 = vpop.f32.mrf.mxu0
      %v2579 = vadd.f32 %v2543, %v2578
      %v2580 = vand.u32 %v2399, 4294901760
      %v2581 = vsub.f32 %v2399, %v2580
      %v2582 = vand.u32 %v2581, 4294901760
      %2583 = vmatmul.f32.gmra.mxu0 %v2582
      %v2584 = vpop.f32.mrf.mxu0
      %v2585 = vadd.f32 %v2548, %v2584
      %2586 = vdwg.mxu0
      %2587 = vmatpush.msra.mxu0 0.0
      %2588 = vmatpush.msra.mxu0 0.0
      %2589 = vmatpush.msra.mxu0 0.0
      %2590 = vmatpush.msra.mxu0 0.0
      %2591 = vmatpush.msra.mxu0 0.0
      %2592 = vmatpush.msra.mxu0 0.0
      %2593 = vmatpush.msra.mxu0 0.0
      %2594 = vmatpush.msra.mxu0 0.0
      %v2595 = vand.u32 %v2394, 4294901760
      %v2596 = vsub.f32 %v2394, %v2595
      %v2597 = vand.u32 %v2596, 4294901760
      %2598 = vmatpush.msra.mxu0 %v2597
      %v2599 = vand.u32 %v2393, 4294901760
      %v2600 = vsub.f32 %v2393, %v2599
      %v2601 = vand.u32 %v2600, 4294901760
      %2602 = vmatpush.msra.mxu0 %v2601
      %v2603 = vand.u32 %v2392, 4294901760
      %v2604 = vsub.f32 %v2392, %v2603
      %v2605 = vand.u32 %v2604, 4294901760
      %2606 = vmatpush.msra.mxu0 %v2605
      %v2607 = vand.u32 %v2391, 4294901760
      %v2608 = vsub.f32 %v2391, %v2607
      %v2609 = vand.u32 %v2608, 4294901760
      %2610 = vmatpush.msra.mxu0 %v2609
      %v2611 = vand.u32 %v2390, 4294901760
      %v2612 = vsub.f32 %v2390, %v2611
      %v2613 = vand.u32 %v2612, 4294901760
      %2614 = vmatpush.msra.mxu0 %v2613
      %v2615 = vand.u32 %v2389, 4294901760
      %v2616 = vsub.f32 %v2389, %v2615
      %v2617 = vand.u32 %v2616, 4294901760
      %2618 = vmatpush.msra.mxu0 %v2617
      %v2619 = vand.u32 %v2388, 4294901760
      %v2620 = vsub.f32 %v2388, %v2619
      %v2621 = vand.u32 %v2620, 4294901760
      %2622 = vmatpush.msra.mxu0 %v2621
      %v2623 = vand.u32 %v2387, 4294901760
      %v2624 = vsub.f32 %v2387, %v2623
      %v2625 = vand.u32 %v2624, 4294901760
      %2626 = vmatpush.msra.mxu0 %v2625
      %v2627 = vand.u32 %v2396, 4294901760
      %2628 = vmatmul.f32.gmra.mxu0 %v2627
      %v2629 = vpop.f32.mrf.mxu0
      %v2630 = vadd.f32 %v2579, %v2629
      %v2631 = vand.u32 %v2399, 4294901760
      %2632 = vmatmul.f32.gmra.mxu0 %v2631
      %v2633 = vpop.f32.mrf.mxu0
      %v2634 = vadd.f32 %v2585, %v2633
      %2635 = vdwg.mxu0
      %2636 = vmatpush.msra.mxu0 0.0
      %2637 = vmatpush.msra.mxu0 0.0
      %2638 = vmatpush.msra.mxu0 0.0
      %2639 = vmatpush.msra.mxu0 0.0
      %2640 = vmatpush.msra.mxu0 0.0
      %2641 = vmatpush.msra.mxu0 0.0
      %2642 = vmatpush.msra.mxu0 0.0
      %2643 = vmatpush.msra.mxu0 0.0
      %v2644 = vand.u32 %v2394, 4294901760
      %2645 = vmatpush.msra.mxu0 %v2644
      %v2646 = vand.u32 %v2393, 4294901760
      %2647 = vmatpush.msra.mxu0 %v2646
      %v2648 = vand.u32 %v2392, 4294901760
      %2649 = vmatpush.msra.mxu0 %v2648
      %v2650 = vand.u32 %v2391, 4294901760
      %2651 = vmatpush.msra.mxu0 %v2650
      %v2652 = vand.u32 %v2390, 4294901760
      %2653 = vmatpush.msra.mxu0 %v2652
      %v2654 = vand.u32 %v2389, 4294901760
      %2655 = vmatpush.msra.mxu0 %v2654
      %v2656 = vand.u32 %v2388, 4294901760
      %2657 = vmatpush.msra.mxu0 %v2656
      %v2658 = vand.u32 %v2387, 4294901760
      %2659 = vmatpush.msra.mxu0 %v2658
      %v2660 = vand.u32 %v2396, 4294901760
      %2661 = vmatmul.f32.gmra.mxu0 %v2660
      %v2662 = vpop.f32.mrf.mxu0
      %v2663 = vadd.f32 %v2630, %v2662
      %v2664 = vand.u32 %v2399, 4294901760
      %2665 = vmatmul.f32.gmra.mxu0 %v2664
      %v2666 = vpop.f32.mrf.mxu0
      %v2667 = vadd.f32 %v2634, %v2666
      %2668 = vdwg.mxu0
      %v2670 = vsel %vm1337, %v1766, 0
      %v2673 = vsel %vm1337, %v1767, 0
      %2675 = vmatpush.msra.mxu0 0.0
      %2676 = vmatpush.msra.mxu0 0.0
      %2677 = vmatpush.msra.mxu0 0.0
      %2678 = vmatpush.msra.mxu0 0.0
      %2679 = vmatpush.msra.mxu0 0.0
      %2680 = vmatpush.msra.mxu0 0.0
      %2681 = vmatpush.msra.mxu0 0.0
      %2682 = vmatpush.msra.mxu0 0.0
      %v2683 = vand.u32 %v1775, 4294901760
      %2684 = vmatpush.msra.mxu0 %v2683
      %v2685 = vand.u32 %v1774, 4294901760
      %2686 = vmatpush.msra.mxu0 %v2685
      %v2687 = vand.u32 %v1773, 4294901760
      %2688 = vmatpush.msra.mxu0 %v2687
      %v2689 = vand.u32 %v1772, 4294901760
      %2690 = vmatpush.msra.mxu0 %v2689
      %v2691 = vand.u32 %v1771, 4294901760
      %2692 = vmatpush.msra.mxu0 %v2691
      %v2693 = vand.u32 %v1770, 4294901760
      %2694 = vmatpush.msra.mxu0 %v2693
      %v2695 = vand.u32 %v1769, 4294901760
      %2696 = vmatpush.msra.mxu0 %v2695
      %v2697 = vand.u32 %v1768, 4294901760
      %2698 = vmatpush.msra.mxu0 %v2697
      %v2699 = vand.u32 %v2670, 4294901760
      %v2700 = vsub.f32 %v2670, %v2699
      %v2701 = vand.u32 %v2700, 4294901760
      %v2702 = vsub.f32 %v2700, %v2701
      %v2703 = vand.u32 %v2702, 4294901760
      %2704 = vmatmul.f32.gmra.mxu0 %v2703
      %v2705 = vpop.f32.mrf.mxu0
      %v2706 = vadd.f32 %v2663, %v2705
      %v2707 = vand.u32 %v2673, 4294901760
      %v2708 = vsub.f32 %v2673, %v2707
      %v2709 = vand.u32 %v2708, 4294901760
      %v2710 = vsub.f32 %v2708, %v2709
      %v2711 = vand.u32 %v2710, 4294901760
      %2712 = vmatmul.f32.gmra.mxu0 %v2711
      %v2713 = vpop.f32.mrf.mxu0
      %v2714 = vadd.f32 %v2667, %v2713
      %2715 = vdwg.mxu0
      %2716 = vmatpush.msra.mxu0 0.0
      %2717 = vmatpush.msra.mxu0 0.0
      %2718 = vmatpush.msra.mxu0 0.0
      %2719 = vmatpush.msra.mxu0 0.0
      %2720 = vmatpush.msra.mxu0 0.0
      %2721 = vmatpush.msra.mxu0 0.0
      %2722 = vmatpush.msra.mxu0 0.0
      %2723 = vmatpush.msra.mxu0 0.0
      %v2724 = vand.u32 %v1775, 4294901760
      %v2725 = vsub.f32 %v1775, %v2724
      %v2726 = vand.u32 %v2725, 4294901760
      %v2727 = vsub.f32 %v2725, %v2726
      %v2728 = vand.u32 %v2727, 4294901760
      %2729 = vmatpush.msra.mxu0 %v2728
      %v2730 = vand.u32 %v1774, 4294901760
      %v2731 = vsub.f32 %v1774, %v2730
      %v2732 = vand.u32 %v2731, 4294901760
      %v2733 = vsub.f32 %v2731, %v2732
      %v2734 = vand.u32 %v2733, 4294901760
      %2735 = vmatpush.msra.mxu0 %v2734
      %v2736 = vand.u32 %v1773, 4294901760
      %v2737 = vsub.f32 %v1773, %v2736
      %v2738 = vand.u32 %v2737, 4294901760
      %v2739 = vsub.f32 %v2737, %v2738
      %v2740 = vand.u32 %v2739, 4294901760
      %2741 = vmatpush.msra.mxu0 %v2740
      %v2742 = vand.u32 %v1772, 4294901760
      %v2743 = vsub.f32 %v1772, %v2742
      %v2744 = vand.u32 %v2743, 4294901760
      %v2745 = vsub.f32 %v2743, %v2744
      %v2746 = vand.u32 %v2745, 4294901760
      %2747 = vmatpush.msra.mxu0 %v2746
      %v2748 = vand.u32 %v1771, 4294901760
      %v2749 = vsub.f32 %v1771, %v2748
      %v2750 = vand.u32 %v2749, 4294901760
      %v2751 = vsub.f32 %v2749, %v2750
      %v2752 = vand.u32 %v2751, 4294901760
      %2753 = vmatpush.msra.mxu0 %v2752
      %v2754 = vand.u32 %v1770, 4294901760
      %v2755 = vsub.f32 %v1770, %v2754
      %v2756 = vand.u32 %v2755, 4294901760
      %v2757 = vsub.f32 %v2755, %v2756
      %v2758 = vand.u32 %v2757, 4294901760
      %2759 = vmatpush.msra.mxu0 %v2758
      %v2760 = vand.u32 %v1769, 4294901760
      %v2761 = vsub.f32 %v1769, %v2760
      %v2762 = vand.u32 %v2761, 4294901760
      %v2763 = vsub.f32 %v2761, %v2762
      %v2764 = vand.u32 %v2763, 4294901760
      %2765 = vmatpush.msra.mxu0 %v2764
      %v2766 = vand.u32 %v1768, 4294901760
      %v2767 = vsub.f32 %v1768, %v2766
      %v2768 = vand.u32 %v2767, 4294901760
      %v2769 = vsub.f32 %v2767, %v2768
      %v2770 = vand.u32 %v2769, 4294901760
      %2771 = vmatpush.msra.mxu0 %v2770
      %v2772 = vand.u32 %v2670, 4294901760
      %2773 = vmatmul.f32.gmra.mxu0 %v2772
      %v2774 = vpop.f32.mrf.mxu0
      %v2775 = vadd.f32 %v2706, %v2774
      %v2776 = vand.u32 %v2673, 4294901760
      %2777 = vmatmul.f32.gmra.mxu0 %v2776
      %v2778 = vpop.f32.mrf.mxu0
      %v2779 = vadd.f32 %v2714, %v2778
      %2780 = vdwg.mxu0
      %2781 = vmatpush.msra.mxu0 0.0
      %2782 = vmatpush.msra.mxu0 0.0
      %2783 = vmatpush.msra.mxu0 0.0
      %2784 = vmatpush.msra.mxu0 0.0
      %2785 = vmatpush.msra.mxu0 0.0
      %2786 = vmatpush.msra.mxu0 0.0
      %2787 = vmatpush.msra.mxu0 0.0
      %2788 = vmatpush.msra.mxu0 0.0
      %v2789 = vand.u32 %v1775, 4294901760
      %v2790 = vsub.f32 %v1775, %v2789
      %2791 = vmatpush.msra.mxu0 %v2790
      %v2792 = vand.u32 %v1774, 4294901760
      %v2793 = vsub.f32 %v1774, %v2792
      %2794 = vmatpush.msra.mxu0 %v2793
      %v2795 = vand.u32 %v1773, 4294901760
      %v2796 = vsub.f32 %v1773, %v2795
      %2797 = vmatpush.msra.mxu0 %v2796
      %v2798 = vand.u32 %v1772, 4294901760
      %v2799 = vsub.f32 %v1772, %v2798
      %2800 = vmatpush.msra.mxu0 %v2799
      %v2801 = vand.u32 %v1771, 4294901760
      %v2802 = vsub.f32 %v1771, %v2801
      %2803 = vmatpush.msra.mxu0 %v2802
      %v2804 = vand.u32 %v1770, 4294901760
      %v2805 = vsub.f32 %v1770, %v2804
      %2806 = vmatpush.msra.mxu0 %v2805
      %v2807 = vand.u32 %v1769, 4294901760
      %v2808 = vsub.f32 %v1769, %v2807
      %2809 = vmatpush.msra.mxu0 %v2808
      %v2810 = vand.u32 %v1768, 4294901760
      %v2811 = vsub.f32 %v1768, %v2810
      %2812 = vmatpush.msra.mxu0 %v2811
      %v2813 = vand.u32 %v2670, 4294901760
      %v2814 = vsub.f32 %v2670, %v2813
      %2815 = vmatmul.f32.gmra.mxu0 %v2814
      %v2816 = vpop.f32.mrf.mxu0
      %v2817 = vadd.f32 %v2775, %v2816
      %v2818 = vand.u32 %v2673, 4294901760
      %v2819 = vsub.f32 %v2673, %v2818
      %2820 = vmatmul.f32.gmra.mxu0 %v2819
      %v2821 = vpop.f32.mrf.mxu0
      %v2822 = vadd.f32 %v2779, %v2821
      %2823 = vdwg.mxu0
      %2824 = vmatpush.msra.mxu0 0.0
      %2825 = vmatpush.msra.mxu0 0.0
      %2826 = vmatpush.msra.mxu0 0.0
      %2827 = vmatpush.msra.mxu0 0.0
      %2828 = vmatpush.msra.mxu0 0.0
      %2829 = vmatpush.msra.mxu0 0.0
      %2830 = vmatpush.msra.mxu0 0.0
      %2831 = vmatpush.msra.mxu0 0.0
      %v2832 = vand.u32 %v1775, 4294901760
      %2833 = vmatpush.msra.mxu0 %v2832
      %v2834 = vand.u32 %v1774, 4294901760
      %2835 = vmatpush.msra.mxu0 %v2834
      %v2836 = vand.u32 %v1773, 4294901760
      %2837 = vmatpush.msra.mxu0 %v2836
      %v2838 = vand.u32 %v1772, 4294901760
      %2839 = vmatpush.msra.mxu0 %v2838
      %v2840 = vand.u32 %v1771, 4294901760
      %2841 = vmatpush.msra.mxu0 %v2840
      %v2842 = vand.u32 %v1770, 4294901760
      %2843 = vmatpush.msra.mxu0 %v2842
      %v2844 = vand.u32 %v1769, 4294901760
      %2845 = vmatpush.msra.mxu0 %v2844
      %v2846 = vand.u32 %v1768, 4294901760
      %2847 = vmatpush.msra.mxu0 %v2846
      %v2848 = vand.u32 %v2670, 4294901760
      %v2849 = vsub.f32 %v2670, %v2848
      %v2850 = vand.u32 %v2849, 4294901760
      %2851 = vmatmul.f32.gmra.mxu0 %v2850
      %v2852 = vpop.f32.mrf.mxu0
      %v2853 = vadd.f32 %v2817, %v2852
      %v2854 = vand.u32 %v2673, 4294901760
      %v2855 = vsub.f32 %v2673, %v2854
      %v2856 = vand.u32 %v2855, 4294901760
      %2857 = vmatmul.f32.gmra.mxu0 %v2856
      %v2858 = vpop.f32.mrf.mxu0
      %v2859 = vadd.f32 %v2822, %v2858
      %2860 = vdwg.mxu0
      %2861 = vmatpush.msra.mxu0 0.0
      %2862 = vmatpush.msra.mxu0 0.0
      %2863 = vmatpush.msra.mxu0 0.0
      %2864 = vmatpush.msra.mxu0 0.0
      %2865 = vmatpush.msra.mxu0 0.0
      %2866 = vmatpush.msra.mxu0 0.0
      %2867 = vmatpush.msra.mxu0 0.0
      %2868 = vmatpush.msra.mxu0 0.0
      %v2869 = vand.u32 %v1775, 4294901760
      %v2870 = vsub.f32 %v1775, %v2869
      %v2871 = vand.u32 %v2870, 4294901760
      %2872 = vmatpush.msra.mxu0 %v2871
      %v2873 = vand.u32 %v1774, 4294901760
      %v2874 = vsub.f32 %v1774, %v2873
      %v2875 = vand.u32 %v2874, 4294901760
      %2876 = vmatpush.msra.mxu0 %v2875
      %v2877 = vand.u32 %v1773, 4294901760
      %v2878 = vsub.f32 %v1773, %v2877
      %v2879 = vand.u32 %v2878, 4294901760
      %2880 = vmatpush.msra.mxu0 %v2879
      %v2881 = vand.u32 %v1772, 4294901760
      %v2882 = vsub.f32 %v1772, %v2881
      %v2883 = vand.u32 %v2882, 4294901760
      %2884 = vmatpush.msra.mxu0 %v2883
      %v2885 = vand.u32 %v1771, 4294901760
      %v2886 = vsub.f32 %v1771, %v2885
      %v2887 = vand.u32 %v2886, 4294901760
      %2888 = vmatpush.msra.mxu0 %v2887
      %v2889 = vand.u32 %v1770, 4294901760
      %v2890 = vsub.f32 %v1770, %v2889
      %v2891 = vand.u32 %v2890, 4294901760
      %2892 = vmatpush.msra.mxu0 %v2891
      %v2893 = vand.u32 %v1769, 4294901760
      %v2894 = vsub.f32 %v1769, %v2893
      %v2895 = vand.u32 %v2894, 4294901760
      %2896 = vmatpush.msra.mxu0 %v2895
      %v2897 = vand.u32 %v1768, 4294901760
      %v2898 = vsub.f32 %v1768, %v2897
      %v2899 = vand.u32 %v2898, 4294901760
      %2900 = vmatpush.msra.mxu0 %v2899
      %v2901 = vand.u32 %v2670, 4294901760
      %2902 = vmatmul.f32.gmra.mxu0 %v2901
      %v2903 = vpop.f32.mrf.mxu0
      %v2904 = vadd.f32 %v2853, %v2903
      %v2905 = vand.u32 %v2673, 4294901760
      %2906 = vmatmul.f32.gmra.mxu0 %v2905
      %v2907 = vpop.f32.mrf.mxu0
      %v2908 = vadd.f32 %v2859, %v2907
      %2909 = vdwg.mxu0
      %2910 = vmatpush.msra.mxu0 0.0
      %2911 = vmatpush.msra.mxu0 0.0
      %2912 = vmatpush.msra.mxu0 0.0
      %2913 = vmatpush.msra.mxu0 0.0
      %2914 = vmatpush.msra.mxu0 0.0
      %2915 = vmatpush.msra.mxu0 0.0
      %2916 = vmatpush.msra.mxu0 0.0
      %2917 = vmatpush.msra.mxu0 0.0
      %v2918 = vand.u32 %v1775, 4294901760
      %2919 = vmatpush.msra.mxu0 %v2918
      %v2920 = vand.u32 %v1774, 4294901760
      %2921 = vmatpush.msra.mxu0 %v2920
      %v2922 = vand.u32 %v1773, 4294901760
      %2923 = vmatpush.msra.mxu0 %v2922
      %v2924 = vand.u32 %v1772, 4294901760
      %2925 = vmatpush.msra.mxu0 %v2924
      %v2926 = vand.u32 %v1771, 4294901760
      %2927 = vmatpush.msra.mxu0 %v2926
      %v2928 = vand.u32 %v1770, 4294901760
      %2929 = vmatpush.msra.mxu0 %v2928
      %v2930 = vand.u32 %v1769, 4294901760
      %2931 = vmatpush.msra.mxu0 %v2930
      %v2932 = vand.u32 %v1768, 4294901760
      %2933 = vmatpush.msra.mxu0 %v2932
      %v2934 = vand.u32 %v2670, 4294901760
      %2935 = vmatmul.f32.gmra.mxu0 %v2934
      %v2936 = vpop.f32.mrf.mxu0
      %v2937 = vadd.f32 %v2904, %v2936
      %v2938 = vand.u32 %v2673, 4294901760
      %2939 = vmatmul.f32.gmra.mxu0 %v2938
      %v2940 = vpop.f32.mrf.mxu0
      %v2941 = vadd.f32 %v2908, %v2940
      %2942 = vdwg.mxu0
      %s2943 = scalar_lea.vmem %s4, 16
      %v2944 = vld [vmem:[%s2943] sm:$0xff]
      %2945 = vmatpush.msra.mxu0 0.0
      %2946 = vmatpush.msra.mxu0 0.0
      %2947 = vmatpush.msra.mxu0 0.0
      %2948 = vmatpush.msra.mxu0 0.0
      %2949 = vmatpush.msra.mxu0 0.0
      %2950 = vmatpush.msra.mxu0 0.0
      %2951 = vmatpush.msra.mxu0 0.0
      %2952 = vmatpush.msra.mxu0 0.0
      %2953 = vmatpush.msra.mxu0 0.0
      %2954 = vmatpush.msra.mxu0 0.0
      %2955 = vmatpush.msra.mxu0 0.0
      %2956 = vmatpush.msra.mxu0 0.0
      %2957 = vmatpush.msra.mxu0 0.0
      %2958 = vmatpush.msra.mxu0 0.0
      %2959 = vmatpush.msra.mxu0 0.0
      %v2960 = vand.u32 %v2944, 4294901760
      %2961 = vmatpush.msra.mxu0 %v2960
      %v2962 = vand.u32 %v1155, 4294901760
      %v2963 = vsub.f32 %v1155, %v2962
      %v2964 = vand.u32 %v2963, 4294901760
      %v2965 = vsub.f32 %v2963, %v2964
      %v2966 = vand.u32 %v2965, 4294901760
      %2967 = vmatmul.f32.gmra.mxu0 %v2966
      %v2968 = vpop.f32.mrf.mxu0
      %v2969 = vadd.f32 0.0, %v2968
      %v2970 = vand.u32 %v1158, 4294901760
      %v2971 = vsub.f32 %v1158, %v2970
      %v2972 = vand.u32 %v2971, 4294901760
      %v2973 = vsub.f32 %v2971, %v2972
      %v2974 = vand.u32 %v2973, 4294901760
      %2975 = vmatmul.f32.gmra.mxu0 %v2974
      %v2976 = vpop.f32.mrf.mxu0
      %v2977 = vadd.f32 0.0, %v2976
      %2978 = vdwg.mxu0
      %2979 = vmatpush.msra.mxu0 0.0
      %2980 = vmatpush.msra.mxu0 0.0
      %2981 = vmatpush.msra.mxu0 0.0
      %2982 = vmatpush.msra.mxu0 0.0
      %2983 = vmatpush.msra.mxu0 0.0
      %2984 = vmatpush.msra.mxu0 0.0
      %2985 = vmatpush.msra.mxu0 0.0
      %2986 = vmatpush.msra.mxu0 0.0
      %2987 = vmatpush.msra.mxu0 0.0
      %2988 = vmatpush.msra.mxu0 0.0
      %2989 = vmatpush.msra.mxu0 0.0
      %2990 = vmatpush.msra.mxu0 0.0
      %2991 = vmatpush.msra.mxu0 0.0
      %2992 = vmatpush.msra.mxu0 0.0
      %2993 = vmatpush.msra.mxu0 0.0
      %v2994 = vand.u32 %v2944, 4294901760
      %v2995 = vsub.f32 %v2944, %v2994
      %v2996 = vand.u32 %v2995, 4294901760
      %v2997 = vsub.f32 %v2995, %v2996
      %v2998 = vand.u32 %v2997, 4294901760
      %2999 = vmatpush.msra.mxu0 %v2998
      %v3000 = vand.u32 %v1155, 4294901760
      %3001 = vmatmul.f32.gmra.mxu0 %v3000
      %v3002 = vpop.f32.mrf.mxu0
      %v3003 = vadd.f32 %v2969, %v3002
      %v3004 = vand.u32 %v1158, 4294901760
      %3005 = vmatmul.f32.gmra.mxu0 %v3004
      %v3006 = vpop.f32.mrf.mxu0
      %v3007 = vadd.f32 %v2977, %v3006
      %3008 = vdwg.mxu0
      %3009 = vmatpush.msra.mxu0 0.0
      %3010 = vmatpush.msra.mxu0 0.0
      %3011 = vmatpush.msra.mxu0 0.0
      %3012 = vmatpush.msra.mxu0 0.0
      %3013 = vmatpush.msra.mxu0 0.0
      %3014 = vmatpush.msra.mxu0 0.0
      %3015 = vmatpush.msra.mxu0 0.0
      %3016 = vmatpush.msra.mxu0 0.0
      %3017 = vmatpush.msra.mxu0 0.0
      %3018 = vmatpush.msra.mxu0 0.0
      %3019 = vmatpush.msra.mxu0 0.0
      %3020 = vmatpush.msra.mxu0 0.0
      %3021 = vmatpush.msra.mxu0 0.0
      %3022 = vmatpush.msra.mxu0 0.0
      %3023 = vmatpush.msra.mxu0 0.0
      %v3024 = vand.u32 %v2944, 4294901760
      %v3025 = vsub.f32 %v2944, %v3024
      %3026 = vmatpush.msra.mxu0 %v3025
      %v3027 = vand.u32 %v1155, 4294901760
      %v3028 = vsub.f32 %v1155, %v3027
      %3029 = vmatmul.f32.gmra.mxu0 %v3028
      %v3030 = vpop.f32.mrf.mxu0
      %v3031 = vadd.f32 %v3003, %v3030
      %v3032 = vand.u32 %v1158, 4294901760
      %v3033 = vsub.f32 %v1158, %v3032
      %3034 = vmatmul.f32.gmra.mxu0 %v3033
      %v3035 = vpop.f32.mrf.mxu0
      %v3036 = vadd.f32 %v3007, %v3035
      %3037 = vdwg.mxu0
      %3038 = vmatpush.msra.mxu0 0.0
      %3039 = vmatpush.msra.mxu0 0.0
      %3040 = vmatpush.msra.mxu0 0.0
      %3041 = vmatpush.msra.mxu0 0.0
      %3042 = vmatpush.msra.mxu0 0.0
      %3043 = vmatpush.msra.mxu0 0.0
      %3044 = vmatpush.msra.mxu0 0.0
      %3045 = vmatpush.msra.mxu0 0.0
      %3046 = vmatpush.msra.mxu0 0.0
      %3047 = vmatpush.msra.mxu0 0.0
      %3048 = vmatpush.msra.mxu0 0.0
      %3049 = vmatpush.msra.mxu0 0.0
      %3050 = vmatpush.msra.mxu0 0.0
      %3051 = vmatpush.msra.mxu0 0.0
      %3052 = vmatpush.msra.mxu0 0.0
      %v3053 = vand.u32 %v2944, 4294901760
      %3054 = vmatpush.msra.mxu0 %v3053
      %v3055 = vand.u32 %v1155, 4294901760
      %v3056 = vsub.f32 %v1155, %v3055
      %v3057 = vand.u32 %v3056, 4294901760
      %3058 = vmatmul.f32.gmra.mxu0 %v3057
      %v3059 = vpop.f32.mrf.mxu0
      %v3060 = vadd.f32 %v3031, %v3059
      %v3061 = vand.u32 %v1158, 4294901760
      %v3062 = vsub.f32 %v1158, %v3061
      %v3063 = vand.u32 %v3062, 4294901760
      %3064 = vmatmul.f32.gmra.mxu0 %v3063
      %v3065 = vpop.f32.mrf.mxu0
      %v3066 = vadd.f32 %v3036, %v3065
      %3067 = vdwg.mxu0
      %3068 = vmatpush.msra.mxu0 0.0
      %3069 = vmatpush.msra.mxu0 0.0
      %3070 = vmatpush.msra.mxu0 0.0
      %3071 = vmatpush.msra.mxu0 0.0
      %3072 = vmatpush.msra.mxu0 0.0
      %3073 = vmatpush.msra.mxu0 0.0
      %3074 = vmatpush.msra.mxu0 0.0
      %3075 = vmatpush.msra.mxu0 0.0
      %3076 = vmatpush.msra.mxu0 0.0
      %3077 = vmatpush.msra.mxu0 0.0
      %3078 = vmatpush.msra.mxu0 0.0
      %3079 = vmatpush.msra.mxu0 0.0
      %3080 = vmatpush.msra.mxu0 0.0
      %3081 = vmatpush.msra.mxu0 0.0
      %3082 = vmatpush.msra.mxu0 0.0
      %v3083 = vand.u32 %v2944, 4294901760
      %v3084 = vsub.f32 %v2944, %v3083
      %v3085 = vand.u32 %v3084, 4294901760
      %3086 = vmatpush.msra.mxu0 %v3085
      %v3087 = vand.u32 %v1155, 4294901760
      %3088 = vmatmul.f32.gmra.mxu0 %v3087
      %v3089 = vpop.f32.mrf.mxu0
      %v3090 = vadd.f32 %v3060, %v3089
      %v3091 = vand.u32 %v1158, 4294901760
      %3092 = vmatmul.f32.gmra.mxu0 %v3091
      %v3093 = vpop.f32.mrf.mxu0
      %v3094 = vadd.f32 %v3066, %v3093
      %3095 = vdwg.mxu0
      %3096 = vmatpush.msra.mxu0 0.0
      %3097 = vmatpush.msra.mxu0 0.0
      %3098 = vmatpush.msra.mxu0 0.0
      %3099 = vmatpush.msra.mxu0 0.0
      %3100 = vmatpush.msra.mxu0 0.0
      %3101 = vmatpush.msra.mxu0 0.0
      %3102 = vmatpush.msra.mxu0 0.0
      %3103 = vmatpush.msra.mxu0 0.0
      %3104 = vmatpush.msra.mxu0 0.0
      %3105 = vmatpush.msra.mxu0 0.0
      %3106 = vmatpush.msra.mxu0 0.0
      %3107 = vmatpush.msra.mxu0 0.0
      %3108 = vmatpush.msra.mxu0 0.0
      %3109 = vmatpush.msra.mxu0 0.0
      %3110 = vmatpush.msra.mxu0 0.0
      %v3111 = vand.u32 %v2944, 4294901760
      %3112 = vmatpush.msra.mxu0 %v3111
      %v3113 = vand.u32 %v1155, 4294901760
      %3114 = vmatmul.f32.gmra.mxu0 %v3113
      %v3115 = vpop.f32.mrf.mxu0
      %v3116 = vadd.f32 %v3090, %v3115
      %v3117 = vand.u32 %v1158, 4294901760
      %3118 = vmatmul.f32.gmra.mxu0 %v3117
      %v3119 = vpop.f32.mrf.mxu0
      %v3120 = vadd.f32 %v3094, %v3119
      %3121 = vdwg.mxu0
      %v3123 = vsel %vm1337, %v3116, 0
      %v3126 = vsel %vm1337, %v3120, 0
      %3128 = vmatpush.xpose.msra.mxu0 0.0
      %3129 = vmatpush.xpose.msra.mxu0 0.0
      %3130 = vmatpush.xpose.msra.mxu0 0.0
      %3131 = vmatpush.xpose.msra.mxu0 0.0
      %3132 = vmatpush.xpose.msra.mxu0 0.0
      %3133 = vmatpush.xpose.msra.mxu0 0.0
      %3134 = vmatpush.xpose.msra.mxu0 0.0
      %3135 = vmatpush.xpose.msra.mxu0 0.0
      %3136 = vmatpush.xpose.msra.mxu0 0.0
      %3137 = vmatpush.xpose.msra.mxu0 0.0
      %3138 = vmatpush.xpose.msra.mxu0 0.0
      %3139 = vmatpush.xpose.msra.mxu0 0.0
      %3140 = vmatpush.xpose.msra.mxu0 0.0
      %3141 = vmatpush.xpose.msra.mxu0 0.0
      %v3142 = vand.u32 %v3126, 4294901760
      %3143 = vmatpush.xpose.msra.mxu0 %v3142
      %v3144 = vand.u32 %v3123, 4294901760
      %3145 = vmatpush.xpose.msra.mxu0 %v3144
      %v3146 = vand.u32 %v3123, 4294901760
      %v3147 = vsub.f32 %v3123, %v3146
      %v3148 = vand.u32 %v3147, 4294901760
      %v3149 = vsub.f32 %v3147, %v3148
      %v3150 = vand.u32 %v3149, 4294901760
      %3151 = vmatmul.f32.gmra.mxu0 %v3150
      %v3152 = vpop.f32.mrf.mxu0
      %v3153 = vadd.f32 0.0, %v3152
      %v3154 = vand.u32 %v3126, 4294901760
      %v3155 = vsub.f32 %v3126, %v3154
      %v3156 = vand.u32 %v3155, 4294901760
      %v3157 = vsub.f32 %v3155, %v3156
      %v3158 = vand.u32 %v3157, 4294901760
      %3159 = vmatmul.f32.gmra.mxu0 %v3158
      %v3160 = vpop.f32.mrf.mxu0
      %v3161 = vadd.f32 0.0, %v3160
      %3162 = vdwg.mxu0
      %3163 = vmatpush.xpose.msra.mxu0 0.0
      %3164 = vmatpush.xpose.msra.mxu0 0.0
      %3165 = vmatpush.xpose.msra.mxu0 0.0
      %3166 = vmatpush.xpose.msra.mxu0 0.0
      %3167 = vmatpush.xpose.msra.mxu0 0.0
      %3168 = vmatpush.xpose.msra.mxu0 0.0
      %3169 = vmatpush.xpose.msra.mxu0 0.0
      %3170 = vmatpush.xpose.msra.mxu0 0.0
      %3171 = vmatpush.xpose.msra.mxu0 0.0
      %3172 = vmatpush.xpose.msra.mxu0 0.0
      %3173 = vmatpush.xpose.msra.mxu0 0.0
      %3174 = vmatpush.xpose.msra.mxu0 0.0
      %3175 = vmatpush.xpose.msra.mxu0 0.0
      %3176 = vmatpush.xpose.msra.mxu0 0.0
      %v3177 = vand.u32 %v3126, 4294901760
      %v3178 = vsub.f32 %v3126, %v3177
      %v3179 = vand.u32 %v3178, 4294901760
      %v3180 = vsub.f32 %v3178, %v3179
      %v3181 = vand.u32 %v3180, 4294901760
      %3182 = vmatpush.xpose.msra.mxu0 %v3181
      %v3183 = vand.u32 %v3123, 4294901760
      %v3184 = vsub.f32 %v3123, %v3183
      %v3185 = vand.u32 %v3184, 4294901760
      %v3186 = vsub.f32 %v3184, %v3185
      %v3187 = vand.u32 %v3186, 4294901760
      %3188 = vmatpush.xpose.msra.mxu0 %v3187
      %v3189 = vand.u32 %v3123, 4294901760
      %3190 = vmatmul.f32.gmra.mxu0 %v3189
      %v3191 = vpop.f32.mrf.mxu0
      %v3192 = vadd.f32 %v3153, %v3191
      %v3193 = vand.u32 %v3126, 4294901760
      %3194 = vmatmul.f32.gmra.mxu0 %v3193
      %v3195 = vpop.f32.mrf.mxu0
      %v3196 = vadd.f32 %v3161, %v3195
      %3197 = vdwg.mxu0
      %3198 = vmatpush.xpose.msra.mxu0 0.0
      %3199 = vmatpush.xpose.msra.mxu0 0.0
      %3200 = vmatpush.xpose.msra.mxu0 0.0
      %3201 = vmatpush.xpose.msra.mxu0 0.0
      %3202 = vmatpush.xpose.msra.mxu0 0.0
      %3203 = vmatpush.xpose.msra.mxu0 0.0
      %3204 = vmatpush.xpose.msra.mxu0 0.0
      %3205 = vmatpush.xpose.msra.mxu0 0.0
      %3206 = vmatpush.xpose.msra.mxu0 0.0
      %3207 = vmatpush.xpose.msra.mxu0 0.0
      %3208 = vmatpush.xpose.msra.mxu0 0.0
      %3209 = vmatpush.xpose.msra.mxu0 0.0
      %3210 = vmatpush.xpose.msra.mxu0 0.0
      %3211 = vmatpush.xpose.msra.mxu0 0.0
      %v3212 = vand.u32 %v3126, 4294901760
      %v3213 = vsub.f32 %v3126, %v3212
      %3214 = vmatpush.xpose.msra.mxu0 %v3213
      %v3215 = vand.u32 %v3123, 4294901760
      %v3216 = vsub.f32 %v3123, %v3215
      %3217 = vmatpush.xpose.msra.mxu0 %v3216
      %v3218 = vand.u32 %v3123, 4294901760
      %v3219 = vsub.f32 %v3123, %v3218
      %3220 = vmatmul.f32.gmra.mxu0 %v3219
      %v3221 = vpop.f32.mrf.mxu0
      %v3222 = vadd.f32 %v3192, %v3221
      %v3223 = vand.u32 %v3126, 4294901760
      %v3224 = vsub.f32 %v3126, %v3223
      %3225 = vmatmul.f32.gmra.mxu0 %v3224
      %v3226 = vpop.f32.mrf.mxu0
      %v3227 = vadd.f32 %v3196, %v3226
      %3228 = vdwg.mxu0
      %3229 = vmatpush.xpose.msra.mxu0 0.0
      %3230 = vmatpush.xpose.msra.mxu0 0.0
      %3231 = vmatpush.xpose.msra.mxu0 0.0
      %3232 = vmatpush.xpose.msra.mxu0 0.0
      %3233 = vmatpush.xpose.msra.mxu0 0.0
      %3234 = vmatpush.xpose.msra.mxu0 0.0
      %3235 = vmatpush.xpose.msra.mxu0 0.0
      %3236 = vmatpush.xpose.msra.mxu0 0.0
      %3237 = vmatpush.xpose.msra.mxu0 0.0
      %3238 = vmatpush.xpose.msra.mxu0 0.0
      %3239 = vmatpush.xpose.msra.mxu0 0.0
      %3240 = vmatpush.xpose.msra.mxu0 0.0
      %3241 = vmatpush.xpose.msra.mxu0 0.0
      %3242 = vmatpush.xpose.msra.mxu0 0.0
      %v3243 = vand.u32 %v3126, 4294901760
      %3244 = vmatpush.xpose.msra.mxu0 %v3243
      %v3245 = vand.u32 %v3123, 4294901760
      %3246 = vmatpush.xpose.msra.mxu0 %v3245
      %v3247 = vand.u32 %v3123, 4294901760
      %v3248 = vsub.f32 %v3123, %v3247
      %v3249 = vand.u32 %v3248, 4294901760
      %3250 = vmatmul.f32.gmra.mxu0 %v3249
      %v3251 = vpop.f32.mrf.mxu0
      %v3252 = vadd.f32 %v3222, %v3251
      %v3253 = vand.u32 %v3126, 4294901760
      %v3254 = vsub.f32 %v3126, %v3253
      %v3255 = vand.u32 %v3254, 4294901760
      %3256 = vmatmul.f32.gmra.mxu0 %v3255
      %v3257 = vpop.f32.mrf.mxu0
      %v3258 = vadd.f32 %v3227, %v3257
      %3259 = vdwg.mxu0
      %3260 = vmatpush.xpose.msra.mxu0 0.0
      %3261 = vmatpush.xpose.msra.mxu0 0.0
      %3262 = vmatpush.xpose.msra.mxu0 0.0
      %3263 = vmatpush.xpose.msra.mxu0 0.0
      %3264 = vmatpush.xpose.msra.mxu0 0.0
      %3265 = vmatpush.xpose.msra.mxu0 0.0
      %3266 = vmatpush.xpose.msra.mxu0 0.0
      %3267 = vmatpush.xpose.msra.mxu0 0.0
      %3268 = vmatpush.xpose.msra.mxu0 0.0
      %3269 = vmatpush.xpose.msra.mxu0 0.0
      %3270 = vmatpush.xpose.msra.mxu0 0.0
      %3271 = vmatpush.xpose.msra.mxu0 0.0
      %3272 = vmatpush.xpose.msra.mxu0 0.0
      %3273 = vmatpush.xpose.msra.mxu0 0.0
      %v3274 = vand.u32 %v3126, 4294901760
      %v3275 = vsub.f32 %v3126, %v3274
      %v3276 = vand.u32 %v3275, 4294901760
      %3277 = vmatpush.xpose.msra.mxu0 %v3276
      %v3278 = vand.u32 %v3123, 4294901760
      %v3279 = vsub.f32 %v3123, %v3278
      %v3280 = vand.u32 %v3279, 4294901760
      %3281 = vmatpush.xpose.msra.mxu0 %v3280
      %v3282 = vand.u32 %v3123, 4294901760
      %3283 = vmatmul.f32.gmra.mxu0 %v3282
      %v3284 = vpop.f32.mrf.mxu0
      %v3285 = vadd.f32 %v3252, %v3284
      %v3286 = vand.u32 %v3126, 4294901760
      %3287 = vmatmul.f32.gmra.mxu0 %v3286
      %v3288 = vpop.f32.mrf.mxu0
      %v3289 = vadd.f32 %v3258, %v3288
      %3290 = vdwg.mxu0
      %3291 = vmatpush.xpose.msra.mxu0 0.0
      %3292 = vmatpush.xpose.msra.mxu0 0.0
      %3293 = vmatpush.xpose.msra.mxu0 0.0
      %3294 = vmatpush.xpose.msra.mxu0 0.0
      %3295 = vmatpush.xpose.msra.mxu0 0.0
      %3296 = vmatpush.xpose.msra.mxu0 0.0
      %3297 = vmatpush.xpose.msra.mxu0 0.0
      %3298 = vmatpush.xpose.msra.mxu0 0.0
      %3299 = vmatpush.xpose.msra.mxu0 0.0
      %3300 = vmatpush.xpose.msra.mxu0 0.0
      %3301 = vmatpush.xpose.msra.mxu0 0.0
      %3302 = vmatpush.xpose.msra.mxu0 0.0
      %3303 = vmatpush.xpose.msra.mxu0 0.0
      %3304 = vmatpush.xpose.msra.mxu0 0.0
      %v3305 = vand.u32 %v3126, 4294901760
      %3306 = vmatpush.xpose.msra.mxu0 %v3305
      %v3307 = vand.u32 %v3123, 4294901760
      %3308 = vmatpush.xpose.msra.mxu0 %v3307
      %v3309 = vand.u32 %v3123, 4294901760
      %3310 = vmatmul.f32.gmra.mxu0 %v3309
      %v3311 = vpop.f32.mrf.mxu0
      %v3312 = vadd.f32 %v3285, %v3311
      %v3313 = vand.u32 %v3126, 4294901760
      %3314 = vmatmul.f32.gmra.mxu0 %v3313
      %v3315 = vpop.f32.mrf.mxu0
      %v3316 = vadd.f32 %v3289, %v3315
      %3317 = vdwg.mxu0
      %v3318 = vmul.f32 %v3312, %v463
      %v3319 = vmul.f32 %v3316, %v464
      %vm3320 = vcmp.eq.f32.partialorder %v3318, 0.0
      %vm3321 = vcmp.eq.f32.partialorder %v3319, 0.0
      %v3322 = vsel %vm3320, -1e+16, %v3318
      %v3323 = vsel %vm3321, -1e+16, %v3319
      %v3324 = vsel %vm468, %v3322, -inf
      %3325 = vmax.xlane.f32.xlu0 %v3324
      %v3326 = vpop.xlane.xlu0 %3325
      %v3327 = vsel %vm468, %v3323, -inf
      %3328 = vmax.xlane.f32.xlu0 %v3327
      %v3329 = vpop.xlane.xlu0 %3328
      %v3330 = vsub.f32 %v3322, %v3326
      %v3331 = vsub.f32 %v3323, %v3329
      %v3332 = vmul.f32 %v3330, 1.442695
      %v3333 = vpow.pop %v3332
      %v3334 = vmul.f32 %v3331, 1.442695
      %v3335 = vpow.pop %v3334
      %v3336 = vsel %vm468, %v3333, 0.0
      %3337 = vadd.xlane.f32.xlu0 %v3336
      %v3338 = vpop.xlane.xlu0 %3337
      %v3339 = vsel %vm468, %v3335, 0.0
      %3340 = vadd.xlane.f32.xlu0 %v3339
      %v3341 = vpop.xlane.xlu0 %3340
      %v3342 = vrcp.pop %v3338
      %v3343 = vrcp.pop %v3341
      %v3344 = vmul.f32 %v3333, %v3342
      %v3345 = vmul.f32 %v3335, %v3343
      %s3346 = scalar_lea.vmem %s5, 2
      %v3347 = vld [vmem:[%s3346] sm:$0x1]
      %v3349 = vperm.slane %v3347, 0
      %v3352 = vsel %vm468, %v3344, 0
      %v3355 = vsel %vm468, %v3345, 0
      %3357 = vmatpush.msra.mxu0 0.0
      %3358 = vmatpush.msra.mxu0 0.0
      %3359 = vmatpush.msra.mxu0 0.0
      %3360 = vmatpush.msra.mxu0 0.0
      %3361 = vmatpush.msra.mxu0 0.0
      %3362 = vmatpush.msra.mxu0 0.0
      %3363 = vmatpush.msra.mxu0 0.0
      %3364 = vmatpush.msra.mxu0 0.0
      %3365 = vmatpush.msra.mxu0 0.0
      %3366 = vmatpush.msra.mxu0 0.0
      %3367 = vmatpush.msra.mxu0 0.0
      %3368 = vmatpush.msra.mxu0 0.0
      %3369 = vmatpush.msra.mxu0 0.0
      %3370 = vmatpush.msra.mxu0 0.0
      %v3371 = vand.u32 %v3120, 4294901760
      %3372 = vmatpush.msra.mxu0 %v3371
      %v3373 = vand.u32 %v3116, 4294901760
      %3374 = vmatpush.msra.mxu0 %v3373
      %v3375 = vand.u32 %v3352, 4294901760
      %v3376 = vsub.f32 %v3352, %v3375
      %v3377 = vand.u32 %v3376, 4294901760
      %v3378 = vsub.f32 %v3376, %v3377
      %v3379 = vand.u32 %v3378, 4294901760
      %3380 = vmatmul.f32.gmra.mxu0 %v3379
      %v3381 = vpop.f32.mrf.mxu0
      %v3382 = vadd.f32 %v3349, %v3381
      %v3383 = vand.u32 %v3355, 4294901760
      %v3384 = vsub.f32 %v3355, %v3383
      %v3385 = vand.u32 %v3384, 4294901760
      %v3386 = vsub.f32 %v3384, %v3385
      %v3387 = vand.u32 %v3386, 4294901760
      %3388 = vmatmul.f32.gmra.mxu0 %v3387
      %v3389 = vpop.f32.mrf.mxu0
      %v3390 = vadd.f32 %v3349, %v3389
      %3391 = vdwg.mxu0
      %3392 = vmatpush.msra.mxu0 0.0
      %3393 = vmatpush.msra.mxu0 0.0
      %3394 = vmatpush.msra.mxu0 0.0
      %3395 = vmatpush.msra.mxu0 0.0
      %3396 = vmatpush.msra.mxu0 0.0
      %3397 = vmatpush.msra.mxu0 0.0
      %3398 = vmatpush.msra.mxu0 0.0
      %3399 = vmatpush.msra.mxu0 0.0
      %3400 = vmatpush.msra.mxu0 0.0
      %3401 = vmatpush.msra.mxu0 0.0
      %3402 = vmatpush.msra.mxu0 0.0
      %3403 = vmatpush.msra.mxu0 0.0
      %3404 = vmatpush.msra.mxu0 0.0
      %3405 = vmatpush.msra.mxu0 0.0
      %v3406 = vand.u32 %v3120, 4294901760
      %v3407 = vsub.f32 %v3120, %v3406
      %v3408 = vand.u32 %v3407, 4294901760
      %v3409 = vsub.f32 %v3407, %v3408
      %v3410 = vand.u32 %v3409, 4294901760
      %3411 = vmatpush.msra.mxu0 %v3410
      %v3412 = vand.u32 %v3116, 4294901760
      %v3413 = vsub.f32 %v3116, %v3412
      %v3414 = vand.u32 %v3413, 4294901760
      %v3415 = vsub.f32 %v3413, %v3414
      %v3416 = vand.u32 %v3415, 4294901760
      %3417 = vmatpush.msra.mxu0 %v3416
      %v3418 = vand.u32 %v3352, 4294901760
      %3419 = vmatmul.f32.gmra.mxu0 %v3418
      %v3420 = vpop.f32.mrf.mxu0
      %v3421 = vadd.f32 %v3382, %v3420
      %v3422 = vand.u32 %v3355, 4294901760
      %3423 = vmatmul.f32.gmra.mxu0 %v3422
      %v3424 = vpop.f32.mrf.mxu0
      %v3425 = vadd.f32 %v3390, %v3424
      %3426 = vdwg.mxu0
      %3427 = vmatpush.msra.mxu0 0.0
      %3428 = vmatpush.msra.mxu0 0.0
      %3429 = vmatpush.msra.mxu0 0.0
      %3430 = vmatpush.msra.mxu0 0.0
      %3431 = vmatpush.msra.mxu0 0.0
      %3432 = vmatpush.msra.mxu0 0.0
      %3433 = vmatpush.msra.mxu0 0.0
      %3434 = vmatpush.msra.mxu0 0.0
      %3435 = vmatpush.msra.mxu0 0.0
      %3436 = vmatpush.msra.mxu0 0.0
      %3437 = vmatpush.msra.mxu0 0.0
      %3438 = vmatpush.msra.mxu0 0.0
      %3439 = vmatpush.msra.mxu0 0.0
      %3440 = vmatpush.msra.mxu0 0.0
      %v3441 = vand.u32 %v3120, 4294901760
      %v3442 = vsub.f32 %v3120, %v3441
      %3443 = vmatpush.msra.mxu0 %v3442
      %v3444 = vand.u32 %v3116, 4294901760
      %v3445 = vsub.f32 %v3116, %v3444
      %3446 = vmatpush.msra.mxu0 %v3445
      %v3447 = vand.u32 %v3352, 4294901760
      %v3448 = vsub.f32 %v3352, %v3447
      %3449 = vmatmul.f32.gmra.mxu0 %v3448
      %v3450 = vpop.f32.mrf.mxu0
      %v3451 = vadd.f32 %v3421, %v3450
      %v3452 = vand.u32 %v3355, 4294901760
      %v3453 = vsub.f32 %v3355, %v3452
      %3454 = vmatmul.f32.gmra.mxu0 %v3453
      %v3455 = vpop.f32.mrf.mxu0
      %v3456 = vadd.f32 %v3425, %v3455
      %3457 = vdwg.mxu0
      %3458 = vmatpush.msra.mxu0 0.0
      %3459 = vmatpush.msra.mxu0 0.0
      %3460 = vmatpush.msra.mxu0 0.0
      %3461 = vmatpush.msra.mxu0 0.0
      %3462 = vmatpush.msra.mxu0 0.0
      %3463 = vmatpush.msra.mxu0 0.0
      %3464 = vmatpush.msra.mxu0 0.0
      %3465 = vmatpush.msra.mxu0 0.0
      %3466 = vmatpush.msra.mxu0 0.0
      %3467 = vmatpush.msra.mxu0 0.0
      %3468 = vmatpush.msra.mxu0 0.0
      %3469 = vmatpush.msra.mxu0 0.0
      %3470 = vmatpush.msra.mxu0 0.0
      %3471 = vmatpush.msra.mxu0 0.0
      %v3472 = vand.u32 %v3120, 4294901760
      %3473 = vmatpush.msra.mxu0 %v3472
      %v3474 = vand.u32 %v3116, 4294901760
      %3475 = vmatpush.msra.mxu0 %v3474
      %v3476 = vand.u32 %v3352, 4294901760
      %v3477 = vsub.f32 %v3352, %v3476
      %v3478 = vand.u32 %v3477, 4294901760
      %3479 = vmatmul.f32.gmra.mxu0 %v3478
      %v3480 = vpop.f32.mrf.mxu0
      %v3481 = vadd.f32 %v3451, %v3480
      %v3482 = vand.u32 %v3355, 4294901760
      %v3483 = vsub.f32 %v3355, %v3482
      %v3484 = vand.u32 %v3483, 4294901760
      %3485 = vmatmul.f32.gmra.mxu0 %v3484
      %v3486 = vpop.f32.mrf.mxu0
      %v3487 = vadd.f32 %v3456, %v3486
      %3488 = vdwg.mxu0
      %3489 = vmatpush.msra.mxu0 0.0
      %3490 = vmatpush.msra.mxu0 0.0
      %3491 = vmatpush.msra.mxu0 0.0
      %3492 = vmatpush.msra.mxu0 0.0
      %3493 = vmatpush.msra.mxu0 0.0
      %3494 = vmatpush.msra.mxu0 0.0
      %3495 = vmatpush.msra.mxu0 0.0
      %3496 = vmatpush.msra.mxu0 0.0
      %3497 = vmatpush.msra.mxu0 0.0
      %3498 = vmatpush.msra.mxu0 0.0
      %3499 = vmatpush.msra.mxu0 0.0
      %3500 = vmatpush.msra.mxu0 0.0
      %3501 = vmatpush.msra.mxu0 0.0
      %3502 = vmatpush.msra.mxu0 0.0
      %v3503 = vand.u32 %v3120, 4294901760
      %v3504 = vsub.f32 %v3120, %v3503
      %v3505 = vand.u32 %v3504, 4294901760
      %3506 = vmatpush.msra.mxu0 %v3505
      %v3507 = vand.u32 %v3116, 4294901760
      %v3508 = vsub.f32 %v3116, %v3507
      %v3509 = vand.u32 %v3508, 4294901760
      %3510 = vmatpush.msra.mxu0 %v3509
      %v3511 = vand.u32 %v3352, 4294901760
      %3512 = vmatmul.f32.gmra.mxu0 %v3511
      %v3513 = vpop.f32.mrf.mxu0
      %v3514 = vadd.f32 %v3481, %v3513
      %v3515 = vand.u32 %v3355, 4294901760
      %3516 = vmatmul.f32.gmra.mxu0 %v3515
      %v3517 = vpop.f32.mrf.mxu0
      %v3518 = vadd.f32 %v3487, %v3517
      %3519 = vdwg.mxu0
      %3520 = vmatpush.msra.mxu0 0.0
      %3521 = vmatpush.msra.mxu0 0.0
      %3522 = vmatpush.msra.mxu0 0.0
      %3523 = vmatpush.msra.mxu0 0.0
      %3524 = vmatpush.msra.mxu0 0.0
      %3525 = vmatpush.msra.mxu0 0.0
      %3526 = vmatpush.msra.mxu0 0.0
      %3527 = vmatpush.msra.mxu0 0.0
      %3528 = vmatpush.msra.mxu0 0.0
      %3529 = vmatpush.msra.mxu0 0.0
      %3530 = vmatpush.msra.mxu0 0.0
      %3531 = vmatpush.msra.mxu0 0.0
      %3532 = vmatpush.msra.mxu0 0.0
      %3533 = vmatpush.msra.mxu0 0.0
      %v3534 = vand.u32 %v3120, 4294901760
      %3535 = vmatpush.msra.mxu0 %v3534
      %v3536 = vand.u32 %v3116, 4294901760
      %3537 = vmatpush.msra.mxu0 %v3536
      %v3538 = vand.u32 %v3352, 4294901760
      %3539 = vmatmul.f32.gmra.mxu0 %v3538
      %v3540 = vpop.f32.mrf.mxu0
      %v3541 = vadd.f32 %v3514, %v3540
      %v3542 = vand.u32 %v3355, 4294901760
      %3543 = vmatmul.f32.gmra.mxu0 %v3542
      %v3544 = vpop.f32.mrf.mxu0
      %v3545 = vadd.f32 %v3518, %v3544
      %3546 = vdwg.mxu0
      %vm3547 = vcmp.ge.f32.partialorder %v3541, 0.0
      %vm3548 = vcmp.ge.f32.partialorder %v3545, 0.0
      %v3549 = vmul.f32 %v3541, 0.2
      %v3550 = vmul.f32 %v3545, 0.2
      %v3551 = vsel %vm3547, %v3541, %v3549
      %v3552 = vsel %vm3548, %v3545, %v3550
      %s3553 = scalar_lea.vmem %s6, 128
      %v3554 = vld [vmem:[%s3553] sm:$0xff]
      %v3555 = vld [vmem:[%s3553 + $0x8] sm:$0xff]
      %v3556 = vld [vmem:[%s3553 + $0x10] sm:$0xff]
      %v3557 = vld [vmem:[%s3553 + $0x18] sm:$0xff]
      %v3558 = vld [vmem:[%s3553 + $0x20] sm:$0xff]
      %v3559 = vld [vmem:[%s3553 + $0x28] sm:$0xff]
      %v3560 = vld [vmem:[%s3553 + $0x30] sm:$0xff]
      %v3561 = vld [vmem:[%s3553 + $0x38] sm:$0xff]
      %v3563 = vsel %vm1337, %v3551, 0
      %v3566 = vsel %vm1337, %v3552, 0
      %3568 = vmatpush.msra.mxu0 0.0
      %3569 = vmatpush.msra.mxu0 0.0
      %3570 = vmatpush.msra.mxu0 0.0
      %3571 = vmatpush.msra.mxu0 0.0
      %3572 = vmatpush.msra.mxu0 0.0
      %3573 = vmatpush.msra.mxu0 0.0
      %3574 = vmatpush.msra.mxu0 0.0
      %3575 = vmatpush.msra.mxu0 0.0
      %v3576 = vand.u32 %v3561, 4294901760
      %3577 = vmatpush.msra.mxu0 %v3576
      %v3578 = vand.u32 %v3560, 4294901760
      %3579 = vmatpush.msra.mxu0 %v3578
      %v3580 = vand.u32 %v3559, 4294901760
      %3581 = vmatpush.msra.mxu0 %v3580
      %v3582 = vand.u32 %v3558, 4294901760
      %3583 = vmatpush.msra.mxu0 %v3582
      %v3584 = vand.u32 %v3557, 4294901760
      %3585 = vmatpush.msra.mxu0 %v3584
      %v3586 = vand.u32 %v3556, 4294901760
      %3587 = vmatpush.msra.mxu0 %v3586
      %v3588 = vand.u32 %v3555, 4294901760
      %3589 = vmatpush.msra.mxu0 %v3588
      %v3590 = vand.u32 %v3554, 4294901760
      %3591 = vmatpush.msra.mxu0 %v3590
      %v3592 = vand.u32 %v3563, 4294901760
      %v3593 = vsub.f32 %v3563, %v3592
      %v3594 = vand.u32 %v3593, 4294901760
      %v3595 = vsub.f32 %v3593, %v3594
      %v3596 = vand.u32 %v3595, 4294901760
      %3597 = vmatmul.f32.gmra.mxu0 %v3596
      %v3598 = vpop.f32.mrf.mxu0
      %v3599 = vadd.f32 0.0, %v3598
      %v3600 = vand.u32 %v3566, 4294901760
      %v3601 = vsub.f32 %v3566, %v3600
      %v3602 = vand.u32 %v3601, 4294901760
      %v3603 = vsub.f32 %v3601, %v3602
      %v3604 = vand.u32 %v3603, 4294901760
      %3605 = vmatmul.f32.gmra.mxu0 %v3604
      %v3606 = vpop.f32.mrf.mxu0
      %v3607 = vadd.f32 0.0, %v3606
      %3608 = vdwg.mxu0
      %3609 = vmatpush.msra.mxu0 0.0
      %3610 = vmatpush.msra.mxu0 0.0
      %3611 = vmatpush.msra.mxu0 0.0
      %3612 = vmatpush.msra.mxu0 0.0
      %3613 = vmatpush.msra.mxu0 0.0
      %3614 = vmatpush.msra.mxu0 0.0
      %3615 = vmatpush.msra.mxu0 0.0
      %3616 = vmatpush.msra.mxu0 0.0
      %v3617 = vand.u32 %v3561, 4294901760
      %v3618 = vsub.f32 %v3561, %v3617
      %v3619 = vand.u32 %v3618, 4294901760
      %v3620 = vsub.f32 %v3618, %v3619
      %v3621 = vand.u32 %v3620, 4294901760
      %3622 = vmatpush.msra.mxu0 %v3621
      %v3623 = vand.u32 %v3560, 4294901760
      %v3624 = vsub.f32 %v3560, %v3623
      %v3625 = vand.u32 %v3624, 4294901760
      %v3626 = vsub.f32 %v3624, %v3625
      %v3627 = vand.u32 %v3626, 4294901760
      %3628 = vmatpush.msra.mxu0 %v3627
      %v3629 = vand.u32 %v3559, 4294901760
      %v3630 = vsub.f32 %v3559, %v3629
      %v3631 = vand.u32 %v3630, 4294901760
      %v3632 = vsub.f32 %v3630, %v3631
      %v3633 = vand.u32 %v3632, 4294901760
      %3634 = vmatpush.msra.mxu0 %v3633
      %v3635 = vand.u32 %v3558, 4294901760
      %v3636 = vsub.f32 %v3558, %v3635
      %v3637 = vand.u32 %v3636, 4294901760
      %v3638 = vsub.f32 %v3636, %v3637
      %v3639 = vand.u32 %v3638, 4294901760
      %3640 = vmatpush.msra.mxu0 %v3639
      %v3641 = vand.u32 %v3557, 4294901760
      %v3642 = vsub.f32 %v3557, %v3641
      %v3643 = vand.u32 %v3642, 4294901760
      %v3644 = vsub.f32 %v3642, %v3643
      %v3645 = vand.u32 %v3644, 4294901760
      %3646 = vmatpush.msra.mxu0 %v3645
      %v3647 = vand.u32 %v3556, 4294901760
      %v3648 = vsub.f32 %v3556, %v3647
      %v3649 = vand.u32 %v3648, 4294901760
      %v3650 = vsub.f32 %v3648, %v3649
      %v3651 = vand.u32 %v3650, 4294901760
      %3652 = vmatpush.msra.mxu0 %v3651
      %v3653 = vand.u32 %v3555, 4294901760
      %v3654 = vsub.f32 %v3555, %v3653
      %v3655 = vand.u32 %v3654, 4294901760
      %v3656 = vsub.f32 %v3654, %v3655
      %v3657 = vand.u32 %v3656, 4294901760
      %3658 = vmatpush.msra.mxu0 %v3657
      %v3659 = vand.u32 %v3554, 4294901760
      %v3660 = vsub.f32 %v3554, %v3659
      %v3661 = vand.u32 %v3660, 4294901760
      %v3662 = vsub.f32 %v3660, %v3661
      %v3663 = vand.u32 %v3662, 4294901760
      %3664 = vmatpush.msra.mxu0 %v3663
      %v3665 = vand.u32 %v3563, 4294901760
      %3666 = vmatmul.f32.gmra.mxu0 %v3665
      %v3667 = vpop.f32.mrf.mxu0
      %v3668 = vadd.f32 %v3599, %v3667
      %v3669 = vand.u32 %v3566, 4294901760
      %3670 = vmatmul.f32.gmra.mxu0 %v3669
      %v3671 = vpop.f32.mrf.mxu0
      %v3672 = vadd.f32 %v3607, %v3671
      %3673 = vdwg.mxu0
      %3674 = vmatpush.msra.mxu0 0.0
      %3675 = vmatpush.msra.mxu0 0.0
      %3676 = vmatpush.msra.mxu0 0.0
      %3677 = vmatpush.msra.mxu0 0.0
      %3678 = vmatpush.msra.mxu0 0.0
      %3679 = vmatpush.msra.mxu0 0.0
      %3680 = vmatpush.msra.mxu0 0.0
      %3681 = vmatpush.msra.mxu0 0.0
      %v3682 = vand.u32 %v3561, 4294901760
      %v3683 = vsub.f32 %v3561, %v3682
      %3684 = vmatpush.msra.mxu0 %v3683
      %v3685 = vand.u32 %v3560, 4294901760
      %v3686 = vsub.f32 %v3560, %v3685
      %3687 = vmatpush.msra.mxu0 %v3686
      %v3688 = vand.u32 %v3559, 4294901760
      %v3689 = vsub.f32 %v3559, %v3688
      %3690 = vmatpush.msra.mxu0 %v3689
      %v3691 = vand.u32 %v3558, 4294901760
      %v3692 = vsub.f32 %v3558, %v3691
      %3693 = vmatpush.msra.mxu0 %v3692
      %v3694 = vand.u32 %v3557, 4294901760
      %v3695 = vsub.f32 %v3557, %v3694
      %3696 = vmatpush.msra.mxu0 %v3695
      %v3697 = vand.u32 %v3556, 4294901760
      %v3698 = vsub.f32 %v3556, %v3697
      %3699 = vmatpush.msra.mxu0 %v3698
      %v3700 = vand.u32 %v3555, 4294901760
      %v3701 = vsub.f32 %v3555, %v3700
      %3702 = vmatpush.msra.mxu0 %v3701
      %v3703 = vand.u32 %v3554, 4294901760
      %v3704 = vsub.f32 %v3554, %v3703
      %3705 = vmatpush.msra.mxu0 %v3704
      %v3706 = vand.u32 %v3563, 4294901760
      %v3707 = vsub.f32 %v3563, %v3706
      %3708 = vmatmul.f32.gmra.mxu0 %v3707
      %v3709 = vpop.f32.mrf.mxu0
      %v3710 = vadd.f32 %v3668, %v3709
      %v3711 = vand.u32 %v3566, 4294901760
      %v3712 = vsub.f32 %v3566, %v3711
      %3713 = vmatmul.f32.gmra.mxu0 %v3712
      %v3714 = vpop.f32.mrf.mxu0
      %v3715 = vadd.f32 %v3672, %v3714
      %3716 = vdwg.mxu0
      %3717 = vmatpush.msra.mxu0 0.0
      %3718 = vmatpush.msra.mxu0 0.0
      %3719 = vmatpush.msra.mxu0 0.0
      %3720 = vmatpush.msra.mxu0 0.0
      %3721 = vmatpush.msra.mxu0 0.0
      %3722 = vmatpush.msra.mxu0 0.0
      %3723 = vmatpush.msra.mxu0 0.0
      %3724 = vmatpush.msra.mxu0 0.0
      %v3725 = vand.u32 %v3561, 4294901760
      %3726 = vmatpush.msra.mxu0 %v3725
      %v3727 = vand.u32 %v3560, 4294901760
      %3728 = vmatpush.msra.mxu0 %v3727
      %v3729 = vand.u32 %v3559, 4294901760
      %3730 = vmatpush.msra.mxu0 %v3729
      %v3731 = vand.u32 %v3558, 4294901760
      %3732 = vmatpush.msra.mxu0 %v3731
      %v3733 = vand.u32 %v3557, 4294901760
      %3734 = vmatpush.msra.mxu0 %v3733
      %v3735 = vand.u32 %v3556, 4294901760
      %3736 = vmatpush.msra.mxu0 %v3735
      %v3737 = vand.u32 %v3555, 4294901760
      %3738 = vmatpush.msra.mxu0 %v3737
      %v3739 = vand.u32 %v3554, 4294901760
      %3740 = vmatpush.msra.mxu0 %v3739
      %v3741 = vand.u32 %v3563, 4294901760
      %v3742 = vsub.f32 %v3563, %v3741
      %v3743 = vand.u32 %v3742, 4294901760
      %3744 = vmatmul.f32.gmra.mxu0 %v3743
      %v3745 = vpop.f32.mrf.mxu0
      %v3746 = vadd.f32 %v3710, %v3745
      %v3747 = vand.u32 %v3566, 4294901760
      %v3748 = vsub.f32 %v3566, %v3747
      %v3749 = vand.u32 %v3748, 4294901760
      %3750 = vmatmul.f32.gmra.mxu0 %v3749
      %v3751 = vpop.f32.mrf.mxu0
      %v3752 = vadd.f32 %v3715, %v3751
      %3753 = vdwg.mxu0
      %3754 = vmatpush.msra.mxu0 0.0
      %3755 = vmatpush.msra.mxu0 0.0
      %3756 = vmatpush.msra.mxu0 0.0
      %3757 = vmatpush.msra.mxu0 0.0
      %3758 = vmatpush.msra.mxu0 0.0
      %3759 = vmatpush.msra.mxu0 0.0
      %3760 = vmatpush.msra.mxu0 0.0
      %3761 = vmatpush.msra.mxu0 0.0
      %v3762 = vand.u32 %v3561, 4294901760
      %v3763 = vsub.f32 %v3561, %v3762
      %v3764 = vand.u32 %v3763, 4294901760
      %3765 = vmatpush.msra.mxu0 %v3764
      %v3766 = vand.u32 %v3560, 4294901760
      %v3767 = vsub.f32 %v3560, %v3766
      %v3768 = vand.u32 %v3767, 4294901760
      %3769 = vmatpush.msra.mxu0 %v3768
      %v3770 = vand.u32 %v3559, 4294901760
      %v3771 = vsub.f32 %v3559, %v3770
      %v3772 = vand.u32 %v3771, 4294901760
      %3773 = vmatpush.msra.mxu0 %v3772
      %v3774 = vand.u32 %v3558, 4294901760
      %v3775 = vsub.f32 %v3558, %v3774
      %v3776 = vand.u32 %v3775, 4294901760
      %3777 = vmatpush.msra.mxu0 %v3776
      %v3778 = vand.u32 %v3557, 4294901760
      %v3779 = vsub.f32 %v3557, %v3778
      %v3780 = vand.u32 %v3779, 4294901760
      %3781 = vmatpush.msra.mxu0 %v3780
      %v3782 = vand.u32 %v3556, 4294901760
      %v3783 = vsub.f32 %v3556, %v3782
      %v3784 = vand.u32 %v3783, 4294901760
      %3785 = vmatpush.msra.mxu0 %v3784
      %v3786 = vand.u32 %v3555, 4294901760
      %v3787 = vsub.f32 %v3555, %v3786
      %v3788 = vand.u32 %v3787, 4294901760
      %3789 = vmatpush.msra.mxu0 %v3788
      %v3790 = vand.u32 %v3554, 4294901760
      %v3791 = vsub.f32 %v3554, %v3790
      %v3792 = vand.u32 %v3791, 4294901760
      %3793 = vmatpush.msra.mxu0 %v3792
      %v3794 = vand.u32 %v3563, 4294901760
      %3795 = vmatmul.f32.gmra.mxu0 %v3794
      %v3796 = vpop.f32.mrf.mxu0
      %v3797 = vadd.f32 %v3746, %v3796
      %v3798 = vand.u32 %v3566, 4294901760
      %3799 = vmatmul.f32.gmra.mxu0 %v3798
      %v3800 = vpop.f32.mrf.mxu0
      %v3801 = vadd.f32 %v3752, %v3800
      %3802 = vdwg.mxu0
      %3803 = vmatpush.msra.mxu0 0.0
      %3804 = vmatpush.msra.mxu0 0.0
      %3805 = vmatpush.msra.mxu0 0.0
      %3806 = vmatpush.msra.mxu0 0.0
      %3807 = vmatpush.msra.mxu0 0.0
      %3808 = vmatpush.msra.mxu0 0.0
      %3809 = vmatpush.msra.mxu0 0.0
      %3810 = vmatpush.msra.mxu0 0.0
      %v3811 = vand.u32 %v3561, 4294901760
      %3812 = vmatpush.msra.mxu0 %v3811
      %v3813 = vand.u32 %v3560, 4294901760
      %3814 = vmatpush.msra.mxu0 %v3813
      %v3815 = vand.u32 %v3559, 4294901760
      %3816 = vmatpush.msra.mxu0 %v3815
      %v3817 = vand.u32 %v3558, 4294901760
      %3818 = vmatpush.msra.mxu0 %v3817
      %v3819 = vand.u32 %v3557, 4294901760
      %3820 = vmatpush.msra.mxu0 %v3819
      %v3821 = vand.u32 %v3556, 4294901760
      %3822 = vmatpush.msra.mxu0 %v3821
      %v3823 = vand.u32 %v3555, 4294901760
      %3824 = vmatpush.msra.mxu0 %v3823
      %v3825 = vand.u32 %v3554, 4294901760
      %3826 = vmatpush.msra.mxu0 %v3825
      %v3827 = vand.u32 %v3563, 4294901760
      %3828 = vmatmul.f32.gmra.mxu0 %v3827
      %v3829 = vpop.f32.mrf.mxu0
      %v3830 = vadd.f32 %v3797, %v3829
      %v3831 = vand.u32 %v3566, 4294901760
      %3832 = vmatmul.f32.gmra.mxu0 %v3831
      %v3833 = vpop.f32.mrf.mxu0
      %v3834 = vadd.f32 %v3801, %v3833
      %3835 = vdwg.mxu0
      %v3836 = vadd.f32 %v2937, %v3830
      %v3837 = vadd.f32 %v2941, %v3834
      %v3839 = vsel %vm468, %v3836, 0
      %v3842 = vsel %vm468, %v3837, 0
      %3844 = vmatpush.xpose.msra.mxu0 0.0
      %3845 = vmatpush.xpose.msra.mxu0 0.0
      %3846 = vmatpush.xpose.msra.mxu0 0.0
      %3847 = vmatpush.xpose.msra.mxu0 0.0
      %3848 = vmatpush.xpose.msra.mxu0 0.0
      %3849 = vmatpush.xpose.msra.mxu0 0.0
      %3850 = vmatpush.xpose.msra.mxu0 0.0
      %3851 = vmatpush.xpose.msra.mxu0 0.0
      %3852 = vmatpush.xpose.msra.mxu0 0.0
      %3853 = vmatpush.xpose.msra.mxu0 0.0
      %3854 = vmatpush.xpose.msra.mxu0 0.0
      %3855 = vmatpush.xpose.msra.mxu0 0.0
      %3856 = vmatpush.xpose.msra.mxu0 0.0
      %3857 = vmatpush.xpose.msra.mxu0 0.0
      %v3858 = vand.u32 %v3842, 4294901760
      %3859 = vmatpush.xpose.msra.mxu0 %v3858
      %v3860 = vand.u32 %v3839, 4294901760
      %3861 = vmatpush.xpose.msra.mxu0 %v3860
      %v3862 = vand.u32 %v3839, 4294901760
      %v3863 = vsub.f32 %v3839, %v3862
      %v3864 = vand.u32 %v3863, 4294901760
      %v3865 = vsub.f32 %v3863, %v3864
      %v3866 = vand.u32 %v3865, 4294901760
      %3867 = vmatmul.f32.gmra.mxu0 %v3866
      %v3868 = vpop.f32.mrf.mxu0
      %v3869 = vadd.f32 0.0, %v3868
      %v3870 = vand.u32 %v3842, 4294901760
      %v3871 = vsub.f32 %v3842, %v3870
      %v3872 = vand.u32 %v3871, 4294901760
      %v3873 = vsub.f32 %v3871, %v3872
      %v3874 = vand.u32 %v3873, 4294901760
      %3875 = vmatmul.f32.gmra.mxu0 %v3874
      %v3876 = vpop.f32.mrf.mxu0
      %v3877 = vadd.f32 0.0, %v3876
      %3878 = vdwg.mxu0
      %3879 = vmatpush.xpose.msra.mxu0 0.0
      %3880 = vmatpush.xpose.msra.mxu0 0.0
      %3881 = vmatpush.xpose.msra.mxu0 0.0
      %3882 = vmatpush.xpose.msra.mxu0 0.0
      %3883 = vmatpush.xpose.msra.mxu0 0.0
      %3884 = vmatpush.xpose.msra.mxu0 0.0
      %3885 = vmatpush.xpose.msra.mxu0 0.0
      %3886 = vmatpush.xpose.msra.mxu0 0.0
      %3887 = vmatpush.xpose.msra.mxu0 0.0
      %3888 = vmatpush.xpose.msra.mxu0 0.0
      %3889 = vmatpush.xpose.msra.mxu0 0.0
      %3890 = vmatpush.xpose.msra.mxu0 0.0
      %3891 = vmatpush.xpose.msra.mxu0 0.0
      %3892 = vmatpush.xpose.msra.mxu0 0.0
      %v3893 = vand.u32 %v3842, 4294901760
      %v3894 = vsub.f32 %v3842, %v3893
      %v3895 = vand.u32 %v3894, 4294901760
      %v3896 = vsub.f32 %v3894, %v3895
      %v3897 = vand.u32 %v3896, 4294901760
      %3898 = vmatpush.xpose.msra.mxu0 %v3897
      %v3899 = vand.u32 %v3839, 4294901760
      %v3900 = vsub.f32 %v3839, %v3899
      %v3901 = vand.u32 %v3900, 4294901760
      %v3902 = vsub.f32 %v3900, %v3901
      %v3903 = vand.u32 %v3902, 4294901760
      %3904 = vmatpush.xpose.msra.mxu0 %v3903
      %v3905 = vand.u32 %v3839, 4294901760
      %3906 = vmatmul.f32.gmra.mxu0 %v3905
      %v3907 = vpop.f32.mrf.mxu0
      %v3908 = vadd.f32 %v3869, %v3907
      %v3909 = vand.u32 %v3842, 4294901760
      %3910 = vmatmul.f32.gmra.mxu0 %v3909
      %v3911 = vpop.f32.mrf.mxu0
      %v3912 = vadd.f32 %v3877, %v3911
      %3913 = vdwg.mxu0
      %3914 = vmatpush.xpose.msra.mxu0 0.0
      %3915 = vmatpush.xpose.msra.mxu0 0.0
      %3916 = vmatpush.xpose.msra.mxu0 0.0
      %3917 = vmatpush.xpose.msra.mxu0 0.0
      %3918 = vmatpush.xpose.msra.mxu0 0.0
      %3919 = vmatpush.xpose.msra.mxu0 0.0
      %3920 = vmatpush.xpose.msra.mxu0 0.0
      %3921 = vmatpush.xpose.msra.mxu0 0.0
      %3922 = vmatpush.xpose.msra.mxu0 0.0
      %3923 = vmatpush.xpose.msra.mxu0 0.0
      %3924 = vmatpush.xpose.msra.mxu0 0.0
      %3925 = vmatpush.xpose.msra.mxu0 0.0
      %3926 = vmatpush.xpose.msra.mxu0 0.0
      %3927 = vmatpush.xpose.msra.mxu0 0.0
      %v3928 = vand.u32 %v3842, 4294901760
      %v3929 = vsub.f32 %v3842, %v3928
      %3930 = vmatpush.xpose.msra.mxu0 %v3929
      %v3931 = vand.u32 %v3839, 4294901760
      %v3932 = vsub.f32 %v3839, %v3931
      %3933 = vmatpush.xpose.msra.mxu0 %v3932
      %v3934 = vand.u32 %v3839, 4294901760
      %v3935 = vsub.f32 %v3839, %v3934
      %3936 = vmatmul.f32.gmra.mxu0 %v3935
      %v3937 = vpop.f32.mrf.mxu0
      %v3938 = vadd.f32 %v3908, %v3937
      %v3939 = vand.u32 %v3842, 4294901760
      %v3940 = vsub.f32 %v3842, %v3939
      %3941 = vmatmul.f32.gmra.mxu0 %v3940
      %v3942 = vpop.f32.mrf.mxu0
      %v3943 = vadd.f32 %v3912, %v3942
      %3944 = vdwg.mxu0
      %3945 = vmatpush.xpose.msra.mxu0 0.0
      %3946 = vmatpush.xpose.msra.mxu0 0.0
      %3947 = vmatpush.xpose.msra.mxu0 0.0
      %3948 = vmatpush.xpose.msra.mxu0 0.0
      %3949 = vmatpush.xpose.msra.mxu0 0.0
      %3950 = vmatpush.xpose.msra.mxu0 0.0
      %3951 = vmatpush.xpose.msra.mxu0 0.0
      %3952 = vmatpush.xpose.msra.mxu0 0.0
      %3953 = vmatpush.xpose.msra.mxu0 0.0
      %3954 = vmatpush.xpose.msra.mxu0 0.0
      %3955 = vmatpush.xpose.msra.mxu0 0.0
      %3956 = vmatpush.xpose.msra.mxu0 0.0
      %3957 = vmatpush.xpose.msra.mxu0 0.0
      %3958 = vmatpush.xpose.msra.mxu0 0.0
      %v3959 = vand.u32 %v3842, 4294901760
      %3960 = vmatpush.xpose.msra.mxu0 %v3959
      %v3961 = vand.u32 %v3839, 4294901760
      %3962 = vmatpush.xpose.msra.mxu0 %v3961
      %v3963 = vand.u32 %v3839, 4294901760
      %v3964 = vsub.f32 %v3839, %v3963
      %v3965 = vand.u32 %v3964, 4294901760
      %3966 = vmatmul.f32.gmra.mxu0 %v3965
      %v3967 = vpop.f32.mrf.mxu0
      %v3968 = vadd.f32 %v3938, %v3967
      %v3969 = vand.u32 %v3842, 4294901760
      %v3970 = vsub.f32 %v3842, %v3969
      %v3971 = vand.u32 %v3970, 4294901760
      %3972 = vmatmul.f32.gmra.mxu0 %v3971
      %v3973 = vpop.f32.mrf.mxu0
      %v3974 = vadd.f32 %v3943, %v3973
      %3975 = vdwg.mxu0
      %3976 = vmatpush.xpose.msra.mxu0 0.0
      %3977 = vmatpush.xpose.msra.mxu0 0.0
      %3978 = vmatpush.xpose.msra.mxu0 0.0
      %3979 = vmatpush.xpose.msra.mxu0 0.0
      %3980 = vmatpush.xpose.msra.mxu0 0.0
      %3981 = vmatpush.xpose.msra.mxu0 0.0
      %3982 = vmatpush.xpose.msra.mxu0 0.0
      %3983 = vmatpush.xpose.msra.mxu0 0.0
      %3984 = vmatpush.xpose.msra.mxu0 0.0
      %3985 = vmatpush.xpose.msra.mxu0 0.0
      %3986 = vmatpush.xpose.msra.mxu0 0.0
      %3987 = vmatpush.xpose.msra.mxu0 0.0
      %3988 = vmatpush.xpose.msra.mxu0 0.0
      %3989 = vmatpush.xpose.msra.mxu0 0.0
      %v3990 = vand.u32 %v3842, 4294901760
      %v3991 = vsub.f32 %v3842, %v3990
      %v3992 = vand.u32 %v3991, 4294901760
      %3993 = vmatpush.xpose.msra.mxu0 %v3992
      %v3994 = vand.u32 %v3839, 4294901760
      %v3995 = vsub.f32 %v3839, %v3994
      %v3996 = vand.u32 %v3995, 4294901760
      %3997 = vmatpush.xpose.msra.mxu0 %v3996
      %v3998 = vand.u32 %v3839, 4294901760
      %3999 = vmatmul.f32.gmra.mxu0 %v3998
      %v4000 = vpop.f32.mrf.mxu0
      %v4001 = vadd.f32 %v3968, %v4000
      %v4002 = vand.u32 %v3842, 4294901760
      %4003 = vmatmul.f32.gmra.mxu0 %v4002
      %v4004 = vpop.f32.mrf.mxu0
      %v4005 = vadd.f32 %v3974, %v4004
      %4006 = vdwg.mxu0
      %4007 = vmatpush.xpose.msra.mxu0 0.0
      %4008 = vmatpush.xpose.msra.mxu0 0.0
      %4009 = vmatpush.xpose.msra.mxu0 0.0
      %4010 = vmatpush.xpose.msra.mxu0 0.0
      %4011 = vmatpush.xpose.msra.mxu0 0.0
      %4012 = vmatpush.xpose.msra.mxu0 0.0
      %4013 = vmatpush.xpose.msra.mxu0 0.0
      %4014 = vmatpush.xpose.msra.mxu0 0.0
      %4015 = vmatpush.xpose.msra.mxu0 0.0
      %4016 = vmatpush.xpose.msra.mxu0 0.0
      %4017 = vmatpush.xpose.msra.mxu0 0.0
      %4018 = vmatpush.xpose.msra.mxu0 0.0
      %4019 = vmatpush.xpose.msra.mxu0 0.0
      %4020 = vmatpush.xpose.msra.mxu0 0.0
      %v4021 = vand.u32 %v3842, 4294901760
      %4022 = vmatpush.xpose.msra.mxu0 %v4021
      %v4023 = vand.u32 %v3839, 4294901760
      %4024 = vmatpush.xpose.msra.mxu0 %v4023
      %v4025 = vand.u32 %v3839, 4294901760
      %4026 = vmatmul.f32.gmra.mxu0 %v4025
      %v4027 = vpop.f32.mrf.mxu0
      %v4028 = vadd.f32 %v4001, %v4027
      %v4029 = vand.u32 %v3842, 4294901760
      %4030 = vmatmul.f32.gmra.mxu0 %v4029
      %v4031 = vpop.f32.mrf.mxu0
      %v4032 = vadd.f32 %v4005, %v4031
      %4033 = vdwg.mxu0
      %v4034 = vmul.f32 %v4028, %v463
      %v4035 = vmul.f32 %v4032, %v464
      %vm4036 = vcmp.eq.f32.partialorder %v4034, 0.0
      %vm4037 = vcmp.eq.f32.partialorder %v4035, 0.0
      %v4038 = vsel %vm4036, -1e+16, %v4034
      %v4039 = vsel %vm4037, -1e+16, %v4035
      %v4040 = vsel %vm468, %v4038, -inf
      %4041 = vmax.xlane.f32.xlu0 %v4040
      %v4042 = vpop.xlane.xlu0 %4041
      %v4043 = vsel %vm468, %v4039, -inf
      %4044 = vmax.xlane.f32.xlu0 %v4043
      %v4045 = vpop.xlane.xlu0 %4044
      %v4046 = vsub.f32 %v4038, %v4042
      %v4047 = vsub.f32 %v4039, %v4045
      %v4048 = vmul.f32 %v4046, 1.442695
      %v4049 = vpow.pop %v4048
      %v4050 = vmul.f32 %v4047, 1.442695
      %v4051 = vpow.pop %v4050
      %v4052 = vsel %vm468, %v4049, 0.0
      %4053 = vadd.xlane.f32.xlu0 %v4052
      %v4054 = vpop.xlane.xlu0 %4053
      %v4055 = vsel %vm468, %v4051, 0.0
      %4056 = vadd.xlane.f32.xlu0 %v4055
      %v4057 = vpop.xlane.xlu0 %4056
      %v4058 = vrcp.pop %v4054
      %v4059 = vrcp.pop %v4057
      %v4060 = vmul.f32 %v4049, %v4058
      %v4061 = vmul.f32 %v4051, %v4059
      %v4062 = vld [vmem:[%s7] sm:$0x1]
      %v4064 = vperm.slane %v4062, 0
      %v4067 = vsel %vm468, %v4060, 0
      %v4070 = vsel %vm468, %v4061, 0
      %4072 = vmatpush.msra.mxu0 0.0
      %4073 = vmatpush.msra.mxu0 0.0
      %4074 = vmatpush.msra.mxu0 0.0
      %4075 = vmatpush.msra.mxu0 0.0
      %4076 = vmatpush.msra.mxu0 0.0
      %4077 = vmatpush.msra.mxu0 0.0
      %4078 = vmatpush.msra.mxu0 0.0
      %4079 = vmatpush.msra.mxu0 0.0
      %4080 = vmatpush.msra.mxu0 0.0
      %4081 = vmatpush.msra.mxu0 0.0
      %4082 = vmatpush.msra.mxu0 0.0
      %4083 = vmatpush.msra.mxu0 0.0
      %4084 = vmatpush.msra.mxu0 0.0
      %4085 = vmatpush.msra.mxu0 0.0
      %v4086 = vand.u32 %v3837, 4294901760
      %4087 = vmatpush.msra.mxu0 %v4086
      %v4088 = vand.u32 %v3836, 4294901760
      %4089 = vmatpush.msra.mxu0 %v4088
      %v4090 = vand.u32 %v4067, 4294901760
      %v4091 = vsub.f32 %v4067, %v4090
      %v4092 = vand.u32 %v4091, 4294901760
      %v4093 = vsub.f32 %v4091, %v4092
      %v4094 = vand.u32 %v4093, 4294901760
      %4095 = vmatmul.f32.gmra.mxu0 %v4094
      %v4096 = vpop.f32.mrf.mxu0
      %v4097 = vadd.f32 %v4064, %v4096
      %v4098 = vand.u32 %v4070, 4294901760
      %v4099 = vsub.f32 %v4070, %v4098
      %v4100 = vand.u32 %v4099, 4294901760
      %v4101 = vsub.f32 %v4099, %v4100
      %v4102 = vand.u32 %v4101, 4294901760
      %4103 = vmatmul.f32.gmra.mxu0 %v4102
      %v4104 = vpop.f32.mrf.mxu0
      %v4105 = vadd.f32 %v4064, %v4104
      %4106 = vdwg.mxu0
      %4107 = vmatpush.msra.mxu0 0.0
      %4108 = vmatpush.msra.mxu0 0.0
      %4109 = vmatpush.msra.mxu0 0.0
      %4110 = vmatpush.msra.mxu0 0.0
      %4111 = vmatpush.msra.mxu0 0.0
      %4112 = vmatpush.msra.mxu0 0.0
      %4113 = vmatpush.msra.mxu0 0.0
      %4114 = vmatpush.msra.mxu0 0.0
      %4115 = vmatpush.msra.mxu0 0.0
      %4116 = vmatpush.msra.mxu0 0.0
      %4117 = vmatpush.msra.mxu0 0.0
      %4118 = vmatpush.msra.mxu0 0.0
      %4119 = vmatpush.msra.mxu0 0.0
      %4120 = vmatpush.msra.mxu0 0.0
      %v4121 = vand.u32 %v3837, 4294901760
      %v4122 = vsub.f32 %v3837, %v4121
      %v4123 = vand.u32 %v4122, 4294901760
      %v4124 = vsub.f32 %v4122, %v4123
      %v4125 = vand.u32 %v4124, 4294901760
      %4126 = vmatpush.msra.mxu0 %v4125
      %v4127 = vand.u32 %v3836, 4294901760
      %v4128 = vsub.f32 %v3836, %v4127
      %v4129 = vand.u32 %v4128, 4294901760
      %v4130 = vsub.f32 %v4128, %v4129
      %v4131 = vand.u32 %v4130, 4294901760
      %4132 = vmatpush.msra.mxu0 %v4131
      %v4133 = vand.u32 %v4067, 4294901760
      %4134 = vmatmul.f32.gmra.mxu0 %v4133
      %v4135 = vpop.f32.mrf.mxu0
      %v4136 = vadd.f32 %v4097, %v4135
      %v4137 = vand.u32 %v4070, 4294901760
      %4138 = vmatmul.f32.gmra.mxu0 %v4137
      %v4139 = vpop.f32.mrf.mxu0
      %v4140 = vadd.f32 %v4105, %v4139
      %4141 = vdwg.mxu0
      %4142 = vmatpush.msra.mxu0 0.0
      %4143 = vmatpush.msra.mxu0 0.0
      %4144 = vmatpush.msra.mxu0 0.0
      %4145 = vmatpush.msra.mxu0 0.0
      %4146 = vmatpush.msra.mxu0 0.0
      %4147 = vmatpush.msra.mxu0 0.0
      %4148 = vmatpush.msra.mxu0 0.0
      %4149 = vmatpush.msra.mxu0 0.0
      %4150 = vmatpush.msra.mxu0 0.0
      %4151 = vmatpush.msra.mxu0 0.0
      %4152 = vmatpush.msra.mxu0 0.0
      %4153 = vmatpush.msra.mxu0 0.0
      %4154 = vmatpush.msra.mxu0 0.0
      %4155 = vmatpush.msra.mxu0 0.0
      %v4156 = vand.u32 %v3837, 4294901760
      %v4157 = vsub.f32 %v3837, %v4156
      %4158 = vmatpush.msra.mxu0 %v4157
      %v4159 = vand.u32 %v3836, 4294901760
      %v4160 = vsub.f32 %v3836, %v4159
      %4161 = vmatpush.msra.mxu0 %v4160
      %v4162 = vand.u32 %v4067, 4294901760
      %v4163 = vsub.f32 %v4067, %v4162
      %4164 = vmatmul.f32.gmra.mxu0 %v4163
      %v4165 = vpop.f32.mrf.mxu0
      %v4166 = vadd.f32 %v4136, %v4165
      %v4167 = vand.u32 %v4070, 4294901760
      %v4168 = vsub.f32 %v4070, %v4167
      %4169 = vmatmul.f32.gmra.mxu0 %v4168
      %v4170 = vpop.f32.mrf.mxu0
      %v4171 = vadd.f32 %v4140, %v4170
      %4172 = vdwg.mxu0
      %4173 = vmatpush.msra.mxu0 0.0
      %4174 = vmatpush.msra.mxu0 0.0
      %4175 = vmatpush.msra.mxu0 0.0
      %4176 = vmatpush.msra.mxu0 0.0
      %4177 = vmatpush.msra.mxu0 0.0
      %4178 = vmatpush.msra.mxu0 0.0
      %4179 = vmatpush.msra.mxu0 0.0
      %4180 = vmatpush.msra.mxu0 0.0
      %4181 = vmatpush.msra.mxu0 0.0
      %4182 = vmatpush.msra.mxu0 0.0
      %4183 = vmatpush.msra.mxu0 0.0
      %4184 = vmatpush.msra.mxu0 0.0
      %4185 = vmatpush.msra.mxu0 0.0
      %4186 = vmatpush.msra.mxu0 0.0
      %v4187 = vand.u32 %v3837, 4294901760
      %4188 = vmatpush.msra.mxu0 %v4187
      %v4189 = vand.u32 %v3836, 4294901760
      %4190 = vmatpush.msra.mxu0 %v4189
      %v4191 = vand.u32 %v4067, 4294901760
      %v4192 = vsub.f32 %v4067, %v4191
      %v4193 = vand.u32 %v4192, 4294901760
      %4194 = vmatmul.f32.gmra.mxu0 %v4193
      %v4195 = vpop.f32.mrf.mxu0
      %v4196 = vadd.f32 %v4166, %v4195
      %v4197 = vand.u32 %v4070, 4294901760
      %v4198 = vsub.f32 %v4070, %v4197
      %v4199 = vand.u32 %v4198, 4294901760
      %4200 = vmatmul.f32.gmra.mxu0 %v4199
      %v4201 = vpop.f32.mrf.mxu0
      %v4202 = vadd.f32 %v4171, %v4201
      %4203 = vdwg.mxu0
      %4204 = vmatpush.msra.mxu0 0.0
      %4205 = vmatpush.msra.mxu0 0.0
      %4206 = vmatpush.msra.mxu0 0.0
      %4207 = vmatpush.msra.mxu0 0.0
      %4208 = vmatpush.msra.mxu0 0.0
      %4209 = vmatpush.msra.mxu0 0.0
      %4210 = vmatpush.msra.mxu0 0.0
      %4211 = vmatpush.msra.mxu0 0.0
      %4212 = vmatpush.msra.mxu0 0.0
      %4213 = vmatpush.msra.mxu0 0.0
      %4214 = vmatpush.msra.mxu0 0.0
      %4215 = vmatpush.msra.mxu0 0.0
      %4216 = vmatpush.msra.mxu0 0.0
      %4217 = vmatpush.msra.mxu0 0.0
      %v4218 = vand.u32 %v3837, 4294901760
      %v4219 = vsub.f32 %v3837, %v4218
      %v4220 = vand.u32 %v4219, 4294901760
      %4221 = vmatpush.msra.mxu0 %v4220
      %v4222 = vand.u32 %v3836, 4294901760
      %v4223 = vsub.f32 %v3836, %v4222
      %v4224 = vand.u32 %v4223, 4294901760
      %4225 = vmatpush.msra.mxu0 %v4224
      %v4226 = vand.u32 %v4067, 4294901760
      %4227 = vmatmul.f32.gmra.mxu0 %v4226
      %v4228 = vpop.f32.mrf.mxu0
      %v4229 = vadd.f32 %v4196, %v4228
      %v4230 = vand.u32 %v4070, 4294901760
      %4231 = vmatmul.f32.gmra.mxu0 %v4230
      %v4232 = vpop.f32.mrf.mxu0
      %v4233 = vadd.f32 %v4202, %v4232
      %4234 = vdwg.mxu0
      %4235 = vmatpush.msra.mxu0 0.0
      %4236 = vmatpush.msra.mxu0 0.0
      %4237 = vmatpush.msra.mxu0 0.0
      %4238 = vmatpush.msra.mxu0 0.0
      %4239 = vmatpush.msra.mxu0 0.0
      %4240 = vmatpush.msra.mxu0 0.0
      %4241 = vmatpush.msra.mxu0 0.0
      %4242 = vmatpush.msra.mxu0 0.0
      %4243 = vmatpush.msra.mxu0 0.0
      %4244 = vmatpush.msra.mxu0 0.0
      %4245 = vmatpush.msra.mxu0 0.0
      %4246 = vmatpush.msra.mxu0 0.0
      %4247 = vmatpush.msra.mxu0 0.0
      %4248 = vmatpush.msra.mxu0 0.0
      %v4249 = vand.u32 %v3837, 4294901760
      %4250 = vmatpush.msra.mxu0 %v4249
      %v4251 = vand.u32 %v3836, 4294901760
      %4252 = vmatpush.msra.mxu0 %v4251
      %v4253 = vand.u32 %v4067, 4294901760
      %4254 = vmatmul.f32.gmra.mxu0 %v4253
      %v4255 = vpop.f32.mrf.mxu0
      %v4256 = vadd.f32 %v4229, %v4255
      %v4257 = vand.u32 %v4070, 4294901760
      %4258 = vmatmul.f32.gmra.mxu0 %v4257
      %v4259 = vpop.f32.mrf.mxu0
      %v4260 = vadd.f32 %v4233, %v4259
      %4261 = vdwg.mxu0
      %vm4262 = vcmp.ge.f32.partialorder %v4256, 0.0
      %vm4263 = vcmp.ge.f32.partialorder %v4260, 0.0
      %v4264 = vmul.f32 %v4256, 0.2
      %v4265 = vmul.f32 %v4260, 0.2
      %v4266 = vsel %vm4262, %v4256, %v4264
      %v4267 = vsel %vm4263, %v4260, %v4265
      %v4268 = vld [vmem:[%s8] sm:$0xff]
      %v4269 = vld [vmem:[%s8 + $0x8] sm:$0xff]
      %v4271 = vsel %vm468, %v4266, 0
      %v4274 = vsel %vm468, %v4267, 0
      %4276 = vmatpush.msra.mxu0 0.0
      %4277 = vmatpush.msra.mxu0 0.0
      %4278 = vmatpush.msra.mxu0 0.0
      %4279 = vmatpush.msra.mxu0 0.0
      %4280 = vmatpush.msra.mxu0 0.0
      %4281 = vmatpush.msra.mxu0 0.0
      %4282 = vmatpush.msra.mxu0 0.0
      %4283 = vmatpush.msra.mxu0 0.0
      %4284 = vmatpush.msra.mxu0 0.0
      %4285 = vmatpush.msra.mxu0 0.0
      %4286 = vmatpush.msra.mxu0 0.0
      %4287 = vmatpush.msra.mxu0 0.0
      %4288 = vmatpush.msra.mxu0 0.0
      %4289 = vmatpush.msra.mxu0 0.0
      %v4290 = vand.u32 %v4269, 4294901760
      %4291 = vmatpush.msra.mxu0 %v4290
      %v4292 = vand.u32 %v4268, 4294901760
      %4293 = vmatpush.msra.mxu0 %v4292
      %v4294 = vand.u32 %v4271, 4294901760
      %v4295 = vsub.f32 %v4271, %v4294
      %v4296 = vand.u32 %v4295, 4294901760
      %v4297 = vsub.f32 %v4295, %v4296
      %v4298 = vand.u32 %v4297, 4294901760
      %4299 = vmatmul.f32.gmra.mxu0 %v4298
      %v4300 = vpop.f32.mrf.mxu0
      %v4301 = vadd.f32 0.0, %v4300
      %v4302 = vand.u32 %v4274, 4294901760
      %v4303 = vsub.f32 %v4274, %v4302
      %v4304 = vand.u32 %v4303, 4294901760
      %v4305 = vsub.f32 %v4303, %v4304
      %v4306 = vand.u32 %v4305, 4294901760
      %4307 = vmatmul.f32.gmra.mxu0 %v4306
      %v4308 = vpop.f32.mrf.mxu0
      %v4309 = vadd.f32 0.0, %v4308
      %4310 = vdwg.mxu0
      %4311 = vmatpush.msra.mxu0 0.0
      %4312 = vmatpush.msra.mxu0 0.0
      %4313 = vmatpush.msra.mxu0 0.0
      %4314 = vmatpush.msra.mxu0 0.0
      %4315 = vmatpush.msra.mxu0 0.0
      %4316 = vmatpush.msra.mxu0 0.0
      %4317 = vmatpush.msra.mxu0 0.0
      %4318 = vmatpush.msra.mxu0 0.0
      %4319 = vmatpush.msra.mxu0 0.0
      %4320 = vmatpush.msra.mxu0 0.0
      %4321 = vmatpush.msra.mxu0 0.0
      %4322 = vmatpush.msra.mxu0 0.0
      %4323 = vmatpush.msra.mxu0 0.0
      %4324 = vmatpush.msra.mxu0 0.0
      %v4325 = vand.u32 %v4269, 4294901760
      %v4326 = vsub.f32 %v4269, %v4325
      %v4327 = vand.u32 %v4326, 4294901760
      %v4328 = vsub.f32 %v4326, %v4327
      %v4329 = vand.u32 %v4328, 4294901760
      %4330 = vmatpush.msra.mxu0 %v4329
      %v4331 = vand.u32 %v4268, 4294901760
      %v4332 = vsub.f32 %v4268, %v4331
      %v4333 = vand.u32 %v4332, 4294901760
      %v4334 = vsub.f32 %v4332, %v4333
      %v4335 = vand.u32 %v4334, 4294901760
      %4336 = vmatpush.msra.mxu0 %v4335
      %v4337 = vand.u32 %v4271, 4294901760
      %4338 = vmatmul.f32.gmra.mxu0 %v4337
      %v4339 = vpop.f32.mrf.mxu0
      %v4340 = vadd.f32 %v4301, %v4339
      %v4341 = vand.u32 %v4274, 4294901760
      %4342 = vmatmul.f32.gmra.mxu0 %v4341
      %v4343 = vpop.f32.mrf.mxu0
      %v4344 = vadd.f32 %v4309, %v4343
      %4345 = vdwg.mxu0
      %4346 = vmatpush.msra.mxu0 0.0
      %4347 = vmatpush.msra.mxu0 0.0
      %4348 = vmatpush.msra.mxu0 0.0
      %4349 = vmatpush.msra.mxu0 0.0
      %4350 = vmatpush.msra.mxu0 0.0
      %4351 = vmatpush.msra.mxu0 0.0
      %4352 = vmatpush.msra.mxu0 0.0
      %4353 = vmatpush.msra.mxu0 0.0
      %4354 = vmatpush.msra.mxu0 0.0
      %4355 = vmatpush.msra.mxu0 0.0
      %4356 = vmatpush.msra.mxu0 0.0
      %4357 = vmatpush.msra.mxu0 0.0
      %4358 = vmatpush.msra.mxu0 0.0
      %4359 = vmatpush.msra.mxu0 0.0
      %v4360 = vand.u32 %v4269, 4294901760
      %v4361 = vsub.f32 %v4269, %v4360
      %4362 = vmatpush.msra.mxu0 %v4361
      %v4363 = vand.u32 %v4268, 4294901760
      %v4364 = vsub.f32 %v4268, %v4363
      %4365 = vmatpush.msra.mxu0 %v4364
      %v4366 = vand.u32 %v4271, 4294901760
      %v4367 = vsub.f32 %v4271, %v4366
      %4368 = vmatmul.f32.gmra.mxu0 %v4367
      %v4369 = vpop.f32.mrf.mxu0
      %v4370 = vadd.f32 %v4340, %v4369
      %v4371 = vand.u32 %v4274, 4294901760
      %v4372 = vsub.f32 %v4274, %v4371
      %4373 = vmatmul.f32.gmra.mxu0 %v4372
      %v4374 = vpop.f32.mrf.mxu0
      %v4375 = vadd.f32 %v4344, %v4374
      %4376 = vdwg.mxu0
      %4377 = vmatpush.msra.mxu0 0.0
      %4378 = vmatpush.msra.mxu0 0.0
      %4379 = vmatpush.msra.mxu0 0.0
      %4380 = vmatpush.msra.mxu0 0.0
      %4381 = vmatpush.msra.mxu0 0.0
      %4382 = vmatpush.msra.mxu0 0.0
      %4383 = vmatpush.msra.mxu0 0.0
      %4384 = vmatpush.msra.mxu0 0.0
      %4385 = vmatpush.msra.mxu0 0.0
      %4386 = vmatpush.msra.mxu0 0.0
      %4387 = vmatpush.msra.mxu0 0.0
      %4388 = vmatpush.msra.mxu0 0.0
      %4389 = vmatpush.msra.mxu0 0.0
      %4390 = vmatpush.msra.mxu0 0.0
      %v4391 = vand.u32 %v4269, 4294901760
      %4392 = vmatpush.msra.mxu0 %v4391
      %v4393 = vand.u32 %v4268, 4294901760
      %4394 = vmatpush.msra.mxu0 %v4393
      %v4395 = vand.u32 %v4271, 4294901760
      %v4396 = vsub.f32 %v4271, %v4395
      %v4397 = vand.u32 %v4396, 4294901760
      %4398 = vmatmul.f32.gmra.mxu0 %v4397
      %v4399 = vpop.f32.mrf.mxu0
      %v4400 = vadd.f32 %v4370, %v4399
      %v4401 = vand.u32 %v4274, 4294901760
      %v4402 = vsub.f32 %v4274, %v4401
      %v4403 = vand.u32 %v4402, 4294901760
      %4404 = vmatmul.f32.gmra.mxu0 %v4403
      %v4405 = vpop.f32.mrf.mxu0
      %v4406 = vadd.f32 %v4375, %v4405
      %4407 = vdwg.mxu0
      %4408 = vmatpush.msra.mxu0 0.0
      %4409 = vmatpush.msra.mxu0 0.0
      %4410 = vmatpush.msra.mxu0 0.0
      %4411 = vmatpush.msra.mxu0 0.0
      %4412 = vmatpush.msra.mxu0 0.0
      %4413 = vmatpush.msra.mxu0 0.0
      %4414 = vmatpush.msra.mxu0 0.0
      %4415 = vmatpush.msra.mxu0 0.0
      %4416 = vmatpush.msra.mxu0 0.0
      %4417 = vmatpush.msra.mxu0 0.0
      %4418 = vmatpush.msra.mxu0 0.0
      %4419 = vmatpush.msra.mxu0 0.0
      %4420 = vmatpush.msra.mxu0 0.0
      %4421 = vmatpush.msra.mxu0 0.0
      %v4422 = vand.u32 %v4269, 4294901760
      %v4423 = vsub.f32 %v4269, %v4422
      %v4424 = vand.u32 %v4423, 4294901760
      %4425 = vmatpush.msra.mxu0 %v4424
      %v4426 = vand.u32 %v4268, 4294901760
      %v4427 = vsub.f32 %v4268, %v4426
      %v4428 = vand.u32 %v4427, 4294901760
      %4429 = vmatpush.msra.mxu0 %v4428
      %v4430 = vand.u32 %v4271, 4294901760
      %4431 = vmatmul.f32.gmra.mxu0 %v4430
      %v4432 = vpop.f32.mrf.mxu0
      %v4433 = vadd.f32 %v4400, %v4432
      %v4434 = vand.u32 %v4274, 4294901760
      %4435 = vmatmul.f32.gmra.mxu0 %v4434
      %v4436 = vpop.f32.mrf.mxu0
      %v4437 = vadd.f32 %v4406, %v4436
      %4438 = vdwg.mxu0
      %4439 = vmatpush.msra.mxu0 0.0
      %4440 = vmatpush.msra.mxu0 0.0
      %4441 = vmatpush.msra.mxu0 0.0
      %4442 = vmatpush.msra.mxu0 0.0
      %4443 = vmatpush.msra.mxu0 0.0
      %4444 = vmatpush.msra.mxu0 0.0
      %4445 = vmatpush.msra.mxu0 0.0
      %4446 = vmatpush.msra.mxu0 0.0
      %4447 = vmatpush.msra.mxu0 0.0
      %4448 = vmatpush.msra.mxu0 0.0
      %4449 = vmatpush.msra.mxu0 0.0
      %4450 = vmatpush.msra.mxu0 0.0
      %4451 = vmatpush.msra.mxu0 0.0
      %4452 = vmatpush.msra.mxu0 0.0
      %v4453 = vand.u32 %v4269, 4294901760
      %4454 = vmatpush.msra.mxu0 %v4453
      %v4455 = vand.u32 %v4268, 4294901760
      %4456 = vmatpush.msra.mxu0 %v4455
      %v4457 = vand.u32 %v4271, 4294901760
      %4458 = vmatmul.f32.gmra.mxu0 %v4457
      %v4459 = vpop.f32.mrf.mxu0
      %v4460 = vadd.f32 %v4433, %v4459
      %v4461 = vand.u32 %v4274, 4294901760
      %4462 = vmatmul.f32.gmra.mxu0 %v4461
      %v4463 = vpop.f32.mrf.mxu0
      %v4464 = vadd.f32 %v4437, %v4463
      %4465 = vdwg.mxu0
      %v4467 = vsel %vm1337, %v4460, 0
      %v4470 = vsel %vm1337, %v4464, 0
      %4472 = vmatpush.xpose.msra.mxu0 0.0
      %4473 = vmatpush.xpose.msra.mxu0 0.0
      %4474 = vmatpush.xpose.msra.mxu0 0.0
      %4475 = vmatpush.xpose.msra.mxu0 0.0
      %4476 = vmatpush.xpose.msra.mxu0 0.0
      %4477 = vmatpush.xpose.msra.mxu0 0.0
      %4478 = vmatpush.xpose.msra.mxu0 0.0
      %4479 = vmatpush.xpose.msra.mxu0 0.0
      %4480 = vmatpush.xpose.msra.mxu0 0.0
      %4481 = vmatpush.xpose.msra.mxu0 0.0
      %4482 = vmatpush.xpose.msra.mxu0 0.0
      %4483 = vmatpush.xpose.msra.mxu0 0.0
      %4484 = vmatpush.xpose.msra.mxu0 0.0
      %4485 = vmatpush.xpose.msra.mxu0 0.0
      %v4486 = vand.u32 %v4470, 4294901760
      %4487 = vmatpush.xpose.msra.mxu0 %v4486
      %v4488 = vand.u32 %v4467, 4294901760
      %4489 = vmatpush.xpose.msra.mxu0 %v4488
      %v4490 = vand.u32 %v4467, 4294901760
      %v4491 = vsub.f32 %v4467, %v4490
      %v4492 = vand.u32 %v4491, 4294901760
      %v4493 = vsub.f32 %v4491, %v4492
      %v4494 = vand.u32 %v4493, 4294901760
      %4495 = vmatmul.f32.gmra.mxu0 %v4494
      %v4496 = vpop.f32.mrf.mxu0
      %v4497 = vadd.f32 0.0, %v4496
      %v4498 = vand.u32 %v4470, 4294901760
      %v4499 = vsub.f32 %v4470, %v4498
      %v4500 = vand.u32 %v4499, 4294901760
      %v4501 = vsub.f32 %v4499, %v4500
      %v4502 = vand.u32 %v4501, 4294901760
      %4503 = vmatmul.f32.gmra.mxu0 %v4502
      %v4504 = vpop.f32.mrf.mxu0
      %v4505 = vadd.f32 0.0, %v4504
      %4506 = vdwg.mxu0
      %4507 = vmatpush.xpose.msra.mxu0 0.0
      %4508 = vmatpush.xpose.msra.mxu0 0.0
      %4509 = vmatpush.xpose.msra.mxu0 0.0
      %4510 = vmatpush.xpose.msra.mxu0 0.0
      %4511 = vmatpush.xpose.msra.mxu0 0.0
      %4512 = vmatpush.xpose.msra.mxu0 0.0
      %4513 = vmatpush.xpose.msra.mxu0 0.0
      %4514 = vmatpush.xpose.msra.mxu0 0.0
      %4515 = vmatpush.xpose.msra.mxu0 0.0
      %4516 = vmatpush.xpose.msra.mxu0 0.0
      %4517 = vmatpush.xpose.msra.mxu0 0.0
      %4518 = vmatpush.xpose.msra.mxu0 0.0
      %4519 = vmatpush.xpose.msra.mxu0 0.0
      %4520 = vmatpush.xpose.msra.mxu0 0.0
      %v4521 = vand.u32 %v4470, 4294901760
      %v4522 = vsub.f32 %v4470, %v4521
      %v4523 = vand.u32 %v4522, 4294901760
      %v4524 = vsub.f32 %v4522, %v4523
      %v4525 = vand.u32 %v4524, 4294901760
      %4526 = vmatpush.xpose.msra.mxu0 %v4525
      %v4527 = vand.u32 %v4467, 4294901760
      %v4528 = vsub.f32 %v4467, %v4527
      %v4529 = vand.u32 %v4528, 4294901760
      %v4530 = vsub.f32 %v4528, %v4529
      %v4531 = vand.u32 %v4530, 4294901760
      %4532 = vmatpush.xpose.msra.mxu0 %v4531
      %v4533 = vand.u32 %v4467, 4294901760
      %4534 = vmatmul.f32.gmra.mxu0 %v4533
      %v4535 = vpop.f32.mrf.mxu0
      %v4536 = vadd.f32 %v4497, %v4535
      %v4537 = vand.u32 %v4470, 4294901760
      %4538 = vmatmul.f32.gmra.mxu0 %v4537
      %v4539 = vpop.f32.mrf.mxu0
      %v4540 = vadd.f32 %v4505, %v4539
      %4541 = vdwg.mxu0
      %4542 = vmatpush.xpose.msra.mxu0 0.0
      %4543 = vmatpush.xpose.msra.mxu0 0.0
      %4544 = vmatpush.xpose.msra.mxu0 0.0
      %4545 = vmatpush.xpose.msra.mxu0 0.0
      %4546 = vmatpush.xpose.msra.mxu0 0.0
      %4547 = vmatpush.xpose.msra.mxu0 0.0
      %4548 = vmatpush.xpose.msra.mxu0 0.0
      %4549 = vmatpush.xpose.msra.mxu0 0.0
      %4550 = vmatpush.xpose.msra.mxu0 0.0
      %4551 = vmatpush.xpose.msra.mxu0 0.0
      %4552 = vmatpush.xpose.msra.mxu0 0.0
      %4553 = vmatpush.xpose.msra.mxu0 0.0
      %4554 = vmatpush.xpose.msra.mxu0 0.0
      %4555 = vmatpush.xpose.msra.mxu0 0.0
      %v4556 = vand.u32 %v4470, 4294901760
      %v4557 = vsub.f32 %v4470, %v4556
      %4558 = vmatpush.xpose.msra.mxu0 %v4557
      %v4559 = vand.u32 %v4467, 4294901760
      %v4560 = vsub.f32 %v4467, %v4559
      %4561 = vmatpush.xpose.msra.mxu0 %v4560
      %v4562 = vand.u32 %v4467, 4294901760
      %v4563 = vsub.f32 %v4467, %v4562
      %4564 = vmatmul.f32.gmra.mxu0 %v4563
      %v4565 = vpop.f32.mrf.mxu0
      %v4566 = vadd.f32 %v4536, %v4565
      %v4567 = vand.u32 %v4470, 4294901760
      %v4568 = vsub.f32 %v4470, %v4567
      %4569 = vmatmul.f32.gmra.mxu0 %v4568
      %v4570 = vpop.f32.mrf.mxu0
      %v4571 = vadd.f32 %v4540, %v4570
      %4572 = vdwg.mxu0
      %4573 = vmatpush.xpose.msra.mxu0 0.0
      %4574 = vmatpush.xpose.msra.mxu0 0.0
      %4575 = vmatpush.xpose.msra.mxu0 0.0
      %4576 = vmatpush.xpose.msra.mxu0 0.0
      %4577 = vmatpush.xpose.msra.mxu0 0.0
      %4578 = vmatpush.xpose.msra.mxu0 0.0
      %4579 = vmatpush.xpose.msra.mxu0 0.0
      %4580 = vmatpush.xpose.msra.mxu0 0.0
      %4581 = vmatpush.xpose.msra.mxu0 0.0
      %4582 = vmatpush.xpose.msra.mxu0 0.0
      %4583 = vmatpush.xpose.msra.mxu0 0.0
      %4584 = vmatpush.xpose.msra.mxu0 0.0
      %4585 = vmatpush.xpose.msra.mxu0 0.0
      %4586 = vmatpush.xpose.msra.mxu0 0.0
      %v4587 = vand.u32 %v4470, 4294901760
      %4588 = vmatpush.xpose.msra.mxu0 %v4587
      %v4589 = vand.u32 %v4467, 4294901760
      %4590 = vmatpush.xpose.msra.mxu0 %v4589
      %v4591 = vand.u32 %v4467, 4294901760
      %v4592 = vsub.f32 %v4467, %v4591
      %v4593 = vand.u32 %v4592, 4294901760
      %4594 = vmatmul.f32.gmra.mxu0 %v4593
      %v4595 = vpop.f32.mrf.mxu0
      %v4596 = vadd.f32 %v4566, %v4595
      %v4597 = vand.u32 %v4470, 4294901760
      %v4598 = vsub.f32 %v4470, %v4597
      %v4599 = vand.u32 %v4598, 4294901760
      %4600 = vmatmul.f32.gmra.mxu0 %v4599
      %v4601 = vpop.f32.mrf.mxu0
      %v4602 = vadd.f32 %v4571, %v4601
      %4603 = vdwg.mxu0
      %4604 = vmatpush.xpose.msra.mxu0 0.0
      %4605 = vmatpush.xpose.msra.mxu0 0.0
      %4606 = vmatpush.xpose.msra.mxu0 0.0
      %4607 = vmatpush.xpose.msra.mxu0 0.0
      %4608 = vmatpush.xpose.msra.mxu0 0.0
      %4609 = vmatpush.xpose.msra.mxu0 0.0
      %4610 = vmatpush.xpose.msra.mxu0 0.0
      %4611 = vmatpush.xpose.msra.mxu0 0.0
      %4612 = vmatpush.xpose.msra.mxu0 0.0
      %4613 = vmatpush.xpose.msra.mxu0 0.0
      %4614 = vmatpush.xpose.msra.mxu0 0.0
      %4615 = vmatpush.xpose.msra.mxu0 0.0
      %4616 = vmatpush.xpose.msra.mxu0 0.0
      %4617 = vmatpush.xpose.msra.mxu0 0.0
      %v4618 = vand.u32 %v4470, 4294901760
      %v4619 = vsub.f32 %v4470, %v4618
      %v4620 = vand.u32 %v4619, 4294901760
      %4621 = vmatpush.xpose.msra.mxu0 %v4620
      %v4622 = vand.u32 %v4467, 4294901760
      %v4623 = vsub.f32 %v4467, %v4622
      %v4624 = vand.u32 %v4623, 4294901760
      %4625 = vmatpush.xpose.msra.mxu0 %v4624
      %v4626 = vand.u32 %v4467, 4294901760
      %4627 = vmatmul.f32.gmra.mxu0 %v4626
      %v4628 = vpop.f32.mrf.mxu0
      %v4629 = vadd.f32 %v4596, %v4628
      %v4630 = vand.u32 %v4470, 4294901760
      %4631 = vmatmul.f32.gmra.mxu0 %v4630
      %v4632 = vpop.f32.mrf.mxu0
      %v4633 = vadd.f32 %v4602, %v4632
      %4634 = vdwg.mxu0
      %4635 = vmatpush.xpose.msra.mxu0 0.0
      %4636 = vmatpush.xpose.msra.mxu0 0.0
      %4637 = vmatpush.xpose.msra.mxu0 0.0
      %4638 = vmatpush.xpose.msra.mxu0 0.0
      %4639 = vmatpush.xpose.msra.mxu0 0.0
      %4640 = vmatpush.xpose.msra.mxu0 0.0
      %4641 = vmatpush.xpose.msra.mxu0 0.0
      %4642 = vmatpush.xpose.msra.mxu0 0.0
      %4643 = vmatpush.xpose.msra.mxu0 0.0
      %4644 = vmatpush.xpose.msra.mxu0 0.0
      %4645 = vmatpush.xpose.msra.mxu0 0.0
      %4646 = vmatpush.xpose.msra.mxu0 0.0
      %4647 = vmatpush.xpose.msra.mxu0 0.0
      %4648 = vmatpush.xpose.msra.mxu0 0.0
      %v4649 = vand.u32 %v4470, 4294901760
      %4650 = vmatpush.xpose.msra.mxu0 %v4649
      %v4651 = vand.u32 %v4467, 4294901760
      %4652 = vmatpush.xpose.msra.mxu0 %v4651
      %v4653 = vand.u32 %v4467, 4294901760
      %4654 = vmatmul.f32.gmra.mxu0 %v4653
      %v4655 = vpop.f32.mrf.mxu0
      %v4656 = vadd.f32 %v4629, %v4655
      %v4657 = vand.u32 %v4470, 4294901760
      %4658 = vmatmul.f32.gmra.mxu0 %v4657
      %v4659 = vpop.f32.mrf.mxu0
      %v4660 = vadd.f32 %v4633, %v4659
      %4661 = vdwg.mxu0
      %v4662 = vmul.f32 %v4656, %v463
      %v4663 = vmul.f32 %v4660, %v464
      %vm4664 = vcmp.eq.f32.partialorder %v4662, 0.0
      %vm4665 = vcmp.eq.f32.partialorder %v4663, 0.0
      %v4666 = vsel %vm4664, -1e+16, %v4662
      %v4667 = vsel %vm4665, -1e+16, %v4663
      %v4668 = vsel %vm468, %v4666, -inf
      %4669 = vmax.xlane.f32.xlu0 %v4668
      %v4670 = vpop.xlane.xlu0 %4669
      %v4671 = vsel %vm468, %v4667, -inf
      %4672 = vmax.xlane.f32.xlu0 %v4671
      %v4673 = vpop.xlane.xlu0 %4672
      %v4674 = vsub.f32 %v4666, %v4670
      %v4675 = vsub.f32 %v4667, %v4673
      %v4676 = vmul.f32 %v4674, 1.442695
      %v4677 = vpow.pop %v4676
      %v4678 = vmul.f32 %v4675, 1.442695
      %v4679 = vpow.pop %v4678
      %v4680 = vsel %vm468, %v4677, 0.0
      %4681 = vadd.xlane.f32.xlu0 %v4680
      %v4682 = vpop.xlane.xlu0 %4681
      %v4683 = vsel %vm468, %v4679, 0.0
      %4684 = vadd.xlane.f32.xlu0 %v4683
      %v4685 = vpop.xlane.xlu0 %4684
      %v4686 = vrcp.pop %v4682
      %v4687 = vrcp.pop %v4685
      %v4688 = vmul.f32 %v4677, %v4686
      %v4689 = vmul.f32 %v4679, %v4687
      %v4690 = vld [vmem:[%s9] sm:$0x1]
      %v4692 = vperm.slane %v4690, 0
      %v4695 = vsel %vm468, %v4688, 0
      %v4698 = vsel %vm468, %v4689, 0
      %4700 = vmatpush.msra.mxu0 0.0
      %4701 = vmatpush.msra.mxu0 0.0
      %4702 = vmatpush.msra.mxu0 0.0
      %4703 = vmatpush.msra.mxu0 0.0
      %4704 = vmatpush.msra.mxu0 0.0
      %4705 = vmatpush.msra.mxu0 0.0
      %4706 = vmatpush.msra.mxu0 0.0
      %4707 = vmatpush.msra.mxu0 0.0
      %4708 = vmatpush.msra.mxu0 0.0
      %4709 = vmatpush.msra.mxu0 0.0
      %4710 = vmatpush.msra.mxu0 0.0
      %4711 = vmatpush.msra.mxu0 0.0
      %4712 = vmatpush.msra.mxu0 0.0
      %4713 = vmatpush.msra.mxu0 0.0
      %v4714 = vand.u32 %v4464, 4294901760
      %4715 = vmatpush.msra.mxu0 %v4714
      %v4716 = vand.u32 %v4460, 4294901760
      %4717 = vmatpush.msra.mxu0 %v4716
      %v4718 = vand.u32 %v4695, 4294901760
      %v4719 = vsub.f32 %v4695, %v4718
      %v4720 = vand.u32 %v4719, 4294901760
      %v4721 = vsub.f32 %v4719, %v4720
      %v4722 = vand.u32 %v4721, 4294901760
      %4723 = vmatmul.f32.gmra.mxu0 %v4722
      %v4724 = vpop.f32.mrf.mxu0
      %v4725 = vadd.f32 %v4692, %v4724
      %v4726 = vand.u32 %v4698, 4294901760
      %v4727 = vsub.f32 %v4698, %v4726
      %v4728 = vand.u32 %v4727, 4294901760
      %v4729 = vsub.f32 %v4727, %v4728
      %v4730 = vand.u32 %v4729, 4294901760
      %4731 = vmatmul.f32.gmra.mxu0 %v4730
      %v4732 = vpop.f32.mrf.mxu0
      %v4733 = vadd.f32 %v4692, %v4732
      %4734 = vdwg.mxu0
      %4735 = vmatpush.msra.mxu0 0.0
      %4736 = vmatpush.msra.mxu0 0.0
      %4737 = vmatpush.msra.mxu0 0.0
      %4738 = vmatpush.msra.mxu0 0.0
      %4739 = vmatpush.msra.mxu0 0.0
      %4740 = vmatpush.msra.mxu0 0.0
      %4741 = vmatpush.msra.mxu0 0.0
      %4742 = vmatpush.msra.mxu0 0.0
      %4743 = vmatpush.msra.mxu0 0.0
      %4744 = vmatpush.msra.mxu0 0.0
      %4745 = vmatpush.msra.mxu0 0.0
      %4746 = vmatpush.msra.mxu0 0.0
      %4747 = vmatpush.msra.mxu0 0.0
      %4748 = vmatpush.msra.mxu0 0.0
      %v4749 = vand.u32 %v4464, 4294901760
      %v4750 = vsub.f32 %v4464, %v4749
      %v4751 = vand.u32 %v4750, 4294901760
      %v4752 = vsub.f32 %v4750, %v4751
      %v4753 = vand.u32 %v4752, 4294901760
      %4754 = vmatpush.msra.mxu0 %v4753
      %v4755 = vand.u32 %v4460, 4294901760
      %v4756 = vsub.f32 %v4460, %v4755
      %v4757 = vand.u32 %v4756, 4294901760
      %v4758 = vsub.f32 %v4756, %v4757
      %v4759 = vand.u32 %v4758, 4294901760
      %4760 = vmatpush.msra.mxu0 %v4759
      %v4761 = vand.u32 %v4695, 4294901760
      %4762 = vmatmul.f32.gmra.mxu0 %v4761
      %v4763 = vpop.f32.mrf.mxu0
      %v4764 = vadd.f32 %v4725, %v4763
      %v4765 = vand.u32 %v4698, 4294901760
      %4766 = vmatmul.f32.gmra.mxu0 %v4765
      %v4767 = vpop.f32.mrf.mxu0
      %v4768 = vadd.f32 %v4733, %v4767
      %4769 = vdwg.mxu0
      %4770 = vmatpush.msra.mxu0 0.0
      %4771 = vmatpush.msra.mxu0 0.0
      %4772 = vmatpush.msra.mxu0 0.0
      %4773 = vmatpush.msra.mxu0 0.0
      %4774 = vmatpush.msra.mxu0 0.0
      %4775 = vmatpush.msra.mxu0 0.0
      %4776 = vmatpush.msra.mxu0 0.0
      %4777 = vmatpush.msra.mxu0 0.0
      %4778 = vmatpush.msra.mxu0 0.0
      %4779 = vmatpush.msra.mxu0 0.0
      %4780 = vmatpush.msra.mxu0 0.0
      %4781 = vmatpush.msra.mxu0 0.0
      %4782 = vmatpush.msra.mxu0 0.0
      %4783 = vmatpush.msra.mxu0 0.0
      %v4784 = vand.u32 %v4464, 4294901760
      %v4785 = vsub.f32 %v4464, %v4784
      %4786 = vmatpush.msra.mxu0 %v4785
      %v4787 = vand.u32 %v4460, 4294901760
      %v4788 = vsub.f32 %v4460, %v4787
      %4789 = vmatpush.msra.mxu0 %v4788
      %v4790 = vand.u32 %v4695, 4294901760
      %v4791 = vsub.f32 %v4695, %v4790
      %4792 = vmatmul.f32.gmra.mxu0 %v4791
      %v4793 = vpop.f32.mrf.mxu0
      %v4794 = vadd.f32 %v4764, %v4793
      %v4795 = vand.u32 %v4698, 4294901760
      %v4796 = vsub.f32 %v4698, %v4795
      %4797 = vmatmul.f32.gmra.mxu0 %v4796
      %v4798 = vpop.f32.mrf.mxu0
      %v4799 = vadd.f32 %v4768, %v4798
      %4800 = vdwg.mxu0
      %4801 = vmatpush.msra.mxu0 0.0
      %4802 = vmatpush.msra.mxu0 0.0
      %4803 = vmatpush.msra.mxu0 0.0
      %4804 = vmatpush.msra.mxu0 0.0
      %4805 = vmatpush.msra.mxu0 0.0
      %4806 = vmatpush.msra.mxu0 0.0
      %4807 = vmatpush.msra.mxu0 0.0
      %4808 = vmatpush.msra.mxu0 0.0
      %4809 = vmatpush.msra.mxu0 0.0
      %4810 = vmatpush.msra.mxu0 0.0
      %4811 = vmatpush.msra.mxu0 0.0
      %4812 = vmatpush.msra.mxu0 0.0
      %4813 = vmatpush.msra.mxu0 0.0
      %4814 = vmatpush.msra.mxu0 0.0
      %v4815 = vand.u32 %v4464, 4294901760
      %4816 = vmatpush.msra.mxu0 %v4815
      %v4817 = vand.u32 %v4460, 4294901760
      %4818 = vmatpush.msra.mxu0 %v4817
      %v4819 = vand.u32 %v4695, 4294901760
      %v4820 = vsub.f32 %v4695, %v4819
      %v4821 = vand.u32 %v4820, 4294901760
      %4822 = vmatmul.f32.gmra.mxu0 %v4821
      %v4823 = vpop.f32.mrf.mxu0
      %v4824 = vadd.f32 %v4794, %v4823
      %v4825 = vand.u32 %v4698, 4294901760
      %v4826 = vsub.f32 %v4698, %v4825
      %v4827 = vand.u32 %v4826, 4294901760
      %4828 = vmatmul.f32.gmra.mxu0 %v4827
      %v4829 = vpop.f32.mrf.mxu0
      %v4830 = vadd.f32 %v4799, %v4829
      %4831 = vdwg.mxu0
      %4832 = vmatpush.msra.mxu0 0.0
      %4833 = vmatpush.msra.mxu0 0.0
      %4834 = vmatpush.msra.mxu0 0.0
      %4835 = vmatpush.msra.mxu0 0.0
      %4836 = vmatpush.msra.mxu0 0.0
      %4837 = vmatpush.msra.mxu0 0.0
      %4838 = vmatpush.msra.mxu0 0.0
      %4839 = vmatpush.msra.mxu0 0.0
      %4840 = vmatpush.msra.mxu0 0.0
      %4841 = vmatpush.msra.mxu0 0.0
      %4842 = vmatpush.msra.mxu0 0.0
      %4843 = vmatpush.msra.mxu0 0.0
      %4844 = vmatpush.msra.mxu0 0.0
      %4845 = vmatpush.msra.mxu0 0.0
      %v4846 = vand.u32 %v4464, 4294901760
      %v4847 = vsub.f32 %v4464, %v4846
      %v4848 = vand.u32 %v4847, 4294901760
      %4849 = vmatpush.msra.mxu0 %v4848
      %v4850 = vand.u32 %v4460, 4294901760
      %v4851 = vsub.f32 %v4460, %v4850
      %v4852 = vand.u32 %v4851, 4294901760
      %4853 = vmatpush.msra.mxu0 %v4852
      %v4854 = vand.u32 %v4695, 4294901760
      %4855 = vmatmul.f32.gmra.mxu0 %v4854
      %v4856 = vpop.f32.mrf.mxu0
      %v4857 = vadd.f32 %v4824, %v4856
      %v4858 = vand.u32 %v4698, 4294901760
      %4859 = vmatmul.f32.gmra.mxu0 %v4858
      %v4860 = vpop.f32.mrf.mxu0
      %v4861 = vadd.f32 %v4830, %v4860
      %4862 = vdwg.mxu0
      %4863 = vmatpush.msra.mxu0 0.0
      %4864 = vmatpush.msra.mxu0 0.0
      %4865 = vmatpush.msra.mxu0 0.0
      %4866 = vmatpush.msra.mxu0 0.0
      %4867 = vmatpush.msra.mxu0 0.0
      %4868 = vmatpush.msra.mxu0 0.0
      %4869 = vmatpush.msra.mxu0 0.0
      %4870 = vmatpush.msra.mxu0 0.0
      %4871 = vmatpush.msra.mxu0 0.0
      %4872 = vmatpush.msra.mxu0 0.0
      %4873 = vmatpush.msra.mxu0 0.0
      %4874 = vmatpush.msra.mxu0 0.0
      %4875 = vmatpush.msra.mxu0 0.0
      %4876 = vmatpush.msra.mxu0 0.0
      %v4877 = vand.u32 %v4464, 4294901760
      %4878 = vmatpush.msra.mxu0 %v4877
      %v4879 = vand.u32 %v4460, 4294901760
      %4880 = vmatpush.msra.mxu0 %v4879
      %v4881 = vand.u32 %v4695, 4294901760
      %4882 = vmatmul.f32.gmra.mxu0 %v4881
      %v4883 = vpop.f32.mrf.mxu0
      %v4884 = vadd.f32 %v4857, %v4883
      %v4885 = vand.u32 %v4698, 4294901760
      %4886 = vmatmul.f32.gmra.mxu0 %v4885
      %v4887 = vpop.f32.mrf.mxu0
      %v4888 = vadd.f32 %v4861, %v4887
      %4889 = vdwg.mxu0
      %vm4890 = vcmp.ge.f32.partialorder %v4884, 0.0
      %vm4891 = vcmp.ge.f32.partialorder %v4888, 0.0
      %v4892 = vmul.f32 %v4884, 0.2
      %v4893 = vmul.f32 %v4888, 0.2
      %v4894 = vsel %vm4890, %v4884, %v4892
      %v4895 = vsel %vm4891, %v4888, %v4893
      %v4896 = vld [vmem:[%s10] sm:$0xff]
      %v4897 = vld [vmem:[%s10 + $0x8] sm:$0xff]
      %v4898 = vld [vmem:[%s10 + $0x10] sm:$0xff]
      %v4899 = vld [vmem:[%s10 + $0x18] sm:$0xff]
      %v4900 = vld [vmem:[%s10 + $0x20] sm:$0xff]
      %v4901 = vld [vmem:[%s10 + $0x28] sm:$0xff]
      %v4902 = vld [vmem:[%s10 + $0x30] sm:$0xff]
      %v4903 = vld [vmem:[%s10 + $0x38] sm:$0xff]
      %s4904 = scalar_lea.vmem %s8, 16
      %v4905 = vld [vmem:[%s4904] sm:$0xff]
      %v4906 = vld [vmem:[%s4904 + $0x8] sm:$0xff]
      %4907 = vmatpush.msra.mxu0 0.0
      %4908 = vmatpush.msra.mxu0 0.0
      %4909 = vmatpush.msra.mxu0 0.0
      %4910 = vmatpush.msra.mxu0 0.0
      %4911 = vmatpush.msra.mxu0 0.0
      %4912 = vmatpush.msra.mxu0 0.0
      %4913 = vmatpush.msra.mxu0 0.0
      %4914 = vmatpush.msra.mxu0 0.0
      %4915 = vmatpush.msra.mxu0 0.0
      %4916 = vmatpush.msra.mxu0 0.0
      %4917 = vmatpush.msra.mxu0 0.0
      %4918 = vmatpush.msra.mxu0 0.0
      %4919 = vmatpush.msra.mxu0 0.0
      %4920 = vmatpush.msra.mxu0 0.0
      %v4921 = vand.u32 %v4906, 4294901760
      %4922 = vmatpush.msra.mxu0 %v4921
      %v4923 = vand.u32 %v4905, 4294901760
      %4924 = vmatpush.msra.mxu0 %v4923
      %v4925 = vand.u32 %v4271, 4294901760
      %v4926 = vsub.f32 %v4271, %v4925
      %v4927 = vand.u32 %v4926, 4294901760
      %v4928 = vsub.f32 %v4926, %v4927
      %v4929 = vand.u32 %v4928, 4294901760
      %4930 = vmatmul.f32.gmra.mxu0 %v4929
      %v4931 = vpop.f32.mrf.mxu0
      %v4932 = vadd.f32 0.0, %v4931
      %v4933 = vand.u32 %v4274, 4294901760
      %v4934 = vsub.f32 %v4274, %v4933
      %v4935 = vand.u32 %v4934, 4294901760
      %v4936 = vsub.f32 %v4934, %v4935
      %v4937 = vand.u32 %v4936, 4294901760
      %4938 = vmatmul.f32.gmra.mxu0 %v4937
      %v4939 = vpop.f32.mrf.mxu0
      %v4940 = vadd.f32 0.0, %v4939
      %4941 = vdwg.mxu0
      %4942 = vmatpush.msra.mxu0 0.0
      %4943 = vmatpush.msra.mxu0 0.0
      %4944 = vmatpush.msra.mxu0 0.0
      %4945 = vmatpush.msra.mxu0 0.0
      %4946 = vmatpush.msra.mxu0 0.0
      %4947 = vmatpush.msra.mxu0 0.0
      %4948 = vmatpush.msra.mxu0 0.0
      %4949 = vmatpush.msra.mxu0 0.0
      %4950 = vmatpush.msra.mxu0 0.0
      %4951 = vmatpush.msra.mxu0 0.0
      %4952 = vmatpush.msra.mxu0 0.0
      %4953 = vmatpush.msra.mxu0 0.0
      %4954 = vmatpush.msra.mxu0 0.0
      %4955 = vmatpush.msra.mxu0 0.0
      %v4956 = vand.u32 %v4906, 4294901760
      %v4957 = vsub.f32 %v4906, %v4956
      %v4958 = vand.u32 %v4957, 4294901760
      %v4959 = vsub.f32 %v4957, %v4958
      %v4960 = vand.u32 %v4959, 4294901760
      %4961 = vmatpush.msra.mxu0 %v4960
      %v4962 = vand.u32 %v4905, 4294901760
      %v4963 = vsub.f32 %v4905, %v4962
      %v4964 = vand.u32 %v4963, 4294901760
      %v4965 = vsub.f32 %v4963, %v4964
      %v4966 = vand.u32 %v4965, 4294901760
      %4967 = vmatpush.msra.mxu0 %v4966
      %v4968 = vand.u32 %v4271, 4294901760
      %4969 = vmatmul.f32.gmra.mxu0 %v4968
      %v4970 = vpop.f32.mrf.mxu0
      %v4971 = vadd.f32 %v4932, %v4970
      %v4972 = vand.u32 %v4274, 4294901760
      %4973 = vmatmul.f32.gmra.mxu0 %v4972
      %v4974 = vpop.f32.mrf.mxu0
      %v4975 = vadd.f32 %v4940, %v4974
      %4976 = vdwg.mxu0
      %4977 = vmatpush.msra.mxu0 0.0
      %4978 = vmatpush.msra.mxu0 0.0
      %4979 = vmatpush.msra.mxu0 0.0
      %4980 = vmatpush.msra.mxu0 0.0
      %4981 = vmatpush.msra.mxu0 0.0
      %4982 = vmatpush.msra.mxu0 0.0
      %4983 = vmatpush.msra.mxu0 0.0
      %4984 = vmatpush.msra.mxu0 0.0
      %4985 = vmatpush.msra.mxu0 0.0
      %4986 = vmatpush.msra.mxu0 0.0
      %4987 = vmatpush.msra.mxu0 0.0
      %4988 = vmatpush.msra.mxu0 0.0
      %4989 = vmatpush.msra.mxu0 0.0
      %4990 = vmatpush.msra.mxu0 0.0
      %v4991 = vand.u32 %v4906, 4294901760
      %v4992 = vsub.f32 %v4906, %v4991
      %4993 = vmatpush.msra.mxu0 %v4992
      %v4994 = vand.u32 %v4905, 4294901760
      %v4995 = vsub.f32 %v4905, %v4994
      %4996 = vmatpush.msra.mxu0 %v4995
      %v4997 = vand.u32 %v4271, 4294901760
      %v4998 = vsub.f32 %v4271, %v4997
      %4999 = vmatmul.f32.gmra.mxu0 %v4998
      %v5000 = vpop.f32.mrf.mxu0
      %v5001 = vadd.f32 %v4971, %v5000
      %v5002 = vand.u32 %v4274, 4294901760
      %v5003 = vsub.f32 %v4274, %v5002
      %5004 = vmatmul.f32.gmra.mxu0 %v5003
      %v5005 = vpop.f32.mrf.mxu0
      %v5006 = vadd.f32 %v4975, %v5005
      %5007 = vdwg.mxu0
      %5008 = vmatpush.msra.mxu0 0.0
      %5009 = vmatpush.msra.mxu0 0.0
      %5010 = vmatpush.msra.mxu0 0.0
      %5011 = vmatpush.msra.mxu0 0.0
      %5012 = vmatpush.msra.mxu0 0.0
      %5013 = vmatpush.msra.mxu0 0.0
      %5014 = vmatpush.msra.mxu0 0.0
      %5015 = vmatpush.msra.mxu0 0.0
      %5016 = vmatpush.msra.mxu0 0.0
      %5017 = vmatpush.msra.mxu0 0.0
      %5018 = vmatpush.msra.mxu0 0.0
      %5019 = vmatpush.msra.mxu0 0.0
      %5020 = vmatpush.msra.mxu0 0.0
      %5021 = vmatpush.msra.mxu0 0.0
      %v5022 = vand.u32 %v4906, 4294901760
      %5023 = vmatpush.msra.mxu0 %v5022
      %v5024 = vand.u32 %v4905, 4294901760
      %5025 = vmatpush.msra.mxu0 %v5024
      %v5026 = vand.u32 %v4271, 4294901760
      %v5027 = vsub.f32 %v4271, %v5026
      %v5028 = vand.u32 %v5027, 4294901760
      %5029 = vmatmul.f32.gmra.mxu0 %v5028
      %v5030 = vpop.f32.mrf.mxu0
      %v5031 = vadd.f32 %v5001, %v5030
      %v5032 = vand.u32 %v4274, 4294901760
      %v5033 = vsub.f32 %v4274, %v5032
      %v5034 = vand.u32 %v5033, 4294901760
      %5035 = vmatmul.f32.gmra.mxu0 %v5034
      %v5036 = vpop.f32.mrf.mxu0
      %v5037 = vadd.f32 %v5006, %v5036
      %5038 = vdwg.mxu0
      %5039 = vmatpush.msra.mxu0 0.0
      %5040 = vmatpush.msra.mxu0 0.0
      %5041 = vmatpush.msra.mxu0 0.0
      %5042 = vmatpush.msra.mxu0 0.0
      %5043 = vmatpush.msra.mxu0 0.0
      %5044 = vmatpush.msra.mxu0 0.0
      %5045 = vmatpush.msra.mxu0 0.0
      %5046 = vmatpush.msra.mxu0 0.0
      %5047 = vmatpush.msra.mxu0 0.0
      %5048 = vmatpush.msra.mxu0 0.0
      %5049 = vmatpush.msra.mxu0 0.0
      %5050 = vmatpush.msra.mxu0 0.0
      %5051 = vmatpush.msra.mxu0 0.0
      %5052 = vmatpush.msra.mxu0 0.0
      %v5053 = vand.u32 %v4906, 4294901760
      %v5054 = vsub.f32 %v4906, %v5053
      %v5055 = vand.u32 %v5054, 4294901760
      %5056 = vmatpush.msra.mxu0 %v5055
      %v5057 = vand.u32 %v4905, 4294901760
      %v5058 = vsub.f32 %v4905, %v5057
      %v5059 = vand.u32 %v5058, 4294901760
      %5060 = vmatpush.msra.mxu0 %v5059
      %v5061 = vand.u32 %v4271, 4294901760
      %5062 = vmatmul.f32.gmra.mxu0 %v5061
      %v5063 = vpop.f32.mrf.mxu0
      %v5064 = vadd.f32 %v5031, %v5063
      %v5065 = vand.u32 %v4274, 4294901760
      %5066 = vmatmul.f32.gmra.mxu0 %v5065
      %v5067 = vpop.f32.mrf.mxu0
      %v5068 = vadd.f32 %v5037, %v5067
      %5069 = vdwg.mxu0
      %5070 = vmatpush.msra.mxu0 0.0
      %5071 = vmatpush.msra.mxu0 0.0
      %5072 = vmatpush.msra.mxu0 0.0
      %5073 = vmatpush.msra.mxu0 0.0
      %5074 = vmatpush.msra.mxu0 0.0
      %5075 = vmatpush.msra.mxu0 0.0
      %5076 = vmatpush.msra.mxu0 0.0
      %5077 = vmatpush.msra.mxu0 0.0
      %5078 = vmatpush.msra.mxu0 0.0
      %5079 = vmatpush.msra.mxu0 0.0
      %5080 = vmatpush.msra.mxu0 0.0
      %5081 = vmatpush.msra.mxu0 0.0
      %5082 = vmatpush.msra.mxu0 0.0
      %5083 = vmatpush.msra.mxu0 0.0
      %v5084 = vand.u32 %v4906, 4294901760
      %5085 = vmatpush.msra.mxu0 %v5084
      %v5086 = vand.u32 %v4905, 4294901760
      %5087 = vmatpush.msra.mxu0 %v5086
      %v5088 = vand.u32 %v4271, 4294901760
      %5089 = vmatmul.f32.gmra.mxu0 %v5088
      %v5090 = vpop.f32.mrf.mxu0
      %v5091 = vadd.f32 %v5064, %v5090
      %v5092 = vand.u32 %v4274, 4294901760
      %5093 = vmatmul.f32.gmra.mxu0 %v5092
      %v5094 = vpop.f32.mrf.mxu0
      %v5095 = vadd.f32 %v5068, %v5094
      %5096 = vdwg.mxu0
      %v5098 = vsel %vm1337, %v5091, 0
      %v5101 = vsel %vm1337, %v5095, 0
      %5103 = vmatpush.xpose.msra.mxu0 0.0
      %5104 = vmatpush.xpose.msra.mxu0 0.0
      %5105 = vmatpush.xpose.msra.mxu0 0.0
      %5106 = vmatpush.xpose.msra.mxu0 0.0
      %5107 = vmatpush.xpose.msra.mxu0 0.0
      %5108 = vmatpush.xpose.msra.mxu0 0.0
      %5109 = vmatpush.xpose.msra.mxu0 0.0
      %5110 = vmatpush.xpose.msra.mxu0 0.0
      %5111 = vmatpush.xpose.msra.mxu0 0.0
      %5112 = vmatpush.xpose.msra.mxu0 0.0
      %5113 = vmatpush.xpose.msra.mxu0 0.0
      %5114 = vmatpush.xpose.msra.mxu0 0.0
      %5115 = vmatpush.xpose.msra.mxu0 0.0
      %5116 = vmatpush.xpose.msra.mxu0 0.0
      %v5117 = vand.u32 %v5101, 4294901760
      %5118 = vmatpush.xpose.msra.mxu0 %v5117
      %v5119 = vand.u32 %v5098, 4294901760
      %5120 = vmatpush.xpose.msra.mxu0 %v5119
      %v5121 = vand.u32 %v5098, 4294901760
      %v5122 = vsub.f32 %v5098, %v5121
      %v5123 = vand.u32 %v5122, 4294901760
      %v5124 = vsub.f32 %v5122, %v5123
      %v5125 = vand.u32 %v5124, 4294901760
      %5126 = vmatmul.f32.gmra.mxu0 %v5125
      %v5127 = vpop.f32.mrf.mxu0
      %v5128 = vadd.f32 0.0, %v5127
      %v5129 = vand.u32 %v5101, 4294901760
      %v5130 = vsub.f32 %v5101, %v5129
      %v5131 = vand.u32 %v5130, 4294901760
      %v5132 = vsub.f32 %v5130, %v5131
      %v5133 = vand.u32 %v5132, 4294901760
      %5134 = vmatmul.f32.gmra.mxu0 %v5133
      %v5135 = vpop.f32.mrf.mxu0
      %v5136 = vadd.f32 0.0, %v5135
      %5137 = vdwg.mxu0
      %5138 = vmatpush.xpose.msra.mxu0 0.0
      %5139 = vmatpush.xpose.msra.mxu0 0.0
      %5140 = vmatpush.xpose.msra.mxu0 0.0
      %5141 = vmatpush.xpose.msra.mxu0 0.0
      %5142 = vmatpush.xpose.msra.mxu0 0.0
      %5143 = vmatpush.xpose.msra.mxu0 0.0
      %5144 = vmatpush.xpose.msra.mxu0 0.0
      %5145 = vmatpush.xpose.msra.mxu0 0.0
      %5146 = vmatpush.xpose.msra.mxu0 0.0
      %5147 = vmatpush.xpose.msra.mxu0 0.0
      %5148 = vmatpush.xpose.msra.mxu0 0.0
      %5149 = vmatpush.xpose.msra.mxu0 0.0
      %5150 = vmatpush.xpose.msra.mxu0 0.0
      %5151 = vmatpush.xpose.msra.mxu0 0.0
      %v5152 = vand.u32 %v5101, 4294901760
      %v5153 = vsub.f32 %v5101, %v5152
      %v5154 = vand.u32 %v5153, 4294901760
      %v5155 = vsub.f32 %v5153, %v5154
      %v5156 = vand.u32 %v5155, 4294901760
      %5157 = vmatpush.xpose.msra.mxu0 %v5156
      %v5158 = vand.u32 %v5098, 4294901760
      %v5159 = vsub.f32 %v5098, %v5158
      %v5160 = vand.u32 %v5159, 4294901760
      %v5161 = vsub.f32 %v5159, %v5160
      %v5162 = vand.u32 %v5161, 4294901760
      %5163 = vmatpush.xpose.msra.mxu0 %v5162
      %v5164 = vand.u32 %v5098, 4294901760
      %5165 = vmatmul.f32.gmra.mxu0 %v5164
      %v5166 = vpop.f32.mrf.mxu0
      %v5167 = vadd.f32 %v5128, %v5166
      %v5168 = vand.u32 %v5101, 4294901760
      %5169 = vmatmul.f32.gmra.mxu0 %v5168
      %v5170 = vpop.f32.mrf.mxu0
      %v5171 = vadd.f32 %v5136, %v5170
      %5172 = vdwg.mxu0
      %5173 = vmatpush.xpose.msra.mxu0 0.0
      %5174 = vmatpush.xpose.msra.mxu0 0.0
      %5175 = vmatpush.xpose.msra.mxu0 0.0
      %5176 = vmatpush.xpose.msra.mxu0 0.0
      %5177 = vmatpush.xpose.msra.mxu0 0.0
      %5178 = vmatpush.xpose.msra.mxu0 0.0
      %5179 = vmatpush.xpose.msra.mxu0 0.0
      %5180 = vmatpush.xpose.msra.mxu0 0.0
      %5181 = vmatpush.xpose.msra.mxu0 0.0
      %5182 = vmatpush.xpose.msra.mxu0 0.0
      %5183 = vmatpush.xpose.msra.mxu0 0.0
      %5184 = vmatpush.xpose.msra.mxu0 0.0
      %5185 = vmatpush.xpose.msra.mxu0 0.0
      %5186 = vmatpush.xpose.msra.mxu0 0.0
      %v5187 = vand.u32 %v5101, 4294901760
      %v5188 = vsub.f32 %v5101, %v5187
      %5189 = vmatpush.xpose.msra.mxu0 %v5188
      %v5190 = vand.u32 %v5098, 4294901760
      %v5191 = vsub.f32 %v5098, %v5190
      %5192 = vmatpush.xpose.msra.mxu0 %v5191
      %v5193 = vand.u32 %v5098, 4294901760
      %v5194 = vsub.f32 %v5098, %v5193
      %5195 = vmatmul.f32.gmra.mxu0 %v5194
      %v5196 = vpop.f32.mrf.mxu0
      %v5197 = vadd.f32 %v5167, %v5196
      %v5198 = vand.u32 %v5101, 4294901760
      %v5199 = vsub.f32 %v5101, %v5198
      %5200 = vmatmul.f32.gmra.mxu0 %v5199
      %v5201 = vpop.f32.mrf.mxu0
      %v5202 = vadd.f32 %v5171, %v5201
      %5203 = vdwg.mxu0
      %5204 = vmatpush.xpose.msra.mxu0 0.0
      %5205 = vmatpush.xpose.msra.mxu0 0.0
      %5206 = vmatpush.xpose.msra.mxu0 0.0
      %5207 = vmatpush.xpose.msra.mxu0 0.0
      %5208 = vmatpush.xpose.msra.mxu0 0.0
      %5209 = vmatpush.xpose.msra.mxu0 0.0
      %5210 = vmatpush.xpose.msra.mxu0 0.0
      %5211 = vmatpush.xpose.msra.mxu0 0.0
      %5212 = vmatpush.xpose.msra.mxu0 0.0
      %5213 = vmatpush.xpose.msra.mxu0 0.0
      %5214 = vmatpush.xpose.msra.mxu0 0.0
      %5215 = vmatpush.xpose.msra.mxu0 0.0
      %5216 = vmatpush.xpose.msra.mxu0 0.0
      %5217 = vmatpush.xpose.msra.mxu0 0.0
      %v5218 = vand.u32 %v5101, 4294901760
      %5219 = vmatpush.xpose.msra.mxu0 %v5218
      %v5220 = vand.u32 %v5098, 4294901760
      %5221 = vmatpush.xpose.msra.mxu0 %v5220
      %v5222 = vand.u32 %v5098, 4294901760
      %v5223 = vsub.f32 %v5098, %v5222
      %v5224 = vand.u32 %v5223, 4294901760
      %5225 = vmatmul.f32.gmra.mxu0 %v5224
      %v5226 = vpop.f32.mrf.mxu0
      %v5227 = vadd.f32 %v5197, %v5226
      %v5228 = vand.u32 %v5101, 4294901760
      %v5229 = vsub.f32 %v5101, %v5228
      %v5230 = vand.u32 %v5229, 4294901760
      %5231 = vmatmul.f32.gmra.mxu0 %v5230
      %v5232 = vpop.f32.mrf.mxu0
      %v5233 = vadd.f32 %v5202, %v5232
      %5234 = vdwg.mxu0
      %5235 = vmatpush.xpose.msra.mxu0 0.0
      %5236 = vmatpush.xpose.msra.mxu0 0.0
      %5237 = vmatpush.xpose.msra.mxu0 0.0
      %5238 = vmatpush.xpose.msra.mxu0 0.0
      %5239 = vmatpush.xpose.msra.mxu0 0.0
      %5240 = vmatpush.xpose.msra.mxu0 0.0
      %5241 = vmatpush.xpose.msra.mxu0 0.0
      %5242 = vmatpush.xpose.msra.mxu0 0.0
      %5243 = vmatpush.xpose.msra.mxu0 0.0
      %5244 = vmatpush.xpose.msra.mxu0 0.0
      %5245 = vmatpush.xpose.msra.mxu0 0.0
      %5246 = vmatpush.xpose.msra.mxu0 0.0
      %5247 = vmatpush.xpose.msra.mxu0 0.0
      %5248 = vmatpush.xpose.msra.mxu0 0.0
      %v5249 = vand.u32 %v5101, 4294901760
      %v5250 = vsub.f32 %v5101, %v5249
      %v5251 = vand.u32 %v5250, 4294901760
      %5252 = vmatpush.xpose.msra.mxu0 %v5251
      %v5253 = vand.u32 %v5098, 4294901760
      %v5254 = vsub.f32 %v5098, %v5253
      %v5255 = vand.u32 %v5254, 4294901760
      %5256 = vmatpush.xpose.msra.mxu0 %v5255
      %v5257 = vand.u32 %v5098, 4294901760
      %5258 = vmatmul.f32.gmra.mxu0 %v5257
      %v5259 = vpop.f32.mrf.mxu0
      %v5260 = vadd.f32 %v5227, %v5259
      %v5261 = vand.u32 %v5101, 4294901760
      %5262 = vmatmul.f32.gmra.mxu0 %v5261
      %v5263 = vpop.f32.mrf.mxu0
      %v5264 = vadd.f32 %v5233, %v5263
      %5265 = vdwg.mxu0
      %5266 = vmatpush.xpose.msra.mxu0 0.0
      %5267 = vmatpush.xpose.msra.mxu0 0.0
      %5268 = vmatpush.xpose.msra.mxu0 0.0
      %5269 = vmatpush.xpose.msra.mxu0 0.0
      %5270 = vmatpush.xpose.msra.mxu0 0.0
      %5271 = vmatpush.xpose.msra.mxu0 0.0
      %5272 = vmatpush.xpose.msra.mxu0 0.0
      %5273 = vmatpush.xpose.msra.mxu0 0.0
      %5274 = vmatpush.xpose.msra.mxu0 0.0
      %5275 = vmatpush.xpose.msra.mxu0 0.0
      %5276 = vmatpush.xpose.msra.mxu0 0.0
      %5277 = vmatpush.xpose.msra.mxu0 0.0
      %5278 = vmatpush.xpose.msra.mxu0 0.0
      %5279 = vmatpush.xpose.msra.mxu0 0.0
      %v5280 = vand.u32 %v5101, 4294901760
      %5281 = vmatpush.xpose.msra.mxu0 %v5280
      %v5282 = vand.u32 %v5098, 4294901760
      %5283 = vmatpush.xpose.msra.mxu0 %v5282
      %v5284 = vand.u32 %v5098, 4294901760
      %5285 = vmatmul.f32.gmra.mxu0 %v5284
      %v5286 = vpop.f32.mrf.mxu0
      %v5287 = vadd.f32 %v5260, %v5286
      %v5288 = vand.u32 %v5101, 4294901760
      %5289 = vmatmul.f32.gmra.mxu0 %v5288
      %v5290 = vpop.f32.mrf.mxu0
      %v5291 = vadd.f32 %v5264, %v5290
      %5292 = vdwg.mxu0
      %v5293 = vmul.f32 %v5287, %v463
      %v5294 = vmul.f32 %v5291, %v464
      %vm5295 = vcmp.eq.f32.partialorder %v5293, 0.0
      %vm5296 = vcmp.eq.f32.partialorder %v5294, 0.0
      %v5297 = vsel %vm5295, -1e+16, %v5293
      %v5298 = vsel %vm5296, -1e+16, %v5294
      %v5299 = vsel %vm468, %v5297, -inf
      %5300 = vmax.xlane.f32.xlu0 %v5299
      %v5301 = vpop.xlane.xlu0 %5300
      %v5302 = vsel %vm468, %v5298, -inf
      %5303 = vmax.xlane.f32.xlu0 %v5302
      %v5304 = vpop.xlane.xlu0 %5303
      %v5305 = vsub.f32 %v5297, %v5301
      %v5306 = vsub.f32 %v5298, %v5304
      %v5307 = vmul.f32 %v5305, 1.442695
      %v5308 = vpow.pop %v5307
      %v5309 = vmul.f32 %v5306, 1.442695
      %v5310 = vpow.pop %v5309
      %v5311 = vsel %vm468, %v5308, 0.0
      %5312 = vadd.xlane.f32.xlu0 %v5311
      %v5313 = vpop.xlane.xlu0 %5312
      %v5314 = vsel %vm468, %v5310, 0.0
      %5315 = vadd.xlane.f32.xlu0 %v5314
      %v5316 = vpop.xlane.xlu0 %5315
      %v5317 = vrcp.pop %v5313
      %v5318 = vrcp.pop %v5316
      %v5319 = vmul.f32 %v5308, %v5317
      %v5320 = vmul.f32 %v5310, %v5318
      %s5321 = scalar_lea.vmem %s9, 1
      %v5322 = vld [vmem:[%s5321] sm:$0x1]
      %v5324 = vperm.slane %v5322, 0
      %v5327 = vsel %vm468, %v5319, 0
      %v5330 = vsel %vm468, %v5320, 0
      %5332 = vmatpush.msra.mxu0 0.0
      %5333 = vmatpush.msra.mxu0 0.0
      %5334 = vmatpush.msra.mxu0 0.0
      %5335 = vmatpush.msra.mxu0 0.0
      %5336 = vmatpush.msra.mxu0 0.0
      %5337 = vmatpush.msra.mxu0 0.0
      %5338 = vmatpush.msra.mxu0 0.0
      %5339 = vmatpush.msra.mxu0 0.0
      %5340 = vmatpush.msra.mxu0 0.0
      %5341 = vmatpush.msra.mxu0 0.0
      %5342 = vmatpush.msra.mxu0 0.0
      %5343 = vmatpush.msra.mxu0 0.0
      %5344 = vmatpush.msra.mxu0 0.0
      %5345 = vmatpush.msra.mxu0 0.0
      %v5346 = vand.u32 %v5095, 4294901760
      %5347 = vmatpush.msra.mxu0 %v5346
      %v5348 = vand.u32 %v5091, 4294901760
      %5349 = vmatpush.msra.mxu0 %v5348
      %v5350 = vand.u32 %v5327, 4294901760
      %v5351 = vsub.f32 %v5327, %v5350
      %v5352 = vand.u32 %v5351, 4294901760
      %v5353 = vsub.f32 %v5351, %v5352
      %v5354 = vand.u32 %v5353, 4294901760
      %5355 = vmatmul.f32.gmra.mxu0 %v5354
      %v5356 = vpop.f32.mrf.mxu0
      %v5357 = vadd.f32 %v5324, %v5356
      %v5358 = vand.u32 %v5330, 4294901760
      %v5359 = vsub.f32 %v5330, %v5358
      %v5360 = vand.u32 %v5359, 4294901760
      %v5361 = vsub.f32 %v5359, %v5360
      %v5362 = vand.u32 %v5361, 4294901760
      %5363 = vmatmul.f32.gmra.mxu0 %v5362
      %v5364 = vpop.f32.mrf.mxu0
      %v5365 = vadd.f32 %v5324, %v5364
      %5366 = vdwg.mxu0
      %5367 = vmatpush.msra.mxu0 0.0
      %5368 = vmatpush.msra.mxu0 0.0
      %5369 = vmatpush.msra.mxu0 0.0
      %5370 = vmatpush.msra.mxu0 0.0
      %5371 = vmatpush.msra.mxu0 0.0
      %5372 = vmatpush.msra.mxu0 0.0
      %5373 = vmatpush.msra.mxu0 0.0
      %5374 = vmatpush.msra.mxu0 0.0
      %5375 = vmatpush.msra.mxu0 0.0
      %5376 = vmatpush.msra.mxu0 0.0
      %5377 = vmatpush.msra.mxu0 0.0
      %5378 = vmatpush.msra.mxu0 0.0
      %5379 = vmatpush.msra.mxu0 0.0
      %5380 = vmatpush.msra.mxu0 0.0
      %v5381 = vand.u32 %v5095, 4294901760
      %v5382 = vsub.f32 %v5095, %v5381
      %v5383 = vand.u32 %v5382, 4294901760
      %v5384 = vsub.f32 %v5382, %v5383
      %v5385 = vand.u32 %v5384, 4294901760
      %5386 = vmatpush.msra.mxu0 %v5385
      %v5387 = vand.u32 %v5091, 4294901760
      %v5388 = vsub.f32 %v5091, %v5387
      %v5389 = vand.u32 %v5388, 4294901760
      %v5390 = vsub.f32 %v5388, %v5389
      %v5391 = vand.u32 %v5390, 4294901760
      %5392 = vmatpush.msra.mxu0 %v5391
      %v5393 = vand.u32 %v5327, 4294901760
      %5394 = vmatmul.f32.gmra.mxu0 %v5393
      %v5395 = vpop.f32.mrf.mxu0
      %v5396 = vadd.f32 %v5357, %v5395
      %v5397 = vand.u32 %v5330, 4294901760
      %5398 = vmatmul.f32.gmra.mxu0 %v5397
      %v5399 = vpop.f32.mrf.mxu0
      %v5400 = vadd.f32 %v5365, %v5399
      %5401 = vdwg.mxu0
      %5402 = vmatpush.msra.mxu0 0.0
      %5403 = vmatpush.msra.mxu0 0.0
      %5404 = vmatpush.msra.mxu0 0.0
      %5405 = vmatpush.msra.mxu0 0.0
      %5406 = vmatpush.msra.mxu0 0.0
      %5407 = vmatpush.msra.mxu0 0.0
      %5408 = vmatpush.msra.mxu0 0.0
      %5409 = vmatpush.msra.mxu0 0.0
      %5410 = vmatpush.msra.mxu0 0.0
      %5411 = vmatpush.msra.mxu0 0.0
      %5412 = vmatpush.msra.mxu0 0.0
      %5413 = vmatpush.msra.mxu0 0.0
      %5414 = vmatpush.msra.mxu0 0.0
      %5415 = vmatpush.msra.mxu0 0.0
      %v5416 = vand.u32 %v5095, 4294901760
      %v5417 = vsub.f32 %v5095, %v5416
      %5418 = vmatpush.msra.mxu0 %v5417
      %v5419 = vand.u32 %v5091, 4294901760
      %v5420 = vsub.f32 %v5091, %v5419
      %5421 = vmatpush.msra.mxu0 %v5420
      %v5422 = vand.u32 %v5327, 4294901760
      %v5423 = vsub.f32 %v5327, %v5422
      %5424 = vmatmul.f32.gmra.mxu0 %v5423
      %v5425 = vpop.f32.mrf.mxu0
      %v5426 = vadd.f32 %v5396, %v5425
      %v5427 = vand.u32 %v5330, 4294901760
      %v5428 = vsub.f32 %v5330, %v5427
      %5429 = vmatmul.f32.gmra.mxu0 %v5428
      %v5430 = vpop.f32.mrf.mxu0
      %v5431 = vadd.f32 %v5400, %v5430
      %5432 = vdwg.mxu0
      %5433 = vmatpush.msra.mxu0 0.0
      %5434 = vmatpush.msra.mxu0 0.0
      %5435 = vmatpush.msra.mxu0 0.0
      %5436 = vmatpush.msra.mxu0 0.0
      %5437 = vmatpush.msra.mxu0 0.0
      %5438 = vmatpush.msra.mxu0 0.0
      %5439 = vmatpush.msra.mxu0 0.0
      %5440 = vmatpush.msra.mxu0 0.0
      %5441 = vmatpush.msra.mxu0 0.0
      %5442 = vmatpush.msra.mxu0 0.0
      %5443 = vmatpush.msra.mxu0 0.0
      %5444 = vmatpush.msra.mxu0 0.0
      %5445 = vmatpush.msra.mxu0 0.0
      %5446 = vmatpush.msra.mxu0 0.0
      %v5447 = vand.u32 %v5095, 4294901760
      %5448 = vmatpush.msra.mxu0 %v5447
      %v5449 = vand.u32 %v5091, 4294901760
      %5450 = vmatpush.msra.mxu0 %v5449
      %v5451 = vand.u32 %v5327, 4294901760
      %v5452 = vsub.f32 %v5327, %v5451
      %v5453 = vand.u32 %v5452, 4294901760
      %5454 = vmatmul.f32.gmra.mxu0 %v5453
      %v5455 = vpop.f32.mrf.mxu0
      %v5456 = vadd.f32 %v5426, %v5455
      %v5457 = vand.u32 %v5330, 4294901760
      %v5458 = vsub.f32 %v5330, %v5457
      %v5459 = vand.u32 %v5458, 4294901760
      %5460 = vmatmul.f32.gmra.mxu0 %v5459
      %v5461 = vpop.f32.mrf.mxu0
      %v5462 = vadd.f32 %v5431, %v5461
      %5463 = vdwg.mxu0
      %5464 = vmatpush.msra.mxu0 0.0
      %5465 = vmatpush.msra.mxu0 0.0
      %5466 = vmatpush.msra.mxu0 0.0
      %5467 = vmatpush.msra.mxu0 0.0
      %5468 = vmatpush.msra.mxu0 0.0
      %5469 = vmatpush.msra.mxu0 0.0
      %5470 = vmatpush.msra.mxu0 0.0
      %5471 = vmatpush.msra.mxu0 0.0
      %5472 = vmatpush.msra.mxu0 0.0
      %5473 = vmatpush.msra.mxu0 0.0
      %5474 = vmatpush.msra.mxu0 0.0
      %5475 = vmatpush.msra.mxu0 0.0
      %5476 = vmatpush.msra.mxu0 0.0
      %5477 = vmatpush.msra.mxu0 0.0
      %v5478 = vand.u32 %v5095, 4294901760
      %v5479 = vsub.f32 %v5095, %v5478
      %v5480 = vand.u32 %v5479, 4294901760
      %5481 = vmatpush.msra.mxu0 %v5480
      %v5482 = vand.u32 %v5091, 4294901760
      %v5483 = vsub.f32 %v5091, %v5482
      %v5484 = vand.u32 %v5483, 4294901760
      %5485 = vmatpush.msra.mxu0 %v5484
      %v5486 = vand.u32 %v5327, 4294901760
      %5487 = vmatmul.f32.gmra.mxu0 %v5486
      %v5488 = vpop.f32.mrf.mxu0
      %v5489 = vadd.f32 %v5456, %v5488
      %v5490 = vand.u32 %v5330, 4294901760
      %5491 = vmatmul.f32.gmra.mxu0 %v5490
      %v5492 = vpop.f32.mrf.mxu0
      %v5493 = vadd.f32 %v5462, %v5492
      %5494 = vdwg.mxu0
      %5495 = vmatpush.msra.mxu0 0.0
      %5496 = vmatpush.msra.mxu0 0.0
      %5497 = vmatpush.msra.mxu0 0.0
      %5498 = vmatpush.msra.mxu0 0.0
      %5499 = vmatpush.msra.mxu0 0.0
      %5500 = vmatpush.msra.mxu0 0.0
      %5501 = vmatpush.msra.mxu0 0.0
      %5502 = vmatpush.msra.mxu0 0.0
      %5503 = vmatpush.msra.mxu0 0.0
      %5504 = vmatpush.msra.mxu0 0.0
      %5505 = vmatpush.msra.mxu0 0.0
      %5506 = vmatpush.msra.mxu0 0.0
      %5507 = vmatpush.msra.mxu0 0.0
      %5508 = vmatpush.msra.mxu0 0.0
      %v5509 = vand.u32 %v5095, 4294901760
      %5510 = vmatpush.msra.mxu0 %v5509
      %v5511 = vand.u32 %v5091, 4294901760
      %5512 = vmatpush.msra.mxu0 %v5511
      %v5513 = vand.u32 %v5327, 4294901760
      %5514 = vmatmul.f32.gmra.mxu0 %v5513
      %v5515 = vpop.f32.mrf.mxu0
      %v5516 = vadd.f32 %v5489, %v5515
      %v5517 = vand.u32 %v5330, 4294901760
      %5518 = vmatmul.f32.gmra.mxu0 %v5517
      %v5519 = vpop.f32.mrf.mxu0
      %v5520 = vadd.f32 %v5493, %v5519
      %5521 = vdwg.mxu0
      %vm5522 = vcmp.ge.f32.partialorder %v5516, 0.0
      %vm5523 = vcmp.ge.f32.partialorder %v5520, 0.0
      %v5524 = vmul.f32 %v5516, 0.2
      %v5525 = vmul.f32 %v5520, 0.2
      %v5526 = vsel %vm5522, %v5516, %v5524
      %v5527 = vsel %vm5523, %v5520, %v5525
      %s5528 = scalar_lea.vmem %s10, 64
      %v5529 = vld [vmem:[%s5528] sm:$0xff]
      %v5530 = vld [vmem:[%s5528 + $0x8] sm:$0xff]
      %v5531 = vld [vmem:[%s5528 + $0x10] sm:$0xff]
      %v5532 = vld [vmem:[%s5528 + $0x18] sm:$0xff]
      %v5533 = vld [vmem:[%s5528 + $0x20] sm:$0xff]
      %v5534 = vld [vmem:[%s5528 + $0x28] sm:$0xff]
      %v5535 = vld [vmem:[%s5528 + $0x30] sm:$0xff]
      %v5536 = vld [vmem:[%s5528 + $0x38] sm:$0xff]
      %v5538 = vsel %vm1337, %v5526, 0
      %v5541 = vsel %vm1337, %v5527, 0
      %5543 = vmatpush.msra.mxu0 0.0
      %5544 = vmatpush.msra.mxu0 0.0
      %5545 = vmatpush.msra.mxu0 0.0
      %5546 = vmatpush.msra.mxu0 0.0
      %5547 = vmatpush.msra.mxu0 0.0
      %5548 = vmatpush.msra.mxu0 0.0
      %5549 = vmatpush.msra.mxu0 0.0
      %5550 = vmatpush.msra.mxu0 0.0
      %v5551 = vand.u32 %v5536, 4294901760
      %5552 = vmatpush.msra.mxu0 %v5551
      %v5553 = vand.u32 %v5535, 4294901760
      %5554 = vmatpush.msra.mxu0 %v5553
      %v5555 = vand.u32 %v5534, 4294901760
      %5556 = vmatpush.msra.mxu0 %v5555
      %v5557 = vand.u32 %v5533, 4294901760
      %5558 = vmatpush.msra.mxu0 %v5557
      %v5559 = vand.u32 %v5532, 4294901760
      %5560 = vmatpush.msra.mxu0 %v5559
      %v5561 = vand.u32 %v5531, 4294901760
      %5562 = vmatpush.msra.mxu0 %v5561
      %v5563 = vand.u32 %v5530, 4294901760
      %5564 = vmatpush.msra.mxu0 %v5563
      %v5565 = vand.u32 %v5529, 4294901760
      %5566 = vmatpush.msra.mxu0 %v5565
      %v5567 = vand.u32 %v5538, 4294901760
      %v5568 = vsub.f32 %v5538, %v5567
      %v5569 = vand.u32 %v5568, 4294901760
      %v5570 = vsub.f32 %v5568, %v5569
      %v5571 = vand.u32 %v5570, 4294901760
      %5572 = vmatmul.f32.gmra.mxu0 %v5571
      %v5573 = vpop.f32.mrf.mxu0
      %v5574 = vadd.f32 0.0, %v5573
      %v5575 = vand.u32 %v5541, 4294901760
      %v5576 = vsub.f32 %v5541, %v5575
      %v5577 = vand.u32 %v5576, 4294901760
      %v5578 = vsub.f32 %v5576, %v5577
      %v5579 = vand.u32 %v5578, 4294901760
      %5580 = vmatmul.f32.gmra.mxu0 %v5579
      %v5581 = vpop.f32.mrf.mxu0
      %v5582 = vadd.f32 0.0, %v5581
      %5583 = vdwg.mxu0
      %5584 = vmatpush.msra.mxu0 0.0
      %5585 = vmatpush.msra.mxu0 0.0
      %5586 = vmatpush.msra.mxu0 0.0
      %5587 = vmatpush.msra.mxu0 0.0
      %5588 = vmatpush.msra.mxu0 0.0
      %5589 = vmatpush.msra.mxu0 0.0
      %5590 = vmatpush.msra.mxu0 0.0
      %5591 = vmatpush.msra.mxu0 0.0
      %v5592 = vand.u32 %v5536, 4294901760
      %v5593 = vsub.f32 %v5536, %v5592
      %v5594 = vand.u32 %v5593, 4294901760
      %v5595 = vsub.f32 %v5593, %v5594
      %v5596 = vand.u32 %v5595, 4294901760
      %5597 = vmatpush.msra.mxu0 %v5596
      %v5598 = vand.u32 %v5535, 4294901760
      %v5599 = vsub.f32 %v5535, %v5598
      %v5600 = vand.u32 %v5599, 4294901760
      %v5601 = vsub.f32 %v5599, %v5600
      %v5602 = vand.u32 %v5601, 4294901760
      %5603 = vmatpush.msra.mxu0 %v5602
      %v5604 = vand.u32 %v5534, 4294901760
      %v5605 = vsub.f32 %v5534, %v5604
      %v5606 = vand.u32 %v5605, 4294901760
      %v5607 = vsub.f32 %v5605, %v5606
      %v5608 = vand.u32 %v5607, 4294901760
      %5609 = vmatpush.msra.mxu0 %v5608
      %v5610 = vand.u32 %v5533, 4294901760
      %v5611 = vsub.f32 %v5533, %v5610
      %v5612 = vand.u32 %v5611, 4294901760
      %v5613 = vsub.f32 %v5611, %v5612
      %v5614 = vand.u32 %v5613, 4294901760
      %5615 = vmatpush.msra.mxu0 %v5614
      %v5616 = vand.u32 %v5532, 4294901760
      %v5617 = vsub.f32 %v5532, %v5616
      %v5618 = vand.u32 %v5617, 4294901760
      %v5619 = vsub.f32 %v5617, %v5618
      %v5620 = vand.u32 %v5619, 4294901760
      %5621 = vmatpush.msra.mxu0 %v5620
      %v5622 = vand.u32 %v5531, 4294901760
      %v5623 = vsub.f32 %v5531, %v5622
      %v5624 = vand.u32 %v5623, 4294901760
      %v5625 = vsub.f32 %v5623, %v5624
      %v5626 = vand.u32 %v5625, 4294901760
      %5627 = vmatpush.msra.mxu0 %v5626
      %v5628 = vand.u32 %v5530, 4294901760
      %v5629 = vsub.f32 %v5530, %v5628
      %v5630 = vand.u32 %v5629, 4294901760
      %v5631 = vsub.f32 %v5629, %v5630
      %v5632 = vand.u32 %v5631, 4294901760
      %5633 = vmatpush.msra.mxu0 %v5632
      %v5634 = vand.u32 %v5529, 4294901760
      %v5635 = vsub.f32 %v5529, %v5634
      %v5636 = vand.u32 %v5635, 4294901760
      %v5637 = vsub.f32 %v5635, %v5636
      %v5638 = vand.u32 %v5637, 4294901760
      %5639 = vmatpush.msra.mxu0 %v5638
      %v5640 = vand.u32 %v5538, 4294901760
      %5641 = vmatmul.f32.gmra.mxu0 %v5640
      %v5642 = vpop.f32.mrf.mxu0
      %v5643 = vadd.f32 %v5574, %v5642
      %v5644 = vand.u32 %v5541, 4294901760
      %5645 = vmatmul.f32.gmra.mxu0 %v5644
      %v5646 = vpop.f32.mrf.mxu0
      %v5647 = vadd.f32 %v5582, %v5646
      %5648 = vdwg.mxu0
      %5649 = vmatpush.msra.mxu0 0.0
      %5650 = vmatpush.msra.mxu0 0.0
      %5651 = vmatpush.msra.mxu0 0.0
      %5652 = vmatpush.msra.mxu0 0.0
      %5653 = vmatpush.msra.mxu0 0.0
      %5654 = vmatpush.msra.mxu0 0.0
      %5655 = vmatpush.msra.mxu0 0.0
      %5656 = vmatpush.msra.mxu0 0.0
      %v5657 = vand.u32 %v5536, 4294901760
      %v5658 = vsub.f32 %v5536, %v5657
      %5659 = vmatpush.msra.mxu0 %v5658
      %v5660 = vand.u32 %v5535, 4294901760
      %v5661 = vsub.f32 %v5535, %v5660
      %5662 = vmatpush.msra.mxu0 %v5661
      %v5663 = vand.u32 %v5534, 4294901760
      %v5664 = vsub.f32 %v5534, %v5663
      %5665 = vmatpush.msra.mxu0 %v5664
      %v5666 = vand.u32 %v5533, 4294901760
      %v5667 = vsub.f32 %v5533, %v5666
      %5668 = vmatpush.msra.mxu0 %v5667
      %v5669 = vand.u32 %v5532, 4294901760
      %v5670 = vsub.f32 %v5532, %v5669
      %5671 = vmatpush.msra.mxu0 %v5670
      %v5672 = vand.u32 %v5531, 4294901760
      %v5673 = vsub.f32 %v5531, %v5672
      %5674 = vmatpush.msra.mxu0 %v5673
      %v5675 = vand.u32 %v5530, 4294901760
      %v5676 = vsub.f32 %v5530, %v5675
      %5677 = vmatpush.msra.mxu0 %v5676
      %v5678 = vand.u32 %v5529, 4294901760
      %v5679 = vsub.f32 %v5529, %v5678
      %5680 = vmatpush.msra.mxu0 %v5679
      %v5681 = vand.u32 %v5538, 4294901760
      %v5682 = vsub.f32 %v5538, %v5681
      %5683 = vmatmul.f32.gmra.mxu0 %v5682
      %v5684 = vpop.f32.mrf.mxu0
      %v5685 = vadd.f32 %v5643, %v5684
      %v5686 = vand.u32 %v5541, 4294901760
      %v5687 = vsub.f32 %v5541, %v5686
      %5688 = vmatmul.f32.gmra.mxu0 %v5687
      %v5689 = vpop.f32.mrf.mxu0
      %v5690 = vadd.f32 %v5647, %v5689
      %5691 = vdwg.mxu0
      %5692 = vmatpush.msra.mxu0 0.0
      %5693 = vmatpush.msra.mxu0 0.0
      %5694 = vmatpush.msra.mxu0 0.0
      %5695 = vmatpush.msra.mxu0 0.0
      %5696 = vmatpush.msra.mxu0 0.0
      %5697 = vmatpush.msra.mxu0 0.0
      %5698 = vmatpush.msra.mxu0 0.0
      %5699 = vmatpush.msra.mxu0 0.0
      %v5700 = vand.u32 %v5536, 4294901760
      %5701 = vmatpush.msra.mxu0 %v5700
      %v5702 = vand.u32 %v5535, 4294901760
      %5703 = vmatpush.msra.mxu0 %v5702
      %v5704 = vand.u32 %v5534, 4294901760
      %5705 = vmatpush.msra.mxu0 %v5704
      %v5706 = vand.u32 %v5533, 4294901760
      %5707 = vmatpush.msra.mxu0 %v5706
      %v5708 = vand.u32 %v5532, 4294901760
      %5709 = vmatpush.msra.mxu0 %v5708
      %v5710 = vand.u32 %v5531, 4294901760
      %5711 = vmatpush.msra.mxu0 %v5710
      %v5712 = vand.u32 %v5530, 4294901760
      %5713 = vmatpush.msra.mxu0 %v5712
      %v5714 = vand.u32 %v5529, 4294901760
      %5715 = vmatpush.msra.mxu0 %v5714
      %v5716 = vand.u32 %v5538, 4294901760
      %v5717 = vsub.f32 %v5538, %v5716
      %v5718 = vand.u32 %v5717, 4294901760
      %5719 = vmatmul.f32.gmra.mxu0 %v5718
      %v5720 = vpop.f32.mrf.mxu0
      %v5721 = vadd.f32 %v5685, %v5720
      %v5722 = vand.u32 %v5541, 4294901760
      %v5723 = vsub.f32 %v5541, %v5722
      %v5724 = vand.u32 %v5723, 4294901760
      %5725 = vmatmul.f32.gmra.mxu0 %v5724
      %v5726 = vpop.f32.mrf.mxu0
      %v5727 = vadd.f32 %v5690, %v5726
      %5728 = vdwg.mxu0
      %5729 = vmatpush.msra.mxu0 0.0
      %5730 = vmatpush.msra.mxu0 0.0
      %5731 = vmatpush.msra.mxu0 0.0
      %5732 = vmatpush.msra.mxu0 0.0
      %5733 = vmatpush.msra.mxu0 0.0
      %5734 = vmatpush.msra.mxu0 0.0
      %5735 = vmatpush.msra.mxu0 0.0
      %5736 = vmatpush.msra.mxu0 0.0
      %v5737 = vand.u32 %v5536, 4294901760
      %v5738 = vsub.f32 %v5536, %v5737
      %v5739 = vand.u32 %v5738, 4294901760
      %5740 = vmatpush.msra.mxu0 %v5739
      %v5741 = vand.u32 %v5535, 4294901760
      %v5742 = vsub.f32 %v5535, %v5741
      %v5743 = vand.u32 %v5742, 4294901760
      %5744 = vmatpush.msra.mxu0 %v5743
      %v5745 = vand.u32 %v5534, 4294901760
      %v5746 = vsub.f32 %v5534, %v5745
      %v5747 = vand.u32 %v5746, 4294901760
      %5748 = vmatpush.msra.mxu0 %v5747
      %v5749 = vand.u32 %v5533, 4294901760
      %v5750 = vsub.f32 %v5533, %v5749
      %v5751 = vand.u32 %v5750, 4294901760
      %5752 = vmatpush.msra.mxu0 %v5751
      %v5753 = vand.u32 %v5532, 4294901760
      %v5754 = vsub.f32 %v5532, %v5753
      %v5755 = vand.u32 %v5754, 4294901760
      %5756 = vmatpush.msra.mxu0 %v5755
      %v5757 = vand.u32 %v5531, 4294901760
      %v5758 = vsub.f32 %v5531, %v5757
      %v5759 = vand.u32 %v5758, 4294901760
      %5760 = vmatpush.msra.mxu0 %v5759
      %v5761 = vand.u32 %v5530, 4294901760
      %v5762 = vsub.f32 %v5530, %v5761
      %v5763 = vand.u32 %v5762, 4294901760
      %5764 = vmatpush.msra.mxu0 %v5763
      %v5765 = vand.u32 %v5529, 4294901760
      %v5766 = vsub.f32 %v5529, %v5765
      %v5767 = vand.u32 %v5766, 4294901760
      %5768 = vmatpush.msra.mxu0 %v5767
      %v5769 = vand.u32 %v5538, 4294901760
      %5770 = vmatmul.f32.gmra.mxu0 %v5769
      %v5771 = vpop.f32.mrf.mxu0
      %v5772 = vadd.f32 %v5721, %v5771
      %v5773 = vand.u32 %v5541, 4294901760
      %5774 = vmatmul.f32.gmra.mxu0 %v5773
      %v5775 = vpop.f32.mrf.mxu0
      %v5776 = vadd.f32 %v5727, %v5775
      %5777 = vdwg.mxu0
      %5778 = vmatpush.msra.mxu0 0.0
      %5779 = vmatpush.msra.mxu0 0.0
      %5780 = vmatpush.msra.mxu0 0.0
      %5781 = vmatpush.msra.mxu0 0.0
      %5782 = vmatpush.msra.mxu0 0.0
      %5783 = vmatpush.msra.mxu0 0.0
      %5784 = vmatpush.msra.mxu0 0.0
      %5785 = vmatpush.msra.mxu0 0.0
      %v5786 = vand.u32 %v5536, 4294901760
      %5787 = vmatpush.msra.mxu0 %v5786
      %v5788 = vand.u32 %v5535, 4294901760
      %5789 = vmatpush.msra.mxu0 %v5788
      %v5790 = vand.u32 %v5534, 4294901760
      %5791 = vmatpush.msra.mxu0 %v5790
      %v5792 = vand.u32 %v5533, 4294901760
      %5793 = vmatpush.msra.mxu0 %v5792
      %v5794 = vand.u32 %v5532, 4294901760
      %5795 = vmatpush.msra.mxu0 %v5794
      %v5796 = vand.u32 %v5531, 4294901760
      %5797 = vmatpush.msra.mxu0 %v5796
      %v5798 = vand.u32 %v5530, 4294901760
      %5799 = vmatpush.msra.mxu0 %v5798
      %v5800 = vand.u32 %v5529, 4294901760
      %5801 = vmatpush.msra.mxu0 %v5800
      %v5802 = vand.u32 %v5538, 4294901760
      %5803 = vmatmul.f32.gmra.mxu0 %v5802
      %v5804 = vpop.f32.mrf.mxu0
      %v5805 = vadd.f32 %v5772, %v5804
      %v5806 = vand.u32 %v5541, 4294901760
      %5807 = vmatmul.f32.gmra.mxu0 %v5806
      %v5808 = vpop.f32.mrf.mxu0
      %v5809 = vadd.f32 %v5776, %v5808
      %5810 = vdwg.mxu0
      %v5812 = vsel %vm1337, %v4894, 0
      %v5815 = vsel %vm1337, %v4895, 0
      %5817 = vmatpush.msra.mxu0 0.0
      %5818 = vmatpush.msra.mxu0 0.0
      %5819 = vmatpush.msra.mxu0 0.0
      %5820 = vmatpush.msra.mxu0 0.0
      %5821 = vmatpush.msra.mxu0 0.0
      %5822 = vmatpush.msra.mxu0 0.0
      %5823 = vmatpush.msra.mxu0 0.0
      %5824 = vmatpush.msra.mxu0 0.0
      %v5825 = vand.u32 %v4903, 4294901760
      %5826 = vmatpush.msra.mxu0 %v5825
      %v5827 = vand.u32 %v4902, 4294901760
      %5828 = vmatpush.msra.mxu0 %v5827
      %v5829 = vand.u32 %v4901, 4294901760
      %5830 = vmatpush.msra.mxu0 %v5829
      %v5831 = vand.u32 %v4900, 4294901760
      %5832 = vmatpush.msra.mxu0 %v5831
      %v5833 = vand.u32 %v4899, 4294901760
      %5834 = vmatpush.msra.mxu0 %v5833
      %v5835 = vand.u32 %v4898, 4294901760
      %5836 = vmatpush.msra.mxu0 %v5835
      %v5837 = vand.u32 %v4897, 4294901760
      %5838 = vmatpush.msra.mxu0 %v5837
      %v5839 = vand.u32 %v4896, 4294901760
      %5840 = vmatpush.msra.mxu0 %v5839
      %v5841 = vand.u32 %v5812, 4294901760
      %v5842 = vsub.f32 %v5812, %v5841
      %v5843 = vand.u32 %v5842, 4294901760
      %v5844 = vsub.f32 %v5842, %v5843
      %v5845 = vand.u32 %v5844, 4294901760
      %5846 = vmatmul.f32.gmra.mxu0 %v5845
      %v5847 = vpop.f32.mrf.mxu0
      %v5848 = vadd.f32 %v5805, %v5847
      %v5849 = vand.u32 %v5815, 4294901760
      %v5850 = vsub.f32 %v5815, %v5849
      %v5851 = vand.u32 %v5850, 4294901760
      %v5852 = vsub.f32 %v5850, %v5851
      %v5853 = vand.u32 %v5852, 4294901760
      %5854 = vmatmul.f32.gmra.mxu0 %v5853
      %v5855 = vpop.f32.mrf.mxu0
      %v5856 = vadd.f32 %v5809, %v5855
      %5857 = vdwg.mxu0
      %5858 = vmatpush.msra.mxu0 0.0
      %5859 = vmatpush.msra.mxu0 0.0
      %5860 = vmatpush.msra.mxu0 0.0
      %5861 = vmatpush.msra.mxu0 0.0
      %5862 = vmatpush.msra.mxu0 0.0
      %5863 = vmatpush.msra.mxu0 0.0
      %5864 = vmatpush.msra.mxu0 0.0
      %5865 = vmatpush.msra.mxu0 0.0
      %v5866 = vand.u32 %v4903, 4294901760
      %v5867 = vsub.f32 %v4903, %v5866
      %v5868 = vand.u32 %v5867, 4294901760
      %v5869 = vsub.f32 %v5867, %v5868
      %v5870 = vand.u32 %v5869, 4294901760
      %5871 = vmatpush.msra.mxu0 %v5870
      %v5872 = vand.u32 %v4902, 4294901760
      %v5873 = vsub.f32 %v4902, %v5872
      %v5874 = vand.u32 %v5873, 4294901760
      %v5875 = vsub.f32 %v5873, %v5874
      %v5876 = vand.u32 %v5875, 4294901760
      %5877 = vmatpush.msra.mxu0 %v5876
      %v5878 = vand.u32 %v4901, 4294901760
      %v5879 = vsub.f32 %v4901, %v5878
      %v5880 = vand.u32 %v5879, 4294901760
      %v5881 = vsub.f32 %v5879, %v5880
      %v5882 = vand.u32 %v5881, 4294901760
      %5883 = vmatpush.msra.mxu0 %v5882
      %v5884 = vand.u32 %v4900, 4294901760
      %v5885 = vsub.f32 %v4900, %v5884
      %v5886 = vand.u32 %v5885, 4294901760
      %v5887 = vsub.f32 %v5885, %v5886
      %v5888 = vand.u32 %v5887, 4294901760
      %5889 = vmatpush.msra.mxu0 %v5888
      %v5890 = vand.u32 %v4899, 4294901760
      %v5891 = vsub.f32 %v4899, %v5890
      %v5892 = vand.u32 %v5891, 4294901760
      %v5893 = vsub.f32 %v5891, %v5892
      %v5894 = vand.u32 %v5893, 4294901760
      %5895 = vmatpush.msra.mxu0 %v5894
      %v5896 = vand.u32 %v4898, 4294901760
      %v5897 = vsub.f32 %v4898, %v5896
      %v5898 = vand.u32 %v5897, 4294901760
      %v5899 = vsub.f32 %v5897, %v5898
      %v5900 = vand.u32 %v5899, 4294901760
      %5901 = vmatpush.msra.mxu0 %v5900
      %v5902 = vand.u32 %v4897, 4294901760
      %v5903 = vsub.f32 %v4897, %v5902
      %v5904 = vand.u32 %v5903, 4294901760
      %v5905 = vsub.f32 %v5903, %v5904
      %v5906 = vand.u32 %v5905, 4294901760
      %5907 = vmatpush.msra.mxu0 %v5906
      %v5908 = vand.u32 %v4896, 4294901760
      %v5909 = vsub.f32 %v4896, %v5908
      %v5910 = vand.u32 %v5909, 4294901760
      %v5911 = vsub.f32 %v5909, %v5910
      %v5912 = vand.u32 %v5911, 4294901760
      %5913 = vmatpush.msra.mxu0 %v5912
      %v5914 = vand.u32 %v5812, 4294901760
      %5915 = vmatmul.f32.gmra.mxu0 %v5914
      %v5916 = vpop.f32.mrf.mxu0
      %v5917 = vadd.f32 %v5848, %v5916
      %v5918 = vand.u32 %v5815, 4294901760
      %5919 = vmatmul.f32.gmra.mxu0 %v5918
      %v5920 = vpop.f32.mrf.mxu0
      %v5921 = vadd.f32 %v5856, %v5920
      %5922 = vdwg.mxu0
      %5923 = vmatpush.msra.mxu0 0.0
      %5924 = vmatpush.msra.mxu0 0.0
      %5925 = vmatpush.msra.mxu0 0.0
      %5926 = vmatpush.msra.mxu0 0.0
      %5927 = vmatpush.msra.mxu0 0.0
      %5928 = vmatpush.msra.mxu0 0.0
      %5929 = vmatpush.msra.mxu0 0.0
      %5930 = vmatpush.msra.mxu0 0.0
      %v5931 = vand.u32 %v4903, 4294901760
      %v5932 = vsub.f32 %v4903, %v5931
      %5933 = vmatpush.msra.mxu0 %v5932
      %v5934 = vand.u32 %v4902, 4294901760
      %v5935 = vsub.f32 %v4902, %v5934
      %5936 = vmatpush.msra.mxu0 %v5935
      %v5937 = vand.u32 %v4901, 4294901760
      %v5938 = vsub.f32 %v4901, %v5937
      %5939 = vmatpush.msra.mxu0 %v5938
      %v5940 = vand.u32 %v4900, 4294901760
      %v5941 = vsub.f32 %v4900, %v5940
      %5942 = vmatpush.msra.mxu0 %v5941
      %v5943 = vand.u32 %v4899, 4294901760
      %v5944 = vsub.f32 %v4899, %v5943
      %5945 = vmatpush.msra.mxu0 %v5944
      %v5946 = vand.u32 %v4898, 4294901760
      %v5947 = vsub.f32 %v4898, %v5946
      %5948 = vmatpush.msra.mxu0 %v5947
      %v5949 = vand.u32 %v4897, 4294901760
      %v5950 = vsub.f32 %v4897, %v5949
      %5951 = vmatpush.msra.mxu0 %v5950
      %v5952 = vand.u32 %v4896, 4294901760
      %v5953 = vsub.f32 %v4896, %v5952
      %5954 = vmatpush.msra.mxu0 %v5953
      %v5955 = vand.u32 %v5812, 4294901760
      %v5956 = vsub.f32 %v5812, %v5955
      %5957 = vmatmul.f32.gmra.mxu0 %v5956
      %v5958 = vpop.f32.mrf.mxu0
      %v5959 = vadd.f32 %v5917, %v5958
      %v5960 = vand.u32 %v5815, 4294901760
      %v5961 = vsub.f32 %v5815, %v5960
      %5962 = vmatmul.f32.gmra.mxu0 %v5961
      %v5963 = vpop.f32.mrf.mxu0
      %v5964 = vadd.f32 %v5921, %v5963
      %5965 = vdwg.mxu0
      %5966 = vmatpush.msra.mxu0 0.0
      %5967 = vmatpush.msra.mxu0 0.0
      %5968 = vmatpush.msra.mxu0 0.0
      %5969 = vmatpush.msra.mxu0 0.0
      %5970 = vmatpush.msra.mxu0 0.0
      %5971 = vmatpush.msra.mxu0 0.0
      %5972 = vmatpush.msra.mxu0 0.0
      %5973 = vmatpush.msra.mxu0 0.0
      %v5974 = vand.u32 %v4903, 4294901760
      %5975 = vmatpush.msra.mxu0 %v5974
      %v5976 = vand.u32 %v4902, 4294901760
      %5977 = vmatpush.msra.mxu0 %v5976
      %v5978 = vand.u32 %v4901, 4294901760
      %5979 = vmatpush.msra.mxu0 %v5978
      %v5980 = vand.u32 %v4900, 4294901760
      %5981 = vmatpush.msra.mxu0 %v5980
      %v5982 = vand.u32 %v4899, 4294901760
      %5983 = vmatpush.msra.mxu0 %v5982
      %v5984 = vand.u32 %v4898, 4294901760
      %5985 = vmatpush.msra.mxu0 %v5984
      %v5986 = vand.u32 %v4897, 4294901760
      %5987 = vmatpush.msra.mxu0 %v5986
      %v5988 = vand.u32 %v4896, 4294901760
      %5989 = vmatpush.msra.mxu0 %v5988
      %v5990 = vand.u32 %v5812, 4294901760
      %v5991 = vsub.f32 %v5812, %v5990
      %v5992 = vand.u32 %v5991, 4294901760
      %5993 = vmatmul.f32.gmra.mxu0 %v5992
      %v5994 = vpop.f32.mrf.mxu0
      %v5995 = vadd.f32 %v5959, %v5994
      %v5996 = vand.u32 %v5815, 4294901760
      %v5997 = vsub.f32 %v5815, %v5996
      %v5998 = vand.u32 %v5997, 4294901760
      %5999 = vmatmul.f32.gmra.mxu0 %v5998
      %v6000 = vpop.f32.mrf.mxu0
      %v6001 = vadd.f32 %v5964, %v6000
      %6002 = vdwg.mxu0
      %6003 = vmatpush.msra.mxu0 0.0
      %6004 = vmatpush.msra.mxu0 0.0
      %6005 = vmatpush.msra.mxu0 0.0
      %6006 = vmatpush.msra.mxu0 0.0
      %6007 = vmatpush.msra.mxu0 0.0
      %6008 = vmatpush.msra.mxu0 0.0
      %6009 = vmatpush.msra.mxu0 0.0
      %6010 = vmatpush.msra.mxu0 0.0
      %v6011 = vand.u32 %v4903, 4294901760
      %v6012 = vsub.f32 %v4903, %v6011
      %v6013 = vand.u32 %v6012, 4294901760
      %6014 = vmatpush.msra.mxu0 %v6013
      %v6015 = vand.u32 %v4902, 4294901760
      %v6016 = vsub.f32 %v4902, %v6015
      %v6017 = vand.u32 %v6016, 4294901760
      %6018 = vmatpush.msra.mxu0 %v6017
      %v6019 = vand.u32 %v4901, 4294901760
      %v6020 = vsub.f32 %v4901, %v6019
      %v6021 = vand.u32 %v6020, 4294901760
      %6022 = vmatpush.msra.mxu0 %v6021
      %v6023 = vand.u32 %v4900, 4294901760
      %v6024 = vsub.f32 %v4900, %v6023
      %v6025 = vand.u32 %v6024, 4294901760
      %6026 = vmatpush.msra.mxu0 %v6025
      %v6027 = vand.u32 %v4899, 4294901760
      %v6028 = vsub.f32 %v4899, %v6027
      %v6029 = vand.u32 %v6028, 4294901760
      %6030 = vmatpush.msra.mxu0 %v6029
      %v6031 = vand.u32 %v4898, 4294901760
      %v6032 = vsub.f32 %v4898, %v6031
      %v6033 = vand.u32 %v6032, 4294901760
      %6034 = vmatpush.msra.mxu0 %v6033
      %v6035 = vand.u32 %v4897, 4294901760
      %v6036 = vsub.f32 %v4897, %v6035
      %v6037 = vand.u32 %v6036, 4294901760
      %6038 = vmatpush.msra.mxu0 %v6037
      %v6039 = vand.u32 %v4896, 4294901760
      %v6040 = vsub.f32 %v4896, %v6039
      %v6041 = vand.u32 %v6040, 4294901760
      %6042 = vmatpush.msra.mxu0 %v6041
      %v6043 = vand.u32 %v5812, 4294901760
      %6044 = vmatmul.f32.gmra.mxu0 %v6043
      %v6045 = vpop.f32.mrf.mxu0
      %v6046 = vadd.f32 %v5995, %v6045
      %v6047 = vand.u32 %v5815, 4294901760
      %6048 = vmatmul.f32.gmra.mxu0 %v6047
      %v6049 = vpop.f32.mrf.mxu0
      %v6050 = vadd.f32 %v6001, %v6049
      %6051 = vdwg.mxu0
      %6052 = vmatpush.msra.mxu0 0.0
      %6053 = vmatpush.msra.mxu0 0.0
      %6054 = vmatpush.msra.mxu0 0.0
      %6055 = vmatpush.msra.mxu0 0.0
      %6056 = vmatpush.msra.mxu0 0.0
      %6057 = vmatpush.msra.mxu0 0.0
      %6058 = vmatpush.msra.mxu0 0.0
      %6059 = vmatpush.msra.mxu0 0.0
      %v6060 = vand.u32 %v4903, 4294901760
      %6061 = vmatpush.msra.mxu0 %v6060
      %v6062 = vand.u32 %v4902, 4294901760
      %6063 = vmatpush.msra.mxu0 %v6062
      %v6064 = vand.u32 %v4901, 4294901760
      %6065 = vmatpush.msra.mxu0 %v6064
      %v6066 = vand.u32 %v4900, 4294901760
      %6067 = vmatpush.msra.mxu0 %v6066
      %v6068 = vand.u32 %v4899, 4294901760
      %6069 = vmatpush.msra.mxu0 %v6068
      %v6070 = vand.u32 %v4898, 4294901760
      %6071 = vmatpush.msra.mxu0 %v6070
      %v6072 = vand.u32 %v4897, 4294901760
      %6073 = vmatpush.msra.mxu0 %v6072
      %v6074 = vand.u32 %v4896, 4294901760
      %6075 = vmatpush.msra.mxu0 %v6074
      %v6076 = vand.u32 %v5812, 4294901760
      %6077 = vmatmul.f32.gmra.mxu0 %v6076
      %v6078 = vpop.f32.mrf.mxu0
      %v6079 = vadd.f32 %v6046, %v6078
      %v6080 = vand.u32 %v5815, 4294901760
      %6081 = vmatmul.f32.gmra.mxu0 %v6080
      %v6082 = vpop.f32.mrf.mxu0
      %v6083 = vadd.f32 %v6050, %v6082
      %6084 = vdwg.mxu0
      %s6085 = scalar_lea.vmem %s8, 32
      %v6086 = vld [vmem:[%s6085] sm:$0xff]
      %v6087 = vld [vmem:[%s6085 + $0x8] sm:$0xff]
      %6088 = vmatpush.msra.mxu0 0.0
      %6089 = vmatpush.msra.mxu0 0.0
      %6090 = vmatpush.msra.mxu0 0.0
      %6091 = vmatpush.msra.mxu0 0.0
      %6092 = vmatpush.msra.mxu0 0.0
      %6093 = vmatpush.msra.mxu0 0.0
      %6094 = vmatpush.msra.mxu0 0.0
      %6095 = vmatpush.msra.mxu0 0.0
      %6096 = vmatpush.msra.mxu0 0.0
      %6097 = vmatpush.msra.mxu0 0.0
      %6098 = vmatpush.msra.mxu0 0.0
      %6099 = vmatpush.msra.mxu0 0.0
      %6100 = vmatpush.msra.mxu0 0.0
      %6101 = vmatpush.msra.mxu0 0.0
      %v6102 = vand.u32 %v6087, 4294901760
      %6103 = vmatpush.msra.mxu0 %v6102
      %v6104 = vand.u32 %v6086, 4294901760
      %6105 = vmatpush.msra.mxu0 %v6104
      %v6106 = vand.u32 %v4271, 4294901760
      %v6107 = vsub.f32 %v4271, %v6106
      %v6108 = vand.u32 %v6107, 4294901760
      %v6109 = vsub.f32 %v6107, %v6108
      %v6110 = vand.u32 %v6109, 4294901760
      %6111 = vmatmul.f32.gmra.mxu0 %v6110
      %v6112 = vpop.f32.mrf.mxu0
      %v6113 = vadd.f32 0.0, %v6112
      %v6114 = vand.u32 %v4274, 4294901760
      %v6115 = vsub.f32 %v4274, %v6114
      %v6116 = vand.u32 %v6115, 4294901760
      %v6117 = vsub.f32 %v6115, %v6116
      %v6118 = vand.u32 %v6117, 4294901760
      %6119 = vmatmul.f32.gmra.mxu0 %v6118
      %v6120 = vpop.f32.mrf.mxu0
      %v6121 = vadd.f32 0.0, %v6120
      %6122 = vdwg.mxu0
      %6123 = vmatpush.msra.mxu0 0.0
      %6124 = vmatpush.msra.mxu0 0.0
      %6125 = vmatpush.msra.mxu0 0.0
      %6126 = vmatpush.msra.mxu0 0.0
      %6127 = vmatpush.msra.mxu0 0.0
      %6128 = vmatpush.msra.mxu0 0.0
      %6129 = vmatpush.msra.mxu0 0.0
      %6130 = vmatpush.msra.mxu0 0.0
      %6131 = vmatpush.msra.mxu0 0.0
      %6132 = vmatpush.msra.mxu0 0.0
      %6133 = vmatpush.msra.mxu0 0.0
      %6134 = vmatpush.msra.mxu0 0.0
      %6135 = vmatpush.msra.mxu0 0.0
      %6136 = vmatpush.msra.mxu0 0.0
      %v6137 = vand.u32 %v6087, 4294901760
      %v6138 = vsub.f32 %v6087, %v6137
      %v6139 = vand.u32 %v6138, 4294901760
      %v6140 = vsub.f32 %v6138, %v6139
      %v6141 = vand.u32 %v6140, 4294901760
      %6142 = vmatpush.msra.mxu0 %v6141
      %v6143 = vand.u32 %v6086, 4294901760
      %v6144 = vsub.f32 %v6086, %v6143
      %v6145 = vand.u32 %v6144, 4294901760
      %v6146 = vsub.f32 %v6144, %v6145
      %v6147 = vand.u32 %v6146, 4294901760
      %6148 = vmatpush.msra.mxu0 %v6147
      %v6149 = vand.u32 %v4271, 4294901760
      %6150 = vmatmul.f32.gmra.mxu0 %v6149
      %v6151 = vpop.f32.mrf.mxu0
      %v6152 = vadd.f32 %v6113, %v6151
      %v6153 = vand.u32 %v4274, 4294901760
      %6154 = vmatmul.f32.gmra.mxu0 %v6153
      %v6155 = vpop.f32.mrf.mxu0
      %v6156 = vadd.f32 %v6121, %v6155
      %6157 = vdwg.mxu0
      %6158 = vmatpush.msra.mxu0 0.0
      %6159 = vmatpush.msra.mxu0 0.0
      %6160 = vmatpush.msra.mxu0 0.0
      %6161 = vmatpush.msra.mxu0 0.0
      %6162 = vmatpush.msra.mxu0 0.0
      %6163 = vmatpush.msra.mxu0 0.0
      %6164 = vmatpush.msra.mxu0 0.0
      %6165 = vmatpush.msra.mxu0 0.0
      %6166 = vmatpush.msra.mxu0 0.0
      %6167 = vmatpush.msra.mxu0 0.0
      %6168 = vmatpush.msra.mxu0 0.0
      %6169 = vmatpush.msra.mxu0 0.0
      %6170 = vmatpush.msra.mxu0 0.0
      %6171 = vmatpush.msra.mxu0 0.0
      %v6172 = vand.u32 %v6087, 4294901760
      %v6173 = vsub.f32 %v6087, %v6172
      %6174 = vmatpush.msra.mxu0 %v6173
      %v6175 = vand.u32 %v6086, 4294901760
      %v6176 = vsub.f32 %v6086, %v6175
      %6177 = vmatpush.msra.mxu0 %v6176
      %v6178 = vand.u32 %v4271, 4294901760
      %v6179 = vsub.f32 %v4271, %v6178
      %6180 = vmatmul.f32.gmra.mxu0 %v6179
      %v6181 = vpop.f32.mrf.mxu0
      %v6182 = vadd.f32 %v6152, %v6181
      %v6183 = vand.u32 %v4274, 4294901760
      %v6184 = vsub.f32 %v4274, %v6183
      %6185 = vmatmul.f32.gmra.mxu0 %v6184
      %v6186 = vpop.f32.mrf.mxu0
      %v6187 = vadd.f32 %v6156, %v6186
      %6188 = vdwg.mxu0
      %6189 = vmatpush.msra.mxu0 0.0
      %6190 = vmatpush.msra.mxu0 0.0
      %6191 = vmatpush.msra.mxu0 0.0
      %6192 = vmatpush.msra.mxu0 0.0
      %6193 = vmatpush.msra.mxu0 0.0
      %6194 = vmatpush.msra.mxu0 0.0
      %6195 = vmatpush.msra.mxu0 0.0
      %6196 = vmatpush.msra.mxu0 0.0
      %6197 = vmatpush.msra.mxu0 0.0
      %6198 = vmatpush.msra.mxu0 0.0
      %6199 = vmatpush.msra.mxu0 0.0
      %6200 = vmatpush.msra.mxu0 0.0
      %6201 = vmatpush.msra.mxu0 0.0
      %6202 = vmatpush.msra.mxu0 0.0
      %v6203 = vand.u32 %v6087, 4294901760
      %6204 = vmatpush.msra.mxu0 %v6203
      %v6205 = vand.u32 %v6086, 4294901760
      %6206 = vmatpush.msra.mxu0 %v6205
      %v6207 = vand.u32 %v4271, 4294901760
      %v6208 = vsub.f32 %v4271, %v6207
      %v6209 = vand.u32 %v6208, 4294901760
      %6210 = vmatmul.f32.gmra.mxu0 %v6209
      %v6211 = vpop.f32.mrf.mxu0
      %v6212 = vadd.f32 %v6182, %v6211
      %v6213 = vand.u32 %v4274, 4294901760
      %v6214 = vsub.f32 %v4274, %v6213
      %v6215 = vand.u32 %v6214, 4294901760
      %6216 = vmatmul.f32.gmra.mxu0 %v6215
      %v6217 = vpop.f32.mrf.mxu0
      %v6218 = vadd.f32 %v6187, %v6217
      %6219 = vdwg.mxu0
      %6220 = vmatpush.msra.mxu0 0.0
      %6221 = vmatpush.msra.mxu0 0.0
      %6222 = vmatpush.msra.mxu0 0.0
      %6223 = vmatpush.msra.mxu0 0.0
      %6224 = vmatpush.msra.mxu0 0.0
      %6225 = vmatpush.msra.mxu0 0.0
      %6226 = vmatpush.msra.mxu0 0.0
      %6227 = vmatpush.msra.mxu0 0.0
      %6228 = vmatpush.msra.mxu0 0.0
      %6229 = vmatpush.msra.mxu0 0.0
      %6230 = vmatpush.msra.mxu0 0.0
      %6231 = vmatpush.msra.mxu0 0.0
      %6232 = vmatpush.msra.mxu0 0.0
      %6233 = vmatpush.msra.mxu0 0.0
      %v6234 = vand.u32 %v6087, 4294901760
      %v6235 = vsub.f32 %v6087, %v6234
      %v6236 = vand.u32 %v6235, 4294901760
      %6237 = vmatpush.msra.mxu0 %v6236
      %v6238 = vand.u32 %v6086, 4294901760
      %v6239 = vsub.f32 %v6086, %v6238
      %v6240 = vand.u32 %v6239, 4294901760
      %6241 = vmatpush.msra.mxu0 %v6240
      %v6242 = vand.u32 %v4271, 4294901760
      %6243 = vmatmul.f32.gmra.mxu0 %v6242
      %v6244 = vpop.f32.mrf.mxu0
      %v6245 = vadd.f32 %v6212, %v6244
      %v6246 = vand.u32 %v4274, 4294901760
      %6247 = vmatmul.f32.gmra.mxu0 %v6246
      %v6248 = vpop.f32.mrf.mxu0
      %v6249 = vadd.f32 %v6218, %v6248
      %6250 = vdwg.mxu0
      %6251 = vmatpush.msra.mxu0 0.0
      %6252 = vmatpush.msra.mxu0 0.0
      %6253 = vmatpush.msra.mxu0 0.0
      %6254 = vmatpush.msra.mxu0 0.0
      %6255 = vmatpush.msra.mxu0 0.0
      %6256 = vmatpush.msra.mxu0 0.0
      %6257 = vmatpush.msra.mxu0 0.0
      %6258 = vmatpush.msra.mxu0 0.0
      %6259 = vmatpush.msra.mxu0 0.0
      %6260 = vmatpush.msra.mxu0 0.0
      %6261 = vmatpush.msra.mxu0 0.0
      %6262 = vmatpush.msra.mxu0 0.0
      %6263 = vmatpush.msra.mxu0 0.0
      %6264 = vmatpush.msra.mxu0 0.0
      %v6265 = vand.u32 %v6087, 4294901760
      %6266 = vmatpush.msra.mxu0 %v6265
      %v6267 = vand.u32 %v6086, 4294901760
      %6268 = vmatpush.msra.mxu0 %v6267
      %v6269 = vand.u32 %v4271, 4294901760
      %6270 = vmatmul.f32.gmra.mxu0 %v6269
      %v6271 = vpop.f32.mrf.mxu0
      %v6272 = vadd.f32 %v6245, %v6271
      %v6273 = vand.u32 %v4274, 4294901760
      %6274 = vmatmul.f32.gmra.mxu0 %v6273
      %v6275 = vpop.f32.mrf.mxu0
      %v6276 = vadd.f32 %v6249, %v6275
      %6277 = vdwg.mxu0
      %v6279 = vsel %vm1337, %v6272, 0
      %v6282 = vsel %vm1337, %v6276, 0
      %6284 = vmatpush.xpose.msra.mxu0 0.0
      %6285 = vmatpush.xpose.msra.mxu0 0.0
      %6286 = vmatpush.xpose.msra.mxu0 0.0
      %6287 = vmatpush.xpose.msra.mxu0 0.0
      %6288 = vmatpush.xpose.msra.mxu0 0.0
      %6289 = vmatpush.xpose.msra.mxu0 0.0
      %6290 = vmatpush.xpose.msra.mxu0 0.0
      %6291 = vmatpush.xpose.msra.mxu0 0.0
      %6292 = vmatpush.xpose.msra.mxu0 0.0
      %6293 = vmatpush.xpose.msra.mxu0 0.0
      %6294 = vmatpush.xpose.msra.mxu0 0.0
      %6295 = vmatpush.xpose.msra.mxu0 0.0
      %6296 = vmatpush.xpose.msra.mxu0 0.0
      %6297 = vmatpush.xpose.msra.mxu0 0.0
      %v6298 = vand.u32 %v6282, 4294901760
      %6299 = vmatpush.xpose.msra.mxu0 %v6298
      %v6300 = vand.u32 %v6279, 4294901760
      %6301 = vmatpush.xpose.msra.mxu0 %v6300
      %v6302 = vand.u32 %v6279, 4294901760
      %v6303 = vsub.f32 %v6279, %v6302
      %v6304 = vand.u32 %v6303, 4294901760
      %v6305 = vsub.f32 %v6303, %v6304
      %v6306 = vand.u32 %v6305, 4294901760
      %6307 = vmatmul.f32.gmra.mxu0 %v6306
      %v6308 = vpop.f32.mrf.mxu0
      %v6309 = vadd.f32 0.0, %v6308
      %v6310 = vand.u32 %v6282, 4294901760
      %v6311 = vsub.f32 %v6282, %v6310
      %v6312 = vand.u32 %v6311, 4294901760
      %v6313 = vsub.f32 %v6311, %v6312
      %v6314 = vand.u32 %v6313, 4294901760
      %6315 = vmatmul.f32.gmra.mxu0 %v6314
      %v6316 = vpop.f32.mrf.mxu0
      %v6317 = vadd.f32 0.0, %v6316
      %6318 = vdwg.mxu0
      %6319 = vmatpush.xpose.msra.mxu0 0.0
      %6320 = vmatpush.xpose.msra.mxu0 0.0
      %6321 = vmatpush.xpose.msra.mxu0 0.0
      %6322 = vmatpush.xpose.msra.mxu0 0.0
      %6323 = vmatpush.xpose.msra.mxu0 0.0
      %6324 = vmatpush.xpose.msra.mxu0 0.0
      %6325 = vmatpush.xpose.msra.mxu0 0.0
      %6326 = vmatpush.xpose.msra.mxu0 0.0
      %6327 = vmatpush.xpose.msra.mxu0 0.0
      %6328 = vmatpush.xpose.msra.mxu0 0.0
      %6329 = vmatpush.xpose.msra.mxu0 0.0
      %6330 = vmatpush.xpose.msra.mxu0 0.0
      %6331 = vmatpush.xpose.msra.mxu0 0.0
      %6332 = vmatpush.xpose.msra.mxu0 0.0
      %v6333 = vand.u32 %v6282, 4294901760
      %v6334 = vsub.f32 %v6282, %v6333
      %v6335 = vand.u32 %v6334, 4294901760
      %v6336 = vsub.f32 %v6334, %v6335
      %v6337 = vand.u32 %v6336, 4294901760
      %6338 = vmatpush.xpose.msra.mxu0 %v6337
      %v6339 = vand.u32 %v6279, 4294901760
      %v6340 = vsub.f32 %v6279, %v6339
      %v6341 = vand.u32 %v6340, 4294901760
      %v6342 = vsub.f32 %v6340, %v6341
      %v6343 = vand.u32 %v6342, 4294901760
      %6344 = vmatpush.xpose.msra.mxu0 %v6343
      %v6345 = vand.u32 %v6279, 4294901760
      %6346 = vmatmul.f32.gmra.mxu0 %v6345
      %v6347 = vpop.f32.mrf.mxu0
      %v6348 = vadd.f32 %v6309, %v6347
      %v6349 = vand.u32 %v6282, 4294901760
      %6350 = vmatmul.f32.gmra.mxu0 %v6349
      %v6351 = vpop.f32.mrf.mxu0
      %v6352 = vadd.f32 %v6317, %v6351
      %6353 = vdwg.mxu0
      %6354 = vmatpush.xpose.msra.mxu0 0.0
      %6355 = vmatpush.xpose.msra.mxu0 0.0
      %6356 = vmatpush.xpose.msra.mxu0 0.0
      %6357 = vmatpush.xpose.msra.mxu0 0.0
      %6358 = vmatpush.xpose.msra.mxu0 0.0
      %6359 = vmatpush.xpose.msra.mxu0 0.0
      %6360 = vmatpush.xpose.msra.mxu0 0.0
      %6361 = vmatpush.xpose.msra.mxu0 0.0
      %6362 = vmatpush.xpose.msra.mxu0 0.0
      %6363 = vmatpush.xpose.msra.mxu0 0.0
      %6364 = vmatpush.xpose.msra.mxu0 0.0
      %6365 = vmatpush.xpose.msra.mxu0 0.0
      %6366 = vmatpush.xpose.msra.mxu0 0.0
      %6367 = vmatpush.xpose.msra.mxu0 0.0
      %v6368 = vand.u32 %v6282, 4294901760
      %v6369 = vsub.f32 %v6282, %v6368
      %6370 = vmatpush.xpose.msra.mxu0 %v6369
      %v6371 = vand.u32 %v6279, 4294901760
      %v6372 = vsub.f32 %v6279, %v6371
      %6373 = vmatpush.xpose.msra.mxu0 %v6372
      %v6374 = vand.u32 %v6279, 4294901760
      %v6375 = vsub.f32 %v6279, %v6374
      %6376 = vmatmul.f32.gmra.mxu0 %v6375
      %v6377 = vpop.f32.mrf.mxu0
      %v6378 = vadd.f32 %v6348, %v6377
      %v6379 = vand.u32 %v6282, 4294901760
      %v6380 = vsub.f32 %v6282, %v6379
      %6381 = vmatmul.f32.gmra.mxu0 %v6380
      %v6382 = vpop.f32.mrf.mxu0
      %v6383 = vadd.f32 %v6352, %v6382
      %6384 = vdwg.mxu0
      %6385 = vmatpush.xpose.msra.mxu0 0.0
      %6386 = vmatpush.xpose.msra.mxu0 0.0
      %6387 = vmatpush.xpose.msra.mxu0 0.0
      %6388 = vmatpush.xpose.msra.mxu0 0.0
      %6389 = vmatpush.xpose.msra.mxu0 0.0
      %6390 = vmatpush.xpose.msra.mxu0 0.0
      %6391 = vmatpush.xpose.msra.mxu0 0.0
      %6392 = vmatpush.xpose.msra.mxu0 0.0
      %6393 = vmatpush.xpose.msra.mxu0 0.0
      %6394 = vmatpush.xpose.msra.mxu0 0.0
      %6395 = vmatpush.xpose.msra.mxu0 0.0
      %6396 = vmatpush.xpose.msra.mxu0 0.0
      %6397 = vmatpush.xpose.msra.mxu0 0.0
      %6398 = vmatpush.xpose.msra.mxu0 0.0
      %v6399 = vand.u32 %v6282, 4294901760
      %6400 = vmatpush.xpose.msra.mxu0 %v6399
      %v6401 = vand.u32 %v6279, 4294901760
      %6402 = vmatpush.xpose.msra.mxu0 %v6401
      %v6403 = vand.u32 %v6279, 4294901760
      %v6404 = vsub.f32 %v6279, %v6403
      %v6405 = vand.u32 %v6404, 4294901760
      %6406 = vmatmul.f32.gmra.mxu0 %v6405
      %v6407 = vpop.f32.mrf.mxu0
      %v6408 = vadd.f32 %v6378, %v6407
      %v6409 = vand.u32 %v6282, 4294901760
      %v6410 = vsub.f32 %v6282, %v6409
      %v6411 = vand.u32 %v6410, 4294901760
      %6412 = vmatmul.f32.gmra.mxu0 %v6411
      %v6413 = vpop.f32.mrf.mxu0
      %v6414 = vadd.f32 %v6383, %v6413
      %6415 = vdwg.mxu0
      %6416 = vmatpush.xpose.msra.mxu0 0.0
      %6417 = vmatpush.xpose.msra.mxu0 0.0
      %6418 = vmatpush.xpose.msra.mxu0 0.0
      %6419 = vmatpush.xpose.msra.mxu0 0.0
      %6420 = vmatpush.xpose.msra.mxu0 0.0
      %6421 = vmatpush.xpose.msra.mxu0 0.0
      %6422 = vmatpush.xpose.msra.mxu0 0.0
      %6423 = vmatpush.xpose.msra.mxu0 0.0
      %6424 = vmatpush.xpose.msra.mxu0 0.0
      %6425 = vmatpush.xpose.msra.mxu0 0.0
      %6426 = vmatpush.xpose.msra.mxu0 0.0
      %6427 = vmatpush.xpose.msra.mxu0 0.0
      %6428 = vmatpush.xpose.msra.mxu0 0.0
      %6429 = vmatpush.xpose.msra.mxu0 0.0
      %v6430 = vand.u32 %v6282, 4294901760
      %v6431 = vsub.f32 %v6282, %v6430
      %v6432 = vand.u32 %v6431, 4294901760
      %6433 = vmatpush.xpose.msra.mxu0 %v6432
      %v6434 = vand.u32 %v6279, 4294901760
      %v6435 = vsub.f32 %v6279, %v6434
      %v6436 = vand.u32 %v6435, 4294901760
      %6437 = vmatpush.xpose.msra.mxu0 %v6436
      %v6438 = vand.u32 %v6279, 4294901760
      %6439 = vmatmul.f32.gmra.mxu0 %v6438
      %v6440 = vpop.f32.mrf.mxu0
      %v6441 = vadd.f32 %v6408, %v6440
      %v6442 = vand.u32 %v6282, 4294901760
      %6443 = vmatmul.f32.gmra.mxu0 %v6442
      %v6444 = vpop.f32.mrf.mxu0
      %v6445 = vadd.f32 %v6414, %v6444
      %6446 = vdwg.mxu0
      %6447 = vmatpush.xpose.msra.mxu0 0.0
      %6448 = vmatpush.xpose.msra.mxu0 0.0
      %6449 = vmatpush.xpose.msra.mxu0 0.0
      %6450 = vmatpush.xpose.msra.mxu0 0.0
      %6451 = vmatpush.xpose.msra.mxu0 0.0
      %6452 = vmatpush.xpose.msra.mxu0 0.0
      %6453 = vmatpush.xpose.msra.mxu0 0.0
      %6454 = vmatpush.xpose.msra.mxu0 0.0
      %6455 = vmatpush.xpose.msra.mxu0 0.0
      %6456 = vmatpush.xpose.msra.mxu0 0.0
      %6457 = vmatpush.xpose.msra.mxu0 0.0
      %6458 = vmatpush.xpose.msra.mxu0 0.0
      %6459 = vmatpush.xpose.msra.mxu0 0.0
      %6460 = vmatpush.xpose.msra.mxu0 0.0
      %v6461 = vand.u32 %v6282, 4294901760
      %6462 = vmatpush.xpose.msra.mxu0 %v6461
      %v6463 = vand.u32 %v6279, 4294901760
      %6464 = vmatpush.xpose.msra.mxu0 %v6463
      %v6465 = vand.u32 %v6279, 4294901760
      %6466 = vmatmul.f32.gmra.mxu0 %v6465
      %v6467 = vpop.f32.mrf.mxu0
      %v6468 = vadd.f32 %v6441, %v6467
      %v6469 = vand.u32 %v6282, 4294901760
      %6470 = vmatmul.f32.gmra.mxu0 %v6469
      %v6471 = vpop.f32.mrf.mxu0
      %v6472 = vadd.f32 %v6445, %v6471
      %6473 = vdwg.mxu0
      %v6474 = vmul.f32 %v6468, %v463
      %v6475 = vmul.f32 %v6472, %v464
      %vm6476 = vcmp.eq.f32.partialorder %v6474, 0.0
      %vm6477 = vcmp.eq.f32.partialorder %v6475, 0.0
      %v6478 = vsel %vm6476, -1e+16, %v6474
      %v6479 = vsel %vm6477, -1e+16, %v6475
      %v6480 = vsel %vm468, %v6478, -inf
      %6481 = vmax.xlane.f32.xlu0 %v6480
      %v6482 = vpop.xlane.xlu0 %6481
      %v6483 = vsel %vm468, %v6479, -inf
      %6484 = vmax.xlane.f32.xlu0 %v6483
      %v6485 = vpop.xlane.xlu0 %6484
      %v6486 = vsub.f32 %v6478, %v6482
      %v6487 = vsub.f32 %v6479, %v6485
      %v6488 = vmul.f32 %v6486, 1.442695
      %v6489 = vpow.pop %v6488
      %v6490 = vmul.f32 %v6487, 1.442695
      %v6491 = vpow.pop %v6490
      %v6492 = vsel %vm468, %v6489, 0.0
      %6493 = vadd.xlane.f32.xlu0 %v6492
      %v6494 = vpop.xlane.xlu0 %6493
      %v6495 = vsel %vm468, %v6491, 0.0
      %6496 = vadd.xlane.f32.xlu0 %v6495
      %v6497 = vpop.xlane.xlu0 %6496
      %v6498 = vrcp.pop %v6494
      %v6499 = vrcp.pop %v6497
      %v6500 = vmul.f32 %v6489, %v6498
      %v6501 = vmul.f32 %v6491, %v6499
      %s6502 = scalar_lea.vmem %s9, 2
      %v6503 = vld [vmem:[%s6502] sm:$0x1]
      %v6505 = vperm.slane %v6503, 0
      %v6508 = vsel %vm468, %v6500, 0
      %v6511 = vsel %vm468, %v6501, 0
      %6513 = vmatpush.msra.mxu0 0.0
      %6514 = vmatpush.msra.mxu0 0.0
      %6515 = vmatpush.msra.mxu0 0.0
      %6516 = vmatpush.msra.mxu0 0.0
      %6517 = vmatpush.msra.mxu0 0.0
      %6518 = vmatpush.msra.mxu0 0.0
      %6519 = vmatpush.msra.mxu0 0.0
      %6520 = vmatpush.msra.mxu0 0.0
      %6521 = vmatpush.msra.mxu0 0.0
      %6522 = vmatpush.msra.mxu0 0.0
      %6523 = vmatpush.msra.mxu0 0.0
      %6524 = vmatpush.msra.mxu0 0.0
      %6525 = vmatpush.msra.mxu0 0.0
      %6526 = vmatpush.msra.mxu0 0.0
      %v6527 = vand.u32 %v6276, 4294901760
      %6528 = vmatpush.msra.mxu0 %v6527
      %v6529 = vand.u32 %v6272, 4294901760
      %6530 = vmatpush.msra.mxu0 %v6529
      %v6531 = vand.u32 %v6508, 4294901760
      %v6532 = vsub.f32 %v6508, %v6531
      %v6533 = vand.u32 %v6532, 4294901760
      %v6534 = vsub.f32 %v6532, %v6533
      %v6535 = vand.u32 %v6534, 4294901760
      %6536 = vmatmul.f32.gmra.mxu0 %v6535
      %v6537 = vpop.f32.mrf.mxu0
      %v6538 = vadd.f32 %v6505, %v6537
      %v6539 = vand.u32 %v6511, 4294901760
      %v6540 = vsub.f32 %v6511, %v6539
      %v6541 = vand.u32 %v6540, 4294901760
      %v6542 = vsub.f32 %v6540, %v6541
      %v6543 = vand.u32 %v6542, 4294901760
      %6544 = vmatmul.f32.gmra.mxu0 %v6543
      %v6545 = vpop.f32.mrf.mxu0
      %v6546 = vadd.f32 %v6505, %v6545
      %6547 = vdwg.mxu0
      %6548 = vmatpush.msra.mxu0 0.0
      %6549 = vmatpush.msra.mxu0 0.0
      %6550 = vmatpush.msra.mxu0 0.0
      %6551 = vmatpush.msra.mxu0 0.0
      %6552 = vmatpush.msra.mxu0 0.0
      %6553 = vmatpush.msra.mxu0 0.0
      %6554 = vmatpush.msra.mxu0 0.0
      %6555 = vmatpush.msra.mxu0 0.0
      %6556 = vmatpush.msra.mxu0 0.0
      %6557 = vmatpush.msra.mxu0 0.0
      %6558 = vmatpush.msra.mxu0 0.0
      %6559 = vmatpush.msra.mxu0 0.0
      %6560 = vmatpush.msra.mxu0 0.0
      %6561 = vmatpush.msra.mxu0 0.0
      %v6562 = vand.u32 %v6276, 4294901760
      %v6563 = vsub.f32 %v6276, %v6562
      %v6564 = vand.u32 %v6563, 4294901760
      %v6565 = vsub.f32 %v6563, %v6564
      %v6566 = vand.u32 %v6565, 4294901760
      %6567 = vmatpush.msra.mxu0 %v6566
      %v6568 = vand.u32 %v6272, 4294901760
      %v6569 = vsub.f32 %v6272, %v6568
      %v6570 = vand.u32 %v6569, 4294901760
      %v6571 = vsub.f32 %v6569, %v6570
      %v6572 = vand.u32 %v6571, 4294901760
      %6573 = vmatpush.msra.mxu0 %v6572
      %v6574 = vand.u32 %v6508, 4294901760
      %6575 = vmatmul.f32.gmra.mxu0 %v6574
      %v6576 = vpop.f32.mrf.mxu0
      %v6577 = vadd.f32 %v6538, %v6576
      %v6578 = vand.u32 %v6511, 4294901760
      %6579 = vmatmul.f32.gmra.mxu0 %v6578
      %v6580 = vpop.f32.mrf.mxu0
      %v6581 = vadd.f32 %v6546, %v6580
      %6582 = vdwg.mxu0
      %6583 = vmatpush.msra.mxu0 0.0
      %6584 = vmatpush.msra.mxu0 0.0
      %6585 = vmatpush.msra.mxu0 0.0
      %6586 = vmatpush.msra.mxu0 0.0
      %6587 = vmatpush.msra.mxu0 0.0
      %6588 = vmatpush.msra.mxu0 0.0
      %6589 = vmatpush.msra.mxu0 0.0
      %6590 = vmatpush.msra.mxu0 0.0
      %6591 = vmatpush.msra.mxu0 0.0
      %6592 = vmatpush.msra.mxu0 0.0
      %6593 = vmatpush.msra.mxu0 0.0
      %6594 = vmatpush.msra.mxu0 0.0
      %6595 = vmatpush.msra.mxu0 0.0
      %6596 = vmatpush.msra.mxu0 0.0
      %v6597 = vand.u32 %v6276, 4294901760
      %v6598 = vsub.f32 %v6276, %v6597
      %6599 = vmatpush.msra.mxu0 %v6598
      %v6600 = vand.u32 %v6272, 4294901760
      %v6601 = vsub.f32 %v6272, %v6600
      %6602 = vmatpush.msra.mxu0 %v6601
      %v6603 = vand.u32 %v6508, 4294901760
      %v6604 = vsub.f32 %v6508, %v6603
      %6605 = vmatmul.f32.gmra.mxu0 %v6604
      %v6606 = vpop.f32.mrf.mxu0
      %v6607 = vadd.f32 %v6577, %v6606
      %v6608 = vand.u32 %v6511, 4294901760
      %v6609 = vsub.f32 %v6511, %v6608
      %6610 = vmatmul.f32.gmra.mxu0 %v6609
      %v6611 = vpop.f32.mrf.mxu0
      %v6612 = vadd.f32 %v6581, %v6611
      %6613 = vdwg.mxu0
      %6614 = vmatpush.msra.mxu0 0.0
      %6615 = vmatpush.msra.mxu0 0.0
      %6616 = vmatpush.msra.mxu0 0.0
      %6617 = vmatpush.msra.mxu0 0.0
      %6618 = vmatpush.msra.mxu0 0.0
      %6619 = vmatpush.msra.mxu0 0.0
      %6620 = vmatpush.msra.mxu0 0.0
      %6621 = vmatpush.msra.mxu0 0.0
      %6622 = vmatpush.msra.mxu0 0.0
      %6623 = vmatpush.msra.mxu0 0.0
      %6624 = vmatpush.msra.mxu0 0.0
      %6625 = vmatpush.msra.mxu0 0.0
      %6626 = vmatpush.msra.mxu0 0.0
      %6627 = vmatpush.msra.mxu0 0.0
      %v6628 = vand.u32 %v6276, 4294901760
      %6629 = vmatpush.msra.mxu0 %v6628
      %v6630 = vand.u32 %v6272, 4294901760
      %6631 = vmatpush.msra.mxu0 %v6630
      %v6632 = vand.u32 %v6508, 4294901760
      %v6633 = vsub.f32 %v6508, %v6632
      %v6634 = vand.u32 %v6633, 4294901760
      %6635 = vmatmul.f32.gmra.mxu0 %v6634
      %v6636 = vpop.f32.mrf.mxu0
      %v6637 = vadd.f32 %v6607, %v6636
      %v6638 = vand.u32 %v6511, 4294901760
      %v6639 = vsub.f32 %v6511, %v6638
      %v6640 = vand.u32 %v6639, 4294901760
      %6641 = vmatmul.f32.gmra.mxu0 %v6640
      %v6642 = vpop.f32.mrf.mxu0
      %v6643 = vadd.f32 %v6612, %v6642
      %6644 = vdwg.mxu0
      %6645 = vmatpush.msra.mxu0 0.0
      %6646 = vmatpush.msra.mxu0 0.0
      %6647 = vmatpush.msra.mxu0 0.0
      %6648 = vmatpush.msra.mxu0 0.0
      %6649 = vmatpush.msra.mxu0 0.0
      %6650 = vmatpush.msra.mxu0 0.0
      %6651 = vmatpush.msra.mxu0 0.0
      %6652 = vmatpush.msra.mxu0 0.0
      %6653 = vmatpush.msra.mxu0 0.0
      %6654 = vmatpush.msra.mxu0 0.0
      %6655 = vmatpush.msra.mxu0 0.0
      %6656 = vmatpush.msra.mxu0 0.0
      %6657 = vmatpush.msra.mxu0 0.0
      %6658 = vmatpush.msra.mxu0 0.0
      %v6659 = vand.u32 %v6276, 4294901760
      %v6660 = vsub.f32 %v6276, %v6659
      %v6661 = vand.u32 %v6660, 4294901760
      %6662 = vmatpush.msra.mxu0 %v6661
      %v6663 = vand.u32 %v6272, 4294901760
      %v6664 = vsub.f32 %v6272, %v6663
      %v6665 = vand.u32 %v6664, 4294901760
      %6666 = vmatpush.msra.mxu0 %v6665
      %v6667 = vand.u32 %v6508, 4294901760
      %6668 = vmatmul.f32.gmra.mxu0 %v6667
      %v6669 = vpop.f32.mrf.mxu0
      %v6670 = vadd.f32 %v6637, %v6669
      %v6671 = vand.u32 %v6511, 4294901760
      %6672 = vmatmul.f32.gmra.mxu0 %v6671
      %v6673 = vpop.f32.mrf.mxu0
      %v6674 = vadd.f32 %v6643, %v6673
      %6675 = vdwg.mxu0
      %6676 = vmatpush.msra.mxu0 0.0
      %6677 = vmatpush.msra.mxu0 0.0
      %6678 = vmatpush.msra.mxu0 0.0
      %6679 = vmatpush.msra.mxu0 0.0
      %6680 = vmatpush.msra.mxu0 0.0
      %6681 = vmatpush.msra.mxu0 0.0
      %6682 = vmatpush.msra.mxu0 0.0
      %6683 = vmatpush.msra.mxu0 0.0
      %6684 = vmatpush.msra.mxu0 0.0
      %6685 = vmatpush.msra.mxu0 0.0
      %6686 = vmatpush.msra.mxu0 0.0
      %6687 = vmatpush.msra.mxu0 0.0
      %6688 = vmatpush.msra.mxu0 0.0
      %6689 = vmatpush.msra.mxu0 0.0
      %v6690 = vand.u32 %v6276, 4294901760
      %6691 = vmatpush.msra.mxu0 %v6690
      %v6692 = vand.u32 %v6272, 4294901760
      %6693 = vmatpush.msra.mxu0 %v6692
      %v6694 = vand.u32 %v6508, 4294901760
      %6695 = vmatmul.f32.gmra.mxu0 %v6694
      %v6696 = vpop.f32.mrf.mxu0
      %v6697 = vadd.f32 %v6670, %v6696
      %v6698 = vand.u32 %v6511, 4294901760
      %6699 = vmatmul.f32.gmra.mxu0 %v6698
      %v6700 = vpop.f32.mrf.mxu0
      %v6701 = vadd.f32 %v6674, %v6700
      %6702 = vdwg.mxu0
      %vm6703 = vcmp.ge.f32.partialorder %v6697, 0.0
      %vm6704 = vcmp.ge.f32.partialorder %v6701, 0.0
      %v6705 = vmul.f32 %v6697, 0.2
      %v6706 = vmul.f32 %v6701, 0.2
      %v6707 = vsel %vm6703, %v6697, %v6705
      %v6708 = vsel %vm6704, %v6701, %v6706
      %s6709 = scalar_lea.vmem %s10, 128
      %v6710 = vld [vmem:[%s6709] sm:$0xff]
      %v6711 = vld [vmem:[%s6709 + $0x8] sm:$0xff]
      %v6712 = vld [vmem:[%s6709 + $0x10] sm:$0xff]
      %v6713 = vld [vmem:[%s6709 + $0x18] sm:$0xff]
      %v6714 = vld [vmem:[%s6709 + $0x20] sm:$0xff]
      %v6715 = vld [vmem:[%s6709 + $0x28] sm:$0xff]
      %v6716 = vld [vmem:[%s6709 + $0x30] sm:$0xff]
      %v6717 = vld [vmem:[%s6709 + $0x38] sm:$0xff]
      %v6719 = vsel %vm1337, %v6707, 0
      %v6722 = vsel %vm1337, %v6708, 0
      %6724 = vmatpush.msra.mxu0 0.0
      %6725 = vmatpush.msra.mxu0 0.0
      %6726 = vmatpush.msra.mxu0 0.0
      %6727 = vmatpush.msra.mxu0 0.0
      %6728 = vmatpush.msra.mxu0 0.0
      %6729 = vmatpush.msra.mxu0 0.0
      %6730 = vmatpush.msra.mxu0 0.0
      %6731 = vmatpush.msra.mxu0 0.0
      %v6732 = vand.u32 %v6717, 4294901760
      %6733 = vmatpush.msra.mxu0 %v6732
      %v6734 = vand.u32 %v6716, 4294901760
      %6735 = vmatpush.msra.mxu0 %v6734
      %v6736 = vand.u32 %v6715, 4294901760
      %6737 = vmatpush.msra.mxu0 %v6736
      %v6738 = vand.u32 %v6714, 4294901760
      %6739 = vmatpush.msra.mxu0 %v6738
      %v6740 = vand.u32 %v6713, 4294901760
      %6741 = vmatpush.msra.mxu0 %v6740
      %v6742 = vand.u32 %v6712, 4294901760
      %6743 = vmatpush.msra.mxu0 %v6742
      %v6744 = vand.u32 %v6711, 4294901760
      %6745 = vmatpush.msra.mxu0 %v6744
      %v6746 = vand.u32 %v6710, 4294901760
      %6747 = vmatpush.msra.mxu0 %v6746
      %v6748 = vand.u32 %v6719, 4294901760
      %v6749 = vsub.f32 %v6719, %v6748
      %v6750 = vand.u32 %v6749, 4294901760
      %v6751 = vsub.f32 %v6749, %v6750
      %v6752 = vand.u32 %v6751, 4294901760
      %6753 = vmatmul.f32.gmra.mxu0 %v6752
      %v6754 = vpop.f32.mrf.mxu0
      %v6755 = vadd.f32 0.0, %v6754
      %v6756 = vand.u32 %v6722, 4294901760
      %v6757 = vsub.f32 %v6722, %v6756
      %v6758 = vand.u32 %v6757, 4294901760
      %v6759 = vsub.f32 %v6757, %v6758
      %v6760 = vand.u32 %v6759, 4294901760
      %6761 = vmatmul.f32.gmra.mxu0 %v6760
      %v6762 = vpop.f32.mrf.mxu0
      %v6763 = vadd.f32 0.0, %v6762
      %6764 = vdwg.mxu0
      %6765 = vmatpush.msra.mxu0 0.0
      %6766 = vmatpush.msra.mxu0 0.0
      %6767 = vmatpush.msra.mxu0 0.0
      %6768 = vmatpush.msra.mxu0 0.0
      %6769 = vmatpush.msra.mxu0 0.0
      %6770 = vmatpush.msra.mxu0 0.0
      %6771 = vmatpush.msra.mxu0 0.0
      %6772 = vmatpush.msra.mxu0 0.0
      %v6773 = vand.u32 %v6717, 4294901760
      %v6774 = vsub.f32 %v6717, %v6773
      %v6775 = vand.u32 %v6774, 4294901760
      %v6776 = vsub.f32 %v6774, %v6775
      %v6777 = vand.u32 %v6776, 4294901760
      %6778 = vmatpush.msra.mxu0 %v6777
      %v6779 = vand.u32 %v6716, 4294901760
      %v6780 = vsub.f32 %v6716, %v6779
      %v6781 = vand.u32 %v6780, 4294901760
      %v6782 = vsub.f32 %v6780, %v6781
      %v6783 = vand.u32 %v6782, 4294901760
      %6784 = vmatpush.msra.mxu0 %v6783
      %v6785 = vand.u32 %v6715, 4294901760
      %v6786 = vsub.f32 %v6715, %v6785
      %v6787 = vand.u32 %v6786, 4294901760
      %v6788 = vsub.f32 %v6786, %v6787
      %v6789 = vand.u32 %v6788, 4294901760
      %6790 = vmatpush.msra.mxu0 %v6789
      %v6791 = vand.u32 %v6714, 4294901760
      %v6792 = vsub.f32 %v6714, %v6791
      %v6793 = vand.u32 %v6792, 4294901760
      %v6794 = vsub.f32 %v6792, %v6793
      %v6795 = vand.u32 %v6794, 4294901760
      %6796 = vmatpush.msra.mxu0 %v6795
      %v6797 = vand.u32 %v6713, 4294901760
      %v6798 = vsub.f32 %v6713, %v6797
      %v6799 = vand.u32 %v6798, 4294901760
      %v6800 = vsub.f32 %v6798, %v6799
      %v6801 = vand.u32 %v6800, 4294901760
      %6802 = vmatpush.msra.mxu0 %v6801
      %v6803 = vand.u32 %v6712, 4294901760
      %v6804 = vsub.f32 %v6712, %v6803
      %v6805 = vand.u32 %v6804, 4294901760
      %v6806 = vsub.f32 %v6804, %v6805
      %v6807 = vand.u32 %v6806, 4294901760
      %6808 = vmatpush.msra.mxu0 %v6807
      %v6809 = vand.u32 %v6711, 4294901760
      %v6810 = vsub.f32 %v6711, %v6809
      %v6811 = vand.u32 %v6810, 4294901760
      %v6812 = vsub.f32 %v6810, %v6811
      %v6813 = vand.u32 %v6812, 4294901760
      %6814 = vmatpush.msra.mxu0 %v6813
      %v6815 = vand.u32 %v6710, 4294901760
      %v6816 = vsub.f32 %v6710, %v6815
      %v6817 = vand.u32 %v6816, 4294901760
      %v6818 = vsub.f32 %v6816, %v6817
      %v6819 = vand.u32 %v6818, 4294901760
      %6820 = vmatpush.msra.mxu0 %v6819
      %v6821 = vand.u32 %v6719, 4294901760
      %6822 = vmatmul.f32.gmra.mxu0 %v6821
      %v6823 = vpop.f32.mrf.mxu0
      %v6824 = vadd.f32 %v6755, %v6823
      %v6825 = vand.u32 %v6722, 4294901760
      %6826 = vmatmul.f32.gmra.mxu0 %v6825
      %v6827 = vpop.f32.mrf.mxu0
      %v6828 = vadd.f32 %v6763, %v6827
      %6829 = vdwg.mxu0
      %6830 = vmatpush.msra.mxu0 0.0
      %6831 = vmatpush.msra.mxu0 0.0
      %6832 = vmatpush.msra.mxu0 0.0
      %6833 = vmatpush.msra.mxu0 0.0
      %6834 = vmatpush.msra.mxu0 0.0
      %6835 = vmatpush.msra.mxu0 0.0
      %6836 = vmatpush.msra.mxu0 0.0
      %6837 = vmatpush.msra.mxu0 0.0
      %v6838 = vand.u32 %v6717, 4294901760
      %v6839 = vsub.f32 %v6717, %v6838
      %6840 = vmatpush.msra.mxu0 %v6839
      %v6841 = vand.u32 %v6716, 4294901760
      %v6842 = vsub.f32 %v6716, %v6841
      %6843 = vmatpush.msra.mxu0 %v6842
      %v6844 = vand.u32 %v6715, 4294901760
      %v6845 = vsub.f32 %v6715, %v6844
      %6846 = vmatpush.msra.mxu0 %v6845
      %v6847 = vand.u32 %v6714, 4294901760
      %v6848 = vsub.f32 %v6714, %v6847
      %6849 = vmatpush.msra.mxu0 %v6848
      %v6850 = vand.u32 %v6713, 4294901760
      %v6851 = vsub.f32 %v6713, %v6850
      %6852 = vmatpush.msra.mxu0 %v6851
      %v6853 = vand.u32 %v6712, 4294901760
      %v6854 = vsub.f32 %v6712, %v6853
      %6855 = vmatpush.msra.mxu0 %v6854
      %v6856 = vand.u32 %v6711, 4294901760
      %v6857 = vsub.f32 %v6711, %v6856
      %6858 = vmatpush.msra.mxu0 %v6857
      %v6859 = vand.u32 %v6710, 4294901760
      %v6860 = vsub.f32 %v6710, %v6859
      %6861 = vmatpush.msra.mxu0 %v6860
      %v6862 = vand.u32 %v6719, 4294901760
      %v6863 = vsub.f32 %v6719, %v6862
      %6864 = vmatmul.f32.gmra.mxu0 %v6863
      %v6865 = vpop.f32.mrf.mxu0
      %v6866 = vadd.f32 %v6824, %v6865
      %v6867 = vand.u32 %v6722, 4294901760
      %v6868 = vsub.f32 %v6722, %v6867
      %6869 = vmatmul.f32.gmra.mxu0 %v6868
      %v6870 = vpop.f32.mrf.mxu0
      %v6871 = vadd.f32 %v6828, %v6870
      %6872 = vdwg.mxu0
      %6873 = vmatpush.msra.mxu0 0.0
      %6874 = vmatpush.msra.mxu0 0.0
      %6875 = vmatpush.msra.mxu0 0.0
      %6876 = vmatpush.msra.mxu0 0.0
      %6877 = vmatpush.msra.mxu0 0.0
      %6878 = vmatpush.msra.mxu0 0.0
      %6879 = vmatpush.msra.mxu0 0.0
      %6880 = vmatpush.msra.mxu0 0.0
      %v6881 = vand.u32 %v6717, 4294901760
      %6882 = vmatpush.msra.mxu0 %v6881
      %v6883 = vand.u32 %v6716, 4294901760
      %6884 = vmatpush.msra.mxu0 %v6883
      %v6885 = vand.u32 %v6715, 4294901760
      %6886 = vmatpush.msra.mxu0 %v6885
      %v6887 = vand.u32 %v6714, 4294901760
      %6888 = vmatpush.msra.mxu0 %v6887
      %v6889 = vand.u32 %v6713, 4294901760
      %6890 = vmatpush.msra.mxu0 %v6889
      %v6891 = vand.u32 %v6712, 4294901760
      %6892 = vmatpush.msra.mxu0 %v6891
      %v6893 = vand.u32 %v6711, 4294901760
      %6894 = vmatpush.msra.mxu0 %v6893
      %v6895 = vand.u32 %v6710, 4294901760
      %6896 = vmatpush.msra.mxu0 %v6895
      %v6897 = vand.u32 %v6719, 4294901760
      %v6898 = vsub.f32 %v6719, %v6897
      %v6899 = vand.u32 %v6898, 4294901760
      %6900 = vmatmul.f32.gmra.mxu0 %v6899
      %v6901 = vpop.f32.mrf.mxu0
      %v6902 = vadd.f32 %v6866, %v6901
      %v6903 = vand.u32 %v6722, 4294901760
      %v6904 = vsub.f32 %v6722, %v6903
      %v6905 = vand.u32 %v6904, 4294901760
      %6906 = vmatmul.f32.gmra.mxu0 %v6905
      %v6907 = vpop.f32.mrf.mxu0
      %v6908 = vadd.f32 %v6871, %v6907
      %6909 = vdwg.mxu0
      %6910 = vmatpush.msra.mxu0 0.0
      %6911 = vmatpush.msra.mxu0 0.0
      %6912 = vmatpush.msra.mxu0 0.0
      %6913 = vmatpush.msra.mxu0 0.0
      %6914 = vmatpush.msra.mxu0 0.0
      %6915 = vmatpush.msra.mxu0 0.0
      %6916 = vmatpush.msra.mxu0 0.0
      %6917 = vmatpush.msra.mxu0 0.0
      %v6918 = vand.u32 %v6717, 4294901760
      %v6919 = vsub.f32 %v6717, %v6918
      %v6920 = vand.u32 %v6919, 4294901760
      %6921 = vmatpush.msra.mxu0 %v6920
      %v6922 = vand.u32 %v6716, 4294901760
      %v6923 = vsub.f32 %v6716, %v6922
      %v6924 = vand.u32 %v6923, 4294901760
      %6925 = vmatpush.msra.mxu0 %v6924
      %v6926 = vand.u32 %v6715, 4294901760
      %v6927 = vsub.f32 %v6715, %v6926
      %v6928 = vand.u32 %v6927, 4294901760
      %6929 = vmatpush.msra.mxu0 %v6928
      %v6930 = vand.u32 %v6714, 4294901760
      %v6931 = vsub.f32 %v6714, %v6930
      %v6932 = vand.u32 %v6931, 4294901760
      %6933 = vmatpush.msra.mxu0 %v6932
      %v6934 = vand.u32 %v6713, 4294901760
      %v6935 = vsub.f32 %v6713, %v6934
      %v6936 = vand.u32 %v6935, 4294901760
      %6937 = vmatpush.msra.mxu0 %v6936
      %v6938 = vand.u32 %v6712, 4294901760
      %v6939 = vsub.f32 %v6712, %v6938
      %v6940 = vand.u32 %v6939, 4294901760
      %6941 = vmatpush.msra.mxu0 %v6940
      %v6942 = vand.u32 %v6711, 4294901760
      %v6943 = vsub.f32 %v6711, %v6942
      %v6944 = vand.u32 %v6943, 4294901760
      %6945 = vmatpush.msra.mxu0 %v6944
      %v6946 = vand.u32 %v6710, 4294901760
      %v6947 = vsub.f32 %v6710, %v6946
      %v6948 = vand.u32 %v6947, 4294901760
      %6949 = vmatpush.msra.mxu0 %v6948
      %v6950 = vand.u32 %v6719, 4294901760
      %6951 = vmatmul.f32.gmra.mxu0 %v6950
      %v6952 = vpop.f32.mrf.mxu0
      %v6953 = vadd.f32 %v6902, %v6952
      %v6954 = vand.u32 %v6722, 4294901760
      %6955 = vmatmul.f32.gmra.mxu0 %v6954
      %v6956 = vpop.f32.mrf.mxu0
      %v6957 = vadd.f32 %v6908, %v6956
      %6958 = vdwg.mxu0
      %6959 = vmatpush.msra.mxu0 0.0
      %6960 = vmatpush.msra.mxu0 0.0
      %6961 = vmatpush.msra.mxu0 0.0
      %6962 = vmatpush.msra.mxu0 0.0
      %6963 = vmatpush.msra.mxu0 0.0
      %6964 = vmatpush.msra.mxu0 0.0
      %6965 = vmatpush.msra.mxu0 0.0
      %6966 = vmatpush.msra.mxu0 0.0
      %v6967 = vand.u32 %v6717, 4294901760
      %6968 = vmatpush.msra.mxu0 %v6967
      %v6969 = vand.u32 %v6716, 4294901760
      %6970 = vmatpush.msra.mxu0 %v6969
      %v6971 = vand.u32 %v6715, 4294901760
      %6972 = vmatpush.msra.mxu0 %v6971
      %v6973 = vand.u32 %v6714, 4294901760
      %6974 = vmatpush.msra.mxu0 %v6973
      %v6975 = vand.u32 %v6713, 4294901760
      %6976 = vmatpush.msra.mxu0 %v6975
      %v6977 = vand.u32 %v6712, 4294901760
      %6978 = vmatpush.msra.mxu0 %v6977
      %v6979 = vand.u32 %v6711, 4294901760
      %6980 = vmatpush.msra.mxu0 %v6979
      %v6981 = vand.u32 %v6710, 4294901760
      %6982 = vmatpush.msra.mxu0 %v6981
      %v6983 = vand.u32 %v6719, 4294901760
      %6984 = vmatmul.f32.gmra.mxu0 %v6983
      %v6985 = vpop.f32.mrf.mxu0
      %v6986 = vadd.f32 %v6953, %v6985
      %v6987 = vand.u32 %v6722, 4294901760
      %6988 = vmatmul.f32.gmra.mxu0 %v6987
      %v6989 = vpop.f32.mrf.mxu0
      %v6990 = vadd.f32 %v6957, %v6989
      %6991 = vdwg.mxu0
      %v6992 = vadd.f32 %v6079, %v6986
      %v6993 = vadd.f32 %v6083, %v6990
      %v6995 = vsel %vm468, %v6992, 0
      %v6998 = vsel %vm468, %v6993, 0
      %7000 = vmatpush.xpose.msra.mxu0 0.0
      %7001 = vmatpush.xpose.msra.mxu0 0.0
      %7002 = vmatpush.xpose.msra.mxu0 0.0
      %7003 = vmatpush.xpose.msra.mxu0 0.0
      %7004 = vmatpush.xpose.msra.mxu0 0.0
      %7005 = vmatpush.xpose.msra.mxu0 0.0
      %7006 = vmatpush.xpose.msra.mxu0 0.0
      %7007 = vmatpush.xpose.msra.mxu0 0.0
      %7008 = vmatpush.xpose.msra.mxu0 0.0
      %7009 = vmatpush.xpose.msra.mxu0 0.0
      %7010 = vmatpush.xpose.msra.mxu0 0.0
      %7011 = vmatpush.xpose.msra.mxu0 0.0
      %7012 = vmatpush.xpose.msra.mxu0 0.0
      %7013 = vmatpush.xpose.msra.mxu0 0.0
      %v7014 = vand.u32 %v6998, 4294901760
      %7015 = vmatpush.xpose.msra.mxu0 %v7014
      %v7016 = vand.u32 %v6995, 4294901760
      %7017 = vmatpush.xpose.msra.mxu0 %v7016
      %v7018 = vand.u32 %v6995, 4294901760
      %v7019 = vsub.f32 %v6995, %v7018
      %v7020 = vand.u32 %v7019, 4294901760
      %v7021 = vsub.f32 %v7019, %v7020
      %v7022 = vand.u32 %v7021, 4294901760
      %7023 = vmatmul.f32.gmra.mxu0 %v7022
      %v7024 = vpop.f32.mrf.mxu0
      %v7025 = vadd.f32 0.0, %v7024
      %v7026 = vand.u32 %v6998, 4294901760
      %v7027 = vsub.f32 %v6998, %v7026
      %v7028 = vand.u32 %v7027, 4294901760
      %v7029 = vsub.f32 %v7027, %v7028
      %v7030 = vand.u32 %v7029, 4294901760
      %7031 = vmatmul.f32.gmra.mxu0 %v7030
      %v7032 = vpop.f32.mrf.mxu0
      %v7033 = vadd.f32 0.0, %v7032
      %7034 = vdwg.mxu0
      %7035 = vmatpush.xpose.msra.mxu0 0.0
      %7036 = vmatpush.xpose.msra.mxu0 0.0
      %7037 = vmatpush.xpose.msra.mxu0 0.0
      %7038 = vmatpush.xpose.msra.mxu0 0.0
      %7039 = vmatpush.xpose.msra.mxu0 0.0
      %7040 = vmatpush.xpose.msra.mxu0 0.0
      %7041 = vmatpush.xpose.msra.mxu0 0.0
      %7042 = vmatpush.xpose.msra.mxu0 0.0
      %7043 = vmatpush.xpose.msra.mxu0 0.0
      %7044 = vmatpush.xpose.msra.mxu0 0.0
      %7045 = vmatpush.xpose.msra.mxu0 0.0
      %7046 = vmatpush.xpose.msra.mxu0 0.0
      %7047 = vmatpush.xpose.msra.mxu0 0.0
      %7048 = vmatpush.xpose.msra.mxu0 0.0
      %v7049 = vand.u32 %v6998, 4294901760
      %v7050 = vsub.f32 %v6998, %v7049
      %v7051 = vand.u32 %v7050, 4294901760
      %v7052 = vsub.f32 %v7050, %v7051
      %v7053 = vand.u32 %v7052, 4294901760
      %7054 = vmatpush.xpose.msra.mxu0 %v7053
      %v7055 = vand.u32 %v6995, 4294901760
      %v7056 = vsub.f32 %v6995, %v7055
      %v7057 = vand.u32 %v7056, 4294901760
      %v7058 = vsub.f32 %v7056, %v7057
      %v7059 = vand.u32 %v7058, 4294901760
      %7060 = vmatpush.xpose.msra.mxu0 %v7059
      %v7061 = vand.u32 %v6995, 4294901760
      %7062 = vmatmul.f32.gmra.mxu0 %v7061
      %v7063 = vpop.f32.mrf.mxu0
      %v7064 = vadd.f32 %v7025, %v7063
      %v7065 = vand.u32 %v6998, 4294901760
      %7066 = vmatmul.f32.gmra.mxu0 %v7065
      %v7067 = vpop.f32.mrf.mxu0
      %v7068 = vadd.f32 %v7033, %v7067
      %7069 = vdwg.mxu0
      %7070 = vmatpush.xpose.msra.mxu0 0.0
      %7071 = vmatpush.xpose.msra.mxu0 0.0
      %7072 = vmatpush.xpose.msra.mxu0 0.0
      %7073 = vmatpush.xpose.msra.mxu0 0.0
      %7074 = vmatpush.xpose.msra.mxu0 0.0
      %7075 = vmatpush.xpose.msra.mxu0 0.0
      %7076 = vmatpush.xpose.msra.mxu0 0.0
      %7077 = vmatpush.xpose.msra.mxu0 0.0
      %7078 = vmatpush.xpose.msra.mxu0 0.0
      %7079 = vmatpush.xpose.msra.mxu0 0.0
      %7080 = vmatpush.xpose.msra.mxu0 0.0
      %7081 = vmatpush.xpose.msra.mxu0 0.0
      %7082 = vmatpush.xpose.msra.mxu0 0.0
      %7083 = vmatpush.xpose.msra.mxu0 0.0
      %v7084 = vand.u32 %v6998, 4294901760
      %v7085 = vsub.f32 %v6998, %v7084
      %7086 = vmatpush.xpose.msra.mxu0 %v7085
      %v7087 = vand.u32 %v6995, 4294901760
      %v7088 = vsub.f32 %v6995, %v7087
      %7089 = vmatpush.xpose.msra.mxu0 %v7088
      %v7090 = vand.u32 %v6995, 4294901760
      %v7091 = vsub.f32 %v6995, %v7090
      %7092 = vmatmul.f32.gmra.mxu0 %v7091
      %v7093 = vpop.f32.mrf.mxu0
      %v7094 = vadd.f32 %v7064, %v7093
      %v7095 = vand.u32 %v6998, 4294901760
      %v7096 = vsub.f32 %v6998, %v7095
      %7097 = vmatmul.f32.gmra.mxu0 %v7096
      %v7098 = vpop.f32.mrf.mxu0
      %v7099 = vadd.f32 %v7068, %v7098
      %7100 = vdwg.mxu0
      %7101 = vmatpush.xpose.msra.mxu0 0.0
      %7102 = vmatpush.xpose.msra.mxu0 0.0
      %7103 = vmatpush.xpose.msra.mxu0 0.0
      %7104 = vmatpush.xpose.msra.mxu0 0.0
      %7105 = vmatpush.xpose.msra.mxu0 0.0
      %7106 = vmatpush.xpose.msra.mxu0 0.0
      %7107 = vmatpush.xpose.msra.mxu0 0.0
      %7108 = vmatpush.xpose.msra.mxu0 0.0
      %7109 = vmatpush.xpose.msra.mxu0 0.0
      %7110 = vmatpush.xpose.msra.mxu0 0.0
      %7111 = vmatpush.xpose.msra.mxu0 0.0
      %7112 = vmatpush.xpose.msra.mxu0 0.0
      %7113 = vmatpush.xpose.msra.mxu0 0.0
      %7114 = vmatpush.xpose.msra.mxu0 0.0
      %v7115 = vand.u32 %v6998, 4294901760
      %7116 = vmatpush.xpose.msra.mxu0 %v7115
      %v7117 = vand.u32 %v6995, 4294901760
      %7118 = vmatpush.xpose.msra.mxu0 %v7117
      %v7119 = vand.u32 %v6995, 4294901760
      %v7120 = vsub.f32 %v6995, %v7119
      %v7121 = vand.u32 %v7120, 4294901760
      %7122 = vmatmul.f32.gmra.mxu0 %v7121
      %v7123 = vpop.f32.mrf.mxu0
      %v7124 = vadd.f32 %v7094, %v7123
      %v7125 = vand.u32 %v6998, 4294901760
      %v7126 = vsub.f32 %v6998, %v7125
      %v7127 = vand.u32 %v7126, 4294901760
      %7128 = vmatmul.f32.gmra.mxu0 %v7127
      %v7129 = vpop.f32.mrf.mxu0
      %v7130 = vadd.f32 %v7099, %v7129
      %7131 = vdwg.mxu0
      %7132 = vmatpush.xpose.msra.mxu0 0.0
      %7133 = vmatpush.xpose.msra.mxu0 0.0
      %7134 = vmatpush.xpose.msra.mxu0 0.0
      %7135 = vmatpush.xpose.msra.mxu0 0.0
      %7136 = vmatpush.xpose.msra.mxu0 0.0
      %7137 = vmatpush.xpose.msra.mxu0 0.0
      %7138 = vmatpush.xpose.msra.mxu0 0.0
      %7139 = vmatpush.xpose.msra.mxu0 0.0
      %7140 = vmatpush.xpose.msra.mxu0 0.0
      %7141 = vmatpush.xpose.msra.mxu0 0.0
      %7142 = vmatpush.xpose.msra.mxu0 0.0
      %7143 = vmatpush.xpose.msra.mxu0 0.0
      %7144 = vmatpush.xpose.msra.mxu0 0.0
      %7145 = vmatpush.xpose.msra.mxu0 0.0
      %v7146 = vand.u32 %v6998, 4294901760
      %v7147 = vsub.f32 %v6998, %v7146
      %v7148 = vand.u32 %v7147, 4294901760
      %7149 = vmatpush.xpose.msra.mxu0 %v7148
      %v7150 = vand.u32 %v6995, 4294901760
      %v7151 = vsub.f32 %v6995, %v7150
      %v7152 = vand.u32 %v7151, 4294901760
      %7153 = vmatpush.xpose.msra.mxu0 %v7152
      %v7154 = vand.u32 %v6995, 4294901760
      %7155 = vmatmul.f32.gmra.mxu0 %v7154
      %v7156 = vpop.f32.mrf.mxu0
      %v7157 = vadd.f32 %v7124, %v7156
      %v7158 = vand.u32 %v6998, 4294901760
      %7159 = vmatmul.f32.gmra.mxu0 %v7158
      %v7160 = vpop.f32.mrf.mxu0
      %v7161 = vadd.f32 %v7130, %v7160
      %7162 = vdwg.mxu0
      %7163 = vmatpush.xpose.msra.mxu0 0.0
      %7164 = vmatpush.xpose.msra.mxu0 0.0
      %7165 = vmatpush.xpose.msra.mxu0 0.0
      %7166 = vmatpush.xpose.msra.mxu0 0.0
      %7167 = vmatpush.xpose.msra.mxu0 0.0
      %7168 = vmatpush.xpose.msra.mxu0 0.0
      %7169 = vmatpush.xpose.msra.mxu0 0.0
      %7170 = vmatpush.xpose.msra.mxu0 0.0
      %7171 = vmatpush.xpose.msra.mxu0 0.0
      %7172 = vmatpush.xpose.msra.mxu0 0.0
      %7173 = vmatpush.xpose.msra.mxu0 0.0
      %7174 = vmatpush.xpose.msra.mxu0 0.0
      %7175 = vmatpush.xpose.msra.mxu0 0.0
      %7176 = vmatpush.xpose.msra.mxu0 0.0
      %v7177 = vand.u32 %v6998, 4294901760
      %7178 = vmatpush.xpose.msra.mxu0 %v7177
      %v7179 = vand.u32 %v6995, 4294901760
      %7180 = vmatpush.xpose.msra.mxu0 %v7179
      %v7181 = vand.u32 %v6995, 4294901760
      %7182 = vmatmul.f32.gmra.mxu0 %v7181
      %v7183 = vpop.f32.mrf.mxu0
      %v7184 = vadd.f32 %v7157, %v7183
      %v7185 = vand.u32 %v6998, 4294901760
      %7186 = vmatmul.f32.gmra.mxu0 %v7185
      %v7187 = vpop.f32.mrf.mxu0
      %v7188 = vadd.f32 %v7161, %v7187
      %7189 = vdwg.mxu0
      %v7190 = vmul.f32 %v7184, %v463
      %v7191 = vmul.f32 %v7188, %v464
      %vm7192 = vcmp.eq.f32.partialorder %v7190, 0.0
      %vm7193 = vcmp.eq.f32.partialorder %v7191, 0.0
      %v7194 = vsel %vm7192, -1e+16, %v7190
      %v7195 = vsel %vm7193, -1e+16, %v7191
      %v7196 = vsel %vm468, %v7194, -inf
      %7197 = vmax.xlane.f32.xlu0 %v7196
      %v7198 = vpop.xlane.xlu0 %7197
      %v7199 = vsel %vm468, %v7195, -inf
      %7200 = vmax.xlane.f32.xlu0 %v7199
      %v7201 = vpop.xlane.xlu0 %7200
      %v7202 = vsub.f32 %v7194, %v7198
      %v7203 = vsub.f32 %v7195, %v7201
      %v7204 = vmul.f32 %v7202, 1.442695
      %v7205 = vpow.pop %v7204
      %v7206 = vmul.f32 %v7203, 1.442695
      %v7207 = vpow.pop %v7206
      %v7208 = vsel %vm468, %v7205, 0.0
      %7209 = vadd.xlane.f32.xlu0 %v7208
      %v7210 = vpop.xlane.xlu0 %7209
      %v7211 = vsel %vm468, %v7207, 0.0
      %7212 = vadd.xlane.f32.xlu0 %v7211
      %v7213 = vpop.xlane.xlu0 %7212
      %v7214 = vrcp.pop %v7210
      %v7215 = vrcp.pop %v7213
      %v7216 = vmul.f32 %v7205, %v7214
      %v7217 = vmul.f32 %v7207, %v7215
      %v7218 = vld [vmem:[%s11] sm:$0x1]
      %v7220 = vperm.slane %v7218, 0
      %v7223 = vsel %vm468, %v7216, 0
      %v7226 = vsel %vm468, %v7217, 0
      %7228 = vmatpush.msra.mxu0 0.0
      %7229 = vmatpush.msra.mxu0 0.0
      %7230 = vmatpush.msra.mxu0 0.0
      %7231 = vmatpush.msra.mxu0 0.0
      %7232 = vmatpush.msra.mxu0 0.0
      %7233 = vmatpush.msra.mxu0 0.0
      %7234 = vmatpush.msra.mxu0 0.0
      %7235 = vmatpush.msra.mxu0 0.0
      %7236 = vmatpush.msra.mxu0 0.0
      %7237 = vmatpush.msra.mxu0 0.0
      %7238 = vmatpush.msra.mxu0 0.0
      %7239 = vmatpush.msra.mxu0 0.0
      %7240 = vmatpush.msra.mxu0 0.0
      %7241 = vmatpush.msra.mxu0 0.0
      %v7242 = vand.u32 %v6993, 4294901760
      %7243 = vmatpush.msra.mxu0 %v7242
      %v7244 = vand.u32 %v6992, 4294901760
      %7245 = vmatpush.msra.mxu0 %v7244
      %v7246 = vand.u32 %v7223, 4294901760
      %v7247 = vsub.f32 %v7223, %v7246
      %v7248 = vand.u32 %v7247, 4294901760
      %v7249 = vsub.f32 %v7247, %v7248
      %v7250 = vand.u32 %v7249, 4294901760
      %7251 = vmatmul.f32.gmra.mxu0 %v7250
      %v7252 = vpop.f32.mrf.mxu0
      %v7253 = vadd.f32 %v7220, %v7252
      %v7254 = vand.u32 %v7226, 4294901760
      %v7255 = vsub.f32 %v7226, %v7254
      %v7256 = vand.u32 %v7255, 4294901760
      %v7257 = vsub.f32 %v7255, %v7256
      %v7258 = vand.u32 %v7257, 4294901760
      %7259 = vmatmul.f32.gmra.mxu0 %v7258
      %v7260 = vpop.f32.mrf.mxu0
      %v7261 = vadd.f32 %v7220, %v7260
      %7262 = vdwg.mxu0
      %7263 = vmatpush.msra.mxu0 0.0
      %7264 = vmatpush.msra.mxu0 0.0
      %7265 = vmatpush.msra.mxu0 0.0
      %7266 = vmatpush.msra.mxu0 0.0
      %7267 = vmatpush.msra.mxu0 0.0
      %7268 = vmatpush.msra.mxu0 0.0
      %7269 = vmatpush.msra.mxu0 0.0
      %7270 = vmatpush.msra.mxu0 0.0
      %7271 = vmatpush.msra.mxu0 0.0
      %7272 = vmatpush.msra.mxu0 0.0
      %7273 = vmatpush.msra.mxu0 0.0
      %7274 = vmatpush.msra.mxu0 0.0
      %7275 = vmatpush.msra.mxu0 0.0
      %7276 = vmatpush.msra.mxu0 0.0
      %v7277 = vand.u32 %v6993, 4294901760
      %v7278 = vsub.f32 %v6993, %v7277
      %v7279 = vand.u32 %v7278, 4294901760
      %v7280 = vsub.f32 %v7278, %v7279
      %v7281 = vand.u32 %v7280, 4294901760
      %7282 = vmatpush.msra.mxu0 %v7281
      %v7283 = vand.u32 %v6992, 4294901760
      %v7284 = vsub.f32 %v6992, %v7283
      %v7285 = vand.u32 %v7284, 4294901760
      %v7286 = vsub.f32 %v7284, %v7285
      %v7287 = vand.u32 %v7286, 4294901760
      %7288 = vmatpush.msra.mxu0 %v7287
      %v7289 = vand.u32 %v7223, 4294901760
      %7290 = vmatmul.f32.gmra.mxu0 %v7289
      %v7291 = vpop.f32.mrf.mxu0
      %v7292 = vadd.f32 %v7253, %v7291
      %v7293 = vand.u32 %v7226, 4294901760
      %7294 = vmatmul.f32.gmra.mxu0 %v7293
      %v7295 = vpop.f32.mrf.mxu0
      %v7296 = vadd.f32 %v7261, %v7295
      %7297 = vdwg.mxu0
      %7298 = vmatpush.msra.mxu0 0.0
      %7299 = vmatpush.msra.mxu0 0.0
      %7300 = vmatpush.msra.mxu0 0.0
      %7301 = vmatpush.msra.mxu0 0.0
      %7302 = vmatpush.msra.mxu0 0.0
      %7303 = vmatpush.msra.mxu0 0.0
      %7304 = vmatpush.msra.mxu0 0.0
      %7305 = vmatpush.msra.mxu0 0.0
      %7306 = vmatpush.msra.mxu0 0.0
      %7307 = vmatpush.msra.mxu0 0.0
      %7308 = vmatpush.msra.mxu0 0.0
      %7309 = vmatpush.msra.mxu0 0.0
      %7310 = vmatpush.msra.mxu0 0.0
      %7311 = vmatpush.msra.mxu0 0.0
      %v7312 = vand.u32 %v6993, 4294901760
      %v7313 = vsub.f32 %v6993, %v7312
      %7314 = vmatpush.msra.mxu0 %v7313
      %v7315 = vand.u32 %v6992, 4294901760
      %v7316 = vsub.f32 %v6992, %v7315
      %7317 = vmatpush.msra.mxu0 %v7316
      %v7318 = vand.u32 %v7223, 4294901760
      %v7319 = vsub.f32 %v7223, %v7318
      %7320 = vmatmul.f32.gmra.mxu0 %v7319
      %v7321 = vpop.f32.mrf.mxu0
      %v7322 = vadd.f32 %v7292, %v7321
      %v7323 = vand.u32 %v7226, 4294901760
      %v7324 = vsub.f32 %v7226, %v7323
      %7325 = vmatmul.f32.gmra.mxu0 %v7324
      %v7326 = vpop.f32.mrf.mxu0
      %v7327 = vadd.f32 %v7296, %v7326
      %7328 = vdwg.mxu0
      %7329 = vmatpush.msra.mxu0 0.0
      %7330 = vmatpush.msra.mxu0 0.0
      %7331 = vmatpush.msra.mxu0 0.0
      %7332 = vmatpush.msra.mxu0 0.0
      %7333 = vmatpush.msra.mxu0 0.0
      %7334 = vmatpush.msra.mxu0 0.0
      %7335 = vmatpush.msra.mxu0 0.0
      %7336 = vmatpush.msra.mxu0 0.0
      %7337 = vmatpush.msra.mxu0 0.0
      %7338 = vmatpush.msra.mxu0 0.0
      %7339 = vmatpush.msra.mxu0 0.0
      %7340 = vmatpush.msra.mxu0 0.0
      %7341 = vmatpush.msra.mxu0 0.0
      %7342 = vmatpush.msra.mxu0 0.0
      %v7343 = vand.u32 %v6993, 4294901760
      %7344 = vmatpush.msra.mxu0 %v7343
      %v7345 = vand.u32 %v6992, 4294901760
      %7346 = vmatpush.msra.mxu0 %v7345
      %v7347 = vand.u32 %v7223, 4294901760
      %v7348 = vsub.f32 %v7223, %v7347
      %v7349 = vand.u32 %v7348, 4294901760
      %7350 = vmatmul.f32.gmra.mxu0 %v7349
      %v7351 = vpop.f32.mrf.mxu0
      %v7352 = vadd.f32 %v7322, %v7351
      %v7353 = vand.u32 %v7226, 4294901760
      %v7354 = vsub.f32 %v7226, %v7353
      %v7355 = vand.u32 %v7354, 4294901760
      %7356 = vmatmul.f32.gmra.mxu0 %v7355
      %v7357 = vpop.f32.mrf.mxu0
      %v7358 = vadd.f32 %v7327, %v7357
      %7359 = vdwg.mxu0
      %7360 = vmatpush.msra.mxu0 0.0
      %7361 = vmatpush.msra.mxu0 0.0
      %7362 = vmatpush.msra.mxu0 0.0
      %7363 = vmatpush.msra.mxu0 0.0
      %7364 = vmatpush.msra.mxu0 0.0
      %7365 = vmatpush.msra.mxu0 0.0
      %7366 = vmatpush.msra.mxu0 0.0
      %7367 = vmatpush.msra.mxu0 0.0
      %7368 = vmatpush.msra.mxu0 0.0
      %7369 = vmatpush.msra.mxu0 0.0
      %7370 = vmatpush.msra.mxu0 0.0
      %7371 = vmatpush.msra.mxu0 0.0
      %7372 = vmatpush.msra.mxu0 0.0
      %7373 = vmatpush.msra.mxu0 0.0
      %v7374 = vand.u32 %v6993, 4294901760
      %v7375 = vsub.f32 %v6993, %v7374
      %v7376 = vand.u32 %v7375, 4294901760
      %7377 = vmatpush.msra.mxu0 %v7376
      %v7378 = vand.u32 %v6992, 4294901760
      %v7379 = vsub.f32 %v6992, %v7378
      %v7380 = vand.u32 %v7379, 4294901760
      %7381 = vmatpush.msra.mxu0 %v7380
      %v7382 = vand.u32 %v7223, 4294901760
      %7383 = vmatmul.f32.gmra.mxu0 %v7382
      %v7384 = vpop.f32.mrf.mxu0
      %v7385 = vadd.f32 %v7352, %v7384
      %v7386 = vand.u32 %v7226, 4294901760
      %7387 = vmatmul.f32.gmra.mxu0 %v7386
      %v7388 = vpop.f32.mrf.mxu0
      %v7389 = vadd.f32 %v7358, %v7388
      %7390 = vdwg.mxu0
      %7391 = vmatpush.msra.mxu0 0.0
      %7392 = vmatpush.msra.mxu0 0.0
      %7393 = vmatpush.msra.mxu0 0.0
      %7394 = vmatpush.msra.mxu0 0.0
      %7395 = vmatpush.msra.mxu0 0.0
      %7396 = vmatpush.msra.mxu0 0.0
      %7397 = vmatpush.msra.mxu0 0.0
      %7398 = vmatpush.msra.mxu0 0.0
      %7399 = vmatpush.msra.mxu0 0.0
      %7400 = vmatpush.msra.mxu0 0.0
      %7401 = vmatpush.msra.mxu0 0.0
      %7402 = vmatpush.msra.mxu0 0.0
      %7403 = vmatpush.msra.mxu0 0.0
      %7404 = vmatpush.msra.mxu0 0.0
      %v7405 = vand.u32 %v6993, 4294901760
      %7406 = vmatpush.msra.mxu0 %v7405
      %v7407 = vand.u32 %v6992, 4294901760
      %7408 = vmatpush.msra.mxu0 %v7407
      %v7409 = vand.u32 %v7223, 4294901760
      %7410 = vmatmul.f32.gmra.mxu0 %v7409
      %v7411 = vpop.f32.mrf.mxu0
      %v7412 = vadd.f32 %v7385, %v7411
      %v7413 = vand.u32 %v7226, 4294901760
      %7414 = vmatmul.f32.gmra.mxu0 %v7413
      %v7415 = vpop.f32.mrf.mxu0
      %v7416 = vadd.f32 %v7389, %v7415
      %7417 = vdwg.mxu0
      %vm7418 = vcmp.ge.f32.partialorder %v7412, 0.0
      %vm7419 = vcmp.ge.f32.partialorder %v7416, 0.0
      %v7420 = vmul.f32 %v7412, 0.2
      %v7421 = vmul.f32 %v7416, 0.2
      %v7422 = vsel %vm7418, %v7412, %v7420
      %v7423 = vsel %vm7419, %v7416, %v7421
      %v7424 = vld [vmem:[%s12] sm:$0x7]
      %v7425 = vld [vmem:[%s13] sm:$0x7]
      %7427 = vset.pattern.permute.xlu0 0
      %7428 = vperm.xlu0 %7427, %v7425
      %v7429 = vpop.permute.xlu0 %7428
      %v7432 = vsel %vm468, %v7424, 0
      %v7435 = vsel %vm468, %v7422, 0
      %v7438 = vsel %vm468, %v7423, 0
      %7440 = vmatpush.xpose.msra.mxu0 0.0
      %7441 = vmatpush.xpose.msra.mxu0 0.0
      %7442 = vmatpush.xpose.msra.mxu0 0.0
      %7443 = vmatpush.xpose.msra.mxu0 0.0
      %7444 = vmatpush.xpose.msra.mxu0 0.0
      %7445 = vmatpush.xpose.msra.mxu0 0.0
      %7446 = vmatpush.xpose.msra.mxu0 0.0
      %7447 = vmatpush.xpose.msra.mxu0 0.0
      %7448 = vmatpush.xpose.msra.mxu0 0.0
      %7449 = vmatpush.xpose.msra.mxu0 0.0
      %7450 = vmatpush.xpose.msra.mxu0 0.0
      %7451 = vmatpush.xpose.msra.mxu0 0.0
      %7452 = vmatpush.xpose.msra.mxu0 0.0
      %7453 = vmatpush.xpose.msra.mxu0 0.0
      %v7454 = vand.u32 %v7438, 4294901760
      %7455 = vmatpush.xpose.msra.mxu0 %v7454
      %v7456 = vand.u32 %v7435, 4294901760
      %7457 = vmatpush.xpose.msra.mxu0 %v7456
      %v7458 = vand.u32 %v7432, 4294901760
      %v7459 = vsub.f32 %v7432, %v7458
      %v7460 = vand.u32 %v7459, 4294901760
      %v7461 = vsub.f32 %v7459, %v7460
      %v7462 = vand.u32 %v7461, 4294901760
      %7463 = vmatmul.f32.gmra.mxu0 %v7462
      %v7464 = vpop.f32.mrf.mxu0
      %v7465 = vadd.f32 %v7429, %v7464
      %7466 = vdwg.mxu0
      %7467 = vmatpush.xpose.msra.mxu0 0.0
      %7468 = vmatpush.xpose.msra.mxu0 0.0
      %7469 = vmatpush.xpose.msra.mxu0 0.0
      %7470 = vmatpush.xpose.msra.mxu0 0.0
      %7471 = vmatpush.xpose.msra.mxu0 0.0
      %7472 = vmatpush.xpose.msra.mxu0 0.0
      %7473 = vmatpush.xpose.msra.mxu0 0.0
      %7474 = vmatpush.xpose.msra.mxu0 0.0
      %7475 = vmatpush.xpose.msra.mxu0 0.0
      %7476 = vmatpush.xpose.msra.mxu0 0.0
      %7477 = vmatpush.xpose.msra.mxu0 0.0
      %7478 = vmatpush.xpose.msra.mxu0 0.0
      %7479 = vmatpush.xpose.msra.mxu0 0.0
      %7480 = vmatpush.xpose.msra.mxu0 0.0
      %v7481 = vand.u32 %v7438, 4294901760
      %v7482 = vsub.f32 %v7438, %v7481
      %v7483 = vand.u32 %v7482, 4294901760
      %v7484 = vsub.f32 %v7482, %v7483
      %v7485 = vand.u32 %v7484, 4294901760
      %7486 = vmatpush.xpose.msra.mxu0 %v7485
      %v7487 = vand.u32 %v7435, 4294901760
      %v7488 = vsub.f32 %v7435, %v7487
      %v7489 = vand.u32 %v7488, 4294901760
      %v7490 = vsub.f32 %v7488, %v7489
      %v7491 = vand.u32 %v7490, 4294901760
      %7492 = vmatpush.xpose.msra.mxu0 %v7491
      %v7493 = vand.u32 %v7432, 4294901760
      %7494 = vmatmul.f32.gmra.mxu0 %v7493
      %v7495 = vpop.f32.mrf.mxu0
      %v7496 = vadd.f32 %v7465, %v7495
      %7497 = vdwg.mxu0
      %7498 = vmatpush.xpose.msra.mxu0 0.0
      %7499 = vmatpush.xpose.msra.mxu0 0.0
      %7500 = vmatpush.xpose.msra.mxu0 0.0
      %7501 = vmatpush.xpose.msra.mxu0 0.0
      %7502 = vmatpush.xpose.msra.mxu0 0.0
      %7503 = vmatpush.xpose.msra.mxu0 0.0
      %7504 = vmatpush.xpose.msra.mxu0 0.0
      %7505 = vmatpush.xpose.msra.mxu0 0.0
      %7506 = vmatpush.xpose.msra.mxu0 0.0
      %7507 = vmatpush.xpose.msra.mxu0 0.0
      %7508 = vmatpush.xpose.msra.mxu0 0.0
      %7509 = vmatpush.xpose.msra.mxu0 0.0
      %7510 = vmatpush.xpose.msra.mxu0 0.0
      %7511 = vmatpush.xpose.msra.mxu0 0.0
      %v7512 = vand.u32 %v7438, 4294901760
      %v7513 = vsub.f32 %v7438, %v7512
      %7514 = vmatpush.xpose.msra.mxu0 %v7513
      %v7515 = vand.u32 %v7435, 4294901760
      %v7516 = vsub.f32 %v7435, %v7515
      %7517 = vmatpush.xpose.msra.mxu0 %v7516
      %v7518 = vand.u32 %v7432, 4294901760
      %v7519 = vsub.f32 %v7432, %v7518
      %7520 = vmatmul.f32.gmra.mxu0 %v7519
      %v7521 = vpop.f32.mrf.mxu0
      %v7522 = vadd.f32 %v7496, %v7521
      %7523 = vdwg.mxu0
      %7524 = vmatpush.xpose.msra.mxu0 0.0
      %7525 = vmatpush.xpose.msra.mxu0 0.0
      %7526 = vmatpush.xpose.msra.mxu0 0.0
      %7527 = vmatpush.xpose.msra.mxu0 0.0
      %7528 = vmatpush.xpose.msra.mxu0 0.0
      %7529 = vmatpush.xpose.msra.mxu0 0.0
      %7530 = vmatpush.xpose.msra.mxu0 0.0
      %7531 = vmatpush.xpose.msra.mxu0 0.0
      %7532 = vmatpush.xpose.msra.mxu0 0.0
      %7533 = vmatpush.xpose.msra.mxu0 0.0
      %7534 = vmatpush.xpose.msra.mxu0 0.0
      %7535 = vmatpush.xpose.msra.mxu0 0.0
      %7536 = vmatpush.xpose.msra.mxu0 0.0
      %7537 = vmatpush.xpose.msra.mxu0 0.0
      %v7538 = vand.u32 %v7438, 4294901760
      %7539 = vmatpush.xpose.msra.mxu0 %v7538
      %v7540 = vand.u32 %v7435, 4294901760
      %7541 = vmatpush.xpose.msra.mxu0 %v7540
      %v7542 = vand.u32 %v7432, 4294901760
      %v7543 = vsub.f32 %v7432, %v7542
      %v7544 = vand.u32 %v7543, 4294901760
      %7545 = vmatmul.f32.gmra.mxu0 %v7544
      %v7546 = vpop.f32.mrf.mxu0
      %v7547 = vadd.f32 %v7522, %v7546
      %7548 = vdwg.mxu0
      %7549 = vmatpush.xpose.msra.mxu0 0.0
      %7550 = vmatpush.xpose.msra.mxu0 0.0
      %7551 = vmatpush.xpose.msra.mxu0 0.0
      %7552 = vmatpush.xpose.msra.mxu0 0.0
      %7553 = vmatpush.xpose.msra.mxu0 0.0
      %7554 = vmatpush.xpose.msra.mxu0 0.0
      %7555 = vmatpush.xpose.msra.mxu0 0.0
      %7556 = vmatpush.xpose.msra.mxu0 0.0
      %7557 = vmatpush.xpose.msra.mxu0 0.0
      %7558 = vmatpush.xpose.msra.mxu0 0.0
      %7559 = vmatpush.xpose.msra.mxu0 0.0
      %7560 = vmatpush.xpose.msra.mxu0 0.0
      %7561 = vmatpush.xpose.msra.mxu0 0.0
      %7562 = vmatpush.xpose.msra.mxu0 0.0
      %v7563 = vand.u32 %v7438, 4294901760
      %v7564 = vsub.f32 %v7438, %v7563
      %v7565 = vand.u32 %v7564, 4294901760
      %7566 = vmatpush.xpose.msra.mxu0 %v7565
      %v7567 = vand.u32 %v7435, 4294901760
      %v7568 = vsub.f32 %v7435, %v7567
      %v7569 = vand.u32 %v7568, 4294901760
      %7570 = vmatpush.xpose.msra.mxu0 %v7569
      %v7571 = vand.u32 %v7432, 4294901760
      %7572 = vmatmul.f32.gmra.mxu0 %v7571
      %v7573 = vpop.f32.mrf.mxu0
      %v7574 = vadd.f32 %v7547, %v7573
      %7575 = vdwg.mxu0
      %7576 = vmatpush.xpose.msra.mxu0 0.0
      %7577 = vmatpush.xpose.msra.mxu0 0.0
      %7578 = vmatpush.xpose.msra.mxu0 0.0
      %7579 = vmatpush.xpose.msra.mxu0 0.0
      %7580 = vmatpush.xpose.msra.mxu0 0.0
      %7581 = vmatpush.xpose.msra.mxu0 0.0
      %7582 = vmatpush.xpose.msra.mxu0 0.0
      %7583 = vmatpush.xpose.msra.mxu0 0.0
      %7584 = vmatpush.xpose.msra.mxu0 0.0
      %7585 = vmatpush.xpose.msra.mxu0 0.0
      %7586 = vmatpush.xpose.msra.mxu0 0.0
      %7587 = vmatpush.xpose.msra.mxu0 0.0
      %7588 = vmatpush.xpose.msra.mxu0 0.0
      %7589 = vmatpush.xpose.msra.mxu0 0.0
      %v7590 = vand.u32 %v7438, 4294901760
      %7591 = vmatpush.xpose.msra.mxu0 %v7590
      %v7592 = vand.u32 %v7435, 4294901760
      %7593 = vmatpush.xpose.msra.mxu0 %v7592
      %v7594 = vand.u32 %v7432, 4294901760
      %7595 = vmatmul.f32.gmra.mxu0 %v7594
      %v7596 = vpop.f32.mrf.mxu0
      %v7597 = vadd.f32 %v7574, %v7596
      %7598 = vdwg.mxu0
      %vm7599 = vcmask 124928
      %7600 = vst.msk [vmem:[%s462] sm:$0x7] %vm7599, %v7597
      %p7601 = scmp.lt.s32.totalorder %s25, 1
      %s7602 = scalar_select %p7601, %s25, 1
      %s7603 = smul.addr %s7602, 4
      %s7604 = scalar_lea.vmem %s14, %s7603
      // Predicated region
      $region77: #{tpu_custom_call.1} parent=75 // pred_check
        %p7605 = pneg %p342
      $region78: #{tpu_custom_call.1} parent=75 // pred_check_branch
        %7607 = sbr.rel (%p7605) target = $region80
      $region79: #{tpu_custom_call.1} parent=75 // pred_region
        _
      $region80: #{tpu_custom_call.1} parent=75 // pred_fallthru
        _
    $region76: #{tpu_custom_call.1} parent=5 // pred_fallthru
      _
    %p7608 = scmp.le.s32.totalorder 2, %s20
    // Predicated region
    $region81: #{tpu_custom_call.1} parent=5 // pred_check
      %p7609 = pneg %p7608
    $region82: #{tpu_custom_call.1} parent=5 // pred_check_branch
      %7611 = sbr.rel (%p7609) target = $region84
    $region83: #{tpu_custom_call.1} parent=5 // pred_region
      %s7612 = ssub.s32 %s20, 2
      // Predicated region
      $region85: #{tpu_custom_call.1} parent=83 // pred_check
        %p7613 = pneg %p348
      $region86: #{tpu_custom_call.1} parent=83 // pred_check_branch
        %7615 = sbr.rel (%p7613) target = $region88
      $region87: #{tpu_custom_call.1} parent=83 // pred_region
        %p7616 = scmp.lt.s32.totalorder %s26, 1
        %s7617 = scalar_select %p7616, %s26, 1
        %s7618 = smul.addr %s7617, 4
        %s7619 = scalar_lea.vmem %s14, %s7618
      $region88: #{tpu_custom_call.1} parent=83 // pred_fallthru
        _
    $region84: #{tpu_custom_call.1} parent=5 // pred_fallthru
      _
  $region6: #{tpu_custom_call.1} parent=0 // loop_footer
    %s24 = sadd.s32 1, %s20
  $region7: #{tpu_custom_call.1} parent=0 // loop_footer_branch
    %19 = sbr.rel target = $region3
  $region8: #{tpu_custom_call.1} parent=0 // loop_exit
    _

</llo_original>
